<compile_context>
chip_gen: v7x
topology: tpu7x:2x2x1
jax: 0.10.0
libtpu: 0.0.40
codegen_flags: <defaults>
</compile_context>

<pallas_src>
import numpy as np
import jax
import jax.numpy as jnp
from jax import lax
from jax.experimental import pallas as pl
from jax.experimental.pallas import tpu as pltpu

VOCAB_SIZE = 50265


def _cdiv(a, b):
    return -(-a // b)


def _pick_tk(V, Q, D, target_tiles=2, vmem_budget_bytes=12 * 1024 * 1024):
    """Vocab tile width: ~target_tiles tiles (multiple of 128), capped so
    double-buffered f32 input tiles stay within a conservative VMEM budget
    (portable across v5e/v6e/v7x).  With Q=D=8 the cap never binds."""
    tk = _cdiv(_cdiv(V, target_tiles), 128) * 128
    bytes_per_lane = 2 * (1 + Q + D) * 4          # double-buffered f32 rows
    max_tk = max(128, (vmem_budget_bytes // bytes_per_lane) // 128 * 128)
    return max(128, min(tk, max_tk))


def _make_scores_kernel(V, tk, n_tiles):
    last_is_partial = (V % tk) != 0

    def kernel(eb_ref, w_ref, q_ref, d_ref, out_ref):
        k = pl.program_id(0)
        eb = eb_ref[0]                                   # exp(beta), f32 in SMEM

        w = w_ref[...]                                   # (1, tk)
        q = q_ref[...]                                   # (Q, tk)
        d = d_ref[...]                                   # (D, tk)

        def unmasked(w, q, d):
            return w * q, d

        if last_is_partial:
            # Only the final tile has out-of-range lanes; mask BOTH operands
            # there so garbage (even NaN/Inf) contributes exactly 0.  The
            # selects + iota compare are skipped on all earlier steps.
            def masked(w, q, d):
                col = lax.broadcasted_iota(jnp.int32, (1, tk), 1)
                valid = (k * tk + col) < V               # (1, tk) bool
                return jnp.where(valid, w * q, 0.0), jnp.where(valid, d, 0.0)

            wz, dm = lax.cond(k == n_tiles - 1, masked, unmasked, w, q, d)
        else:
            wz, dm = unmasked(w, q, d)

        # func = d / (d + exp(beta)) via EUP approximate reciprocal.
        func = dm * pl.reciprocal(dm + eb, approx=True)  # (D, tk)

        # 'dk,qk->dq' -- contraction on the last dim of both operands (no
        # materialized transpose).  bf16 operands -> single-pass MXU, f32 acc.
        contrib = lax.dot_general(
            func.astype(jnp.bfloat16), wz.astype(jnp.bfloat16),
            (((1,), (1,)), ((), ())),
            preferred_element_type=jnp.float32)          # (D, Q)

        @pl.when(k == 0)
        def _():
            out_ref[...] = contrib

        @pl.when(k > 0)
        def _():
            out_ref[...] += contrib

    return kernel


def our_model_forward(weights, beta, queries, doc_features, *, tk=None):
    """weights: (V,), beta: (1,), queries: (Q, V), doc_features: (D, V) -> (D, Q)."""
    Q, V = queries.shape
    D, Vd = doc_features.shape
    assert V == Vd == weights.shape[0]

    if tk is None:
        tk = _pick_tk(V, Q, D)
    n_tiles = _cdiv(V, tk)

    w2 = weights.astype(jnp.float32).reshape(1, V)       # tiny reshape only
    qf = queries.astype(jnp.float32)
    df = doc_features.astype(jnp.float32)
    eb = jnp.exp(beta.astype(jnp.float32)).reshape(1,)   # exp(beta) once, scalar

    kernel = _make_scores_kernel(V, tk, n_tiles)

    return pl.pallas_call(
        kernel,
        out_shape=jax.ShapeDtypeStruct((D, Q), jnp.float32),
        grid_spec=pltpu.PrefetchScalarGridSpec(
            num_scalar_prefetch=0,
            grid=(n_tiles,),
            in_specs=[
                pl.BlockSpec(memory_space=pltpu.MemorySpace.SMEM),  # exp(beta)
                pl.BlockSpec((1, tk), lambda k: (0, k)),            # weights tile
                pl.BlockSpec((Q, tk), lambda k: (0, k)),            # queries tile
                pl.BlockSpec((D, tk), lambda k: (0, k)),            # doc tile
            ],
            out_specs=pl.BlockSpec((D, Q), lambda k: (0, 0)),       # resident acc
        ),
        compiler_params=pltpu.CompilerParams(
            dimension_semantics=("arbitrary",)),   # vocab reduction axis
    )(eb, w2, qf, df)


if __name__ == "__main__":
    key = jax.random.PRNGKey(0)
    k1, k2, k3, k4 = jax.random.split(key, 4)

    Q, D = 8, 8  # small number of queries / docs; vocab fixed by the module
    weights = jax.random.uniform(k1, (VOCAB_SIZE,), dtype=jnp.float32)  # torch.rand analogue
    beta = jax.random.uniform(k2, (1,), dtype=jnp.float32)
    queries = jax.random.uniform(k3, (Q, VOCAB_SIZE), dtype=jnp.float32)
    doc_features = jax.random.uniform(k4, (D, VOCAB_SIZE), dtype=jnp.float32)

    scores = jax.block_until_ready(
        our_model_forward(weights, beta, queries, doc_features))
    assert scores.shape == (D, Q)

    # Pure-numpy float64 reference for correctness.
    w_np = np.asarray(weights, dtype=np.float64)
    b_np = np.asarray(beta, dtype=np.float64)
    q_np = np.asarray(queries, dtype=np.float64)
    d_np = np.asarray(doc_features, dtype=np.float64)
    wz = w_np * q_np                              # (Q, V)
    func = d_np / (d_np + np.exp(b_np))           # (D, V)
    ref = func @ wz.T                             # (D, Q)

    np.testing.assert_allclose(np.asarray(scores, dtype=np.float64), ref,
                               rtol=5e-3, atol=1e-1)
    print("KERNEL_OK")
</pallas_src>

<mosaic_0001>
module attributes {stable_mosaic.version = 11 : i64} {
  func.func @kernel(%arg0: i32, %arg1: memref<1xf32, #tpu.memory_space<smem>>, %arg2: memref<1x25216xf32, #tpu.memory_space<vmem>>, %arg3: memref<8x25216xf32, #tpu.memory_space<vmem>>, %arg4: memref<8x25216xf32, #tpu.memory_space<vmem>>, %arg5: memref<8x8xf32, #tpu.memory_space<vmem>>) attributes {dimension_semantics = [#tpu.dimension_semantics<arbitrary>], iteration_bounds = array<i64: 2>, scalar_prefetch = 0 : i64, scratch_operands = 0 : i64, tpu.core_type = #tpu.core_type<tc>, window_params = [{transform_indices = @transform_0, window_bounds = array<i64: 1>}, {transform_indices = @transform_1, window_bounds = array<i64: 1, 25216>}, {transform_indices = @transform_2, window_bounds = array<i64: 8, 25216>}, {transform_indices = @transform_3, window_bounds = array<i64: 8, 25216>}, {pipeline_mode = #tpu.pipeline_mode<synchronous>, transform_indices = @transform_4, window_bounds = array<i64: 8, 8>}]} {
    %c0 = arith.constant 0 : index
    %0 = memref.load %arg1[%c0] : memref<1xf32, #tpu.memory_space<smem>>
    %c0_0 = arith.constant 0 : index
    %c0_1 = arith.constant 0 : index
    %1 = vector.load %arg2[%c0_0, %c0_1] : memref<1x25216xf32, #tpu.memory_space<vmem>>, vector<1x25216xf32>
    %c0_2 = arith.constant 0 : index
    %c0_3 = arith.constant 0 : index
    %2 = vector.load %arg3[%c0_2, %c0_3] : memref<8x25216xf32, #tpu.memory_space<vmem>>, vector<8x25216xf32>
    %c0_4 = arith.constant 0 : index
    %c0_5 = arith.constant 0 : index
    %3 = vector.load %arg4[%c0_4, %c0_5] : memref<8x25216xf32, #tpu.memory_space<vmem>>, vector<8x25216xf32>
    %c1_i32 = arith.constant 1 : i32
    %4 = arith.cmpi eq, %arg0, %c1_i32 : i32
    %5 = arith.extui %4 : i1 to i32
    %c0_i32 = arith.constant 0 : i32
    %6 = arith.cmpi ne, %5, %c0_i32 : i32
    %7:2 = scf.if %6 -> (vector<8x25216xf32>, vector<8x25216xf32>) {
      %21 = tpu.iota {dimensions = array<i32: 1>} : vector<1x25216xi32>
      %c25216_i32 = arith.constant 25216 : i32
      %22 = arith.muli %arg0, %c25216_i32 : i32
      %23 = vector.broadcast %22 : i32 to vector<1x25216xi32>
      %24 = arith.addi %23, %21 : vector<1x25216xi32>
      %c50265_i32 = arith.constant 50265 : i32
      %25 = vector.broadcast %c50265_i32 : i32 to vector<1x25216xi32>
      %26 = arith.cmpi slt, %24, %25 : vector<1x25216xi32>
      %27 = vector.broadcast %1 : vector<1x25216xf32> to vector<8x25216xf32>
      %28 = arith.mulf %27, %2 : vector<8x25216xf32>
      %cst_10 = arith.constant 0.000000e+00 : f32
      %29 = vector.shape_cast %26 : vector<1x25216xi1> to vector<1x25216xi1>
      %30 = vector.broadcast %29 : vector<1x25216xi1> to vector<8x25216xi1>
      %31 = vector.broadcast %cst_10 : f32 to vector<8x25216xf32>
      %32 = arith.select %30, %28, %31 : vector<8x25216xi1>, vector<8x25216xf32>
      %cst_11 = arith.constant 0.000000e+00 : f32
      %33 = vector.shape_cast %26 : vector<1x25216xi1> to vector<1x25216xi1>
      %34 = vector.broadcast %33 : vector<1x25216xi1> to vector<8x25216xi1>
      %35 = vector.broadcast %cst_11 : f32 to vector<8x25216xf32>
      %36 = arith.select %34, %3, %35 : vector<8x25216xi1>, vector<8x25216xf32>
      scf.yield %32, %36 : vector<8x25216xf32>, vector<8x25216xf32>
    } else {
      %21 = vector.broadcast %1 : vector<1x25216xf32> to vector<8x25216xf32>
      %22 = arith.mulf %21, %2 : vector<8x25216xf32>
      scf.yield %22, %3 : vector<8x25216xf32>, vector<8x25216xf32>
    }
    %8 = vector.broadcast %0 : f32 to vector<8x25216xf32>
    %9 = arith.addf %7#1, %8 : vector<8x25216xf32>
    %10 = tpu.reciprocal %9 {approx = true} : vector<8x25216xf32> -> vector<8x25216xf32>
    %11 = arith.mulf %7#1, %10 : vector<8x25216xf32>
    %12 = arith.truncf %11 : vector<8x25216xf32> to vector<8x25216xbf16>
    %13 = arith.truncf %7#0 : vector<8x25216xf32> to vector<8x25216xbf16>
    %cst = arith.constant dense<0.000000e+00> : vector<8x8xf32>
    %14 = tpu.matmul %12, %13, %cst {dimension_numbers = #tpu.dot_dimension_numbers<[1], [1], [0], [0], [0, 0, 1, 0], [], []>} : vector<8x25216xbf16>, vector<8x25216xbf16>, vector<8x8xf32> -> vector<8x8xf32>
    %c0_i32_6 = arith.constant 0 : i32
    %15 = arith.cmpi eq, %arg0, %c0_i32_6 : i32
    %16 = arith.extui %15 : i1 to i32
    %c0_i32_7 = arith.constant 0 : i32
    %17 = arith.cmpi ne, %16, %c0_i32_7 : i32
    scf.if %17 {
      %c0_10 = arith.constant 0 : index
      %c0_11 = arith.constant 0 : index
      %21 = vector.load %arg5[%c0_10, %c0_11] : memref<8x8xf32, #tpu.memory_space<vmem>>, vector<8x8xf32>
      tpu.vector_store %arg5[%c0_10, %c0_11], %14 {strides = array<i32>} : memref<8x8xf32, #tpu.memory_space<vmem>>, vector<8x8xf32>,
    } else {
    }
    %c0_i32_8 = arith.constant 0 : i32
    %18 = arith.cmpi sgt, %arg0, %c0_i32_8 : i32
    %19 = arith.extui %18 : i1 to i32
    %c0_i32_9 = arith.constant 0 : i32
    %20 = arith.cmpi ne, %19, %c0_i32_9 : i32
    scf.if %20 {
      %c0_10 = arith.constant 0 : index
      %c0_11 = arith.constant 0 : index
      %21 = vector.load %arg5[%c0_10, %c0_11] : memref<8x8xf32, #tpu.memory_space<vmem>>, vector<8x8xf32>
      %22 = arith.addf %21, %14 : vector<8x8xf32>
      %c0_12 = arith.constant 0 : index
      %c0_13 = arith.constant 0 : index
      %23 = vector.load %arg5[%c0_12, %c0_13] : memref<8x8xf32, #tpu.memory_space<vmem>>, vector<8x8xf32>
      tpu.vector_store %arg5[%c0_12, %c0_13], %22 {strides = array<i32>} : memref<8x8xf32, #tpu.memory_space<vmem>>, vector<8x8xf32>,
    } else {
    }
    return
  }
  func.func @transform_0(%arg0: i32) -> i32 {
    %c0_i32 = arith.constant 0 : i32
    %c0_i32_0 = arith.constant 0 : i32
    return %c0_i32 : i32
  }
  func.func @transform_1(%arg0: i32) -> (i32, i32) {
    %c0_i32 = arith.constant 0 : i32
    %c0_i32_0 = arith.constant 0 : i32
    return %c0_i32, %arg0 : i32, i32
  }
  func.func @transform_2(%arg0: i32) -> (i32, i32) {
    %c0_i32 = arith.constant 0 : i32
    %c0_i32_0 = arith.constant 0 : i32
    return %c0_i32, %arg0 : i32, i32
  }
  func.func @transform_3(%arg0: i32) -> (i32, i32) {
    %c0_i32 = arith.constant 0 : i32
    %c0_i32_0 = arith.constant 0 : i32
    return %c0_i32, %arg0 : i32, i32
  }
  func.func @transform_4(%arg0: i32) -> (i32, i32) {
    %c0_i32 = arith.constant 0 : i32
    %c0_i32_0 = arith.constant 0 : i32
    %c0_i32_1 = arith.constant 0 : i32
    return %c0_i32, %c0_i32_0 : i32, i32
  }
}

</mosaic_0001>

<llo_original>
// kernel: tpu_custom_call.1
$region0: #{tpu_custom_call.1}
  #allocation0 [shape = 'u32[]', space=smem, size = 0x4, offset = 0x4, fixed_abs, tag = 'smem constant byte address 0x4 - core index']
  #allocation1 [shape = 'u32[144,128]{1,0:T(1,128)}', space=vmem, size = 0x12000, scoped, tag = 'internal scratch']
  #allocation2 [shape = 'f32[1]{0:T(128)S(6)}', space=smem, size = 0x200, scoped, tag = 'scoped memory for tpu_custom_call.1']
  %s0 = inlined_call_operand.<no memory space> [shape: f32[1], index: 0, kind: input, shape index: {}]
  %s1 = inlined_call_operand.hbm [shape: f32[1,50265], index: 1, kind: input, shape index: {}]
  %s2 = inlined_call_operand.hbm [shape: f32[8,50265], index: 2, kind: input, shape index: {}]
  %s3 = inlined_call_operand.hbm [shape: f32[8,50265], index: 3, kind: input, shape index: {}]
  %s4 = inlined_call_operand.hbm [shape: f32[8,8], index: 4, kind: output, shape index: {}]
  %s5 = sld [smem:[#allocation0]]
  $region77: #{tpu_custom_call.1} parent=0
    _
  %s7 = ssub.s32 1, %s5
  %s8 = scalar_select 0, %s7, %s5
  %9 = sst [smem:[#allocation2]] %s0
  $region1: #{tpu_custom_call.1} parent=0
    #allocation3 [shape = 'u8[201728]{0}', space=vmem, size = 0x31400, scoped, tag = 'input window, operand 1']
    #allocation4 [shape = 's32[2]{0}', space=sflag, size = 0x8, scoped, tag = 'scoped memory for tpu_custom_call.1']
    #allocation5 [shape = 's32[2]{0}', space=sflag, size = 0x8, scoped, tag = 'scoped memory for tpu_custom_call.1']
    #allocation6 [shape = 'u8[1613824]{0}', space=vmem, size = 0x18a000, scoped, tag = 'input window, operand 2']
    #allocation7 [shape = 's32[2]{0}', space=sflag, size = 0x8, scoped, tag = 'scoped memory for tpu_custom_call.1']
    #allocation8 [shape = 'u8[1613824]{0}', space=vmem, size = 0x18a000, scoped, tag = 'input window, operand 3']
    #allocation9 [shape = 'u8[4096]{0}', space=vmem, size = 0x1000, scoped, tag = 'output window, operand 0, single buffered']
    %10 = vsyncpa [#allocation4], 0
    %s11 = scalar_lea.sflag [#allocation4], 1
    %12 = vsyncpa %s11, 0
    %13 = vsyncpa [#allocation7], 0
    %s14 = scalar_lea.sflag [#allocation7], 1
    %15 = vsyncpa %s14, 0
    %16 = vsyncpa [#allocation5], 0
    loop: start=0, step=1, limit=4
    $region2: #{tpu_custom_call.1} parent=1 // loop_pre_header
      _
    $region3: #{tpu_custom_call.1} parent=1 // loop_header
      %s18 = sphi 0, %s22
      %p19 = scmp.ge.s32.totalorder %s18, 4
      %s26 = sphi 0, %s26
      %s28 = sphi 0, %s26
      %s29 = sphi 0, %s28
      %s43 = sphi 0, %s29
      %s49 = sphi 0, %s51
      %s52 = sphi 0, %s49
      %s53 = sphi 0, %s52
      %s69 = sphi 0, %s53
      %s75 = sphi 0, %s77
      %s78 = sphi 0, %s75
      %s79 = sphi 0, %s78
      %s95 = sphi 0, %s79
      %s101 = sphi 0, %s103
      %s104 = sphi 0, %s101
      %s105 = sphi 0, %s104
      %s121 = sphi 0, %s105
      %s125 = sphi 0, %s125
      %s127 = sphi 0, %s125
      %s128 = sphi 0, %s127
      %s142 = sphi 0, %s128
    $region4: #{tpu_custom_call.1} parent=1 // loop_header_branch
      %21 = sbr.rel (%p19) target = $region8
    $region5: #{tpu_custom_call.1} parent=1 // loop_body
      %s23 = ssub.s32 %s18, 1
      %s24 = ssub.s32 %s18, 2
      %s25 = sadd.s32 %s18, 1
      %s27 = sadd.s32 %s26, 1
      %p30 = scmp.eq.s32.totalorder %s18, 1
      %p31 = scmp.ne.s32.totalorder %s26, %s28
      %p32 = scmp.eq.s32.totalorder %s18, 0
      %p33 = por %p31, %p32
      %p34 = scmp.ne.s32.totalorder %s26, %s28
      %p35 = scmp.eq.s32.totalorder %s23, 1
      %p36 = por %p34, %p35
      %p37 = scmp.ne.s32.totalorder %s28, %s29
      %p38 = scmp.eq.s32.totalorder %s23, 0
      %p39 = por %p37, %p38
      %p40 = scmp.ne.s32.totalorder %s28, %s29
      %p41 = scmp.eq.s32.totalorder %s24, 1
      %p42 = por %p40, %p41
      %p44 = scmp.ne.s32.totalorder %s29, %s43
      %p45 = scmp.eq.s32.totalorder %s24, 0
      %p46 = por %p44, %p45
      %s47 = ssub.s32 %s18, %s25
      %p48 = scmp.eq.s32.totalorder %s47, 0
      %s50 = sadd.s32 %s49, 1
      %s51 = scalar_select %p48, %s49, %s50
      %p54 = pneg %p48
      %p55 = scmp.eq.s32.totalorder %s18, 1
      %p56 = por %p54, %p55
      %p57 = scmp.ne.s32.totalorder %s49, %s52
      %p58 = scmp.eq.s32.totalorder %s18, 0
      %p59 = por %p57, %p58
      %p60 = scmp.ne.s32.totalorder %s49, %s52
      %p61 = scmp.eq.s32.totalorder %s23, 1
      %p62 = por %p60, %p61
      %p63 = scmp.ne.s32.totalorder %s52, %s53
      %p64 = scmp.eq.s32.totalorder %s23, 0
      %p65 = por %p63, %p64
      %p66 = scmp.ne.s32.totalorder %s52, %s53
      %p67 = scmp.eq.s32.totalorder %s24, 1
      %p68 = por %p66, %p67
      %p70 = scmp.ne.s32.totalorder %s53, %s69
      %p71 = scmp.eq.s32.totalorder %s24, 0
      %p72 = por %p70, %p71
      %s73 = ssub.s32 %s18, %s25
      %p74 = scmp.eq.s32.totalorder %s73, 0
      %s76 = sadd.s32 %s75, 1
      %s77 = scalar_select %p74, %s75, %s76
      %p80 = pneg %p74
      %p81 = scmp.eq.s32.totalorder %s18, 1
      %p82 = por %p80, %p81
      %p83 = scmp.ne.s32.totalorder %s75, %s78
      %p84 = scmp.eq.s32.totalorder %s18, 0
      %p85 = por %p83, %p84
      %p86 = scmp.ne.s32.totalorder %s75, %s78
      %p87 = scmp.eq.s32.totalorder %s23, 1
      %p88 = por %p86, %p87
      %p89 = scmp.ne.s32.totalorder %s78, %s79
      %p90 = scmp.eq.s32.totalorder %s23, 0
      %p91 = por %p89, %p90
      %p92 = scmp.ne.s32.totalorder %s78, %s79
      %p93 = scmp.eq.s32.totalorder %s24, 1
      %p94 = por %p92, %p93
      %p96 = scmp.ne.s32.totalorder %s79, %s95
      %p97 = scmp.eq.s32.totalorder %s24, 0
      %p98 = por %p96, %p97
      %s99 = ssub.s32 %s18, %s25
      %p100 = scmp.eq.s32.totalorder %s99, 0
      %s102 = sadd.s32 %s101, 1
      %s103 = scalar_select %p100, %s101, %s102
      %p106 = pneg %p100
      %p107 = scmp.eq.s32.totalorder %s18, 1
      %p108 = por %p106, %p107
      %p109 = scmp.ne.s32.totalorder %s101, %s104
      %p110 = scmp.eq.s32.totalorder %s18, 0
      %p111 = por %p109, %p110
      %p112 = scmp.ne.s32.totalorder %s101, %s104
      %p113 = scmp.eq.s32.totalorder %s23, 1
      %p114 = por %p112, %p113
      %p115 = scmp.ne.s32.totalorder %s104, %s105
      %p116 = scmp.eq.s32.totalorder %s23, 0
      %p117 = por %p115, %p116
      %p118 = scmp.ne.s32.totalorder %s104, %s105
      %p119 = scmp.eq.s32.totalorder %s24, 1
      %p120 = por %p118, %p119
      %p122 = scmp.ne.s32.totalorder %s105, %s121
      %p123 = scmp.eq.s32.totalorder %s24, 0
      %p124 = por %p122, %p123
      %s126 = sadd.s32 %s125, 1
      %p129 = scmp.eq.s32.totalorder %s18, 1
      %p130 = scmp.ne.s32.totalorder %s125, %s127
      %p131 = scmp.eq.s32.totalorder %s18, 0
      %p132 = por %p130, %p131
      %p133 = scmp.ne.s32.totalorder %s125, %s127
      %p134 = scmp.eq.s32.totalorder %s23, 1
      %p135 = por %p133, %p134
      %p136 = scmp.ne.s32.totalorder %s127, %s128
      %p137 = scmp.eq.s32.totalorder %s23, 0
      %p138 = por %p136, %p137
      %p139 = scmp.ne.s32.totalorder %s127, %s128
      %p140 = scmp.eq.s32.totalorder %s24, 1
      %p141 = por %p139, %p140
      %p143 = scmp.ne.s32.totalorder %s128, %s142
      %p144 = scmp.eq.s32.totalorder %s24, 0
      %p145 = por %p143, %p144
      %p146 = scmp.le.s32.totalorder 1, %s18
      %p147 = scmp.lt.s32.totalorder %s18, 3
      %p148 = pnand %p146, %p147
      %p149 = pneg %p148
      // Predicated region
      $region9: #{tpu_custom_call.1} parent=5 // pred_check
        _
      $region10: #{tpu_custom_call.1} parent=5 // pred_check_branch
        %151 = sbr.rel (%p148) target = $region12
      $region11: #{tpu_custom_call.1} parent=5 // pred_region
        %s152 = ssub.s32 %s18, 1
        // Predicated region
        $region13: #{tpu_custom_call.1} parent=11 // pred_check
          %p153 = pneg %p39
        $region14: #{tpu_custom_call.1} parent=11 // pred_check_branch
          %155 = sbr.rel (%p153) target = $region16
        $region15: #{tpu_custom_call.1} parent=11 // pred_region
          _
        $region16: #{tpu_custom_call.1} parent=11 // pred_fallthru
          _
      $region12: #{tpu_custom_call.1} parent=5 // pred_fallthru
        _
      %p156 = scmp.lt.s32.totalorder %s18, 2
      // Predicated region
      $region17: #{tpu_custom_call.1} parent=5 // pred_check
        %p157 = pneg %p156
      $region18: #{tpu_custom_call.1} parent=5 // pred_check_branch
        %159 = sbr.rel (%p157) target = $region20
      $region19: #{tpu_custom_call.1} parent=5 // pred_region
        // Predicated region
        $region21: #{tpu_custom_call.1} parent=19 // pred_check
          %p160 = pneg %p59
        $region22: #{tpu_custom_call.1} parent=19 // pred_check_branch
          %162 = sbr.rel (%p160) target = $region24
        $region23: #{tpu_custom_call.1} parent=19 // pred_region
          %s163 = sand.u32 %s49, 1
          %s164 = scalar_lea.sflag [#allocation4], %s163
          %s165 = sand.u32 %s49, 1
          %s166 = smul.addr %s165, 197
          %s167 = scalar_lea.vmem [#allocation3], %s166
          %s168 = smul.u32 197, %s18
          %s169 = ssub.s32 393, %s168
          %p170 = scmp.lt.s32.totalorder %s169, 197
          %s171 = scalar_select %p170, %s169, 197
          %s172 = smul.u32 16, %s171
          %s174 = ssub.s32 3152, %s172
          %175 = vsyncadd %s164, %s174
          %p176 = scmp.ne.s32.totalorder 0, %s172
          %s177 = smul.addr %s168, 16
          %s178 = scalar_lea.hbm %s1, %s177
          %s179 = sshll.u32 %s171, 4
          %s180 = sshll.u32 %s167, 4
          %s181 = int_to_ptr.vmem [resolvable:$true] %s180
          %183 = dma.hbm_to_vmem [thread:$0]  (%p176), %s178, %s179, %s181, %s164
        $region24: #{tpu_custom_call.1} parent=19 // pred_fallthru
          _
        // Predicated region
        $region25: #{tpu_custom_call.1} parent=19 // pred_check
          %p184 = pneg %p85
        $region26: #{tpu_custom_call.1} parent=19 // pred_check_branch
          %186 = sbr.rel (%p184) target = $region28
        $region27: #{tpu_custom_call.1} parent=19 // pred_region
          %s187 = sand.u32 %s18, 1
          %s188 = scalar_lea.sflag [#allocation7], %s187
          %s189 = sand.u32 %s75, 1
          %s190 = smul.addr %s189, 1576
          %s191 = scalar_lea.vmem [#allocation6], %s190
          %s192 = smul.u32 197, %s18
          %s193 = ssub.s32 393, %s192
          %p194 = scmp.lt.s32.totalorder %s193, 197
          %s195 = scalar_select %p194, %s193, 197
          %s196 = smul.u32 128, %s195
          %s198 = ssub.s32 25216, %s196
          %199 = vsyncadd %s188, %s198
          %p200 = scmp.ne.s32.totalorder 0, %s196
          %s201 = smul.addr %s192, 128
          %s202 = scalar_lea.hbm %s2, %s201
          %s203 = smul.u32 %s195, 8
          %s204 = sshll.u32 %s203, 4
          %s205 = sshll.u32 %s191, 4
          %s206 = int_to_ptr.vmem [resolvable:$true] %s205
          %208 = dma.hbm_to_vmem [thread:$0]  (%p200), %s202, %s204, %s206, %s188
        $region28: #{tpu_custom_call.1} parent=19 // pred_fallthru
          _
        // Predicated region
        $region29: #{tpu_custom_call.1} parent=19 // pred_check
          %p209 = pneg %p111
        $region30: #{tpu_custom_call.1} parent=19 // pred_check_branch
          %211 = sbr.rel (%p209) target = $region32
        $region31: #{tpu_custom_call.1} parent=19 // pred_region
          %s212 = sand.u32 %s18, 1
          %s213 = scalar_lea.sflag [#allocation7], %s212
          %s214 = sand.u32 %s101, 1
          %s215 = smul.addr %s214, 1576
          %s216 = scalar_lea.vmem [#allocation8], %s215
          %s217 = smul.u32 197, %s18
          %s218 = ssub.s32 393, %s217
          %p219 = scmp.lt.s32.totalorder %s218, 197
          %s220 = scalar_select %p219, %s218, 197
          %s221 = smul.u32 128, %s220
          %s223 = ssub.s32 25216, %s221
          %224 = vsyncadd %s213, %s223
          %p225 = scmp.ne.s32.totalorder 0, %s221
          %s226 = smul.addr %s217, 128
          %s227 = scalar_lea.hbm %s3, %s226
          %s228 = smul.u32 %s220, 8
          %s229 = sshll.u32 %s228, 4
          %s230 = sshll.u32 %s216, 4
          %s231 = int_to_ptr.vmem [resolvable:$true] %s230
          %233 = dma.hbm_to_vmem [thread:$0]  (%p225), %s227, %s229, %s231, %s213
        $region32: #{tpu_custom_call.1} parent=19 // pred_fallthru
          _
      $region20: #{tpu_custom_call.1} parent=5 // pred_fallthru
        _
      %p234 = scmp.le.s32.totalorder 1, %s18
      %p235 = scmp.lt.s32.totalorder %s18, 3
      %p236 = pnand %p234, %p235
      %p237 = pneg %p236
      // Predicated region
      $region33: #{tpu_custom_call.1} parent=5 // pred_check
        _
      $region34: #{tpu_custom_call.1} parent=5 // pred_check_branch
        %239 = sbr.rel (%p236) target = $region36
      $region35: #{tpu_custom_call.1} parent=5 // pred_region
        %s240 = ssub.s32 %s18, 1
        %s241 = sand.u32 %s52, 1
        %s242 = scalar_lea.sflag [#allocation4], %s241
        %s243 = sand.u32 %s52, 1
        %s244 = smul.addr %s243, 197
        %s245 = scalar_lea.vmem [#allocation3], %s244
        // Predicated region
        $region37: #{tpu_custom_call.1} parent=35 // pred_check
          %p246 = pneg %p65
        $region38: #{tpu_custom_call.1} parent=35 // pred_check_branch
          %248 = sbr.rel (%p246) target = $region40
        $region39: #{tpu_custom_call.1} parent=35 // pred_region
          %249 = dma.done %s242, 3152
        $region40: #{tpu_custom_call.1} parent=35 // pred_fallthru
          _
        %s250 = sand.u32 %s23, 1
        %s251 = scalar_lea.sflag [#allocation7], %s250
        %s252 = sand.u32 %s78, 1
        %s253 = smul.addr %s252, 1576
        %s254 = scalar_lea.vmem [#allocation6], %s253
        // Predicated region
        $region41: #{tpu_custom_call.1} parent=35 // pred_check
          %p255 = pneg %p91
        $region42: #{tpu_custom_call.1} parent=35 // pred_check_branch
          %257 = sbr.rel (%p255) target = $region44
        $region43: #{tpu_custom_call.1} parent=35 // pred_region
          %258 = dma.done %s251, 25216
        $region44: #{tpu_custom_call.1} parent=35 // pred_fallthru
          _
        %s259 = sand.u32 %s23, 1
        %s260 = scalar_lea.sflag [#allocation7], %s259
        %s261 = sand.u32 %s104, 1
        %s262 = smul.addr %s261, 1576
        %s263 = scalar_lea.vmem [#allocation8], %s262
        // Predicated region
        $region45: #{tpu_custom_call.1} parent=35 // pred_check
          %p264 = pneg %p117
        $region46: #{tpu_custom_call.1} parent=35 // pred_check_branch
          %266 = sbr.rel (%p264) target = $region48
        $region47: #{tpu_custom_call.1} parent=35 // pred_region
          %267 = dma.done %s260, 25216
        $region48: #{tpu_custom_call.1} parent=35 // pred_fallthru
          _
        %p268 = pneg %p39
        %p269 = pneg %p36
        %s270 = sand.u32 %s52, 1
        %s271 = scalar_lea.sflag [#allocation4], %s270
        %s272 = sand.u32 %s52, 1
        %s273 = smul.addr %s272, 197
        %s274 = scalar_lea.vmem [#allocation3], %s273
        %p275 = pneg %p65
        %p276 = pneg %p62
        %s277 = sand.u32 %s23, 1
        %s278 = scalar_lea.sflag [#allocation7], %s277
        %s279 = sand.u32 %s78, 1
        %s280 = smul.addr %s279, 1576
        %s281 = scalar_lea.vmem [#allocation6], %s280
        %p282 = pneg %p91
        %p283 = pneg %p88
        %s284 = sand.u32 %s23, 1
        %s285 = scalar_lea.sflag [#allocation7], %s284
        %s286 = sand.u32 %s104, 1
        %s287 = smul.addr %s286, 1576
        %s288 = scalar_lea.vmem [#allocation8], %s287
        %p289 = pneg %p117
        %p290 = pneg %p114
        %p291 = pneg %p138
        %p292 = pneg %p135
        %s293 = smul.u32 197, %s23
        %s294 = ssub.s32 393, %s293
        %p295 = scmp.lt.s32.totalorder %s294, 197
        %s296 = scalar_select %p295, %s294, 197
        %s297 = smul.u32 16, %s296
        %s298 = smul.u32 197, %s23
        %s299 = ssub.s32 393, %s298
        %p300 = scmp.lt.s32.totalorder %s299, 197
        %s301 = scalar_select %p300, %s299, 197
        %s302 = smul.u32 128, %s301
        %s303 = smul.u32 197, %s23
        %s304 = ssub.s32 393, %s303
        %p305 = scmp.lt.s32.totalorder %s304, 197
        %s306 = scalar_select %p305, %s304, 197
        %s307 = smul.u32 128, %s306
        %s309 = sld [smem:[#allocation2]]
        %v310 = vld [vmem:[%s245] sm:$0xff]
        %v311 = vld [vmem:[%s245 + $0x8] sm:$0xff]
        %v312 = vld [vmem:[%s245 + $0x10] sm:$0xff]
        %v313 = vld [vmem:[%s245 + $0x18] sm:$0xff]
        %v314 = vld [vmem:[%s245 + $0x20] sm:$0xff]
        %v315 = vld [vmem:[%s245 + $0x28] sm:$0xff]
        %v316 = vld [vmem:[%s245 + $0x30] sm:$0xff]
        %v317 = vld [vmem:[%s245 + $0x38] sm:$0xff]
        %v318 = vld [vmem:[%s245 + $0x40] sm:$0xff]
        %v319 = vld [vmem:[%s245 + $0x48] sm:$0xff]
        %v320 = vld [vmem:[%s245 + $0x50] sm:$0xff]
        %v321 = vld [vmem:[%s245 + $0x58] sm:$0xff]
        %v322 = vld [vmem:[%s245 + $0x60] sm:$0xff]
        %v323 = vld [vmem:[%s245 + $0x68] sm:$0xff]
        %v324 = vld [vmem:[%s245 + $0x70] sm:$0xff]
        %v325 = vld [vmem:[%s245 + $0x78] sm:$0xff]
        %v326 = vld [vmem:[%s245 + $0x80] sm:$0xff]
        %v327 = vld [vmem:[%s245 + $0x88] sm:$0xff]
        %v328 = vld [vmem:[%s245 + $0x90] sm:$0xff]
        %v329 = vld [vmem:[%s245 + $0x98] sm:$0xff]
        %v330 = vld [vmem:[%s245 + $0xa0] sm:$0xff]
        %v331 = vld [vmem:[%s245 + $0xa8] sm:$0xff]
        %v332 = vld [vmem:[%s245 + $0xb0] sm:$0xff]
        %v333 = vld [vmem:[%s245 + $0xb8] sm:$0xff]
        %v334 = vld [vmem:[%s245 + $0xc0] sm:$0x1f]
        %v335 = vld [vmem:[%s254] sm:$0xff]
        %v336 = vld [vmem:[%s254 + $0x8] sm:$0xff]
        %v337 = vld [vmem:[%s254 + $0x10] sm:$0xff]
        %v338 = vld [vmem:[%s254 + $0x18] sm:$0xff]
        %v339 = vld [vmem:[%s254 + $0x20] sm:$0xff]
        %v340 = vld [vmem:[%s254 + $0x28] sm:$0xff]
        %v341 = vld [vmem:[%s254 + $0x30] sm:$0xff]
        %v342 = vld [vmem:[%s254 + $0x38] sm:$0xff]
        %v343 = vld [vmem:[%s254 + $0x40] sm:$0xff]
        %v344 = vld [vmem:[%s254 + $0x48] sm:$0xff]
        %v345 = vld [vmem:[%s254 + $0x50] sm:$0xff]
        %v346 = vld [vmem:[%s254 + $0x58] sm:$0xff]
        %v347 = vld [vmem:[%s254 + $0x60] sm:$0xff]
        %v348 = vld [vmem:[%s254 + $0x68] sm:$0xff]
        %v349 = vld [vmem:[%s254 + $0x70] sm:$0xff]
        %v350 = vld [vmem:[%s254 + $0x78] sm:$0xff]
        %v351 = vld [vmem:[%s254 + $0x80] sm:$0xff]
        %v352 = vld [vmem:[%s254 + $0x88] sm:$0xff]
        %v353 = vld [vmem:[%s254 + $0x90] sm:$0xff]
        %v354 = vld [vmem:[%s254 + $0x98] sm:$0xff]
        %v355 = vld [vmem:[%s254 + $0xa0] sm:$0xff]
        %v356 = vld [vmem:[%s254 + $0xa8] sm:$0xff]
        %v357 = vld [vmem:[%s254 + $0xb0] sm:$0xff]
        %v358 = vld [vmem:[%s254 + $0xb8] sm:$0xff]
        %v359 = vld [vmem:[%s254 + $0xc0] sm:$0xff]
        %v360 = vld [vmem:[%s254 + $0xc8] sm:$0xff]
        %v361 = vld [vmem:[%s254 + $0xd0] sm:$0xff]
        %v362 = vld [vmem:[%s254 + $0xd8] sm:$0xff]
        %v363 = vld [vmem:[%s254 + $0xe0] sm:$0xff]
        %v364 = vld [vmem:[%s254 + $0xe8] sm:$0xff]
        %v365 = vld [vmem:[%s254 + $0xf0] sm:$0xff]
        %v366 = vld [vmem:[%s254 + $0xf8] sm:$0xff]
        %v367 = vld [vmem:[%s254 + $0x100] sm:$0xff]
        %v368 = vld [vmem:[%s254 + $0x108] sm:$0xff]
        %v369 = vld [vmem:[%s254 + $0x110] sm:$0xff]
        %v370 = vld [vmem:[%s254 + $0x118] sm:$0xff]
        %v371 = vld [vmem:[%s254 + $0x120] sm:$0xff]
        %v372 = vld [vmem:[%s254 + $0x128] sm:$0xff]
        %v373 = vld [vmem:[%s254 + $0x130] sm:$0xff]
        %v374 = vld [vmem:[%s254 + $0x138] sm:$0xff]
        %v375 = vld [vmem:[%s254 + $0x140] sm:$0xff]
        %v376 = vld [vmem:[%s254 + $0x148] sm:$0xff]
        %v377 = vld [vmem:[%s254 + $0x150] sm:$0xff]
        %v378 = vld [vmem:[%s254 + $0x158] sm:$0xff]
        %v379 = vld [vmem:[%s254 + $0x160] sm:$0xff]
        %v380 = vld [vmem:[%s254 + $0x168] sm:$0xff]
        %v381 = vld [vmem:[%s254 + $0x170] sm:$0xff]
        %v382 = vld [vmem:[%s254 + $0x178] sm:$0xff]
        %v383 = vld [vmem:[%s254 + $0x180] sm:$0xff]
        %v384 = vld [vmem:[%s254 + $0x188] sm:$0xff]
        %v385 = vld [vmem:[%s254 + $0x190] sm:$0xff]
        %v386 = vld [vmem:[%s254 + $0x198] sm:$0xff]
        %v387 = vld [vmem:[%s254 + $0x1a0] sm:$0xff]
        %v388 = vld [vmem:[%s254 + $0x1a8] sm:$0xff]
        %v389 = vld [vmem:[%s254 + $0x1b0] sm:$0xff]
        %v390 = vld [vmem:[%s254 + $0x1b8] sm:$0xff]
        %v391 = vld [vmem:[%s254 + $0x1c0] sm:$0xff]
        %v392 = vld [vmem:[%s254 + $0x1c8] sm:$0xff]
        %v393 = vld [vmem:[%s254 + $0x1d0] sm:$0xff]
        %v394 = vld [vmem:[%s254 + $0x1d8] sm:$0xff]
        %v395 = vld [vmem:[%s254 + $0x1e0] sm:$0xff]
        %v396 = vld [vmem:[%s254 + $0x1e8] sm:$0xff]
        %v397 = vld [vmem:[%s254 + $0x1f0] sm:$0xff]
        %v398 = vld [vmem:[%s254 + $0x1f8] sm:$0xff]
        %v399 = vld [vmem:[%s254 + $0x200] sm:$0xff]
        %v400 = vld [vmem:[%s254 + $0x208] sm:$0xff]
        %v401 = vld [vmem:[%s254 + $0x210] sm:$0xff]
        %v402 = vld [vmem:[%s254 + $0x218] sm:$0xff]
        %v403 = vld [vmem:[%s254 + $0x220] sm:$0xff]
        %v404 = vld [vmem:[%s254 + $0x228] sm:$0xff]
        %v405 = vld [vmem:[%s254 + $0x230] sm:$0xff]
        %v406 = vld [vmem:[%s254 + $0x238] sm:$0xff]
        %v407 = vld [vmem:[%s254 + $0x240] sm:$0xff]
        %v408 = vld [vmem:[%s254 + $0x248] sm:$0xff]
        %v409 = vld [vmem:[%s254 + $0x250] sm:$0xff]
        %v410 = vld [vmem:[%s254 + $0x258] sm:$0xff]
        %v411 = vld [vmem:[%s254 + $0x260] sm:$0xff]
        %v412 = vld [vmem:[%s254 + $0x268] sm:$0xff]
        %v413 = vld [vmem:[%s254 + $0x270] sm:$0xff]
        %v414 = vld [vmem:[%s254 + $0x278] sm:$0xff]
        %v415 = vld [vmem:[%s254 + $0x280] sm:$0xff]
        %v416 = vld [vmem:[%s254 + $0x288] sm:$0xff]
        %v417 = vld [vmem:[%s254 + $0x290] sm:$0xff]
        %v418 = vld [vmem:[%s254 + $0x298] sm:$0xff]
        %v419 = vld [vmem:[%s254 + $0x2a0] sm:$0xff]
        %v420 = vld [vmem:[%s254 + $0x2a8] sm:$0xff]
        %v421 = vld [vmem:[%s254 + $0x2b0] sm:$0xff]
        %v422 = vld [vmem:[%s254 + $0x2b8] sm:$0xff]
        %v423 = vld [vmem:[%s254 + $0x2c0] sm:$0xff]
        %v424 = vld [vmem:[%s254 + $0x2c8] sm:$0xff]
        %v425 = vld [vmem:[%s254 + $0x2d0] sm:$0xff]
        %v426 = vld [vmem:[%s254 + $0x2d8] sm:$0xff]
        %v427 = vld [vmem:[%s254 + $0x2e0] sm:$0xff]
        %v428 = vld [vmem:[%s254 + $0x2e8] sm:$0xff]
        %v429 = vld [vmem:[%s254 + $0x2f0] sm:$0xff]
        %v430 = vld [vmem:[%s254 + $0x2f8] sm:$0xff]
        %v431 = vld [vmem:[%s254 + $0x300] sm:$0xff]
        %v432 = vld [vmem:[%s254 + $0x308] sm:$0xff]
        %v433 = vld [vmem:[%s254 + $0x310] sm:$0xff]
        %v434 = vld [vmem:[%s254 + $0x318] sm:$0xff]
        %v435 = vld [vmem:[%s254 + $0x320] sm:$0xff]
        %v436 = vld [vmem:[%s254 + $0x328] sm:$0xff]
        %v437 = vld [vmem:[%s254 + $0x330] sm:$0xff]
        %v438 = vld [vmem:[%s254 + $0x338] sm:$0xff]
        %v439 = vld [vmem:[%s254 + $0x340] sm:$0xff]
        %v440 = vld [vmem:[%s254 + $0x348] sm:$0xff]
        %v441 = vld [vmem:[%s254 + $0x350] sm:$0xff]
        %v442 = vld [vmem:[%s254 + $0x358] sm:$0xff]
        %v443 = vld [vmem:[%s254 + $0x360] sm:$0xff]
        %v444 = vld [vmem:[%s254 + $0x368] sm:$0xff]
        %v445 = vld [vmem:[%s254 + $0x370] sm:$0xff]
        %v446 = vld [vmem:[%s254 + $0x378] sm:$0xff]
        %v447 = vld [vmem:[%s254 + $0x380] sm:$0xff]
        %v448 = vld [vmem:[%s254 + $0x388] sm:$0xff]
        %v449 = vld [vmem:[%s254 + $0x390] sm:$0xff]
        %v450 = vld [vmem:[%s254 + $0x398] sm:$0xff]
        %v451 = vld [vmem:[%s254 + $0x3a0] sm:$0xff]
        %v452 = vld [vmem:[%s254 + $0x3a8] sm:$0xff]
        %v453 = vld [vmem:[%s254 + $0x3b0] sm:$0xff]
        %v454 = vld [vmem:[%s254 + $0x3b8] sm:$0xff]
        %v455 = vld [vmem:[%s254 + $0x3c0] sm:$0xff]
        %v456 = vld [vmem:[%s254 + $0x3c8] sm:$0xff]
        %v457 = vld [vmem:[%s254 + $0x3d0] sm:$0xff]
        %v458 = vld [vmem:[%s254 + $0x3d8] sm:$0xff]
        %v459 = vld [vmem:[%s254 + $0x3e0] sm:$0xff]
        %v460 = vld [vmem:[%s254 + $0x3e8] sm:$0xff]
        %v461 = vld [vmem:[%s254 + $0x3f0] sm:$0xff]
        %v462 = vld [vmem:[%s254 + $0x3f8] sm:$0xff]
        %v463 = vld [vmem:[%s254 + $0x400] sm:$0xff]
        %v464 = vld [vmem:[%s254 + $0x408] sm:$0xff]
        %v465 = vld [vmem:[%s254 + $0x410] sm:$0xff]
        %v466 = vld [vmem:[%s254 + $0x418] sm:$0xff]
        %v467 = vld [vmem:[%s254 + $0x420] sm:$0xff]
        %v468 = vld [vmem:[%s254 + $0x428] sm:$0xff]
        %v469 = vld [vmem:[%s254 + $0x430] sm:$0xff]
        %v470 = vld [vmem:[%s254 + $0x438] sm:$0xff]
        %v471 = vld [vmem:[%s254 + $0x440] sm:$0xff]
        %v472 = vld [vmem:[%s254 + $0x448] sm:$0xff]
        %v473 = vld [vmem:[%s254 + $0x450] sm:$0xff]
        %v474 = vld [vmem:[%s254 + $0x458] sm:$0xff]
        %v475 = vld [vmem:[%s254 + $0x460] sm:$0xff]
        %v476 = vld [vmem:[%s254 + $0x468] sm:$0xff]
        %v477 = vld [vmem:[%s254 + $0x470] sm:$0xff]
        %v478 = vld [vmem:[%s254 + $0x478] sm:$0xff]
        %v479 = vld [vmem:[%s254 + $0x480] sm:$0xff]
        %v480 = vld [vmem:[%s254 + $0x488] sm:$0xff]
        %v481 = vld [vmem:[%s254 + $0x490] sm:$0xff]
        %v482 = vld [vmem:[%s254 + $0x498] sm:$0xff]
        %v483 = vld [vmem:[%s254 + $0x4a0] sm:$0xff]
        %v484 = vld [vmem:[%s254 + $0x4a8] sm:$0xff]
        %v485 = vld [vmem:[%s254 + $0x4b0] sm:$0xff]
        %v486 = vld [vmem:[%s254 + $0x4b8] sm:$0xff]
        %v487 = vld [vmem:[%s254 + $0x4c0] sm:$0xff]
        %v488 = vld [vmem:[%s254 + $0x4c8] sm:$0xff]
        %v489 = vld [vmem:[%s254 + $0x4d0] sm:$0xff]
        %v490 = vld [vmem:[%s254 + $0x4d8] sm:$0xff]
        %v491 = vld [vmem:[%s254 + $0x4e0] sm:$0xff]
        %v492 = vld [vmem:[%s254 + $0x4e8] sm:$0xff]
        %v493 = vld [vmem:[%s254 + $0x4f0] sm:$0xff]
        %v494 = vld [vmem:[%s254 + $0x4f8] sm:$0xff]
        %v495 = vld [vmem:[%s254 + $0x500] sm:$0xff]
        %v496 = vld [vmem:[%s254 + $0x508] sm:$0xff]
        %v497 = vld [vmem:[%s254 + $0x510] sm:$0xff]
        %v498 = vld [vmem:[%s254 + $0x518] sm:$0xff]
        %v499 = vld [vmem:[%s254 + $0x520] sm:$0xff]
        %v500 = vld [vmem:[%s254 + $0x528] sm:$0xff]
        %v501 = vld [vmem:[%s254 + $0x530] sm:$0xff]
        %v502 = vld [vmem:[%s254 + $0x538] sm:$0xff]
        %v503 = vld [vmem:[%s254 + $0x540] sm:$0xff]
        %v504 = vld [vmem:[%s254 + $0x548] sm:$0xff]
        %v505 = vld [vmem:[%s254 + $0x550] sm:$0xff]
        %v506 = vld [vmem:[%s254 + $0x558] sm:$0xff]
        %v507 = vld [vmem:[%s254 + $0x560] sm:$0xff]
        %v508 = vld [vmem:[%s254 + $0x568] sm:$0xff]
        %v509 = vld [vmem:[%s254 + $0x570] sm:$0xff]
        %v510 = vld [vmem:[%s254 + $0x578] sm:$0xff]
        %v511 = vld [vmem:[%s254 + $0x580] sm:$0xff]
        %v512 = vld [vmem:[%s254 + $0x588] sm:$0xff]
        %v513 = vld [vmem:[%s254 + $0x590] sm:$0xff]
        %v514 = vld [vmem:[%s254 + $0x598] sm:$0xff]
        %v515 = vld [vmem:[%s254 + $0x5a0] sm:$0xff]
        %v516 = vld [vmem:[%s254 + $0x5a8] sm:$0xff]
        %v517 = vld [vmem:[%s254 + $0x5b0] sm:$0xff]
        %v518 = vld [vmem:[%s254 + $0x5b8] sm:$0xff]
        %v519 = vld [vmem:[%s254 + $0x5c0] sm:$0xff]
        %v520 = vld [vmem:[%s254 + $0x5c8] sm:$0xff]
        %v521 = vld [vmem:[%s254 + $0x5d0] sm:$0xff]
        %v522 = vld [vmem:[%s254 + $0x5d8] sm:$0xff]
        %v523 = vld [vmem:[%s254 + $0x5e0] sm:$0xff]
        %v524 = vld [vmem:[%s254 + $0x5e8] sm:$0xff]
        %v525 = vld [vmem:[%s254 + $0x5f0] sm:$0xff]
        %v526 = vld [vmem:[%s254 + $0x5f8] sm:$0xff]
        %v527 = vld [vmem:[%s254 + $0x600] sm:$0xff]
        %v528 = vld [vmem:[%s254 + $0x608] sm:$0xff]
        %v529 = vld [vmem:[%s254 + $0x610] sm:$0xff]
        %v530 = vld [vmem:[%s254 + $0x618] sm:$0xff]
        %v531 = vld [vmem:[%s254 + $0x620] sm:$0xff]
        %v532 = vld [vmem:[%s263] sm:$0xff]
        %v533 = vld [vmem:[%s263 + $0x8] sm:$0xff]
        %v534 = vld [vmem:[%s263 + $0x10] sm:$0xff]
        %v535 = vld [vmem:[%s263 + $0x18] sm:$0xff]
        %v536 = vld [vmem:[%s263 + $0x20] sm:$0xff]
        %v537 = vld [vmem:[%s263 + $0x28] sm:$0xff]
        %v538 = vld [vmem:[%s263 + $0x30] sm:$0xff]
        %v539 = vld [vmem:[%s263 + $0x38] sm:$0xff]
        %v540 = vld [vmem:[%s263 + $0x40] sm:$0xff]
        %v541 = vld [vmem:[%s263 + $0x48] sm:$0xff]
        %v542 = vld [vmem:[%s263 + $0x50] sm:$0xff]
        %v543 = vld [vmem:[%s263 + $0x58] sm:$0xff]
        %v544 = vld [vmem:[%s263 + $0x60] sm:$0xff]
        %v545 = vld [vmem:[%s263 + $0x68] sm:$0xff]
        %v546 = vld [vmem:[%s263 + $0x70] sm:$0xff]
        %v547 = vld [vmem:[%s263 + $0x78] sm:$0xff]
        %v548 = vld [vmem:[%s263 + $0x80] sm:$0xff]
        %v549 = vld [vmem:[%s263 + $0x88] sm:$0xff]
        %v550 = vld [vmem:[%s263 + $0x90] sm:$0xff]
        %v551 = vld [vmem:[%s263 + $0x98] sm:$0xff]
        %v552 = vld [vmem:[%s263 + $0xa0] sm:$0xff]
        %v553 = vld [vmem:[%s263 + $0xa8] sm:$0xff]
        %v554 = vld [vmem:[%s263 + $0xb0] sm:$0xff]
        %v555 = vld [vmem:[%s263 + $0xb8] sm:$0xff]
        %v556 = vld [vmem:[%s263 + $0xc0] sm:$0xff]
        %v557 = vld [vmem:[%s263 + $0xc8] sm:$0xff]
        %v558 = vld [vmem:[%s263 + $0xd0] sm:$0xff]
        %v559 = vld [vmem:[%s263 + $0xd8] sm:$0xff]
        %v560 = vld [vmem:[%s263 + $0xe0] sm:$0xff]
        %v561 = vld [vmem:[%s263 + $0xe8] sm:$0xff]
        %v562 = vld [vmem:[%s263 + $0xf0] sm:$0xff]
        %v563 = vld [vmem:[%s263 + $0xf8] sm:$0xff]
        %v564 = vld [vmem:[%s263 + $0x100] sm:$0xff]
        %v565 = vld [vmem:[%s263 + $0x108] sm:$0xff]
        %v566 = vld [vmem:[%s263 + $0x110] sm:$0xff]
        %v567 = vld [vmem:[%s263 + $0x118] sm:$0xff]
        %v568 = vld [vmem:[%s263 + $0x120] sm:$0xff]
        %v569 = vld [vmem:[%s263 + $0x128] sm:$0xff]
        %v570 = vld [vmem:[%s263 + $0x130] sm:$0xff]
        %v571 = vld [vmem:[%s263 + $0x138] sm:$0xff]
        %v572 = vld [vmem:[%s263 + $0x140] sm:$0xff]
        %v573 = vld [vmem:[%s263 + $0x148] sm:$0xff]
        %v574 = vld [vmem:[%s263 + $0x150] sm:$0xff]
        %v575 = vld [vmem:[%s263 + $0x158] sm:$0xff]
        %v576 = vld [vmem:[%s263 + $0x160] sm:$0xff]
        %v577 = vld [vmem:[%s263 + $0x168] sm:$0xff]
        %v578 = vld [vmem:[%s263 + $0x170] sm:$0xff]
        %v579 = vld [vmem:[%s263 + $0x178] sm:$0xff]
        %v580 = vld [vmem:[%s263 + $0x180] sm:$0xff]
        %v581 = vld [vmem:[%s263 + $0x188] sm:$0xff]
        %v582 = vld [vmem:[%s263 + $0x190] sm:$0xff]
        %v583 = vld [vmem:[%s263 + $0x198] sm:$0xff]
        %v584 = vld [vmem:[%s263 + $0x1a0] sm:$0xff]
        %v585 = vld [vmem:[%s263 + $0x1a8] sm:$0xff]
        %v586 = vld [vmem:[%s263 + $0x1b0] sm:$0xff]
        %v587 = vld [vmem:[%s263 + $0x1b8] sm:$0xff]
        %v588 = vld [vmem:[%s263 + $0x1c0] sm:$0xff]
        %v589 = vld [vmem:[%s263 + $0x1c8] sm:$0xff]
        %v590 = vld [vmem:[%s263 + $0x1d0] sm:$0xff]
        %v591 = vld [vmem:[%s263 + $0x1d8] sm:$0xff]
        %v592 = vld [vmem:[%s263 + $0x1e0] sm:$0xff]
        %v593 = vld [vmem:[%s263 + $0x1e8] sm:$0xff]
        %v594 = vld [vmem:[%s263 + $0x1f0] sm:$0xff]
        %v595 = vld [vmem:[%s263 + $0x1f8] sm:$0xff]
        %v596 = vld [vmem:[%s263 + $0x200] sm:$0xff]
        %v597 = vld [vmem:[%s263 + $0x208] sm:$0xff]
        %v598 = vld [vmem:[%s263 + $0x210] sm:$0xff]
        %v599 = vld [vmem:[%s263 + $0x218] sm:$0xff]
        %v600 = vld [vmem:[%s263 + $0x220] sm:$0xff]
        %v601 = vld [vmem:[%s263 + $0x228] sm:$0xff]
        %v602 = vld [vmem:[%s263 + $0x230] sm:$0xff]
        %v603 = vld [vmem:[%s263 + $0x238] sm:$0xff]
        %v604 = vld [vmem:[%s263 + $0x240] sm:$0xff]
        %v605 = vld [vmem:[%s263 + $0x248] sm:$0xff]
        %v606 = vld [vmem:[%s263 + $0x250] sm:$0xff]
        %v607 = vld [vmem:[%s263 + $0x258] sm:$0xff]
        %v608 = vld [vmem:[%s263 + $0x260] sm:$0xff]
        %v609 = vld [vmem:[%s263 + $0x268] sm:$0xff]
        %v610 = vld [vmem:[%s263 + $0x270] sm:$0xff]
        %v611 = vld [vmem:[%s263 + $0x278] sm:$0xff]
        %v612 = vld [vmem:[%s263 + $0x280] sm:$0xff]
        %v613 = vld [vmem:[%s263 + $0x288] sm:$0xff]
        %v614 = vld [vmem:[%s263 + $0x290] sm:$0xff]
        %v615 = vld [vmem:[%s263 + $0x298] sm:$0xff]
        %v616 = vld [vmem:[%s263 + $0x2a0] sm:$0xff]
        %v617 = vld [vmem:[%s263 + $0x2a8] sm:$0xff]
        %v618 = vld [vmem:[%s263 + $0x2b0] sm:$0xff]
        %v619 = vld [vmem:[%s263 + $0x2b8] sm:$0xff]
        %v620 = vld [vmem:[%s263 + $0x2c0] sm:$0xff]
        %v621 = vld [vmem:[%s263 + $0x2c8] sm:$0xff]
        %v622 = vld [vmem:[%s263 + $0x2d0] sm:$0xff]
        %v623 = vld [vmem:[%s263 + $0x2d8] sm:$0xff]
        %v624 = vld [vmem:[%s263 + $0x2e0] sm:$0xff]
        %v625 = vld [vmem:[%s263 + $0x2e8] sm:$0xff]
        %v626 = vld [vmem:[%s263 + $0x2f0] sm:$0xff]
        %v627 = vld [vmem:[%s263 + $0x2f8] sm:$0xff]
        %v628 = vld [vmem:[%s263 + $0x300] sm:$0xff]
        %v629 = vld [vmem:[%s263 + $0x308] sm:$0xff]
        %v630 = vld [vmem:[%s263 + $0x310] sm:$0xff]
        %v631 = vld [vmem:[%s263 + $0x318] sm:$0xff]
        %v632 = vld [vmem:[%s263 + $0x320] sm:$0xff]
        %v633 = vld [vmem:[%s263 + $0x328] sm:$0xff]
        %v634 = vld [vmem:[%s263 + $0x330] sm:$0xff]
        %v635 = vld [vmem:[%s263 + $0x338] sm:$0xff]
        %v636 = vld [vmem:[%s263 + $0x340] sm:$0xff]
        %v637 = vld [vmem:[%s263 + $0x348] sm:$0xff]
        %v638 = vld [vmem:[%s263 + $0x350] sm:$0xff]
        %v639 = vld [vmem:[%s263 + $0x358] sm:$0xff]
        %v640 = vld [vmem:[%s263 + $0x360] sm:$0xff]
        %v641 = vld [vmem:[%s263 + $0x368] sm:$0xff]
        %v642 = vld [vmem:[%s263 + $0x370] sm:$0xff]
        %v643 = vld [vmem:[%s263 + $0x378] sm:$0xff]
        %v644 = vld [vmem:[%s263 + $0x380] sm:$0xff]
        %v645 = vld [vmem:[%s263 + $0x388] sm:$0xff]
        %v646 = vld [vmem:[%s263 + $0x390] sm:$0xff]
        %v647 = vld [vmem:[%s263 + $0x398] sm:$0xff]
        %v648 = vld [vmem:[%s263 + $0x3a0] sm:$0xff]
        %v649 = vld [vmem:[%s263 + $0x3a8] sm:$0xff]
        %v650 = vld [vmem:[%s263 + $0x3b0] sm:$0xff]
        %v651 = vld [vmem:[%s263 + $0x3b8] sm:$0xff]
        %v652 = vld [vmem:[%s263 + $0x3c0] sm:$0xff]
        %v653 = vld [vmem:[%s263 + $0x3c8] sm:$0xff]
        %v654 = vld [vmem:[%s263 + $0x3d0] sm:$0xff]
        %v655 = vld [vmem:[%s263 + $0x3d8] sm:$0xff]
        %v656 = vld [vmem:[%s263 + $0x3e0] sm:$0xff]
        %v657 = vld [vmem:[%s263 + $0x3e8] sm:$0xff]
        %v658 = vld [vmem:[%s263 + $0x3f0] sm:$0xff]
        %v659 = vld [vmem:[%s263 + $0x3f8] sm:$0xff]
        %v660 = vld [vmem:[%s263 + $0x400] sm:$0xff]
        %v661 = vld [vmem:[%s263 + $0x408] sm:$0xff]
        %v662 = vld [vmem:[%s263 + $0x410] sm:$0xff]
        %v663 = vld [vmem:[%s263 + $0x418] sm:$0xff]
        %v664 = vld [vmem:[%s263 + $0x420] sm:$0xff]
        %v665 = vld [vmem:[%s263 + $0x428] sm:$0xff]
        %v666 = vld [vmem:[%s263 + $0x430] sm:$0xff]
        %v667 = vld [vmem:[%s263 + $0x438] sm:$0xff]
        %v668 = vld [vmem:[%s263 + $0x440] sm:$0xff]
        %v669 = vld [vmem:[%s263 + $0x448] sm:$0xff]
        %v670 = vld [vmem:[%s263 + $0x450] sm:$0xff]
        %v671 = vld [vmem:[%s263 + $0x458] sm:$0xff]
        %v672 = vld [vmem:[%s263 + $0x460] sm:$0xff]
        %v673 = vld [vmem:[%s263 + $0x468] sm:$0xff]
        %v674 = vld [vmem:[%s263 + $0x470] sm:$0xff]
        %v675 = vld [vmem:[%s263 + $0x478] sm:$0xff]
        %v676 = vld [vmem:[%s263 + $0x480] sm:$0xff]
        %v677 = vld [vmem:[%s263 + $0x488] sm:$0xff]
        %v678 = vld [vmem:[%s263 + $0x490] sm:$0xff]
        %v679 = vld [vmem:[%s263 + $0x498] sm:$0xff]
        %v680 = vld [vmem:[%s263 + $0x4a0] sm:$0xff]
        %v681 = vld [vmem:[%s263 + $0x4a8] sm:$0xff]
        %v682 = vld [vmem:[%s263 + $0x4b0] sm:$0xff]
        %v683 = vld [vmem:[%s263 + $0x4b8] sm:$0xff]
        %v684 = vld [vmem:[%s263 + $0x4c0] sm:$0xff]
        %v685 = vld [vmem:[%s263 + $0x4c8] sm:$0xff]
        %v686 = vld [vmem:[%s263 + $0x4d0] sm:$0xff]
        %v687 = vld [vmem:[%s263 + $0x4d8] sm:$0xff]
        %v688 = vld [vmem:[%s263 + $0x4e0] sm:$0xff]
        %v689 = vld [vmem:[%s263 + $0x4e8] sm:$0xff]
        %v690 = vld [vmem:[%s263 + $0x4f0] sm:$0xff]
        %v691 = vld [vmem:[%s263 + $0x4f8] sm:$0xff]
        %v692 = vld [vmem:[%s263 + $0x500] sm:$0xff]
        %v693 = vld [vmem:[%s263 + $0x508] sm:$0xff]
        %v694 = vld [vmem:[%s263 + $0x510] sm:$0xff]
        %v695 = vld [vmem:[%s263 + $0x518] sm:$0xff]
        %v696 = vld [vmem:[%s263 + $0x520] sm:$0xff]
        %v697 = vld [vmem:[%s263 + $0x528] sm:$0xff]
        %v698 = vld [vmem:[%s263 + $0x530] sm:$0xff]
        %v699 = vld [vmem:[%s263 + $0x538] sm:$0xff]
        %v700 = vld [vmem:[%s263 + $0x540] sm:$0xff]
        %v701 = vld [vmem:[%s263 + $0x548] sm:$0xff]
        %v702 = vld [vmem:[%s263 + $0x550] sm:$0xff]
        %v703 = vld [vmem:[%s263 + $0x558] sm:$0xff]
        %v704 = vld [vmem:[%s263 + $0x560] sm:$0xff]
        %v705 = vld [vmem:[%s263 + $0x568] sm:$0xff]
        %v706 = vld [vmem:[%s263 + $0x570] sm:$0xff]
        %v707 = vld [vmem:[%s263 + $0x578] sm:$0xff]
        %v708 = vld [vmem:[%s263 + $0x580] sm:$0xff]
        %v709 = vld [vmem:[%s263 + $0x588] sm:$0xff]
        %v710 = vld [vmem:[%s263 + $0x590] sm:$0xff]
        %v711 = vld [vmem:[%s263 + $0x598] sm:$0xff]
        %v712 = vld [vmem:[%s263 + $0x5a0] sm:$0xff]
        %v713 = vld [vmem:[%s263 + $0x5a8] sm:$0xff]
        %v714 = vld [vmem:[%s263 + $0x5b0] sm:$0xff]
        %v715 = vld [vmem:[%s263 + $0x5b8] sm:$0xff]
        %v716 = vld [vmem:[%s263 + $0x5c0] sm:$0xff]
        %v717 = vld [vmem:[%s263 + $0x5c8] sm:$0xff]
        %v718 = vld [vmem:[%s263 + $0x5d0] sm:$0xff]
        %v719 = vld [vmem:[%s263 + $0x5d8] sm:$0xff]
        %v720 = vld [vmem:[%s263 + $0x5e0] sm:$0xff]
        %v721 = vld [vmem:[%s263 + $0x5e8] sm:$0xff]
        %v722 = vld [vmem:[%s263 + $0x5f0] sm:$0xff]
        %v723 = vld [vmem:[%s263 + $0x5f8] sm:$0xff]
        %v724 = vld [vmem:[%s263 + $0x600] sm:$0xff]
        %v725 = vld [vmem:[%s263 + $0x608] sm:$0xff]
        %v726 = vld [vmem:[%s263 + $0x610] sm:$0xff]
        %v727 = vld [vmem:[%s263 + $0x618] sm:$0xff]
        %v728 = vld [vmem:[%s263 + $0x620] sm:$0xff]
        %p729 = scmp.eq.s32.totalorder %s23, 1
        // Predicated region
        $region49: #{tpu_custom_call.1} parent=35 // pred_check
          %p730 = pneg %p729
        $region50: #{tpu_custom_call.1} parent=35 // pred_check_branch
          %732 = sbr.rel (%p730) target = $region52
        $region51: #{tpu_custom_call.1} parent=35 // pred_region
          %v733 = vlaneseq
          %v734 = vand.u32 %v733, 127
          %v735 = vadd.s32 %v734, 128
          %v736 = vadd.s32 %v734, 256
          %v737 = vadd.s32 %v734, 384
          %v738 = vadd.s32 %v734, 512
          %v739 = vadd.s32 %v734, 640
          %v740 = vadd.s32 %v734, 768
          %v741 = vadd.s32 %v734, 896
          %v742 = vadd.s32 %v734, 1024
          %v743 = vadd.s32 %v734, 1152
          %v744 = vadd.s32 %v734, 1280
          %v745 = vadd.s32 %v734, 1408
          %v746 = vadd.s32 %v734, 1536
          %v747 = vadd.s32 %v734, 1664
          %v748 = vadd.s32 %v734, 1792
          %v749 = vadd.s32 %v734, 1920
          %v750 = vadd.s32 %v734, 2048
          %v751 = vadd.s32 %v734, 2176
          %v752 = vadd.s32 %v734, 2304
          %v753 = vadd.s32 %v734, 2432
          %v754 = vadd.s32 %v734, 2560
          %v755 = vadd.s32 %v734, 2688
          %v756 = vadd.s32 %v734, 2816
          %v757 = vadd.s32 %v734, 2944
          %v758 = vadd.s32 %v734, 3072
          %v759 = vadd.s32 %v734, 3200
          %v760 = vadd.s32 %v734, 3328
          %v761 = vadd.s32 %v734, 3456
          %v762 = vadd.s32 %v734, 3584
          %v763 = vadd.s32 %v734, 3712
          %v764 = vadd.s32 %v734, 3840
          %v765 = vadd.s32 %v734, 3968
          %v766 = vadd.s32 %v734, 4096
          %v767 = vadd.s32 %v734, 4224
          %v768 = vadd.s32 %v734, 4352
          %v769 = vadd.s32 %v734, 4480
          %v770 = vadd.s32 %v734, 4608
          %v771 = vadd.s32 %v734, 4736
          %v772 = vadd.s32 %v734, 4864
          %v773 = vadd.s32 %v734, 4992
          %v774 = vadd.s32 %v734, 5120
          %v775 = vadd.s32 %v734, 5248
          %v776 = vadd.s32 %v734, 5376
          %v777 = vadd.s32 %v734, 5504
          %v778 = vadd.s32 %v734, 5632
          %v779 = vadd.s32 %v734, 5760
          %v780 = vadd.s32 %v734, 5888
          %v781 = vadd.s32 %v734, 6016
          %v782 = vadd.s32 %v734, 6144
          %v783 = vadd.s32 %v734, 6272
          %v784 = vadd.s32 %v734, 6400
          %v785 = vadd.s32 %v734, 6528
          %v786 = vadd.s32 %v734, 6656
          %v787 = vadd.s32 %v734, 6784
          %v788 = vadd.s32 %v734, 6912
          %v789 = vadd.s32 %v734, 7040
          %v790 = vadd.s32 %v734, 7168
          %v791 = vadd.s32 %v734, 7296
          %v792 = vadd.s32 %v734, 7424
          %v793 = vadd.s32 %v734, 7552
          %v794 = vadd.s32 %v734, 7680
          %v795 = vadd.s32 %v734, 7808
          %v796 = vadd.s32 %v734, 7936
          %v797 = vadd.s32 %v734, 8064
          %v798 = vadd.s32 %v734, 8192
          %v799 = vadd.s32 %v734, 8320
          %v800 = vadd.s32 %v734, 8448
          %v801 = vadd.s32 %v734, 8576
          %v802 = vadd.s32 %v734, 8704
          %v803 = vadd.s32 %v734, 8832
          %v804 = vadd.s32 %v734, 8960
          %v805 = vadd.s32 %v734, 9088
          %v806 = vadd.s32 %v734, 9216
          %v807 = vadd.s32 %v734, 9344
          %v808 = vadd.s32 %v734, 9472
          %v809 = vadd.s32 %v734, 9600
          %v810 = vadd.s32 %v734, 9728
          %v811 = vadd.s32 %v734, 9856
          %v812 = vadd.s32 %v734, 9984
          %v813 = vadd.s32 %v734, 10112
          %v814 = vadd.s32 %v734, 10240
          %v815 = vadd.s32 %v734, 10368
          %v816 = vadd.s32 %v734, 10496
          %v817 = vadd.s32 %v734, 10624
          %v818 = vadd.s32 %v734, 10752
          %v819 = vadd.s32 %v734, 10880
          %v820 = vadd.s32 %v734, 11008
          %v821 = vadd.s32 %v734, 11136
          %v822 = vadd.s32 %v734, 11264
          %v823 = vadd.s32 %v734, 11392
          %v824 = vadd.s32 %v734, 11520
          %v825 = vadd.s32 %v734, 11648
          %v826 = vadd.s32 %v734, 11776
          %v827 = vadd.s32 %v734, 11904
          %v828 = vadd.s32 %v734, 12032
          %v829 = vadd.s32 %v734, 12160
          %v830 = vadd.s32 %v734, 12288
          %v831 = vadd.s32 %v734, 12416
          %v832 = vadd.s32 %v734, 12544
          %v833 = vadd.s32 %v734, 12672
          %v834 = vadd.s32 %v734, 12800
          %v835 = vadd.s32 %v734, 12928
          %v836 = vadd.s32 %v734, 13056
          %v837 = vadd.s32 %v734, 13184
          %v838 = vadd.s32 %v734, 13312
          %v839 = vadd.s32 %v734, 13440
          %v840 = vadd.s32 %v734, 13568
          %v841 = vadd.s32 %v734, 13696
          %v842 = vadd.s32 %v734, 13824
          %v843 = vadd.s32 %v734, 13952
          %v844 = vadd.s32 %v734, 14080
          %v845 = vadd.s32 %v734, 14208
          %v846 = vadd.s32 %v734, 14336
          %v847 = vadd.s32 %v734, 14464
          %v848 = vadd.s32 %v734, 14592
          %v849 = vadd.s32 %v734, 14720
          %v850 = vadd.s32 %v734, 14848
          %v851 = vadd.s32 %v734, 14976
          %v852 = vadd.s32 %v734, 15104
          %v853 = vadd.s32 %v734, 15232
          %v854 = vadd.s32 %v734, 15360
          %v855 = vadd.s32 %v734, 15488
          %v856 = vadd.s32 %v734, 15616
          %v857 = vadd.s32 %v734, 15744
          %v858 = vadd.s32 %v734, 15872
          %v859 = vadd.s32 %v734, 16000
          %v860 = vadd.s32 %v734, 16128
          %v861 = vadd.s32 %v734, 16256
          %v862 = vadd.s32 %v734, 16384
          %v863 = vadd.s32 %v734, 16512
          %v864 = vadd.s32 %v734, 16640
          %v865 = vadd.s32 %v734, 16768
          %v866 = vadd.s32 %v734, 16896
          %v867 = vadd.s32 %v734, 17024
          %v868 = vadd.s32 %v734, 17152
          %v869 = vadd.s32 %v734, 17280
          %v870 = vadd.s32 %v734, 17408
          %v871 = vadd.s32 %v734, 17536
          %v872 = vadd.s32 %v734, 17664
          %v873 = vadd.s32 %v734, 17792
          %v874 = vadd.s32 %v734, 17920
          %v875 = vadd.s32 %v734, 18048
          %v876 = vadd.s32 %v734, 18176
          %v877 = vadd.s32 %v734, 18304
          %v878 = vadd.s32 %v734, 18432
          %v879 = vadd.s32 %v734, 18560
          %v880 = vadd.s32 %v734, 18688
          %v881 = vadd.s32 %v734, 18816
          %v882 = vadd.s32 %v734, 18944
          %v883 = vadd.s32 %v734, 19072
          %v884 = vadd.s32 %v734, 19200
          %v885 = vadd.s32 %v734, 19328
          %v886 = vadd.s32 %v734, 19456
          %v887 = vadd.s32 %v734, 19584
          %v888 = vadd.s32 %v734, 19712
          %v889 = vadd.s32 %v734, 19840
          %v890 = vadd.s32 %v734, 19968
          %v891 = vadd.s32 %v734, 20096
          %v892 = vadd.s32 %v734, 20224
          %v893 = vadd.s32 %v734, 20352
          %v894 = vadd.s32 %v734, 20480
          %v895 = vadd.s32 %v734, 20608
          %v896 = vadd.s32 %v734, 20736
          %v897 = vadd.s32 %v734, 20864
          %v898 = vadd.s32 %v734, 20992
          %v899 = vadd.s32 %v734, 21120
          %v900 = vadd.s32 %v734, 21248
          %v901 = vadd.s32 %v734, 21376
          %v902 = vadd.s32 %v734, 21504
          %v903 = vadd.s32 %v734, 21632
          %v904 = vadd.s32 %v734, 21760
          %v905 = vadd.s32 %v734, 21888
          %v906 = vadd.s32 %v734, 22016
          %v907 = vadd.s32 %v734, 22144
          %v908 = vadd.s32 %v734, 22272
          %v909 = vadd.s32 %v734, 22400
          %v910 = vadd.s32 %v734, 22528
          %v911 = vadd.s32 %v734, 22656
          %v912 = vadd.s32 %v734, 22784
          %v913 = vadd.s32 %v734, 22912
          %v914 = vadd.s32 %v734, 23040
          %v915 = vadd.s32 %v734, 23168
          %v916 = vadd.s32 %v734, 23296
          %v917 = vadd.s32 %v734, 23424
          %v918 = vadd.s32 %v734, 23552
          %v919 = vadd.s32 %v734, 23680
          %v920 = vadd.s32 %v734, 23808
          %v921 = vadd.s32 %v734, 23936
          %v922 = vadd.s32 %v734, 24064
          %v923 = vadd.s32 %v734, 24192
          %v924 = vadd.s32 %v734, 24320
          %v925 = vadd.s32 %v734, 24448
          %v926 = vadd.s32 %v734, 24576
          %v927 = vadd.s32 %v734, 24704
          %v928 = vadd.s32 %v734, 24832
          %v929 = vadd.s32 %v734, 24960
          %v930 = vadd.s32 %v734, 25088
          %s931 = smul.u32 %s23, 25216
          %v932 = vstv %s931
          %v933 = vadd.s32 %v932, %v734
          %v934 = vadd.s32 %v932, %v735
          %v935 = vadd.s32 %v932, %v736
          %v936 = vadd.s32 %v932, %v737
          %v937 = vadd.s32 %v932, %v738
          %v938 = vadd.s32 %v932, %v739
          %v939 = vadd.s32 %v932, %v740
          %v940 = vadd.s32 %v932, %v741
          %v941 = vadd.s32 %v932, %v742
          %v942 = vadd.s32 %v932, %v743
          %v943 = vadd.s32 %v932, %v744
          %v944 = vadd.s32 %v932, %v745
          %v945 = vadd.s32 %v932, %v746
          %v946 = vadd.s32 %v932, %v747
          %v947 = vadd.s32 %v932, %v748
          %v948 = vadd.s32 %v932, %v749
          %v949 = vadd.s32 %v932, %v750
          %v950 = vadd.s32 %v932, %v751
          %v951 = vadd.s32 %v932, %v752
          %v952 = vadd.s32 %v932, %v753
          %v953 = vadd.s32 %v932, %v754
          %v954 = vadd.s32 %v932, %v755
          %v955 = vadd.s32 %v932, %v756
          %v956 = vadd.s32 %v932, %v757
          %v957 = vadd.s32 %v932, %v758
          %v958 = vadd.s32 %v932, %v759
          %v959 = vadd.s32 %v932, %v760
          %v960 = vadd.s32 %v932, %v761
          %v961 = vadd.s32 %v932, %v762
          %v962 = vadd.s32 %v932, %v763
          %v963 = vadd.s32 %v932, %v764
          %v964 = vadd.s32 %v932, %v765
          %v965 = vadd.s32 %v932, %v766
          %v966 = vadd.s32 %v932, %v767
          %v967 = vadd.s32 %v932, %v768
          %v968 = vadd.s32 %v932, %v769
          %v969 = vadd.s32 %v932, %v770
          %v970 = vadd.s32 %v932, %v771
          %v971 = vadd.s32 %v932, %v772
          %v972 = vadd.s32 %v932, %v773
          %v973 = vadd.s32 %v932, %v774
          %v974 = vadd.s32 %v932, %v775
          %v975 = vadd.s32 %v932, %v776
          %v976 = vadd.s32 %v932, %v777
          %v977 = vadd.s32 %v932, %v778
          %v978 = vadd.s32 %v932, %v779
          %v979 = vadd.s32 %v932, %v780
          %v980 = vadd.s32 %v932, %v781
          %v981 = vadd.s32 %v932, %v782
          %v982 = vadd.s32 %v932, %v783
          %v983 = vadd.s32 %v932, %v784
          %v984 = vadd.s32 %v932, %v785
          %v985 = vadd.s32 %v932, %v786
          %v986 = vadd.s32 %v932, %v787
          %v987 = vadd.s32 %v932, %v788
          %v988 = vadd.s32 %v932, %v789
          %v989 = vadd.s32 %v932, %v790
          %v990 = vadd.s32 %v932, %v791
          %v991 = vadd.s32 %v932, %v792
          %v992 = vadd.s32 %v932, %v793
          %v993 = vadd.s32 %v932, %v794
          %v994 = vadd.s32 %v932, %v795
          %v995 = vadd.s32 %v932, %v796
          %v996 = vadd.s32 %v932, %v797
          %v997 = vadd.s32 %v932, %v798
          %v998 = vadd.s32 %v932, %v799
          %v999 = vadd.s32 %v932, %v800
          %v1000 = vadd.s32 %v932, %v801
          %v1001 = vadd.s32 %v932, %v802
          %v1002 = vadd.s32 %v932, %v803
          %v1003 = vadd.s32 %v932, %v804
          %v1004 = vadd.s32 %v932, %v805
          %v1005 = vadd.s32 %v932, %v806
          %v1006 = vadd.s32 %v932, %v807
          %v1007 = vadd.s32 %v932, %v808
          %v1008 = vadd.s32 %v932, %v809
          %v1009 = vadd.s32 %v932, %v810
          %v1010 = vadd.s32 %v932, %v811
          %v1011 = vadd.s32 %v932, %v812
          %v1012 = vadd.s32 %v932, %v813
          %v1013 = vadd.s32 %v932, %v814
          %v1014 = vadd.s32 %v932, %v815
          %v1015 = vadd.s32 %v932, %v816
          %v1016 = vadd.s32 %v932, %v817
          %v1017 = vadd.s32 %v932, %v818
          %v1018 = vadd.s32 %v932, %v819
          %v1019 = vadd.s32 %v932, %v820
          %v1020 = vadd.s32 %v932, %v821
          %v1021 = vadd.s32 %v932, %v822
          %v1022 = vadd.s32 %v932, %v823
          %v1023 = vadd.s32 %v932, %v824
          %v1024 = vadd.s32 %v932, %v825
          %v1025 = vadd.s32 %v932, %v826
          %v1026 = vadd.s32 %v932, %v827
          %v1027 = vadd.s32 %v932, %v828
          %v1028 = vadd.s32 %v932, %v829
          %v1029 = vadd.s32 %v932, %v830
          %v1030 = vadd.s32 %v932, %v831
          %v1031 = vadd.s32 %v932, %v832
          %v1032 = vadd.s32 %v932, %v833
          %v1033 = vadd.s32 %v932, %v834
          %v1034 = vadd.s32 %v932, %v835
          %v1035 = vadd.s32 %v932, %v836
          %v1036 = vadd.s32 %v932, %v837
          %v1037 = vadd.s32 %v932, %v838
          %v1038 = vadd.s32 %v932, %v839
          %v1039 = vadd.s32 %v932, %v840
          %v1040 = vadd.s32 %v932, %v841
          %v1041 = vadd.s32 %v932, %v842
          %v1042 = vadd.s32 %v932, %v843
          %v1043 = vadd.s32 %v932, %v844
          %v1044 = vadd.s32 %v932, %v845
          %v1045 = vadd.s32 %v932, %v846
          %v1046 = vadd.s32 %v932, %v847
          %v1047 = vadd.s32 %v932, %v848
          %v1048 = vadd.s32 %v932, %v849
          %v1049 = vadd.s32 %v932, %v850
          %v1050 = vadd.s32 %v932, %v851
          %v1051 = vadd.s32 %v932, %v852
          %v1052 = vadd.s32 %v932, %v853
          %v1053 = vadd.s32 %v932, %v854
          %v1054 = vadd.s32 %v932, %v855
          %v1055 = vadd.s32 %v932, %v856
          %v1056 = vadd.s32 %v932, %v857
          %v1057 = vadd.s32 %v932, %v858
          %v1058 = vadd.s32 %v932, %v859
          %v1059 = vadd.s32 %v932, %v860
          %v1060 = vadd.s32 %v932, %v861
          %v1061 = vadd.s32 %v932, %v862
          %v1062 = vadd.s32 %v932, %v863
          %v1063 = vadd.s32 %v932, %v864
          %v1064 = vadd.s32 %v932, %v865
          %v1065 = vadd.s32 %v932, %v866
          %v1066 = vadd.s32 %v932, %v867
          %v1067 = vadd.s32 %v932, %v868
          %v1068 = vadd.s32 %v932, %v869
          %v1069 = vadd.s32 %v932, %v870
          %v1070 = vadd.s32 %v932, %v871
          %v1071 = vadd.s32 %v932, %v872
          %v1072 = vadd.s32 %v932, %v873
          %v1073 = vadd.s32 %v932, %v874
          %v1074 = vadd.s32 %v932, %v875
          %v1075 = vadd.s32 %v932, %v876
          %v1076 = vadd.s32 %v932, %v877
          %v1077 = vadd.s32 %v932, %v878
          %v1078 = vadd.s32 %v932, %v879
          %v1079 = vadd.s32 %v932, %v880
          %v1080 = vadd.s32 %v932, %v881
          %v1081 = vadd.s32 %v932, %v882
          %v1082 = vadd.s32 %v932, %v883
          %v1083 = vadd.s32 %v932, %v884
          %v1084 = vadd.s32 %v932, %v885
          %v1085 = vadd.s32 %v932, %v886
          %v1086 = vadd.s32 %v932, %v887
          %v1087 = vadd.s32 %v932, %v888
          %v1088 = vadd.s32 %v932, %v889
          %v1089 = vadd.s32 %v932, %v890
          %v1090 = vadd.s32 %v932, %v891
          %v1091 = vadd.s32 %v932, %v892
          %v1092 = vadd.s32 %v932, %v893
          %v1093 = vadd.s32 %v932, %v894
          %v1094 = vadd.s32 %v932, %v895
          %v1095 = vadd.s32 %v932, %v896
          %v1096 = vadd.s32 %v932, %v897
          %v1097 = vadd.s32 %v932, %v898
          %v1098 = vadd.s32 %v932, %v899
          %v1099 = vadd.s32 %v932, %v900
          %v1100 = vadd.s32 %v932, %v901
          %v1101 = vadd.s32 %v932, %v902
          %v1102 = vadd.s32 %v932, %v903
          %v1103 = vadd.s32 %v932, %v904
          %v1104 = vadd.s32 %v932, %v905
          %v1105 = vadd.s32 %v932, %v906
          %v1106 = vadd.s32 %v932, %v907
          %v1107 = vadd.s32 %v932, %v908
          %v1108 = vadd.s32 %v932, %v909
          %v1109 = vadd.s32 %v932, %v910
          %v1110 = vadd.s32 %v932, %v911
          %v1111 = vadd.s32 %v932, %v912
          %v1112 = vadd.s32 %v932, %v913
          %v1113 = vadd.s32 %v932, %v914
          %v1114 = vadd.s32 %v932, %v915
          %v1115 = vadd.s32 %v932, %v916
          %v1116 = vadd.s32 %v932, %v917
          %v1117 = vadd.s32 %v932, %v918
          %v1118 = vadd.s32 %v932, %v919
          %v1119 = vadd.s32 %v932, %v920
          %v1120 = vadd.s32 %v932, %v921
          %v1121 = vadd.s32 %v932, %v922
          %v1122 = vadd.s32 %v932, %v923
          %v1123 = vadd.s32 %v932, %v924
          %v1124 = vadd.s32 %v932, %v925
          %v1125 = vadd.s32 %v932, %v926
          %v1126 = vadd.s32 %v932, %v927
          %v1127 = vadd.s32 %v932, %v928
          %v1128 = vadd.s32 %v932, %v929
          %v1129 = vadd.s32 %v932, %v930
          %vm1130 = vcmp.lt.s32.totalorder %v933, 50265
          %vm1131 = vcmp.lt.s32.totalorder %v934, 50265
          %vm1132 = vcmp.lt.s32.totalorder %v935, 50265
          %vm1133 = vcmp.lt.s32.totalorder %v936, 50265
          %vm1134 = vcmp.lt.s32.totalorder %v937, 50265
          %vm1135 = vcmp.lt.s32.totalorder %v938, 50265
          %vm1136 = vcmp.lt.s32.totalorder %v939, 50265
          %vm1137 = vcmp.lt.s32.totalorder %v940, 50265
          %vm1138 = vcmp.lt.s32.totalorder %v941, 50265
          %vm1139 = vcmp.lt.s32.totalorder %v942, 50265
          %vm1140 = vcmp.lt.s32.totalorder %v943, 50265
          %vm1141 = vcmp.lt.s32.totalorder %v944, 50265
          %vm1142 = vcmp.lt.s32.totalorder %v945, 50265
          %vm1143 = vcmp.lt.s32.totalorder %v946, 50265
          %vm1144 = vcmp.lt.s32.totalorder %v947, 50265
          %vm1145 = vcmp.lt.s32.totalorder %v948, 50265
          %vm1146 = vcmp.lt.s32.totalorder %v949, 50265
          %vm1147 = vcmp.lt.s32.totalorder %v950, 50265
          %vm1148 = vcmp.lt.s32.totalorder %v951, 50265
          %vm1149 = vcmp.lt.s32.totalorder %v952, 50265
          %vm1150 = vcmp.lt.s32.totalorder %v953, 50265
          %vm1151 = vcmp.lt.s32.totalorder %v954, 50265
          %vm1152 = vcmp.lt.s32.totalorder %v955, 50265
          %vm1153 = vcmp.lt.s32.totalorder %v956, 50265
          %vm1154 = vcmp.lt.s32.totalorder %v957, 50265
          %vm1155 = vcmp.lt.s32.totalorder %v958, 50265
          %vm1156 = vcmp.lt.s32.totalorder %v959, 50265
          %vm1157 = vcmp.lt.s32.totalorder %v960, 50265
          %vm1158 = vcmp.lt.s32.totalorder %v961, 50265
          %vm1159 = vcmp.lt.s32.totalorder %v962, 50265
          %vm1160 = vcmp.lt.s32.totalorder %v963, 50265
          %vm1161 = vcmp.lt.s32.totalorder %v964, 50265
          %vm1162 = vcmp.lt.s32.totalorder %v965, 50265
          %vm1163 = vcmp.lt.s32.totalorder %v966, 50265
          %vm1164 = vcmp.lt.s32.totalorder %v967, 50265
          %vm1165 = vcmp.lt.s32.totalorder %v968, 50265
          %vm1166 = vcmp.lt.s32.totalorder %v969, 50265
          %vm1167 = vcmp.lt.s32.totalorder %v970, 50265
          %vm1168 = vcmp.lt.s32.totalorder %v971, 50265
          %vm1169 = vcmp.lt.s32.totalorder %v972, 50265
          %vm1170 = vcmp.lt.s32.totalorder %v973, 50265
          %vm1171 = vcmp.lt.s32.totalorder %v974, 50265
          %vm1172 = vcmp.lt.s32.totalorder %v975, 50265
          %vm1173 = vcmp.lt.s32.totalorder %v976, 50265
          %vm1174 = vcmp.lt.s32.totalorder %v977, 50265
          %vm1175 = vcmp.lt.s32.totalorder %v978, 50265
          %vm1176 = vcmp.lt.s32.totalorder %v979, 50265
          %vm1177 = vcmp.lt.s32.totalorder %v980, 50265
          %vm1178 = vcmp.lt.s32.totalorder %v981, 50265
          %vm1179 = vcmp.lt.s32.totalorder %v982, 50265
          %vm1180 = vcmp.lt.s32.totalorder %v983, 50265
          %vm1181 = vcmp.lt.s32.totalorder %v984, 50265
          %vm1182 = vcmp.lt.s32.totalorder %v985, 50265
          %vm1183 = vcmp.lt.s32.totalorder %v986, 50265
          %vm1184 = vcmp.lt.s32.totalorder %v987, 50265
          %vm1185 = vcmp.lt.s32.totalorder %v988, 50265
          %vm1186 = vcmp.lt.s32.totalorder %v989, 50265
          %vm1187 = vcmp.lt.s32.totalorder %v990, 50265
          %vm1188 = vcmp.lt.s32.totalorder %v991, 50265
          %vm1189 = vcmp.lt.s32.totalorder %v992, 50265
          %vm1190 = vcmp.lt.s32.totalorder %v993, 50265
          %vm1191 = vcmp.lt.s32.totalorder %v994, 50265
          %vm1192 = vcmp.lt.s32.totalorder %v995, 50265
          %vm1193 = vcmp.lt.s32.totalorder %v996, 50265
          %vm1194 = vcmp.lt.s32.totalorder %v997, 50265
          %vm1195 = vcmp.lt.s32.totalorder %v998, 50265
          %vm1196 = vcmp.lt.s32.totalorder %v999, 50265
          %vm1197 = vcmp.lt.s32.totalorder %v1000, 50265
          %vm1198 = vcmp.lt.s32.totalorder %v1001, 50265
          %vm1199 = vcmp.lt.s32.totalorder %v1002, 50265
          %vm1200 = vcmp.lt.s32.totalorder %v1003, 50265
          %vm1201 = vcmp.lt.s32.totalorder %v1004, 50265
          %vm1202 = vcmp.lt.s32.totalorder %v1005, 50265
          %vm1203 = vcmp.lt.s32.totalorder %v1006, 50265
          %vm1204 = vcmp.lt.s32.totalorder %v1007, 50265
          %vm1205 = vcmp.lt.s32.totalorder %v1008, 50265
          %vm1206 = vcmp.lt.s32.totalorder %v1009, 50265
          %vm1207 = vcmp.lt.s32.totalorder %v1010, 50265
          %vm1208 = vcmp.lt.s32.totalorder %v1011, 50265
          %vm1209 = vcmp.lt.s32.totalorder %v1012, 50265
          %vm1210 = vcmp.lt.s32.totalorder %v1013, 50265
          %vm1211 = vcmp.lt.s32.totalorder %v1014, 50265
          %vm1212 = vcmp.lt.s32.totalorder %v1015, 50265
          %vm1213 = vcmp.lt.s32.totalorder %v1016, 50265
          %vm1214 = vcmp.lt.s32.totalorder %v1017, 50265
          %vm1215 = vcmp.lt.s32.totalorder %v1018, 50265
          %vm1216 = vcmp.lt.s32.totalorder %v1019, 50265
          %vm1217 = vcmp.lt.s32.totalorder %v1020, 50265
          %vm1218 = vcmp.lt.s32.totalorder %v1021, 50265
          %vm1219 = vcmp.lt.s32.totalorder %v1022, 50265
          %vm1220 = vcmp.lt.s32.totalorder %v1023, 50265
          %vm1221 = vcmp.lt.s32.totalorder %v1024, 50265
          %vm1222 = vcmp.lt.s32.totalorder %v1025, 50265
          %vm1223 = vcmp.lt.s32.totalorder %v1026, 50265
          %vm1224 = vcmp.lt.s32.totalorder %v1027, 50265
          %vm1225 = vcmp.lt.s32.totalorder %v1028, 50265
          %vm1226 = vcmp.lt.s32.totalorder %v1029, 50265
          %vm1227 = vcmp.lt.s32.totalorder %v1030, 50265
          %vm1228 = vcmp.lt.s32.totalorder %v1031, 50265
          %vm1229 = vcmp.lt.s32.totalorder %v1032, 50265
          %vm1230 = vcmp.lt.s32.totalorder %v1033, 50265
          %vm1231 = vcmp.lt.s32.totalorder %v1034, 50265
          %vm1232 = vcmp.lt.s32.totalorder %v1035, 50265
          %vm1233 = vcmp.lt.s32.totalorder %v1036, 50265
          %vm1234 = vcmp.lt.s32.totalorder %v1037, 50265
          %vm1235 = vcmp.lt.s32.totalorder %v1038, 50265
          %vm1236 = vcmp.lt.s32.totalorder %v1039, 50265
          %vm1237 = vcmp.lt.s32.totalorder %v1040, 50265
          %vm1238 = vcmp.lt.s32.totalorder %v1041, 50265
          %vm1239 = vcmp.lt.s32.totalorder %v1042, 50265
          %vm1240 = vcmp.lt.s32.totalorder %v1043, 50265
          %vm1241 = vcmp.lt.s32.totalorder %v1044, 50265
          %vm1242 = vcmp.lt.s32.totalorder %v1045, 50265
          %vm1243 = vcmp.lt.s32.totalorder %v1046, 50265
          %vm1244 = vcmp.lt.s32.totalorder %v1047, 50265
          %vm1245 = vcmp.lt.s32.totalorder %v1048, 50265
          %vm1246 = vcmp.lt.s32.totalorder %v1049, 50265
          %vm1247 = vcmp.lt.s32.totalorder %v1050, 50265
          %vm1248 = vcmp.lt.s32.totalorder %v1051, 50265
          %vm1249 = vcmp.lt.s32.totalorder %v1052, 50265
          %vm1250 = vcmp.lt.s32.totalorder %v1053, 50265
          %vm1251 = vcmp.lt.s32.totalorder %v1054, 50265
          %vm1252 = vcmp.lt.s32.totalorder %v1055, 50265
          %vm1253 = vcmp.lt.s32.totalorder %v1056, 50265
          %vm1254 = vcmp.lt.s32.totalorder %v1057, 50265
          %vm1255 = vcmp.lt.s32.totalorder %v1058, 50265
          %vm1256 = vcmp.lt.s32.totalorder %v1059, 50265
          %vm1257 = vcmp.lt.s32.totalorder %v1060, 50265
          %vm1258 = vcmp.lt.s32.totalorder %v1061, 50265
          %vm1259 = vcmp.lt.s32.totalorder %v1062, 50265
          %vm1260 = vcmp.lt.s32.totalorder %v1063, 50265
          %vm1261 = vcmp.lt.s32.totalorder %v1064, 50265
          %vm1262 = vcmp.lt.s32.totalorder %v1065, 50265
          %vm1263 = vcmp.lt.s32.totalorder %v1066, 50265
          %vm1264 = vcmp.lt.s32.totalorder %v1067, 50265
          %vm1265 = vcmp.lt.s32.totalorder %v1068, 50265
          %vm1266 = vcmp.lt.s32.totalorder %v1069, 50265
          %vm1267 = vcmp.lt.s32.totalorder %v1070, 50265
          %vm1268 = vcmp.lt.s32.totalorder %v1071, 50265
          %vm1269 = vcmp.lt.s32.totalorder %v1072, 50265
          %vm1270 = vcmp.lt.s32.totalorder %v1073, 50265
          %vm1271 = vcmp.lt.s32.totalorder %v1074, 50265
          %vm1272 = vcmp.lt.s32.totalorder %v1075, 50265
          %vm1273 = vcmp.lt.s32.totalorder %v1076, 50265
          %vm1274 = vcmp.lt.s32.totalorder %v1077, 50265
          %vm1275 = vcmp.lt.s32.totalorder %v1078, 50265
          %vm1276 = vcmp.lt.s32.totalorder %v1079, 50265
          %vm1277 = vcmp.lt.s32.totalorder %v1080, 50265
          %vm1278 = vcmp.lt.s32.totalorder %v1081, 50265
          %vm1279 = vcmp.lt.s32.totalorder %v1082, 50265
          %vm1280 = vcmp.lt.s32.totalorder %v1083, 50265
          %vm1281 = vcmp.lt.s32.totalorder %v1084, 50265
          %vm1282 = vcmp.lt.s32.totalorder %v1085, 50265
          %vm1283 = vcmp.lt.s32.totalorder %v1086, 50265
          %vm1284 = vcmp.lt.s32.totalorder %v1087, 50265
          %vm1285 = vcmp.lt.s32.totalorder %v1088, 50265
          %vm1286 = vcmp.lt.s32.totalorder %v1089, 50265
          %vm1287 = vcmp.lt.s32.totalorder %v1090, 50265
          %vm1288 = vcmp.lt.s32.totalorder %v1091, 50265
          %vm1289 = vcmp.lt.s32.totalorder %v1092, 50265
          %vm1290 = vcmp.lt.s32.totalorder %v1093, 50265
          %vm1291 = vcmp.lt.s32.totalorder %v1094, 50265
          %vm1292 = vcmp.lt.s32.totalorder %v1095, 50265
          %vm1293 = vcmp.lt.s32.totalorder %v1096, 50265
          %vm1294 = vcmp.lt.s32.totalorder %v1097, 50265
          %vm1295 = vcmp.lt.s32.totalorder %v1098, 50265
          %vm1296 = vcmp.lt.s32.totalorder %v1099, 50265
          %vm1297 = vcmp.lt.s32.totalorder %v1100, 50265
          %vm1298 = vcmp.lt.s32.totalorder %v1101, 50265
          %vm1299 = vcmp.lt.s32.totalorder %v1102, 50265
          %vm1300 = vcmp.lt.s32.totalorder %v1103, 50265
          %vm1301 = vcmp.lt.s32.totalorder %v1104, 50265
          %vm1302 = vcmp.lt.s32.totalorder %v1105, 50265
          %vm1303 = vcmp.lt.s32.totalorder %v1106, 50265
          %vm1304 = vcmp.lt.s32.totalorder %v1107, 50265
          %vm1305 = vcmp.lt.s32.totalorder %v1108, 50265
          %vm1306 = vcmp.lt.s32.totalorder %v1109, 50265
          %vm1307 = vcmp.lt.s32.totalorder %v1110, 50265
          %vm1308 = vcmp.lt.s32.totalorder %v1111, 50265
          %vm1309 = vcmp.lt.s32.totalorder %v1112, 50265
          %vm1310 = vcmp.lt.s32.totalorder %v1113, 50265
          %vm1311 = vcmp.lt.s32.totalorder %v1114, 50265
          %vm1312 = vcmp.lt.s32.totalorder %v1115, 50265
          %vm1313 = vcmp.lt.s32.totalorder %v1116, 50265
          %vm1314 = vcmp.lt.s32.totalorder %v1117, 50265
          %vm1315 = vcmp.lt.s32.totalorder %v1118, 50265
          %vm1316 = vcmp.lt.s32.totalorder %v1119, 50265
          %vm1317 = vcmp.lt.s32.totalorder %v1120, 50265
          %vm1318 = vcmp.lt.s32.totalorder %v1121, 50265
          %vm1319 = vcmp.lt.s32.totalorder %v1122, 50265
          %vm1320 = vcmp.lt.s32.totalorder %v1123, 50265
          %vm1321 = vcmp.lt.s32.totalorder %v1124, 50265
          %vm1322 = vcmp.lt.s32.totalorder %v1125, 50265
          %vm1323 = vcmp.lt.s32.totalorder %v1126, 50265
          %vm1324 = vcmp.lt.s32.totalorder %v1127, 50265
          %vm1325 = vcmp.lt.s32.totalorder %v1128, 50265
          %vm1326 = vcmp.lt.s32.totalorder %v1129, 50265
          %v1352 = vlaneseq
          %v1353 = vshrl.u32 %v1352, 7
          %v1354 = vsub.s32 0, %v1353
          %v1355 = vrot.slane %v310, %v1354
          %v1356 = vlaneseq
          %v1357 = vshrl.u32 %v1356, 7
          %v1358 = vsub.s32 1, %v1357
          %v1359 = vrot.slane %v310, %v1358
          %v1360 = vlaneseq
          %v1361 = vshrl.u32 %v1360, 7
          %v1362 = vsub.s32 2, %v1361
          %v1363 = vrot.slane %v310, %v1362
          %v1364 = vlaneseq
          %v1365 = vshrl.u32 %v1364, 7
          %v1366 = vsub.s32 3, %v1365
          %v1367 = vrot.slane %v310, %v1366
          %v1368 = vlaneseq
          %v1369 = vshrl.u32 %v1368, 7
          %v1370 = vsub.s32 4, %v1369
          %v1371 = vrot.slane %v310, %v1370
          %v1372 = vlaneseq
          %v1373 = vshrl.u32 %v1372, 7
          %v1374 = vsub.s32 5, %v1373
          %v1375 = vrot.slane %v310, %v1374
          %v1376 = vlaneseq
          %v1377 = vshrl.u32 %v1376, 7
          %v1378 = vsub.s32 6, %v1377
          %v1379 = vrot.slane %v310, %v1378
          %v1380 = vlaneseq
          %v1381 = vshrl.u32 %v1380, 7
          %v1382 = vsub.s32 7, %v1381
          %v1383 = vrot.slane %v310, %v1382
          %v1384 = vlaneseq
          %v1385 = vshrl.u32 %v1384, 7
          %v1386 = vsub.s32 0, %v1385
          %v1387 = vrot.slane %v311, %v1386
          %v1388 = vlaneseq
          %v1389 = vshrl.u32 %v1388, 7
          %v1390 = vsub.s32 1, %v1389
          %v1391 = vrot.slane %v311, %v1390
          %v1392 = vlaneseq
          %v1393 = vshrl.u32 %v1392, 7
          %v1394 = vsub.s32 2, %v1393
          %v1395 = vrot.slane %v311, %v1394
          %v1396 = vlaneseq
          %v1397 = vshrl.u32 %v1396, 7
          %v1398 = vsub.s32 3, %v1397
          %v1399 = vrot.slane %v311, %v1398
          %v1400 = vlaneseq
          %v1401 = vshrl.u32 %v1400, 7
          %v1402 = vsub.s32 4, %v1401
          %v1403 = vrot.slane %v311, %v1402
          %v1404 = vlaneseq
          %v1405 = vshrl.u32 %v1404, 7
          %v1406 = vsub.s32 5, %v1405
          %v1407 = vrot.slane %v311, %v1406
          %v1408 = vlaneseq
          %v1409 = vshrl.u32 %v1408, 7
          %v1410 = vsub.s32 6, %v1409
          %v1411 = vrot.slane %v311, %v1410
          %v1412 = vlaneseq
          %v1413 = vshrl.u32 %v1412, 7
          %v1414 = vsub.s32 7, %v1413
          %v1415 = vrot.slane %v311, %v1414
          %v1416 = vlaneseq
          %v1417 = vshrl.u32 %v1416, 7
          %v1418 = vsub.s32 0, %v1417
          %v1419 = vrot.slane %v312, %v1418
          %v1420 = vlaneseq
          %v1421 = vshrl.u32 %v1420, 7
          %v1422 = vsub.s32 1, %v1421
          %v1423 = vrot.slane %v312, %v1422
          %v1424 = vlaneseq
          %v1425 = vshrl.u32 %v1424, 7
          %v1426 = vsub.s32 2, %v1425
          %v1427 = vrot.slane %v312, %v1426
          %v1428 = vlaneseq
          %v1429 = vshrl.u32 %v1428, 7
          %v1430 = vsub.s32 3, %v1429
          %v1431 = vrot.slane %v312, %v1430
          %v1432 = vlaneseq
          %v1433 = vshrl.u32 %v1432, 7
          %v1434 = vsub.s32 4, %v1433
          %v1435 = vrot.slane %v312, %v1434
          %v1436 = vlaneseq
          %v1437 = vshrl.u32 %v1436, 7
          %v1438 = vsub.s32 5, %v1437
          %v1439 = vrot.slane %v312, %v1438
          %v1440 = vlaneseq
          %v1441 = vshrl.u32 %v1440, 7
          %v1442 = vsub.s32 6, %v1441
          %v1443 = vrot.slane %v312, %v1442
          %v1444 = vlaneseq
          %v1445 = vshrl.u32 %v1444, 7
          %v1446 = vsub.s32 7, %v1445
          %v1447 = vrot.slane %v312, %v1446
          %v1448 = vlaneseq
          %v1449 = vshrl.u32 %v1448, 7
          %v1450 = vsub.s32 0, %v1449
          %v1451 = vrot.slane %v313, %v1450
          %v1452 = vlaneseq
          %v1453 = vshrl.u32 %v1452, 7
          %v1454 = vsub.s32 1, %v1453
          %v1455 = vrot.slane %v313, %v1454
          %v1456 = vlaneseq
          %v1457 = vshrl.u32 %v1456, 7
          %v1458 = vsub.s32 2, %v1457
          %v1459 = vrot.slane %v313, %v1458
          %v1460 = vlaneseq
          %v1461 = vshrl.u32 %v1460, 7
          %v1462 = vsub.s32 3, %v1461
          %v1463 = vrot.slane %v313, %v1462
          %v1464 = vlaneseq
          %v1465 = vshrl.u32 %v1464, 7
          %v1466 = vsub.s32 4, %v1465
          %v1467 = vrot.slane %v313, %v1466
          %v1468 = vlaneseq
          %v1469 = vshrl.u32 %v1468, 7
          %v1470 = vsub.s32 5, %v1469
          %v1471 = vrot.slane %v313, %v1470
          %v1472 = vlaneseq
          %v1473 = vshrl.u32 %v1472, 7
          %v1474 = vsub.s32 6, %v1473
          %v1475 = vrot.slane %v313, %v1474
          %v1476 = vlaneseq
          %v1477 = vshrl.u32 %v1476, 7
          %v1478 = vsub.s32 7, %v1477
          %v1479 = vrot.slane %v313, %v1478
          %v1480 = vlaneseq
          %v1481 = vshrl.u32 %v1480, 7
          %v1482 = vsub.s32 0, %v1481
          %v1483 = vrot.slane %v314, %v1482
          %v1484 = vlaneseq
          %v1485 = vshrl.u32 %v1484, 7
          %v1486 = vsub.s32 1, %v1485
          %v1487 = vrot.slane %v314, %v1486
          %v1488 = vlaneseq
          %v1489 = vshrl.u32 %v1488, 7
          %v1490 = vsub.s32 2, %v1489
          %v1491 = vrot.slane %v314, %v1490
          %v1492 = vlaneseq
          %v1493 = vshrl.u32 %v1492, 7
          %v1494 = vsub.s32 3, %v1493
          %v1495 = vrot.slane %v314, %v1494
          %v1496 = vlaneseq
          %v1497 = vshrl.u32 %v1496, 7
          %v1498 = vsub.s32 4, %v1497
          %v1499 = vrot.slane %v314, %v1498
          %v1500 = vlaneseq
          %v1501 = vshrl.u32 %v1500, 7
          %v1502 = vsub.s32 5, %v1501
          %v1503 = vrot.slane %v314, %v1502
          %v1504 = vlaneseq
          %v1505 = vshrl.u32 %v1504, 7
          %v1506 = vsub.s32 6, %v1505
          %v1507 = vrot.slane %v314, %v1506
          %v1508 = vlaneseq
          %v1509 = vshrl.u32 %v1508, 7
          %v1510 = vsub.s32 7, %v1509
          %v1511 = vrot.slane %v314, %v1510
          %v1512 = vlaneseq
          %v1513 = vshrl.u32 %v1512, 7
          %v1514 = vsub.s32 0, %v1513
          %v1515 = vrot.slane %v315, %v1514
          %v1516 = vlaneseq
          %v1517 = vshrl.u32 %v1516, 7
          %v1518 = vsub.s32 1, %v1517
          %v1519 = vrot.slane %v315, %v1518
          %v1520 = vlaneseq
          %v1521 = vshrl.u32 %v1520, 7
          %v1522 = vsub.s32 2, %v1521
          %v1523 = vrot.slane %v315, %v1522
          %v1524 = vlaneseq
          %v1525 = vshrl.u32 %v1524, 7
          %v1526 = vsub.s32 3, %v1525
          %v1527 = vrot.slane %v315, %v1526
          %v1528 = vlaneseq
          %v1529 = vshrl.u32 %v1528, 7
          %v1530 = vsub.s32 4, %v1529
          %v1531 = vrot.slane %v315, %v1530
          %v1532 = vlaneseq
          %v1533 = vshrl.u32 %v1532, 7
          %v1534 = vsub.s32 5, %v1533
          %v1535 = vrot.slane %v315, %v1534
          %v1536 = vlaneseq
          %v1537 = vshrl.u32 %v1536, 7
          %v1538 = vsub.s32 6, %v1537
          %v1539 = vrot.slane %v315, %v1538
          %v1540 = vlaneseq
          %v1541 = vshrl.u32 %v1540, 7
          %v1542 = vsub.s32 7, %v1541
          %v1543 = vrot.slane %v315, %v1542
          %v1544 = vlaneseq
          %v1545 = vshrl.u32 %v1544, 7
          %v1546 = vsub.s32 0, %v1545
          %v1547 = vrot.slane %v316, %v1546
          %v1548 = vlaneseq
          %v1549 = vshrl.u32 %v1548, 7
          %v1550 = vsub.s32 1, %v1549
          %v1551 = vrot.slane %v316, %v1550
          %v1552 = vlaneseq
          %v1553 = vshrl.u32 %v1552, 7
          %v1554 = vsub.s32 2, %v1553
          %v1555 = vrot.slane %v316, %v1554
          %v1556 = vlaneseq
          %v1557 = vshrl.u32 %v1556, 7
          %v1558 = vsub.s32 3, %v1557
          %v1559 = vrot.slane %v316, %v1558
          %v1560 = vlaneseq
          %v1561 = vshrl.u32 %v1560, 7
          %v1562 = vsub.s32 4, %v1561
          %v1563 = vrot.slane %v316, %v1562
          %v1564 = vlaneseq
          %v1565 = vshrl.u32 %v1564, 7
          %v1566 = vsub.s32 5, %v1565
          %v1567 = vrot.slane %v316, %v1566
          %v1568 = vlaneseq
          %v1569 = vshrl.u32 %v1568, 7
          %v1570 = vsub.s32 6, %v1569
          %v1571 = vrot.slane %v316, %v1570
          %v1572 = vlaneseq
          %v1573 = vshrl.u32 %v1572, 7
          %v1574 = vsub.s32 7, %v1573
          %v1575 = vrot.slane %v316, %v1574
          %v1576 = vlaneseq
          %v1577 = vshrl.u32 %v1576, 7
          %v1578 = vsub.s32 0, %v1577
          %v1579 = vrot.slane %v317, %v1578
          %v1580 = vlaneseq
          %v1581 = vshrl.u32 %v1580, 7
          %v1582 = vsub.s32 1, %v1581
          %v1583 = vrot.slane %v317, %v1582
          %v1584 = vlaneseq
          %v1585 = vshrl.u32 %v1584, 7
          %v1586 = vsub.s32 2, %v1585
          %v1587 = vrot.slane %v317, %v1586
          %v1588 = vlaneseq
          %v1589 = vshrl.u32 %v1588, 7
          %v1590 = vsub.s32 3, %v1589
          %v1591 = vrot.slane %v317, %v1590
          %v1592 = vlaneseq
          %v1593 = vshrl.u32 %v1592, 7
          %v1594 = vsub.s32 4, %v1593
          %v1595 = vrot.slane %v317, %v1594
          %v1596 = vlaneseq
          %v1597 = vshrl.u32 %v1596, 7
          %v1598 = vsub.s32 5, %v1597
          %v1599 = vrot.slane %v317, %v1598
          %v1600 = vlaneseq
          %v1601 = vshrl.u32 %v1600, 7
          %v1602 = vsub.s32 6, %v1601
          %v1603 = vrot.slane %v317, %v1602
          %v1604 = vlaneseq
          %v1605 = vshrl.u32 %v1604, 7
          %v1606 = vsub.s32 7, %v1605
          %v1607 = vrot.slane %v317, %v1606
          %v1608 = vlaneseq
          %v1609 = vshrl.u32 %v1608, 7
          %v1610 = vsub.s32 0, %v1609
          %v1611 = vrot.slane %v318, %v1610
          %v1612 = vlaneseq
          %v1613 = vshrl.u32 %v1612, 7
          %v1614 = vsub.s32 1, %v1613
          %v1615 = vrot.slane %v318, %v1614
          %v1616 = vlaneseq
          %v1617 = vshrl.u32 %v1616, 7
          %v1618 = vsub.s32 2, %v1617
          %v1619 = vrot.slane %v318, %v1618
          %v1620 = vlaneseq
          %v1621 = vshrl.u32 %v1620, 7
          %v1622 = vsub.s32 3, %v1621
          %v1623 = vrot.slane %v318, %v1622
          %v1624 = vlaneseq
          %v1625 = vshrl.u32 %v1624, 7
          %v1626 = vsub.s32 4, %v1625
          %v1627 = vrot.slane %v318, %v1626
          %v1628 = vlaneseq
          %v1629 = vshrl.u32 %v1628, 7
          %v1630 = vsub.s32 5, %v1629
          %v1631 = vrot.slane %v318, %v1630
          %v1632 = vlaneseq
          %v1633 = vshrl.u32 %v1632, 7
          %v1634 = vsub.s32 6, %v1633
          %v1635 = vrot.slane %v318, %v1634
          %v1636 = vlaneseq
          %v1637 = vshrl.u32 %v1636, 7
          %v1638 = vsub.s32 7, %v1637
          %v1639 = vrot.slane %v318, %v1638
          %v1640 = vlaneseq
          %v1641 = vshrl.u32 %v1640, 7
          %v1642 = vsub.s32 0, %v1641
          %v1643 = vrot.slane %v319, %v1642
          %v1644 = vlaneseq
          %v1645 = vshrl.u32 %v1644, 7
          %v1646 = vsub.s32 1, %v1645
          %v1647 = vrot.slane %v319, %v1646
          %v1648 = vlaneseq
          %v1649 = vshrl.u32 %v1648, 7
          %v1650 = vsub.s32 2, %v1649
          %v1651 = vrot.slane %v319, %v1650
          %v1652 = vlaneseq
          %v1653 = vshrl.u32 %v1652, 7
          %v1654 = vsub.s32 3, %v1653
          %v1655 = vrot.slane %v319, %v1654
          %v1656 = vlaneseq
          %v1657 = vshrl.u32 %v1656, 7
          %v1658 = vsub.s32 4, %v1657
          %v1659 = vrot.slane %v319, %v1658
          %v1660 = vlaneseq
          %v1661 = vshrl.u32 %v1660, 7
          %v1662 = vsub.s32 5, %v1661
          %v1663 = vrot.slane %v319, %v1662
          %v1664 = vlaneseq
          %v1665 = vshrl.u32 %v1664, 7
          %v1666 = vsub.s32 6, %v1665
          %v1667 = vrot.slane %v319, %v1666
          %v1668 = vlaneseq
          %v1669 = vshrl.u32 %v1668, 7
          %v1670 = vsub.s32 7, %v1669
          %v1671 = vrot.slane %v319, %v1670
          %v1672 = vlaneseq
          %v1673 = vshrl.u32 %v1672, 7
          %v1674 = vsub.s32 0, %v1673
          %v1675 = vrot.slane %v320, %v1674
          %v1676 = vlaneseq
          %v1677 = vshrl.u32 %v1676, 7
          %v1678 = vsub.s32 1, %v1677
          %v1679 = vrot.slane %v320, %v1678
          %v1680 = vlaneseq
          %v1681 = vshrl.u32 %v1680, 7
          %v1682 = vsub.s32 2, %v1681
          %v1683 = vrot.slane %v320, %v1682
          %v1684 = vlaneseq
          %v1685 = vshrl.u32 %v1684, 7
          %v1686 = vsub.s32 3, %v1685
          %v1687 = vrot.slane %v320, %v1686
          %v1688 = vlaneseq
          %v1689 = vshrl.u32 %v1688, 7
          %v1690 = vsub.s32 4, %v1689
          %v1691 = vrot.slane %v320, %v1690
          %v1692 = vlaneseq
          %v1693 = vshrl.u32 %v1692, 7
          %v1694 = vsub.s32 5, %v1693
          %v1695 = vrot.slane %v320, %v1694
          %v1696 = vlaneseq
          %v1697 = vshrl.u32 %v1696, 7
          %v1698 = vsub.s32 6, %v1697
          %v1699 = vrot.slane %v320, %v1698
          %v1700 = vlaneseq
          %v1701 = vshrl.u32 %v1700, 7
          %v1702 = vsub.s32 7, %v1701
          %v1703 = vrot.slane %v320, %v1702
          %v1704 = vlaneseq
          %v1705 = vshrl.u32 %v1704, 7
          %v1706 = vsub.s32 0, %v1705
          %v1707 = vrot.slane %v321, %v1706
          %v1708 = vlaneseq
          %v1709 = vshrl.u32 %v1708, 7
          %v1710 = vsub.s32 1, %v1709
          %v1711 = vrot.slane %v321, %v1710
          %v1712 = vlaneseq
          %v1713 = vshrl.u32 %v1712, 7
          %v1714 = vsub.s32 2, %v1713
          %v1715 = vrot.slane %v321, %v1714
          %v1716 = vlaneseq
          %v1717 = vshrl.u32 %v1716, 7
          %v1718 = vsub.s32 3, %v1717
          %v1719 = vrot.slane %v321, %v1718
          %v1720 = vlaneseq
          %v1721 = vshrl.u32 %v1720, 7
          %v1722 = vsub.s32 4, %v1721
          %v1723 = vrot.slane %v321, %v1722
          %v1724 = vlaneseq
          %v1725 = vshrl.u32 %v1724, 7
          %v1726 = vsub.s32 5, %v1725
          %v1727 = vrot.slane %v321, %v1726
          %v1728 = vlaneseq
          %v1729 = vshrl.u32 %v1728, 7
          %v1730 = vsub.s32 6, %v1729
          %v1731 = vrot.slane %v321, %v1730
          %v1732 = vlaneseq
          %v1733 = vshrl.u32 %v1732, 7
          %v1734 = vsub.s32 7, %v1733
          %v1735 = vrot.slane %v321, %v1734
          %v1736 = vlaneseq
          %v1737 = vshrl.u32 %v1736, 7
          %v1738 = vsub.s32 0, %v1737
          %v1739 = vrot.slane %v322, %v1738
          %v1740 = vlaneseq
          %v1741 = vshrl.u32 %v1740, 7
          %v1742 = vsub.s32 1, %v1741
          %v1743 = vrot.slane %v322, %v1742
          %v1744 = vlaneseq
          %v1745 = vshrl.u32 %v1744, 7
          %v1746 = vsub.s32 2, %v1745
          %v1747 = vrot.slane %v322, %v1746
          %v1748 = vlaneseq
          %v1749 = vshrl.u32 %v1748, 7
          %v1750 = vsub.s32 3, %v1749
          %v1751 = vrot.slane %v322, %v1750
          %v1752 = vlaneseq
          %v1753 = vshrl.u32 %v1752, 7
          %v1754 = vsub.s32 4, %v1753
          %v1755 = vrot.slane %v322, %v1754
          %v1756 = vlaneseq
          %v1757 = vshrl.u32 %v1756, 7
          %v1758 = vsub.s32 5, %v1757
          %v1759 = vrot.slane %v322, %v1758
          %v1760 = vlaneseq
          %v1761 = vshrl.u32 %v1760, 7
          %v1762 = vsub.s32 6, %v1761
          %v1763 = vrot.slane %v322, %v1762
          %v1764 = vlaneseq
          %v1765 = vshrl.u32 %v1764, 7
          %v1766 = vsub.s32 7, %v1765
          %v1767 = vrot.slane %v322, %v1766
          %v1768 = vlaneseq
          %v1769 = vshrl.u32 %v1768, 7
          %v1770 = vsub.s32 0, %v1769
          %v1771 = vrot.slane %v323, %v1770
          %v1772 = vlaneseq
          %v1773 = vshrl.u32 %v1772, 7
          %v1774 = vsub.s32 1, %v1773
          %v1775 = vrot.slane %v323, %v1774
          %v1776 = vlaneseq
          %v1777 = vshrl.u32 %v1776, 7
          %v1778 = vsub.s32 2, %v1777
          %v1779 = vrot.slane %v323, %v1778
          %v1780 = vlaneseq
          %v1781 = vshrl.u32 %v1780, 7
          %v1782 = vsub.s32 3, %v1781
          %v1783 = vrot.slane %v323, %v1782
          %v1784 = vlaneseq
          %v1785 = vshrl.u32 %v1784, 7
          %v1786 = vsub.s32 4, %v1785
          %v1787 = vrot.slane %v323, %v1786
          %v1788 = vlaneseq
          %v1789 = vshrl.u32 %v1788, 7
          %v1790 = vsub.s32 5, %v1789
          %v1791 = vrot.slane %v323, %v1790
          %v1792 = vlaneseq
          %v1793 = vshrl.u32 %v1792, 7
          %v1794 = vsub.s32 6, %v1793
          %v1795 = vrot.slane %v323, %v1794
          %v1796 = vlaneseq
          %v1797 = vshrl.u32 %v1796, 7
          %v1798 = vsub.s32 7, %v1797
          %v1799 = vrot.slane %v323, %v1798
          %v1800 = vlaneseq
          %v1801 = vshrl.u32 %v1800, 7
          %v1802 = vsub.s32 0, %v1801
          %v1803 = vrot.slane %v324, %v1802
          %v1804 = vlaneseq
          %v1805 = vshrl.u32 %v1804, 7
          %v1806 = vsub.s32 1, %v1805
          %v1807 = vrot.slane %v324, %v1806
          %v1808 = vlaneseq
          %v1809 = vshrl.u32 %v1808, 7
          %v1810 = vsub.s32 2, %v1809
          %v1811 = vrot.slane %v324, %v1810
          %v1812 = vlaneseq
          %v1813 = vshrl.u32 %v1812, 7
          %v1814 = vsub.s32 3, %v1813
          %v1815 = vrot.slane %v324, %v1814
          %v1816 = vlaneseq
          %v1817 = vshrl.u32 %v1816, 7
          %v1818 = vsub.s32 4, %v1817
          %v1819 = vrot.slane %v324, %v1818
          %v1820 = vlaneseq
          %v1821 = vshrl.u32 %v1820, 7
          %v1822 = vsub.s32 5, %v1821
          %v1823 = vrot.slane %v324, %v1822
          %v1824 = vlaneseq
          %v1825 = vshrl.u32 %v1824, 7
          %v1826 = vsub.s32 6, %v1825
          %v1827 = vrot.slane %v324, %v1826
          %v1828 = vlaneseq
          %v1829 = vshrl.u32 %v1828, 7
          %v1830 = vsub.s32 7, %v1829
          %v1831 = vrot.slane %v324, %v1830
          %v1832 = vlaneseq
          %v1833 = vshrl.u32 %v1832, 7
          %v1834 = vsub.s32 0, %v1833
          %v1835 = vrot.slane %v325, %v1834
          %v1836 = vlaneseq
          %v1837 = vshrl.u32 %v1836, 7
          %v1838 = vsub.s32 1, %v1837
          %v1839 = vrot.slane %v325, %v1838
          %v1840 = vlaneseq
          %v1841 = vshrl.u32 %v1840, 7
          %v1842 = vsub.s32 2, %v1841
          %v1843 = vrot.slane %v325, %v1842
          %v1844 = vlaneseq
          %v1845 = vshrl.u32 %v1844, 7
          %v1846 = vsub.s32 3, %v1845
          %v1847 = vrot.slane %v325, %v1846
          %v1848 = vlaneseq
          %v1849 = vshrl.u32 %v1848, 7
          %v1850 = vsub.s32 4, %v1849
          %v1851 = vrot.slane %v325, %v1850
          %v1852 = vlaneseq
          %v1853 = vshrl.u32 %v1852, 7
          %v1854 = vsub.s32 5, %v1853
          %v1855 = vrot.slane %v325, %v1854
          %v1856 = vlaneseq
          %v1857 = vshrl.u32 %v1856, 7
          %v1858 = vsub.s32 6, %v1857
          %v1859 = vrot.slane %v325, %v1858
          %v1860 = vlaneseq
          %v1861 = vshrl.u32 %v1860, 7
          %v1862 = vsub.s32 7, %v1861
          %v1863 = vrot.slane %v325, %v1862
          %v1864 = vlaneseq
          %v1865 = vshrl.u32 %v1864, 7
          %v1866 = vsub.s32 0, %v1865
          %v1867 = vrot.slane %v326, %v1866
          %v1868 = vlaneseq
          %v1869 = vshrl.u32 %v1868, 7
          %v1870 = vsub.s32 1, %v1869
          %v1871 = vrot.slane %v326, %v1870
          %v1872 = vlaneseq
          %v1873 = vshrl.u32 %v1872, 7
          %v1874 = vsub.s32 2, %v1873
          %v1875 = vrot.slane %v326, %v1874
          %v1876 = vlaneseq
          %v1877 = vshrl.u32 %v1876, 7
          %v1878 = vsub.s32 3, %v1877
          %v1879 = vrot.slane %v326, %v1878
          %v1880 = vlaneseq
          %v1881 = vshrl.u32 %v1880, 7
          %v1882 = vsub.s32 4, %v1881
          %v1883 = vrot.slane %v326, %v1882
          %v1884 = vlaneseq
          %v1885 = vshrl.u32 %v1884, 7
          %v1886 = vsub.s32 5, %v1885
          %v1887 = vrot.slane %v326, %v1886
          %v1888 = vlaneseq
          %v1889 = vshrl.u32 %v1888, 7
          %v1890 = vsub.s32 6, %v1889
          %v1891 = vrot.slane %v326, %v1890
          %v1892 = vlaneseq
          %v1893 = vshrl.u32 %v1892, 7
          %v1894 = vsub.s32 7, %v1893
          %v1895 = vrot.slane %v326, %v1894
          %v1896 = vlaneseq
          %v1897 = vshrl.u32 %v1896, 7
          %v1898 = vsub.s32 0, %v1897
          %v1899 = vrot.slane %v327, %v1898
          %v1900 = vlaneseq
          %v1901 = vshrl.u32 %v1900, 7
          %v1902 = vsub.s32 1, %v1901
          %v1903 = vrot.slane %v327, %v1902
          %v1904 = vlaneseq
          %v1905 = vshrl.u32 %v1904, 7
          %v1906 = vsub.s32 2, %v1905
          %v1907 = vrot.slane %v327, %v1906
          %v1908 = vlaneseq
          %v1909 = vshrl.u32 %v1908, 7
          %v1910 = vsub.s32 3, %v1909
          %v1911 = vrot.slane %v327, %v1910
          %v1912 = vlaneseq
          %v1913 = vshrl.u32 %v1912, 7
          %v1914 = vsub.s32 4, %v1913
          %v1915 = vrot.slane %v327, %v1914
          %v1916 = vlaneseq
          %v1917 = vshrl.u32 %v1916, 7
          %v1918 = vsub.s32 5, %v1917
          %v1919 = vrot.slane %v327, %v1918
          %v1920 = vlaneseq
          %v1921 = vshrl.u32 %v1920, 7
          %v1922 = vsub.s32 6, %v1921
          %v1923 = vrot.slane %v327, %v1922
          %v1924 = vlaneseq
          %v1925 = vshrl.u32 %v1924, 7
          %v1926 = vsub.s32 7, %v1925
          %v1927 = vrot.slane %v327, %v1926
          %v1928 = vlaneseq
          %v1929 = vshrl.u32 %v1928, 7
          %v1930 = vsub.s32 0, %v1929
          %v1931 = vrot.slane %v328, %v1930
          %v1932 = vlaneseq
          %v1933 = vshrl.u32 %v1932, 7
          %v1934 = vsub.s32 1, %v1933
          %v1935 = vrot.slane %v328, %v1934
          %v1936 = vlaneseq
          %v1937 = vshrl.u32 %v1936, 7
          %v1938 = vsub.s32 2, %v1937
          %v1939 = vrot.slane %v328, %v1938
          %v1940 = vlaneseq
          %v1941 = vshrl.u32 %v1940, 7
          %v1942 = vsub.s32 3, %v1941
          %v1943 = vrot.slane %v328, %v1942
          %v1944 = vlaneseq
          %v1945 = vshrl.u32 %v1944, 7
          %v1946 = vsub.s32 4, %v1945
          %v1947 = vrot.slane %v328, %v1946
          %v1948 = vlaneseq
          %v1949 = vshrl.u32 %v1948, 7
          %v1950 = vsub.s32 5, %v1949
          %v1951 = vrot.slane %v328, %v1950
          %v1952 = vlaneseq
          %v1953 = vshrl.u32 %v1952, 7
          %v1954 = vsub.s32 6, %v1953
          %v1955 = vrot.slane %v328, %v1954
          %v1956 = vlaneseq
          %v1957 = vshrl.u32 %v1956, 7
          %v1958 = vsub.s32 7, %v1957
          %v1959 = vrot.slane %v328, %v1958
          %v1960 = vlaneseq
          %v1961 = vshrl.u32 %v1960, 7
          %v1962 = vsub.s32 0, %v1961
          %v1963 = vrot.slane %v329, %v1962
          %v1964 = vlaneseq
          %v1965 = vshrl.u32 %v1964, 7
          %v1966 = vsub.s32 1, %v1965
          %v1967 = vrot.slane %v329, %v1966
          %v1968 = vlaneseq
          %v1969 = vshrl.u32 %v1968, 7
          %v1970 = vsub.s32 2, %v1969
          %v1971 = vrot.slane %v329, %v1970
          %v1972 = vlaneseq
          %v1973 = vshrl.u32 %v1972, 7
          %v1974 = vsub.s32 3, %v1973
          %v1975 = vrot.slane %v329, %v1974
          %v1976 = vlaneseq
          %v1977 = vshrl.u32 %v1976, 7
          %v1978 = vsub.s32 4, %v1977
          %v1979 = vrot.slane %v329, %v1978
          %v1980 = vlaneseq
          %v1981 = vshrl.u32 %v1980, 7
          %v1982 = vsub.s32 5, %v1981
          %v1983 = vrot.slane %v329, %v1982
          %v1984 = vlaneseq
          %v1985 = vshrl.u32 %v1984, 7
          %v1986 = vsub.s32 6, %v1985
          %v1987 = vrot.slane %v329, %v1986
          %v1988 = vlaneseq
          %v1989 = vshrl.u32 %v1988, 7
          %v1990 = vsub.s32 7, %v1989
          %v1991 = vrot.slane %v329, %v1990
          %v1992 = vlaneseq
          %v1993 = vshrl.u32 %v1992, 7
          %v1994 = vsub.s32 0, %v1993
          %v1995 = vrot.slane %v330, %v1994
          %v1996 = vlaneseq
          %v1997 = vshrl.u32 %v1996, 7
          %v1998 = vsub.s32 1, %v1997
          %v1999 = vrot.slane %v330, %v1998
          %v2000 = vlaneseq
          %v2001 = vshrl.u32 %v2000, 7
          %v2002 = vsub.s32 2, %v2001
          %v2003 = vrot.slane %v330, %v2002
          %v2004 = vlaneseq
          %v2005 = vshrl.u32 %v2004, 7
          %v2006 = vsub.s32 3, %v2005
          %v2007 = vrot.slane %v330, %v2006
          %v2008 = vlaneseq
          %v2009 = vshrl.u32 %v2008, 7
          %v2010 = vsub.s32 4, %v2009
          %v2011 = vrot.slane %v330, %v2010
          %v2012 = vlaneseq
          %v2013 = vshrl.u32 %v2012, 7
          %v2014 = vsub.s32 5, %v2013
          %v2015 = vrot.slane %v330, %v2014
          %v2016 = vlaneseq
          %v2017 = vshrl.u32 %v2016, 7
          %v2018 = vsub.s32 6, %v2017
          %v2019 = vrot.slane %v330, %v2018
          %v2020 = vlaneseq
          %v2021 = vshrl.u32 %v2020, 7
          %v2022 = vsub.s32 7, %v2021
          %v2023 = vrot.slane %v330, %v2022
          %v2024 = vlaneseq
          %v2025 = vshrl.u32 %v2024, 7
          %v2026 = vsub.s32 0, %v2025
          %v2027 = vrot.slane %v331, %v2026
          %v2028 = vlaneseq
          %v2029 = vshrl.u32 %v2028, 7
          %v2030 = vsub.s32 1, %v2029
          %v2031 = vrot.slane %v331, %v2030
          %v2032 = vlaneseq
          %v2033 = vshrl.u32 %v2032, 7
          %v2034 = vsub.s32 2, %v2033
          %v2035 = vrot.slane %v331, %v2034
          %v2036 = vlaneseq
          %v2037 = vshrl.u32 %v2036, 7
          %v2038 = vsub.s32 3, %v2037
          %v2039 = vrot.slane %v331, %v2038
          %v2040 = vlaneseq
          %v2041 = vshrl.u32 %v2040, 7
          %v2042 = vsub.s32 4, %v2041
          %v2043 = vrot.slane %v331, %v2042
          %v2044 = vlaneseq
          %v2045 = vshrl.u32 %v2044, 7
          %v2046 = vsub.s32 5, %v2045
          %v2047 = vrot.slane %v331, %v2046
          %v2048 = vlaneseq
          %v2049 = vshrl.u32 %v2048, 7
          %v2050 = vsub.s32 6, %v2049
          %v2051 = vrot.slane %v331, %v2050
          %v2052 = vlaneseq
          %v2053 = vshrl.u32 %v2052, 7
          %v2054 = vsub.s32 7, %v2053
          %v2055 = vrot.slane %v331, %v2054
          %v2056 = vlaneseq
          %v2057 = vshrl.u32 %v2056, 7
          %v2058 = vsub.s32 0, %v2057
          %v2059 = vrot.slane %v332, %v2058
          %v2060 = vlaneseq
          %v2061 = vshrl.u32 %v2060, 7
          %v2062 = vsub.s32 1, %v2061
          %v2063 = vrot.slane %v332, %v2062
          %v2064 = vlaneseq
          %v2065 = vshrl.u32 %v2064, 7
          %v2066 = vsub.s32 2, %v2065
          %v2067 = vrot.slane %v332, %v2066
          %v2068 = vlaneseq
          %v2069 = vshrl.u32 %v2068, 7
          %v2070 = vsub.s32 3, %v2069
          %v2071 = vrot.slane %v332, %v2070
          %v2072 = vlaneseq
          %v2073 = vshrl.u32 %v2072, 7
          %v2074 = vsub.s32 4, %v2073
          %v2075 = vrot.slane %v332, %v2074
          %v2076 = vlaneseq
          %v2077 = vshrl.u32 %v2076, 7
          %v2078 = vsub.s32 5, %v2077
          %v2079 = vrot.slane %v332, %v2078
          %v2080 = vlaneseq
          %v2081 = vshrl.u32 %v2080, 7
          %v2082 = vsub.s32 6, %v2081
          %v2083 = vrot.slane %v332, %v2082
          %v2084 = vlaneseq
          %v2085 = vshrl.u32 %v2084, 7
          %v2086 = vsub.s32 7, %v2085
          %v2087 = vrot.slane %v332, %v2086
          %v2088 = vlaneseq
          %v2089 = vshrl.u32 %v2088, 7
          %v2090 = vsub.s32 0, %v2089
          %v2091 = vrot.slane %v333, %v2090
          %v2092 = vlaneseq
          %v2093 = vshrl.u32 %v2092, 7
          %v2094 = vsub.s32 1, %v2093
          %v2095 = vrot.slane %v333, %v2094
          %v2096 = vlaneseq
          %v2097 = vshrl.u32 %v2096, 7
          %v2098 = vsub.s32 2, %v2097
          %v2099 = vrot.slane %v333, %v2098
          %v2100 = vlaneseq
          %v2101 = vshrl.u32 %v2100, 7
          %v2102 = vsub.s32 3, %v2101
          %v2103 = vrot.slane %v333, %v2102
          %v2104 = vlaneseq
          %v2105 = vshrl.u32 %v2104, 7
          %v2106 = vsub.s32 4, %v2105
          %v2107 = vrot.slane %v333, %v2106
          %v2108 = vlaneseq
          %v2109 = vshrl.u32 %v2108, 7
          %v2110 = vsub.s32 5, %v2109
          %v2111 = vrot.slane %v333, %v2110
          %v2112 = vlaneseq
          %v2113 = vshrl.u32 %v2112, 7
          %v2114 = vsub.s32 6, %v2113
          %v2115 = vrot.slane %v333, %v2114
          %v2116 = vlaneseq
          %v2117 = vshrl.u32 %v2116, 7
          %v2118 = vsub.s32 7, %v2117
          %v2119 = vrot.slane %v333, %v2118
          %v2120 = vlaneseq
          %v2121 = vshrl.u32 %v2120, 7
          %v2122 = vsub.s32 0, %v2121
          %v2123 = vrot.slane %v334, %v2122
          %v2124 = vlaneseq
          %v2125 = vshrl.u32 %v2124, 7
          %v2126 = vsub.s32 1, %v2125
          %v2127 = vrot.slane %v334, %v2126
          %v2128 = vlaneseq
          %v2129 = vshrl.u32 %v2128, 7
          %v2130 = vsub.s32 2, %v2129
          %v2131 = vrot.slane %v334, %v2130
          %v2132 = vlaneseq
          %v2133 = vshrl.u32 %v2132, 7
          %v2134 = vsub.s32 3, %v2133
          %v2135 = vrot.slane %v334, %v2134
          %v2136 = vlaneseq
          %v2137 = vshrl.u32 %v2136, 7
          %v2138 = vsub.s32 4, %v2137
          %v2139 = vrot.slane %v334, %v2138
          %v2337 = vmul.f32 %v1355, %v335
          %v2338 = vmul.f32 %v1359, %v336
          %v2339 = vmul.f32 %v1363, %v337
          %v2340 = vmul.f32 %v1367, %v338
          %v2341 = vmul.f32 %v1371, %v339
          %v2342 = vmul.f32 %v1375, %v340
          %v2343 = vmul.f32 %v1379, %v341
          %v2344 = vmul.f32 %v1383, %v342
          %v2345 = vmul.f32 %v1387, %v343
          %v2346 = vmul.f32 %v1391, %v344
          %v2347 = vmul.f32 %v1395, %v345
          %v2348 = vmul.f32 %v1399, %v346
          %v2349 = vmul.f32 %v1403, %v347
          %v2350 = vmul.f32 %v1407, %v348
          %v2351 = vmul.f32 %v1411, %v349
          %v2352 = vmul.f32 %v1415, %v350
          %v2353 = vmul.f32 %v1419, %v351
          %v2354 = vmul.f32 %v1423, %v352
          %v2355 = vmul.f32 %v1427, %v353
          %v2356 = vmul.f32 %v1431, %v354
          %v2357 = vmul.f32 %v1435, %v355
          %v2358 = vmul.f32 %v1439, %v356
          %v2359 = vmul.f32 %v1443, %v357
          %v2360 = vmul.f32 %v1447, %v358
          %v2361 = vmul.f32 %v1451, %v359
          %v2362 = vmul.f32 %v1455, %v360
          %v2363 = vmul.f32 %v1459, %v361
          %v2364 = vmul.f32 %v1463, %v362
          %v2365 = vmul.f32 %v1467, %v363
          %v2366 = vmul.f32 %v1471, %v364
          %v2367 = vmul.f32 %v1475, %v365
          %v2368 = vmul.f32 %v1479, %v366
          %v2369 = vmul.f32 %v1483, %v367
          %v2370 = vmul.f32 %v1487, %v368
          %v2371 = vmul.f32 %v1491, %v369
          %v2372 = vmul.f32 %v1495, %v370
          %v2373 = vmul.f32 %v1499, %v371
          %v2374 = vmul.f32 %v1503, %v372
          %v2375 = vmul.f32 %v1507, %v373
          %v2376 = vmul.f32 %v1511, %v374
          %v2377 = vmul.f32 %v1515, %v375
          %v2378 = vmul.f32 %v1519, %v376
          %v2379 = vmul.f32 %v1523, %v377
          %v2380 = vmul.f32 %v1527, %v378
          %v2381 = vmul.f32 %v1531, %v379
          %v2382 = vmul.f32 %v1535, %v380
          %v2383 = vmul.f32 %v1539, %v381
          %v2384 = vmul.f32 %v1543, %v382
          %v2385 = vmul.f32 %v1547, %v383
          %v2386 = vmul.f32 %v1551, %v384
          %v2387 = vmul.f32 %v1555, %v385
          %v2388 = vmul.f32 %v1559, %v386
          %v2389 = vmul.f32 %v1563, %v387
          %v2390 = vmul.f32 %v1567, %v388
          %v2391 = vmul.f32 %v1571, %v389
          %v2392 = vmul.f32 %v1575, %v390
          %v2393 = vmul.f32 %v1579, %v391
          %v2394 = vmul.f32 %v1583, %v392
          %v2395 = vmul.f32 %v1587, %v393
          %v2396 = vmul.f32 %v1591, %v394
          %v2397 = vmul.f32 %v1595, %v395
          %v2398 = vmul.f32 %v1599, %v396
          %v2399 = vmul.f32 %v1603, %v397
          %v2400 = vmul.f32 %v1607, %v398
          %v2401 = vmul.f32 %v1611, %v399
          %v2402 = vmul.f32 %v1615, %v400
          %v2403 = vmul.f32 %v1619, %v401
          %v2404 = vmul.f32 %v1623, %v402
          %v2405 = vmul.f32 %v1627, %v403
          %v2406 = vmul.f32 %v1631, %v404
          %v2407 = vmul.f32 %v1635, %v405
          %v2408 = vmul.f32 %v1639, %v406
          %v2409 = vmul.f32 %v1643, %v407
          %v2410 = vmul.f32 %v1647, %v408
          %v2411 = vmul.f32 %v1651, %v409
          %v2412 = vmul.f32 %v1655, %v410
          %v2413 = vmul.f32 %v1659, %v411
          %v2414 = vmul.f32 %v1663, %v412
          %v2415 = vmul.f32 %v1667, %v413
          %v2416 = vmul.f32 %v1671, %v414
          %v2417 = vmul.f32 %v1675, %v415
          %v2418 = vmul.f32 %v1679, %v416
          %v2419 = vmul.f32 %v1683, %v417
          %v2420 = vmul.f32 %v1687, %v418
          %v2421 = vmul.f32 %v1691, %v419
          %v2422 = vmul.f32 %v1695, %v420
          %v2423 = vmul.f32 %v1699, %v421
          %v2424 = vmul.f32 %v1703, %v422
          %v2425 = vmul.f32 %v1707, %v423
          %v2426 = vmul.f32 %v1711, %v424
          %v2427 = vmul.f32 %v1715, %v425
          %v2428 = vmul.f32 %v1719, %v426
          %v2429 = vmul.f32 %v1723, %v427
          %v2430 = vmul.f32 %v1727, %v428
          %v2431 = vmul.f32 %v1731, %v429
          %v2432 = vmul.f32 %v1735, %v430
          %v2433 = vmul.f32 %v1739, %v431
          %v2434 = vmul.f32 %v1743, %v432
          %v2435 = vmul.f32 %v1747, %v433
          %v2436 = vmul.f32 %v1751, %v434
          %v2437 = vmul.f32 %v1755, %v435
          %v2438 = vmul.f32 %v1759, %v436
          %v2439 = vmul.f32 %v1763, %v437
          %v2440 = vmul.f32 %v1767, %v438
          %v2441 = vmul.f32 %v1771, %v439
          %v2442 = vmul.f32 %v1775, %v440
          %v2443 = vmul.f32 %v1779, %v441
          %v2444 = vmul.f32 %v1783, %v442
          %v2445 = vmul.f32 %v1787, %v443
          %v2446 = vmul.f32 %v1791, %v444
          %v2447 = vmul.f32 %v1795, %v445
          %v2448 = vmul.f32 %v1799, %v446
          %v2449 = vmul.f32 %v1803, %v447
          %v2450 = vmul.f32 %v1807, %v448
          %v2451 = vmul.f32 %v1811, %v449
          %v2452 = vmul.f32 %v1815, %v450
          %v2453 = vmul.f32 %v1819, %v451
          %v2454 = vmul.f32 %v1823, %v452
          %v2455 = vmul.f32 %v1827, %v453
          %v2456 = vmul.f32 %v1831, %v454
          %v2457 = vmul.f32 %v1835, %v455
          %v2458 = vmul.f32 %v1839, %v456
          %v2459 = vmul.f32 %v1843, %v457
          %v2460 = vmul.f32 %v1847, %v458
          %v2461 = vmul.f32 %v1851, %v459
          %v2462 = vmul.f32 %v1855, %v460
          %v2463 = vmul.f32 %v1859, %v461
          %v2464 = vmul.f32 %v1863, %v462
          %v2465 = vmul.f32 %v1867, %v463
          %v2466 = vmul.f32 %v1871, %v464
          %v2467 = vmul.f32 %v1875, %v465
          %v2468 = vmul.f32 %v1879, %v466
          %v2469 = vmul.f32 %v1883, %v467
          %v2470 = vmul.f32 %v1887, %v468
          %v2471 = vmul.f32 %v1891, %v469
          %v2472 = vmul.f32 %v1895, %v470
          %v2473 = vmul.f32 %v1899, %v471
          %v2474 = vmul.f32 %v1903, %v472
          %v2475 = vmul.f32 %v1907, %v473
          %v2476 = vmul.f32 %v1911, %v474
          %v2477 = vmul.f32 %v1915, %v475
          %v2478 = vmul.f32 %v1919, %v476
          %v2479 = vmul.f32 %v1923, %v477
          %v2480 = vmul.f32 %v1927, %v478
          %v2481 = vmul.f32 %v1931, %v479
          %v2482 = vmul.f32 %v1935, %v480
          %v2483 = vmul.f32 %v1939, %v481
          %v2484 = vmul.f32 %v1943, %v482
          %v2485 = vmul.f32 %v1947, %v483
          %v2486 = vmul.f32 %v1951, %v484
          %v2487 = vmul.f32 %v1955, %v485
          %v2488 = vmul.f32 %v1959, %v486
          %v2489 = vmul.f32 %v1963, %v487
          %v2490 = vmul.f32 %v1967, %v488
          %v2491 = vmul.f32 %v1971, %v489
          %v2492 = vmul.f32 %v1975, %v490
          %v2493 = vmul.f32 %v1979, %v491
          %v2494 = vmul.f32 %v1983, %v492
          %v2495 = vmul.f32 %v1987, %v493
          %v2496 = vmul.f32 %v1991, %v494
          %v2497 = vmul.f32 %v1995, %v495
          %v2498 = vmul.f32 %v1999, %v496
          %v2499 = vmul.f32 %v2003, %v497
          %v2500 = vmul.f32 %v2007, %v498
          %v2501 = vmul.f32 %v2011, %v499
          %v2502 = vmul.f32 %v2015, %v500
          %v2503 = vmul.f32 %v2019, %v501
          %v2504 = vmul.f32 %v2023, %v502
          %v2505 = vmul.f32 %v2027, %v503
          %v2506 = vmul.f32 %v2031, %v504
          %v2507 = vmul.f32 %v2035, %v505
          %v2508 = vmul.f32 %v2039, %v506
          %v2509 = vmul.f32 %v2043, %v507
          %v2510 = vmul.f32 %v2047, %v508
          %v2511 = vmul.f32 %v2051, %v509
          %v2512 = vmul.f32 %v2055, %v510
          %v2513 = vmul.f32 %v2059, %v511
          %v2514 = vmul.f32 %v2063, %v512
          %v2515 = vmul.f32 %v2067, %v513
          %v2516 = vmul.f32 %v2071, %v514
          %v2517 = vmul.f32 %v2075, %v515
          %v2518 = vmul.f32 %v2079, %v516
          %v2519 = vmul.f32 %v2083, %v517
          %v2520 = vmul.f32 %v2087, %v518
          %v2521 = vmul.f32 %v2091, %v519
          %v2522 = vmul.f32 %v2095, %v520
          %v2523 = vmul.f32 %v2099, %v521
          %v2524 = vmul.f32 %v2103, %v522
          %v2525 = vmul.f32 %v2107, %v523
          %v2526 = vmul.f32 %v2111, %v524
          %v2527 = vmul.f32 %v2115, %v525
          %v2528 = vmul.f32 %v2119, %v526
          %v2529 = vmul.f32 %v2123, %v527
          %v2530 = vmul.f32 %v2127, %v528
          %v2531 = vmul.f32 %v2131, %v529
          %v2532 = vmul.f32 %v2135, %v530
          %v2533 = vmul.f32 %v2139, %v531
          %v2534 = vsel %vm1130, 1, 0
          %v2535 = vsel %vm1131, 1, 0
          %v2536 = vsel %vm1132, 1, 0
          %v2537 = vsel %vm1133, 1, 0
          %v2538 = vsel %vm1134, 1, 0
          %v2539 = vsel %vm1135, 1, 0
          %v2540 = vsel %vm1136, 1, 0
          %v2541 = vsel %vm1137, 1, 0
          %v2542 = vsel %vm1138, 1, 0
          %v2543 = vsel %vm1139, 1, 0
          %v2544 = vsel %vm1140, 1, 0
          %v2545 = vsel %vm1141, 1, 0
          %v2546 = vsel %vm1142, 1, 0
          %v2547 = vsel %vm1143, 1, 0
          %v2548 = vsel %vm1144, 1, 0
          %v2549 = vsel %vm1145, 1, 0
          %v2550 = vsel %vm1146, 1, 0
          %v2551 = vsel %vm1147, 1, 0
          %v2552 = vsel %vm1148, 1, 0
          %v2553 = vsel %vm1149, 1, 0
          %v2554 = vsel %vm1150, 1, 0
          %v2555 = vsel %vm1151, 1, 0
          %v2556 = vsel %vm1152, 1, 0
          %v2557 = vsel %vm1153, 1, 0
          %v2558 = vsel %vm1154, 1, 0
          %v2559 = vsel %vm1155, 1, 0
          %v2560 = vsel %vm1156, 1, 0
          %v2561 = vsel %vm1157, 1, 0
          %v2562 = vsel %vm1158, 1, 0
          %v2563 = vsel %vm1159, 1, 0
          %v2564 = vsel %vm1160, 1, 0
          %v2565 = vsel %vm1161, 1, 0
          %v2566 = vsel %vm1162, 1, 0
          %v2567 = vsel %vm1163, 1, 0
          %v2568 = vsel %vm1164, 1, 0
          %v2569 = vsel %vm1165, 1, 0
          %v2570 = vsel %vm1166, 1, 0
          %v2571 = vsel %vm1167, 1, 0
          %v2572 = vsel %vm1168, 1, 0
          %v2573 = vsel %vm1169, 1, 0
          %v2574 = vsel %vm1170, 1, 0
          %v2575 = vsel %vm1171, 1, 0
          %v2576 = vsel %vm1172, 1, 0
          %v2577 = vsel %vm1173, 1, 0
          %v2578 = vsel %vm1174, 1, 0
          %v2579 = vsel %vm1175, 1, 0
          %v2580 = vsel %vm1176, 1, 0
          %v2581 = vsel %vm1177, 1, 0
          %v2582 = vsel %vm1178, 1, 0
          %v2583 = vsel %vm1179, 1, 0
          %v2584 = vsel %vm1180, 1, 0
          %v2585 = vsel %vm1181, 1, 0
          %v2586 = vsel %vm1182, 1, 0
          %v2587 = vsel %vm1183, 1, 0
          %v2588 = vsel %vm1184, 1, 0
          %v2589 = vsel %vm1185, 1, 0
          %v2590 = vsel %vm1186, 1, 0
          %v2591 = vsel %vm1187, 1, 0
          %v2592 = vsel %vm1188, 1, 0
          %v2593 = vsel %vm1189, 1, 0
          %v2594 = vsel %vm1190, 1, 0
          %v2595 = vsel %vm1191, 1, 0
          %v2596 = vsel %vm1192, 1, 0
          %v2597 = vsel %vm1193, 1, 0
          %v2598 = vsel %vm1194, 1, 0
          %v2599 = vsel %vm1195, 1, 0
          %v2600 = vsel %vm1196, 1, 0
          %v2601 = vsel %vm1197, 1, 0
          %v2602 = vsel %vm1198, 1, 0
          %v2603 = vsel %vm1199, 1, 0
          %v2604 = vsel %vm1200, 1, 0
          %v2605 = vsel %vm1201, 1, 0
          %v2606 = vsel %vm1202, 1, 0
          %v2607 = vsel %vm1203, 1, 0
          %v2608 = vsel %vm1204, 1, 0
          %v2609 = vsel %vm1205, 1, 0
          %v2610 = vsel %vm1206, 1, 0
          %v2611 = vsel %vm1207, 1, 0
          %v2612 = vsel %vm1208, 1, 0
          %v2613 = vsel %vm1209, 1, 0
          %v2614 = vsel %vm1210, 1, 0
          %v2615 = vsel %vm1211, 1, 0
          %v2616 = vsel %vm1212, 1, 0
          %v2617 = vsel %vm1213, 1, 0
          %v2618 = vsel %vm1214, 1, 0
          %v2619 = vsel %vm1215, 1, 0
          %v2620 = vsel %vm1216, 1, 0
          %v2621 = vsel %vm1217, 1, 0
          %v2622 = vsel %vm1218, 1, 0
          %v2623 = vsel %vm1219, 1, 0
          %v2624 = vsel %vm1220, 1, 0
          %v2625 = vsel %vm1221, 1, 0
          %v2626 = vsel %vm1222, 1, 0
          %v2627 = vsel %vm1223, 1, 0
          %v2628 = vsel %vm1224, 1, 0
          %v2629 = vsel %vm1225, 1, 0
          %v2630 = vsel %vm1226, 1, 0
          %v2631 = vsel %vm1227, 1, 0
          %v2632 = vsel %vm1228, 1, 0
          %v2633 = vsel %vm1229, 1, 0
          %v2634 = vsel %vm1230, 1, 0
          %v2635 = vsel %vm1231, 1, 0
          %v2636 = vsel %vm1232, 1, 0
          %v2637 = vsel %vm1233, 1, 0
          %v2638 = vsel %vm1234, 1, 0
          %v2639 = vsel %vm1235, 1, 0
          %v2640 = vsel %vm1236, 1, 0
          %v2641 = vsel %vm1237, 1, 0
          %v2642 = vsel %vm1238, 1, 0
          %v2643 = vsel %vm1239, 1, 0
          %v2644 = vsel %vm1240, 1, 0
          %v2645 = vsel %vm1241, 1, 0
          %v2646 = vsel %vm1242, 1, 0
          %v2647 = vsel %vm1243, 1, 0
          %v2648 = vsel %vm1244, 1, 0
          %v2649 = vsel %vm1245, 1, 0
          %v2650 = vsel %vm1246, 1, 0
          %v2651 = vsel %vm1247, 1, 0
          %v2652 = vsel %vm1248, 1, 0
          %v2653 = vsel %vm1249, 1, 0
          %v2654 = vsel %vm1250, 1, 0
          %v2655 = vsel %vm1251, 1, 0
          %v2656 = vsel %vm1252, 1, 0
          %v2657 = vsel %vm1253, 1, 0
          %v2658 = vsel %vm1254, 1, 0
          %v2659 = vsel %vm1255, 1, 0
          %v2660 = vsel %vm1256, 1, 0
          %v2661 = vsel %vm1257, 1, 0
          %v2662 = vsel %vm1258, 1, 0
          %v2663 = vsel %vm1259, 1, 0
          %v2664 = vsel %vm1260, 1, 0
          %v2665 = vsel %vm1261, 1, 0
          %v2666 = vsel %vm1262, 1, 0
          %v2667 = vsel %vm1263, 1, 0
          %v2668 = vsel %vm1264, 1, 0
          %v2669 = vsel %vm1265, 1, 0
          %v2670 = vsel %vm1266, 1, 0
          %v2671 = vsel %vm1267, 1, 0
          %v2672 = vsel %vm1268, 1, 0
          %v2673 = vsel %vm1269, 1, 0
          %v2674 = vsel %vm1270, 1, 0
          %v2675 = vsel %vm1271, 1, 0
          %v2676 = vsel %vm1272, 1, 0
          %v2677 = vsel %vm1273, 1, 0
          %v2678 = vsel %vm1274, 1, 0
          %v2679 = vsel %vm1275, 1, 0
          %v2680 = vsel %vm1276, 1, 0
          %v2681 = vsel %vm1277, 1, 0
          %v2682 = vsel %vm1278, 1, 0
          %v2683 = vsel %vm1279, 1, 0
          %v2684 = vsel %vm1280, 1, 0
          %v2685 = vsel %vm1281, 1, 0
          %v2686 = vsel %vm1282, 1, 0
          %v2687 = vsel %vm1283, 1, 0
          %v2688 = vsel %vm1284, 1, 0
          %v2689 = vsel %vm1285, 1, 0
          %v2690 = vsel %vm1286, 1, 0
          %v2691 = vsel %vm1287, 1, 0
          %v2692 = vsel %vm1288, 1, 0
          %v2693 = vsel %vm1289, 1, 0
          %v2694 = vsel %vm1290, 1, 0
          %v2695 = vsel %vm1291, 1, 0
          %v2696 = vsel %vm1292, 1, 0
          %v2697 = vsel %vm1293, 1, 0
          %v2698 = vsel %vm1294, 1, 0
          %v2699 = vsel %vm1295, 1, 0
          %v2700 = vsel %vm1296, 1, 0
          %v2701 = vsel %vm1297, 1, 0
          %v2702 = vsel %vm1298, 1, 0
          %v2703 = vsel %vm1299, 1, 0
          %v2704 = vsel %vm1300, 1, 0
          %v2705 = vsel %vm1301, 1, 0
          %v2706 = vsel %vm1302, 1, 0
          %v2707 = vsel %vm1303, 1, 0
          %v2708 = vsel %vm1304, 1, 0
          %v2709 = vsel %vm1305, 1, 0
          %v2710 = vsel %vm1306, 1, 0
          %v2711 = vsel %vm1307, 1, 0
          %v2712 = vsel %vm1308, 1, 0
          %v2713 = vsel %vm1309, 1, 0
          %v2714 = vsel %vm1310, 1, 0
          %v2715 = vsel %vm1311, 1, 0
          %v2716 = vsel %vm1312, 1, 0
          %v2717 = vsel %vm1313, 1, 0
          %v2718 = vsel %vm1314, 1, 0
          %v2719 = vsel %vm1315, 1, 0
          %v2720 = vsel %vm1316, 1, 0
          %v2721 = vsel %vm1317, 1, 0
          %v2722 = vsel %vm1318, 1, 0
          %v2723 = vsel %vm1319, 1, 0
          %v2724 = vsel %vm1320, 1, 0
          %v2725 = vsel %vm1321, 1, 0
          %v2726 = vsel %vm1322, 1, 0
          %v2727 = vsel %vm1323, 1, 0
          %v2728 = vsel %vm1324, 1, 0
          %v2729 = vsel %vm1325, 1, 0
          %v2730 = vsel %vm1326, 1, 0
          %vm2731 = vcmp.eq.s32.totalorder %v2534, 1
          %vm2732 = vcmp.eq.s32.totalorder %v2535, 1
          %vm2733 = vcmp.eq.s32.totalorder %v2536, 1
          %vm2734 = vcmp.eq.s32.totalorder %v2537, 1
          %vm2735 = vcmp.eq.s32.totalorder %v2538, 1
          %vm2736 = vcmp.eq.s32.totalorder %v2539, 1
          %vm2737 = vcmp.eq.s32.totalorder %v2540, 1
          %vm2738 = vcmp.eq.s32.totalorder %v2541, 1
          %vm2739 = vcmp.eq.s32.totalorder %v2542, 1
          %vm2740 = vcmp.eq.s32.totalorder %v2543, 1
          %vm2741 = vcmp.eq.s32.totalorder %v2544, 1
          %vm2742 = vcmp.eq.s32.totalorder %v2545, 1
          %vm2743 = vcmp.eq.s32.totalorder %v2546, 1
          %vm2744 = vcmp.eq.s32.totalorder %v2547, 1
          %vm2745 = vcmp.eq.s32.totalorder %v2548, 1
          %vm2746 = vcmp.eq.s32.totalorder %v2549, 1
          %vm2747 = vcmp.eq.s32.totalorder %v2550, 1
          %vm2748 = vcmp.eq.s32.totalorder %v2551, 1
          %vm2749 = vcmp.eq.s32.totalorder %v2552, 1
          %vm2750 = vcmp.eq.s32.totalorder %v2553, 1
          %vm2751 = vcmp.eq.s32.totalorder %v2554, 1
          %vm2752 = vcmp.eq.s32.totalorder %v2555, 1
          %vm2753 = vcmp.eq.s32.totalorder %v2556, 1
          %vm2754 = vcmp.eq.s32.totalorder %v2557, 1
          %vm2755 = vcmp.eq.s32.totalorder %v2558, 1
          %vm2756 = vcmp.eq.s32.totalorder %v2559, 1
          %vm2757 = vcmp.eq.s32.totalorder %v2560, 1
          %vm2758 = vcmp.eq.s32.totalorder %v2561, 1
          %vm2759 = vcmp.eq.s32.totalorder %v2562, 1
          %vm2760 = vcmp.eq.s32.totalorder %v2563, 1
          %vm2761 = vcmp.eq.s32.totalorder %v2564, 1
          %vm2762 = vcmp.eq.s32.totalorder %v2565, 1
          %vm2763 = vcmp.eq.s32.totalorder %v2566, 1
          %vm2764 = vcmp.eq.s32.totalorder %v2567, 1
          %vm2765 = vcmp.eq.s32.totalorder %v2568, 1
          %vm2766 = vcmp.eq.s32.totalorder %v2569, 1
          %vm2767 = vcmp.eq.s32.totalorder %v2570, 1
          %vm2768 = vcmp.eq.s32.totalorder %v2571, 1
          %vm2769 = vcmp.eq.s32.totalorder %v2572, 1
          %vm2770 = vcmp.eq.s32.totalorder %v2573, 1
          %vm2771 = vcmp.eq.s32.totalorder %v2574, 1
          %vm2772 = vcmp.eq.s32.totalorder %v2575, 1
          %vm2773 = vcmp.eq.s32.totalorder %v2576, 1
          %vm2774 = vcmp.eq.s32.totalorder %v2577, 1
          %vm2775 = vcmp.eq.s32.totalorder %v2578, 1
          %vm2776 = vcmp.eq.s32.totalorder %v2579, 1
          %vm2777 = vcmp.eq.s32.totalorder %v2580, 1
          %vm2778 = vcmp.eq.s32.totalorder %v2581, 1
          %vm2779 = vcmp.eq.s32.totalorder %v2582, 1
          %vm2780 = vcmp.eq.s32.totalorder %v2583, 1
          %vm2781 = vcmp.eq.s32.totalorder %v2584, 1
          %vm2782 = vcmp.eq.s32.totalorder %v2585, 1
          %vm2783 = vcmp.eq.s32.totalorder %v2586, 1
          %vm2784 = vcmp.eq.s32.totalorder %v2587, 1
          %vm2785 = vcmp.eq.s32.totalorder %v2588, 1
          %vm2786 = vcmp.eq.s32.totalorder %v2589, 1
          %vm2787 = vcmp.eq.s32.totalorder %v2590, 1
          %vm2788 = vcmp.eq.s32.totalorder %v2591, 1
          %vm2789 = vcmp.eq.s32.totalorder %v2592, 1
          %vm2790 = vcmp.eq.s32.totalorder %v2593, 1
          %vm2791 = vcmp.eq.s32.totalorder %v2594, 1
          %vm2792 = vcmp.eq.s32.totalorder %v2595, 1
          %vm2793 = vcmp.eq.s32.totalorder %v2596, 1
          %vm2794 = vcmp.eq.s32.totalorder %v2597, 1
          %vm2795 = vcmp.eq.s32.totalorder %v2598, 1
          %vm2796 = vcmp.eq.s32.totalorder %v2599, 1
          %vm2797 = vcmp.eq.s32.totalorder %v2600, 1
          %vm2798 = vcmp.eq.s32.totalorder %v2601, 1
          %vm2799 = vcmp.eq.s32.totalorder %v2602, 1
          %vm2800 = vcmp.eq.s32.totalorder %v2603, 1
          %vm2801 = vcmp.eq.s32.totalorder %v2604, 1
          %vm2802 = vcmp.eq.s32.totalorder %v2605, 1
          %vm2803 = vcmp.eq.s32.totalorder %v2606, 1
          %vm2804 = vcmp.eq.s32.totalorder %v2607, 1
          %vm2805 = vcmp.eq.s32.totalorder %v2608, 1
          %vm2806 = vcmp.eq.s32.totalorder %v2609, 1
          %vm2807 = vcmp.eq.s32.totalorder %v2610, 1
          %vm2808 = vcmp.eq.s32.totalorder %v2611, 1
          %vm2809 = vcmp.eq.s32.totalorder %v2612, 1
          %vm2810 = vcmp.eq.s32.totalorder %v2613, 1
          %vm2811 = vcmp.eq.s32.totalorder %v2614, 1
          %vm2812 = vcmp.eq.s32.totalorder %v2615, 1
          %vm2813 = vcmp.eq.s32.totalorder %v2616, 1
          %vm2814 = vcmp.eq.s32.totalorder %v2617, 1
          %vm2815 = vcmp.eq.s32.totalorder %v2618, 1
          %vm2816 = vcmp.eq.s32.totalorder %v2619, 1
          %vm2817 = vcmp.eq.s32.totalorder %v2620, 1
          %vm2818 = vcmp.eq.s32.totalorder %v2621, 1
          %vm2819 = vcmp.eq.s32.totalorder %v2622, 1
          %vm2820 = vcmp.eq.s32.totalorder %v2623, 1
          %vm2821 = vcmp.eq.s32.totalorder %v2624, 1
          %vm2822 = vcmp.eq.s32.totalorder %v2625, 1
          %vm2823 = vcmp.eq.s32.totalorder %v2626, 1
          %vm2824 = vcmp.eq.s32.totalorder %v2627, 1
          %vm2825 = vcmp.eq.s32.totalorder %v2628, 1
          %vm2826 = vcmp.eq.s32.totalorder %v2629, 1
          %vm2827 = vcmp.eq.s32.totalorder %v2630, 1
          %vm2828 = vcmp.eq.s32.totalorder %v2631, 1
          %vm2829 = vcmp.eq.s32.totalorder %v2632, 1
          %vm2830 = vcmp.eq.s32.totalorder %v2633, 1
          %vm2831 = vcmp.eq.s32.totalorder %v2634, 1
          %vm2832 = vcmp.eq.s32.totalorder %v2635, 1
          %vm2833 = vcmp.eq.s32.totalorder %v2636, 1
          %vm2834 = vcmp.eq.s32.totalorder %v2637, 1
          %vm2835 = vcmp.eq.s32.totalorder %v2638, 1
          %vm2836 = vcmp.eq.s32.totalorder %v2639, 1
          %vm2837 = vcmp.eq.s32.totalorder %v2640, 1
          %vm2838 = vcmp.eq.s32.totalorder %v2641, 1
          %vm2839 = vcmp.eq.s32.totalorder %v2642, 1
          %vm2840 = vcmp.eq.s32.totalorder %v2643, 1
          %vm2841 = vcmp.eq.s32.totalorder %v2644, 1
          %vm2842 = vcmp.eq.s32.totalorder %v2645, 1
          %vm2843 = vcmp.eq.s32.totalorder %v2646, 1
          %vm2844 = vcmp.eq.s32.totalorder %v2647, 1
          %vm2845 = vcmp.eq.s32.totalorder %v2648, 1
          %vm2846 = vcmp.eq.s32.totalorder %v2649, 1
          %vm2847 = vcmp.eq.s32.totalorder %v2650, 1
          %vm2848 = vcmp.eq.s32.totalorder %v2651, 1
          %vm2849 = vcmp.eq.s32.totalorder %v2652, 1
          %vm2850 = vcmp.eq.s32.totalorder %v2653, 1
          %vm2851 = vcmp.eq.s32.totalorder %v2654, 1
          %vm2852 = vcmp.eq.s32.totalorder %v2655, 1
          %vm2853 = vcmp.eq.s32.totalorder %v2656, 1
          %vm2854 = vcmp.eq.s32.totalorder %v2657, 1
          %vm2855 = vcmp.eq.s32.totalorder %v2658, 1
          %vm2856 = vcmp.eq.s32.totalorder %v2659, 1
          %vm2857 = vcmp.eq.s32.totalorder %v2660, 1
          %vm2858 = vcmp.eq.s32.totalorder %v2661, 1
          %vm2859 = vcmp.eq.s32.totalorder %v2662, 1
          %vm2860 = vcmp.eq.s32.totalorder %v2663, 1
          %vm2861 = vcmp.eq.s32.totalorder %v2664, 1
          %vm2862 = vcmp.eq.s32.totalorder %v2665, 1
          %vm2863 = vcmp.eq.s32.totalorder %v2666, 1
          %vm2864 = vcmp.eq.s32.totalorder %v2667, 1
          %vm2865 = vcmp.eq.s32.totalorder %v2668, 1
          %vm2866 = vcmp.eq.s32.totalorder %v2669, 1
          %vm2867 = vcmp.eq.s32.totalorder %v2670, 1
          %vm2868 = vcmp.eq.s32.totalorder %v2671, 1
          %vm2869 = vcmp.eq.s32.totalorder %v2672, 1
          %vm2870 = vcmp.eq.s32.totalorder %v2673, 1
          %vm2871 = vcmp.eq.s32.totalorder %v2674, 1
          %vm2872 = vcmp.eq.s32.totalorder %v2675, 1
          %vm2873 = vcmp.eq.s32.totalorder %v2676, 1
          %vm2874 = vcmp.eq.s32.totalorder %v2677, 1
          %vm2875 = vcmp.eq.s32.totalorder %v2678, 1
          %vm2876 = vcmp.eq.s32.totalorder %v2679, 1
          %vm2877 = vcmp.eq.s32.totalorder %v2680, 1
          %vm2878 = vcmp.eq.s32.totalorder %v2681, 1
          %vm2879 = vcmp.eq.s32.totalorder %v2682, 1
          %vm2880 = vcmp.eq.s32.totalorder %v2683, 1
          %vm2881 = vcmp.eq.s32.totalorder %v2684, 1
          %vm2882 = vcmp.eq.s32.totalorder %v2685, 1
          %vm2883 = vcmp.eq.s32.totalorder %v2686, 1
          %vm2884 = vcmp.eq.s32.totalorder %v2687, 1
          %vm2885 = vcmp.eq.s32.totalorder %v2688, 1
          %vm2886 = vcmp.eq.s32.totalorder %v2689, 1
          %vm2887 = vcmp.eq.s32.totalorder %v2690, 1
          %vm2888 = vcmp.eq.s32.totalorder %v2691, 1
          %vm2889 = vcmp.eq.s32.totalorder %v2692, 1
          %vm2890 = vcmp.eq.s32.totalorder %v2693, 1
          %vm2891 = vcmp.eq.s32.totalorder %v2694, 1
          %vm2892 = vcmp.eq.s32.totalorder %v2695, 1
          %vm2893 = vcmp.eq.s32.totalorder %v2696, 1
          %vm2894 = vcmp.eq.s32.totalorder %v2697, 1
          %vm2895 = vcmp.eq.s32.totalorder %v2698, 1
          %vm2896 = vcmp.eq.s32.totalorder %v2699, 1
          %vm2897 = vcmp.eq.s32.totalorder %v2700, 1
          %vm2898 = vcmp.eq.s32.totalorder %v2701, 1
          %vm2899 = vcmp.eq.s32.totalorder %v2702, 1
          %vm2900 = vcmp.eq.s32.totalorder %v2703, 1
          %vm2901 = vcmp.eq.s32.totalorder %v2704, 1
          %vm2902 = vcmp.eq.s32.totalorder %v2705, 1
          %vm2903 = vcmp.eq.s32.totalorder %v2706, 1
          %vm2904 = vcmp.eq.s32.totalorder %v2707, 1
          %vm2905 = vcmp.eq.s32.totalorder %v2708, 1
          %vm2906 = vcmp.eq.s32.totalorder %v2709, 1
          %vm2907 = vcmp.eq.s32.totalorder %v2710, 1
          %vm2908 = vcmp.eq.s32.totalorder %v2711, 1
          %vm2909 = vcmp.eq.s32.totalorder %v2712, 1
          %vm2910 = vcmp.eq.s32.totalorder %v2713, 1
          %vm2911 = vcmp.eq.s32.totalorder %v2714, 1
          %vm2912 = vcmp.eq.s32.totalorder %v2715, 1
          %vm2913 = vcmp.eq.s32.totalorder %v2716, 1
          %vm2914 = vcmp.eq.s32.totalorder %v2717, 1
          %vm2915 = vcmp.eq.s32.totalorder %v2718, 1
          %vm2916 = vcmp.eq.s32.totalorder %v2719, 1
          %vm2917 = vcmp.eq.s32.totalorder %v2720, 1
          %vm2918 = vcmp.eq.s32.totalorder %v2721, 1
          %vm2919 = vcmp.eq.s32.totalorder %v2722, 1
          %vm2920 = vcmp.eq.s32.totalorder %v2723, 1
          %vm2921 = vcmp.eq.s32.totalorder %v2724, 1
          %vm2922 = vcmp.eq.s32.totalorder %v2725, 1
          %vm2923 = vcmp.eq.s32.totalorder %v2726, 1
          %vm2924 = vcmp.eq.s32.totalorder %v2727, 1
          %vm2925 = vcmp.eq.s32.totalorder %v2728, 1
          %vm2926 = vcmp.eq.s32.totalorder %v2729, 1
          %vm2927 = vcmp.eq.s32.totalorder %v2730, 1
          %v2928 = vsel %vm2731, %v2337, 0.0
          %v2929 = vsel %vm2732, %v2338, 0.0
          %v2930 = vsel %vm2733, %v2339, 0.0
          %v2931 = vsel %vm2734, %v2340, 0.0
          %v2932 = vsel %vm2735, %v2341, 0.0
          %v2933 = vsel %vm2736, %v2342, 0.0
          %v2934 = vsel %vm2737, %v2343, 0.0
          %v2935 = vsel %vm2738, %v2344, 0.0
          %v2936 = vsel %vm2739, %v2345, 0.0
          %v2937 = vsel %vm2740, %v2346, 0.0
          %v2938 = vsel %vm2741, %v2347, 0.0
          %v2939 = vsel %vm2742, %v2348, 0.0
          %v2940 = vsel %vm2743, %v2349, 0.0
          %v2941 = vsel %vm2744, %v2350, 0.0
          %v2942 = vsel %vm2745, %v2351, 0.0
          %v2943 = vsel %vm2746, %v2352, 0.0
          %v2944 = vsel %vm2747, %v2353, 0.0
          %v2945 = vsel %vm2748, %v2354, 0.0
          %v2946 = vsel %vm2749, %v2355, 0.0
          %v2947 = vsel %vm2750, %v2356, 0.0
          %v2948 = vsel %vm2751, %v2357, 0.0
          %v2949 = vsel %vm2752, %v2358, 0.0
          %v2950 = vsel %vm2753, %v2359, 0.0
          %v2951 = vsel %vm2754, %v2360, 0.0
          %v2952 = vsel %vm2755, %v2361, 0.0
          %v2953 = vsel %vm2756, %v2362, 0.0
          %v2954 = vsel %vm2757, %v2363, 0.0
          %v2955 = vsel %vm2758, %v2364, 0.0
          %v2956 = vsel %vm2759, %v2365, 0.0
          %v2957 = vsel %vm2760, %v2366, 0.0
          %v2958 = vsel %vm2761, %v2367, 0.0
          %v2959 = vsel %vm2762, %v2368, 0.0
          %v2960 = vsel %vm2763, %v2369, 0.0
          %v2961 = vsel %vm2764, %v2370, 0.0
          %v2962 = vsel %vm2765, %v2371, 0.0
          %v2963 = vsel %vm2766, %v2372, 0.0
          %v2964 = vsel %vm2767, %v2373, 0.0
          %v2965 = vsel %vm2768, %v2374, 0.0
          %v2966 = vsel %vm2769, %v2375, 0.0
          %v2967 = vsel %vm2770, %v2376, 0.0
          %v2968 = vsel %vm2771, %v2377, 0.0
          %v2969 = vsel %vm2772, %v2378, 0.0
          %v2970 = vsel %vm2773, %v2379, 0.0
          %v2971 = vsel %vm2774, %v2380, 0.0
          %v2972 = vsel %vm2775, %v2381, 0.0
          %v2973 = vsel %vm2776, %v2382, 0.0
          %v2974 = vsel %vm2777, %v2383, 0.0
          %v2975 = vsel %vm2778, %v2384, 0.0
          %v2976 = vsel %vm2779, %v2385, 0.0
          %v2977 = vsel %vm2780, %v2386, 0.0
          %v2978 = vsel %vm2781, %v2387, 0.0
          %v2979 = vsel %vm2782, %v2388, 0.0
          %v2980 = vsel %vm2783, %v2389, 0.0
          %v2981 = vsel %vm2784, %v2390, 0.0
          %v2982 = vsel %vm2785, %v2391, 0.0
          %v2983 = vsel %vm2786, %v2392, 0.0
          %v2984 = vsel %vm2787, %v2393, 0.0
          %v2985 = vsel %vm2788, %v2394, 0.0
          %v2986 = vsel %vm2789, %v2395, 0.0
          %v2987 = vsel %vm2790, %v2396, 0.0
          %v2988 = vsel %vm2791, %v2397, 0.0
          %v2989 = vsel %vm2792, %v2398, 0.0
          %v2990 = vsel %vm2793, %v2399, 0.0
          %v2991 = vsel %vm2794, %v2400, 0.0
          %v2992 = vsel %vm2795, %v2401, 0.0
          %v2993 = vsel %vm2796, %v2402, 0.0
          %v2994 = vsel %vm2797, %v2403, 0.0
          %v2995 = vsel %vm2798, %v2404, 0.0
          %v2996 = vsel %vm2799, %v2405, 0.0
          %v2997 = vsel %vm2800, %v2406, 0.0
          %v2998 = vsel %vm2801, %v2407, 0.0
          %v2999 = vsel %vm2802, %v2408, 0.0
          %v3000 = vsel %vm2803, %v2409, 0.0
          %v3001 = vsel %vm2804, %v2410, 0.0
          %v3002 = vsel %vm2805, %v2411, 0.0
          %v3003 = vsel %vm2806, %v2412, 0.0
          %v3004 = vsel %vm2807, %v2413, 0.0
          %v3005 = vsel %vm2808, %v2414, 0.0
          %v3006 = vsel %vm2809, %v2415, 0.0
          %v3007 = vsel %vm2810, %v2416, 0.0
          %v3008 = vsel %vm2811, %v2417, 0.0
          %v3009 = vsel %vm2812, %v2418, 0.0
          %v3010 = vsel %vm2813, %v2419, 0.0
          %v3011 = vsel %vm2814, %v2420, 0.0
          %v3012 = vsel %vm2815, %v2421, 0.0
          %v3013 = vsel %vm2816, %v2422, 0.0
          %v3014 = vsel %vm2817, %v2423, 0.0
          %v3015 = vsel %vm2818, %v2424, 0.0
          %v3016 = vsel %vm2819, %v2425, 0.0
          %v3017 = vsel %vm2820, %v2426, 0.0
          %v3018 = vsel %vm2821, %v2427, 0.0
          %v3019 = vsel %vm2822, %v2428, 0.0
          %v3020 = vsel %vm2823, %v2429, 0.0
          %v3021 = vsel %vm2824, %v2430, 0.0
          %v3022 = vsel %vm2825, %v2431, 0.0
          %v3023 = vsel %vm2826, %v2432, 0.0
          %v3024 = vsel %vm2827, %v2433, 0.0
          %v3025 = vsel %vm2828, %v2434, 0.0
          %v3026 = vsel %vm2829, %v2435, 0.0
          %v3027 = vsel %vm2830, %v2436, 0.0
          %v3028 = vsel %vm2831, %v2437, 0.0
          %v3029 = vsel %vm2832, %v2438, 0.0
          %v3030 = vsel %vm2833, %v2439, 0.0
          %v3031 = vsel %vm2834, %v2440, 0.0
          %v3032 = vsel %vm2835, %v2441, 0.0
          %v3033 = vsel %vm2836, %v2442, 0.0
          %v3034 = vsel %vm2837, %v2443, 0.0
          %v3035 = vsel %vm2838, %v2444, 0.0
          %v3036 = vsel %vm2839, %v2445, 0.0
          %v3037 = vsel %vm2840, %v2446, 0.0
          %v3038 = vsel %vm2841, %v2447, 0.0
          %v3039 = vsel %vm2842, %v2448, 0.0
          %v3040 = vsel %vm2843, %v2449, 0.0
          %v3041 = vsel %vm2844, %v2450, 0.0
          %v3042 = vsel %vm2845, %v2451, 0.0
          %v3043 = vsel %vm2846, %v2452, 0.0
          %v3044 = vsel %vm2847, %v2453, 0.0
          %v3045 = vsel %vm2848, %v2454, 0.0
          %v3046 = vsel %vm2849, %v2455, 0.0
          %v3047 = vsel %vm2850, %v2456, 0.0
          %v3048 = vsel %vm2851, %v2457, 0.0
          %v3049 = vsel %vm2852, %v2458, 0.0
          %v3050 = vsel %vm2853, %v2459, 0.0
          %v3051 = vsel %vm2854, %v2460, 0.0
          %v3052 = vsel %vm2855, %v2461, 0.0
          %v3053 = vsel %vm2856, %v2462, 0.0
          %v3054 = vsel %vm2857, %v2463, 0.0
          %v3055 = vsel %vm2858, %v2464, 0.0
          %v3056 = vsel %vm2859, %v2465, 0.0
          %v3057 = vsel %vm2860, %v2466, 0.0
          %v3058 = vsel %vm2861, %v2467, 0.0
          %v3059 = vsel %vm2862, %v2468, 0.0
          %v3060 = vsel %vm2863, %v2469, 0.0
          %v3061 = vsel %vm2864, %v2470, 0.0
          %v3062 = vsel %vm2865, %v2471, 0.0
          %v3063 = vsel %vm2866, %v2472, 0.0
          %v3064 = vsel %vm2867, %v2473, 0.0
          %v3065 = vsel %vm2868, %v2474, 0.0
          %v3066 = vsel %vm2869, %v2475, 0.0
          %v3067 = vsel %vm2870, %v2476, 0.0
          %v3068 = vsel %vm2871, %v2477, 0.0
          %v3069 = vsel %vm2872, %v2478, 0.0
          %v3070 = vsel %vm2873, %v2479, 0.0
          %v3071 = vsel %vm2874, %v2480, 0.0
          %v3072 = vsel %vm2875, %v2481, 0.0
          %v3073 = vsel %vm2876, %v2482, 0.0
          %v3074 = vsel %vm2877, %v2483, 0.0
          %v3075 = vsel %vm2878, %v2484, 0.0
          %v3076 = vsel %vm2879, %v2485, 0.0
          %v3077 = vsel %vm2880, %v2486, 0.0
          %v3078 = vsel %vm2881, %v2487, 0.0
          %v3079 = vsel %vm2882, %v2488, 0.0
          %v3080 = vsel %vm2883, %v2489, 0.0
          %v3081 = vsel %vm2884, %v2490, 0.0
          %v3082 = vsel %vm2885, %v2491, 0.0
          %v3083 = vsel %vm2886, %v2492, 0.0
          %v3084 = vsel %vm2887, %v2493, 0.0
          %v3085 = vsel %vm2888, %v2494, 0.0
          %v3086 = vsel %vm2889, %v2495, 0.0
          %v3087 = vsel %vm2890, %v2496, 0.0
          %v3088 = vsel %vm2891, %v2497, 0.0
          %v3089 = vsel %vm2892, %v2498, 0.0
          %v3090 = vsel %vm2893, %v2499, 0.0
          %v3091 = vsel %vm2894, %v2500, 0.0
          %v3092 = vsel %vm2895, %v2501, 0.0
          %v3093 = vsel %vm2896, %v2502, 0.0
          %v3094 = vsel %vm2897, %v2503, 0.0
          %v3095 = vsel %vm2898, %v2504, 0.0
          %v3096 = vsel %vm2899, %v2505, 0.0
          %v3097 = vsel %vm2900, %v2506, 0.0
          %v3098 = vsel %vm2901, %v2507, 0.0
          %v3099 = vsel %vm2902, %v2508, 0.0
          %v3100 = vsel %vm2903, %v2509, 0.0
          %v3101 = vsel %vm2904, %v2510, 0.0
          %v3102 = vsel %vm2905, %v2511, 0.0
          %v3103 = vsel %vm2906, %v2512, 0.0
          %v3104 = vsel %vm2907, %v2513, 0.0
          %v3105 = vsel %vm2908, %v2514, 0.0
          %v3106 = vsel %vm2909, %v2515, 0.0
          %v3107 = vsel %vm2910, %v2516, 0.0
          %v3108 = vsel %vm2911, %v2517, 0.0
          %v3109 = vsel %vm2912, %v2518, 0.0
          %v3110 = vsel %vm2913, %v2519, 0.0
          %v3111 = vsel %vm2914, %v2520, 0.0
          %v3112 = vsel %vm2915, %v2521, 0.0
          %v3113 = vsel %vm2916, %v2522, 0.0
          %v3114 = vsel %vm2917, %v2523, 0.0
          %v3115 = vsel %vm2918, %v2524, 0.0
          %v3116 = vsel %vm2919, %v2525, 0.0
          %v3117 = vsel %vm2920, %v2526, 0.0
          %v3118 = vsel %vm2921, %v2527, 0.0
          %v3119 = vsel %vm2922, %v2528, 0.0
          %v3120 = vsel %vm2923, %v2529, 0.0
          %v3121 = vsel %vm2924, %v2530, 0.0
          %v3122 = vsel %vm2925, %v2531, 0.0
          %v3123 = vsel %vm2926, %v2532, 0.0
          %v3124 = vsel %vm2927, %v2533, 0.0
          %v3125 = vsel %vm2731, %v532, 0.0
          %v3126 = vsel %vm2732, %v533, 0.0
          %v3127 = vsel %vm2733, %v534, 0.0
          %v3128 = vsel %vm2734, %v535, 0.0
          %v3129 = vsel %vm2735, %v536, 0.0
          %v3130 = vsel %vm2736, %v537, 0.0
          %v3131 = vsel %vm2737, %v538, 0.0
          %v3132 = vsel %vm2738, %v539, 0.0
          %v3133 = vsel %vm2739, %v540, 0.0
          %v3134 = vsel %vm2740, %v541, 0.0
          %v3135 = vsel %vm2741, %v542, 0.0
          %v3136 = vsel %vm2742, %v543, 0.0
          %v3137 = vsel %vm2743, %v544, 0.0
          %v3138 = vsel %vm2744, %v545, 0.0
          %v3139 = vsel %vm2745, %v546, 0.0
          %v3140 = vsel %vm2746, %v547, 0.0
          %v3141 = vsel %vm2747, %v548, 0.0
          %v3142 = vsel %vm2748, %v549, 0.0
          %v3143 = vsel %vm2749, %v550, 0.0
          %v3144 = vsel %vm2750, %v551, 0.0
          %v3145 = vsel %vm2751, %v552, 0.0
          %v3146 = vsel %vm2752, %v553, 0.0
          %v3147 = vsel %vm2753, %v554, 0.0
          %v3148 = vsel %vm2754, %v555, 0.0
          %v3149 = vsel %vm2755, %v556, 0.0
          %v3150 = vsel %vm2756, %v557, 0.0
          %v3151 = vsel %vm2757, %v558, 0.0
          %v3152 = vsel %vm2758, %v559, 0.0
          %v3153 = vsel %vm2759, %v560, 0.0
          %v3154 = vsel %vm2760, %v561, 0.0
          %v3155 = vsel %vm2761, %v562, 0.0
          %v3156 = vsel %vm2762, %v563, 0.0
          %v3157 = vsel %vm2763, %v564, 0.0
          %v3158 = vsel %vm2764, %v565, 0.0
          %v3159 = vsel %vm2765, %v566, 0.0
          %v3160 = vsel %vm2766, %v567, 0.0
          %v3161 = vsel %vm2767, %v568, 0.0
          %v3162 = vsel %vm2768, %v569, 0.0
          %v3163 = vsel %vm2769, %v570, 0.0
          %v3164 = vsel %vm2770, %v571, 0.0
          %v3165 = vsel %vm2771, %v572, 0.0
          %v3166 = vsel %vm2772, %v573, 0.0
          %v3167 = vsel %vm2773, %v574, 0.0
          %v3168 = vsel %vm2774, %v575, 0.0
          %v3169 = vsel %vm2775, %v576, 0.0
          %v3170 = vsel %vm2776, %v577, 0.0
          %v3171 = vsel %vm2777, %v578, 0.0
          %v3172 = vsel %vm2778, %v579, 0.0
          %v3173 = vsel %vm2779, %v580, 0.0
          %v3174 = vsel %vm2780, %v581, 0.0
          %v3175 = vsel %vm2781, %v582, 0.0
          %v3176 = vsel %vm2782, %v583, 0.0
          %v3177 = vsel %vm2783, %v584, 0.0
          %v3178 = vsel %vm2784, %v585, 0.0
          %v3179 = vsel %vm2785, %v586, 0.0
          %v3180 = vsel %vm2786, %v587, 0.0
          %v3181 = vsel %vm2787, %v588, 0.0
          %v3182 = vsel %vm2788, %v589, 0.0
          %v3183 = vsel %vm2789, %v590, 0.0
          %v3184 = vsel %vm2790, %v591, 0.0
          %v3185 = vsel %vm2791, %v592, 0.0
          %v3186 = vsel %vm2792, %v593, 0.0
          %v3187 = vsel %vm2793, %v594, 0.0
          %v3188 = vsel %vm2794, %v595, 0.0
          %v3189 = vsel %vm2795, %v596, 0.0
          %v3190 = vsel %vm2796, %v597, 0.0
          %v3191 = vsel %vm2797, %v598, 0.0
          %v3192 = vsel %vm2798, %v599, 0.0
          %v3193 = vsel %vm2799, %v600, 0.0
          %v3194 = vsel %vm2800, %v601, 0.0
          %v3195 = vsel %vm2801, %v602, 0.0
          %v3196 = vsel %vm2802, %v603, 0.0
          %v3197 = vsel %vm2803, %v604, 0.0
          %v3198 = vsel %vm2804, %v605, 0.0
          %v3199 = vsel %vm2805, %v606, 0.0
          %v3200 = vsel %vm2806, %v607, 0.0
          %v3201 = vsel %vm2807, %v608, 0.0
          %v3202 = vsel %vm2808, %v609, 0.0
          %v3203 = vsel %vm2809, %v610, 0.0
          %v3204 = vsel %vm2810, %v611, 0.0
          %v3205 = vsel %vm2811, %v612, 0.0
          %v3206 = vsel %vm2812, %v613, 0.0
          %v3207 = vsel %vm2813, %v614, 0.0
          %v3208 = vsel %vm2814, %v615, 0.0
          %v3209 = vsel %vm2815, %v616, 0.0
          %v3210 = vsel %vm2816, %v617, 0.0
          %v3211 = vsel %vm2817, %v618, 0.0
          %v3212 = vsel %vm2818, %v619, 0.0
          %v3213 = vsel %vm2819, %v620, 0.0
          %v3214 = vsel %vm2820, %v621, 0.0
          %v3215 = vsel %vm2821, %v622, 0.0
          %v3216 = vsel %vm2822, %v623, 0.0
          %v3217 = vsel %vm2823, %v624, 0.0
          %v3218 = vsel %vm2824, %v625, 0.0
          %v3219 = vsel %vm2825, %v626, 0.0
          %v3220 = vsel %vm2826, %v627, 0.0
          %v3221 = vsel %vm2827, %v628, 0.0
          %v3222 = vsel %vm2828, %v629, 0.0
          %v3223 = vsel %vm2829, %v630, 0.0
          %v3224 = vsel %vm2830, %v631, 0.0
          %v3225 = vsel %vm2831, %v632, 0.0
          %v3226 = vsel %vm2832, %v633, 0.0
          %v3227 = vsel %vm2833, %v634, 0.0
          %v3228 = vsel %vm2834, %v635, 0.0
          %v3229 = vsel %vm2835, %v636, 0.0
          %v3230 = vsel %vm2836, %v637, 0.0
          %v3231 = vsel %vm2837, %v638, 0.0
          %v3232 = vsel %vm2838, %v639, 0.0
          %v3233 = vsel %vm2839, %v640, 0.0
          %v3234 = vsel %vm2840, %v641, 0.0
          %v3235 = vsel %vm2841, %v642, 0.0
          %v3236 = vsel %vm2842, %v643, 0.0
          %v3237 = vsel %vm2843, %v644, 0.0
          %v3238 = vsel %vm2844, %v645, 0.0
          %v3239 = vsel %vm2845, %v646, 0.0
          %v3240 = vsel %vm2846, %v647, 0.0
          %v3241 = vsel %vm2847, %v648, 0.0
          %v3242 = vsel %vm2848, %v649, 0.0
          %v3243 = vsel %vm2849, %v650, 0.0
          %v3244 = vsel %vm2850, %v651, 0.0
          %v3245 = vsel %vm2851, %v652, 0.0
          %v3246 = vsel %vm2852, %v653, 0.0
          %v3247 = vsel %vm2853, %v654, 0.0
          %v3248 = vsel %vm2854, %v655, 0.0
          %v3249 = vsel %vm2855, %v656, 0.0
          %v3250 = vsel %vm2856, %v657, 0.0
          %v3251 = vsel %vm2857, %v658, 0.0
          %v3252 = vsel %vm2858, %v659, 0.0
          %v3253 = vsel %vm2859, %v660, 0.0
          %v3254 = vsel %vm2860, %v661, 0.0
          %v3255 = vsel %vm2861, %v662, 0.0
          %v3256 = vsel %vm2862, %v663, 0.0
          %v3257 = vsel %vm2863, %v664, 0.0
          %v3258 = vsel %vm2864, %v665, 0.0
          %v3259 = vsel %vm2865, %v666, 0.0
          %v3260 = vsel %vm2866, %v667, 0.0
          %v3261 = vsel %vm2867, %v668, 0.0
          %v3262 = vsel %vm2868, %v669, 0.0
          %v3263 = vsel %vm2869, %v670, 0.0
          %v3264 = vsel %vm2870, %v671, 0.0
          %v3265 = vsel %vm2871, %v672, 0.0
          %v3266 = vsel %vm2872, %v673, 0.0
          %v3267 = vsel %vm2873, %v674, 0.0
          %v3268 = vsel %vm2874, %v675, 0.0
          %v3269 = vsel %vm2875, %v676, 0.0
          %v3270 = vsel %vm2876, %v677, 0.0
          %v3271 = vsel %vm2877, %v678, 0.0
          %v3272 = vsel %vm2878, %v679, 0.0
          %v3273 = vsel %vm2879, %v680, 0.0
          %v3274 = vsel %vm2880, %v681, 0.0
          %v3275 = vsel %vm2881, %v682, 0.0
          %v3276 = vsel %vm2882, %v683, 0.0
          %v3277 = vsel %vm2883, %v684, 0.0
          %v3278 = vsel %vm2884, %v685, 0.0
          %v3279 = vsel %vm2885, %v686, 0.0
          %v3280 = vsel %vm2886, %v687, 0.0
          %v3281 = vsel %vm2887, %v688, 0.0
          %v3282 = vsel %vm2888, %v689, 0.0
          %v3283 = vsel %vm2889, %v690, 0.0
          %v3284 = vsel %vm2890, %v691, 0.0
          %v3285 = vsel %vm2891, %v692, 0.0
          %v3286 = vsel %vm2892, %v693, 0.0
          %v3287 = vsel %vm2893, %v694, 0.0
          %v3288 = vsel %vm2894, %v695, 0.0
          %v3289 = vsel %vm2895, %v696, 0.0
          %v3290 = vsel %vm2896, %v697, 0.0
          %v3291 = vsel %vm2897, %v698, 0.0
          %v3292 = vsel %vm2898, %v699, 0.0
          %v3293 = vsel %vm2899, %v700, 0.0
          %v3294 = vsel %vm2900, %v701, 0.0
          %v3295 = vsel %vm2901, %v702, 0.0
          %v3296 = vsel %vm2902, %v703, 0.0
          %v3297 = vsel %vm2903, %v704, 0.0
          %v3298 = vsel %vm2904, %v705, 0.0
          %v3299 = vsel %vm2905, %v706, 0.0
          %v3300 = vsel %vm2906, %v707, 0.0
          %v3301 = vsel %vm2907, %v708, 0.0
          %v3302 = vsel %vm2908, %v709, 0.0
          %v3303 = vsel %vm2909, %v710, 0.0
          %v3304 = vsel %vm2910, %v711, 0.0
          %v3305 = vsel %vm2911, %v712, 0.0
          %v3306 = vsel %vm2912, %v713, 0.0
          %v3307 = vsel %vm2913, %v714, 0.0
          %v3308 = vsel %vm2914, %v715, 0.0
          %v3309 = vsel %vm2915, %v716, 0.0
          %v3310 = vsel %vm2916, %v717, 0.0
          %v3311 = vsel %vm2917, %v718, 0.0
          %v3312 = vsel %vm2918, %v719, 0.0
          %v3313 = vsel %vm2919, %v720, 0.0
          %v3314 = vsel %vm2920, %v721, 0.0
          %v3315 = vsel %vm2921, %v722, 0.0
          %v3316 = vsel %vm2922, %v723, 0.0
          %v3317 = vsel %vm2923, %v724, 0.0
          %v3318 = vsel %vm2924, %v725, 0.0
          %v3319 = vsel %vm2925, %v726, 0.0
          %v3320 = vsel %vm2926, %v727, 0.0
          %v3321 = vsel %vm2927, %v728, 0.0
        $region52: #{tpu_custom_call.1} parent=35 // pred_fallthru
          %v3322 = vphi 0, %v2928
          %v3323 = vphi 0, %v2929
          %v3324 = vphi 0, %v2930
          %v3325 = vphi 0, %v2931
          %v3326 = vphi 0, %v2932
          %v3327 = vphi 0, %v2933
          %v3328 = vphi 0, %v2934
          %v3329 = vphi 0, %v2935
          %v3330 = vphi 0, %v2936
          %v3331 = vphi 0, %v2937
          %v3332 = vphi 0, %v2938
          %v3333 = vphi 0, %v2939
          %v3334 = vphi 0, %v2940
          %v3335 = vphi 0, %v2941
          %v3336 = vphi 0, %v2942
          %v3337 = vphi 0, %v2943
          %v3338 = vphi 0, %v2944
          %v3339 = vphi 0, %v2945
          %v3340 = vphi 0, %v2946
          %v3341 = vphi 0, %v2947
          %v3342 = vphi 0, %v2948
          %v3343 = vphi 0, %v2949
          %v3344 = vphi 0, %v2950
          %v3345 = vphi 0, %v2951
          %v3346 = vphi 0, %v2952
          %v3347 = vphi 0, %v2953
          %v3348 = vphi 0, %v2954
          %v3349 = vphi 0, %v2955
          %v3350 = vphi 0, %v2956
          %v3351 = vphi 0, %v2957
          %v3352 = vphi 0, %v2958
          %v3353 = vphi 0, %v2959
          %v3354 = vphi 0, %v2960
          %v3355 = vphi 0, %v2961
          %v3356 = vphi 0, %v2962
          %v3357 = vphi 0, %v2963
          %v3358 = vphi 0, %v2964
          %v3359 = vphi 0, %v2965
          %v3360 = vphi 0, %v2966
          %v3361 = vphi 0, %v2967
          %v3362 = vphi 0, %v2968
          %v3363 = vphi 0, %v2969
          %v3364 = vphi 0, %v2970
          %v3365 = vphi 0, %v2971
          %v3366 = vphi 0, %v2972
          %v3367 = vphi 0, %v2973
          %v3368 = vphi 0, %v2974
          %v3369 = vphi 0, %v2975
          %v3370 = vphi 0, %v2976
          %v3371 = vphi 0, %v2977
          %v3372 = vphi 0, %v2978
          %v3373 = vphi 0, %v2979
          %v3374 = vphi 0, %v2980
          %v3375 = vphi 0, %v2981
          %v3376 = vphi 0, %v2982
          %v3377 = vphi 0, %v2983
          %v3378 = vphi 0, %v2984
          %v3379 = vphi 0, %v2985
          %v3380 = vphi 0, %v2986
          %v3381 = vphi 0, %v2987
          %v3382 = vphi 0, %v2988
          %v3383 = vphi 0, %v2989
          %v3384 = vphi 0, %v2990
          %v3385 = vphi 0, %v2991
          %v3386 = vphi 0, %v2992
          %v3387 = vphi 0, %v2993
          %v3388 = vphi 0, %v2994
          %v3389 = vphi 0, %v2995
          %v3390 = vphi 0, %v2996
          %v3391 = vphi 0, %v2997
          %v3392 = vphi 0, %v2998
          %v3393 = vphi 0, %v2999
          %v3394 = vphi 0, %v3000
          %v3395 = vphi 0, %v3001
          %v3396 = vphi 0, %v3002
          %v3397 = vphi 0, %v3003
          %v3398 = vphi 0, %v3004
          %v3399 = vphi 0, %v3005
          %v3400 = vphi 0, %v3006
          %v3401 = vphi 0, %v3007
          %v3402 = vphi 0, %v3008
          %v3403 = vphi 0, %v3009
          %v3404 = vphi 0, %v3010
          %v3405 = vphi 0, %v3011
          %v3406 = vphi 0, %v3012
          %v3407 = vphi 0, %v3013
          %v3408 = vphi 0, %v3014
          %v3409 = vphi 0, %v3015
          %v3410 = vphi 0, %v3016
          %v3411 = vphi 0, %v3017
          %v3412 = vphi 0, %v3018
          %v3413 = vphi 0, %v3019
          %v3414 = vphi 0, %v3020
          %v3415 = vphi 0, %v3021
          %v3416 = vphi 0, %v3022
          %v3417 = vphi 0, %v3023
          %v3418 = vphi 0, %v3024
          %v3419 = vphi 0, %v3025
          %v3420 = vphi 0, %v3026
          %v3421 = vphi 0, %v3027
          %v3422 = vphi 0, %v3028
          %v3423 = vphi 0, %v3029
          %v3424 = vphi 0, %v3030
          %v3425 = vphi 0, %v3031
          %v3426 = vphi 0, %v3032
          %v3427 = vphi 0, %v3033
          %v3428 = vphi 0, %v3034
          %v3429 = vphi 0, %v3035
          %v3430 = vphi 0, %v3036
          %v3431 = vphi 0, %v3037
          %v3432 = vphi 0, %v3038
          %v3433 = vphi 0, %v3039
          %v3434 = vphi 0, %v3040
          %v3435 = vphi 0, %v3041
          %v3436 = vphi 0, %v3042
          %v3437 = vphi 0, %v3043
          %v3438 = vphi 0, %v3044
          %v3439 = vphi 0, %v3045
          %v3440 = vphi 0, %v3046
          %v3441 = vphi 0, %v3047
          %v3442 = vphi 0, %v3048
          %v3443 = vphi 0, %v3049
          %v3444 = vphi 0, %v3050
          %v3445 = vphi 0, %v3051
          %v3446 = vphi 0, %v3052
          %v3447 = vphi 0, %v3053
          %v3448 = vphi 0, %v3054
          %v3449 = vphi 0, %v3055
          %v3450 = vphi 0, %v3056
          %v3451 = vphi 0, %v3057
          %v3452 = vphi 0, %v3058
          %v3453 = vphi 0, %v3059
          %v3454 = vphi 0, %v3060
          %v3455 = vphi 0, %v3061
          %v3456 = vphi 0, %v3062
          %v3457 = vphi 0, %v3063
          %v3458 = vphi 0, %v3064
          %v3459 = vphi 0, %v3065
          %v3460 = vphi 0, %v3066
          %v3461 = vphi 0, %v3067
          %v3462 = vphi 0, %v3068
          %v3463 = vphi 0, %v3069
          %v3464 = vphi 0, %v3070
          %v3465 = vphi 0, %v3071
          %v3466 = vphi 0, %v3072
          %v3467 = vphi 0, %v3073
          %v3468 = vphi 0, %v3074
          %v3469 = vphi 0, %v3075
          %v3470 = vphi 0, %v3076
          %v3471 = vphi 0, %v3077
          %v3472 = vphi 0, %v3078
          %v3473 = vphi 0, %v3079
          %v3474 = vphi 0, %v3080
          %v3475 = vphi 0, %v3081
          %v3476 = vphi 0, %v3082
          %v3477 = vphi 0, %v3083
          %v3478 = vphi 0, %v3084
          %v3479 = vphi 0, %v3085
          %v3480 = vphi 0, %v3086
          %v3481 = vphi 0, %v3087
          %v3482 = vphi 0, %v3088
          %v3483 = vphi 0, %v3089
          %v3484 = vphi 0, %v3090
          %v3485 = vphi 0, %v3091
          %v3486 = vphi 0, %v3092
          %v3487 = vphi 0, %v3093
          %v3488 = vphi 0, %v3094
          %v3489 = vphi 0, %v3095
          %v3490 = vphi 0, %v3096
          %v3491 = vphi 0, %v3097
          %v3492 = vphi 0, %v3098
          %v3493 = vphi 0, %v3099
          %v3494 = vphi 0, %v3100
          %v3495 = vphi 0, %v3101
          %v3496 = vphi 0, %v3102
          %v3497 = vphi 0, %v3103
          %v3498 = vphi 0, %v3104
          %v3499 = vphi 0, %v3105
          %v3500 = vphi 0, %v3106
          %v3501 = vphi 0, %v3107
          %v3502 = vphi 0, %v3108
          %v3503 = vphi 0, %v3109
          %v3504 = vphi 0, %v3110
          %v3505 = vphi 0, %v3111
          %v3506 = vphi 0, %v3112
          %v3507 = vphi 0, %v3113
          %v3508 = vphi 0, %v3114
          %v3509 = vphi 0, %v3115
          %v3510 = vphi 0, %v3116
          %v3511 = vphi 0, %v3117
          %v3512 = vphi 0, %v3118
          %v3513 = vphi 0, %v3119
          %v3514 = vphi 0, %v3120
          %v3515 = vphi 0, %v3121
          %v3516 = vphi 0, %v3122
          %v3517 = vphi 0, %v3123
          %v3518 = vphi 0, %v3124
          %v3519 = vphi 0, %v3125
          %v3520 = vphi 0, %v3126
          %v3521 = vphi 0, %v3127
          %v3522 = vphi 0, %v3128
          %v3523 = vphi 0, %v3129
          %v3524 = vphi 0, %v3130
          %v3525 = vphi 0, %v3131
          %v3526 = vphi 0, %v3132
          %v3527 = vphi 0, %v3133
          %v3528 = vphi 0, %v3134
          %v3529 = vphi 0, %v3135
          %v3530 = vphi 0, %v3136
          %v3531 = vphi 0, %v3137
          %v3532 = vphi 0, %v3138
          %v3533 = vphi 0, %v3139
          %v3534 = vphi 0, %v3140
          %v3535 = vphi 0, %v3141
          %v3536 = vphi 0, %v3142
          %v3537 = vphi 0, %v3143
          %v3538 = vphi 0, %v3144
          %v3539 = vphi 0, %v3145
          %v3540 = vphi 0, %v3146
          %v3541 = vphi 0, %v3147
          %v3542 = vphi 0, %v3148
          %v3543 = vphi 0, %v3149
          %v3544 = vphi 0, %v3150
          %v3545 = vphi 0, %v3151
          %v3546 = vphi 0, %v3152
          %v3547 = vphi 0, %v3153
          %v3548 = vphi 0, %v3154
          %v3549 = vphi 0, %v3155
          %v3550 = vphi 0, %v3156
          %v3551 = vphi 0, %v3157
          %v3552 = vphi 0, %v3158
          %v3553 = vphi 0, %v3159
          %v3554 = vphi 0, %v3160
          %v3555 = vphi 0, %v3161
          %v3556 = vphi 0, %v3162
          %v3557 = vphi 0, %v3163
          %v3558 = vphi 0, %v3164
          %v3559 = vphi 0, %v3165
          %v3560 = vphi 0, %v3166
          %v3561 = vphi 0, %v3167
          %v3562 = vphi 0, %v3168
          %v3563 = vphi 0, %v3169
          %v3564 = vphi 0, %v3170
          %v3565 = vphi 0, %v3171
          %v3566 = vphi 0, %v3172
          %v3567 = vphi 0, %v3173
          %v3568 = vphi 0, %v3174
          %v3569 = vphi 0, %v3175
          %v3570 = vphi 0, %v3176
          %v3571 = vphi 0, %v3177
          %v3572 = vphi 0, %v3178
          %v3573 = vphi 0, %v3179
          %v3574 = vphi 0, %v3180
          %v3575 = vphi 0, %v3181
          %v3576 = vphi 0, %v3182
          %v3577 = vphi 0, %v3183
          %v3578 = vphi 0, %v3184
          %v3579 = vphi 0, %v3185
          %v3580 = vphi 0, %v3186
          %v3581 = vphi 0, %v3187
          %v3582 = vphi 0, %v3188
          %v3583 = vphi 0, %v3189
          %v3584 = vphi 0, %v3190
          %v3585 = vphi 0, %v3191
          %v3586 = vphi 0, %v3192
          %v3587 = vphi 0, %v3193
          %v3588 = vphi 0, %v3194
          %v3589 = vphi 0, %v3195
          %v3590 = vphi 0, %v3196
          %v3591 = vphi 0, %v3197
          %v3592 = vphi 0, %v3198
          %v3593 = vphi 0, %v3199
          %v3594 = vphi 0, %v3200
          %v3595 = vphi 0, %v3201
          %v3596 = vphi 0, %v3202
          %v3597 = vphi 0, %v3203
          %v3598 = vphi 0, %v3204
          %v3599 = vphi 0, %v3205
          %v3600 = vphi 0, %v3206
          %v3601 = vphi 0, %v3207
          %v3602 = vphi 0, %v3208
          %v3603 = vphi 0, %v3209
          %v3604 = vphi 0, %v3210
          %v3605 = vphi 0, %v3211
          %v3606 = vphi 0, %v3212
          %v3607 = vphi 0, %v3213
          %v3608 = vphi 0, %v3214
          %v3609 = vphi 0, %v3215
          %v3610 = vphi 0, %v3216
          %v3611 = vphi 0, %v3217
          %v3612 = vphi 0, %v3218
          %v3613 = vphi 0, %v3219
          %v3614 = vphi 0, %v3220
          %v3615 = vphi 0, %v3221
          %v3616 = vphi 0, %v3222
          %v3617 = vphi 0, %v3223
          %v3618 = vphi 0, %v3224
          %v3619 = vphi 0, %v3225
          %v3620 = vphi 0, %v3226
          %v3621 = vphi 0, %v3227
          %v3622 = vphi 0, %v3228
          %v3623 = vphi 0, %v3229
          %v3624 = vphi 0, %v3230
          %v3625 = vphi 0, %v3231
          %v3626 = vphi 0, %v3232
          %v3627 = vphi 0, %v3233
          %v3628 = vphi 0, %v3234
          %v3629 = vphi 0, %v3235
          %v3630 = vphi 0, %v3236
          %v3631 = vphi 0, %v3237
          %v3632 = vphi 0, %v3238
          %v3633 = vphi 0, %v3239
          %v3634 = vphi 0, %v3240
          %v3635 = vphi 0, %v3241
          %v3636 = vphi 0, %v3242
          %v3637 = vphi 0, %v3243
          %v3638 = vphi 0, %v3244
          %v3639 = vphi 0, %v3245
          %v3640 = vphi 0, %v3246
          %v3641 = vphi 0, %v3247
          %v3642 = vphi 0, %v3248
          %v3643 = vphi 0, %v3249
          %v3644 = vphi 0, %v3250
          %v3645 = vphi 0, %v3251
          %v3646 = vphi 0, %v3252
          %v3647 = vphi 0, %v3253
          %v3648 = vphi 0, %v3254
          %v3649 = vphi 0, %v3255
          %v3650 = vphi 0, %v3256
          %v3651 = vphi 0, %v3257
          %v3652 = vphi 0, %v3258
          %v3653 = vphi 0, %v3259
          %v3654 = vphi 0, %v3260
          %v3655 = vphi 0, %v3261
          %v3656 = vphi 0, %v3262
          %v3657 = vphi 0, %v3263
          %v3658 = vphi 0, %v3264
          %v3659 = vphi 0, %v3265
          %v3660 = vphi 0, %v3266
          %v3661 = vphi 0, %v3267
          %v3662 = vphi 0, %v3268
          %v3663 = vphi 0, %v3269
          %v3664 = vphi 0, %v3270
          %v3665 = vphi 0, %v3271
          %v3666 = vphi 0, %v3272
          %v3667 = vphi 0, %v3273
          %v3668 = vphi 0, %v3274
          %v3669 = vphi 0, %v3275
          %v3670 = vphi 0, %v3276
          %v3671 = vphi 0, %v3277
          %v3672 = vphi 0, %v3278
          %v3673 = vphi 0, %v3279
          %v3674 = vphi 0, %v3280
          %v3675 = vphi 0, %v3281
          %v3676 = vphi 0, %v3282
          %v3677 = vphi 0, %v3283
          %v3678 = vphi 0, %v3284
          %v3679 = vphi 0, %v3285
          %v3680 = vphi 0, %v3286
          %v3681 = vphi 0, %v3287
          %v3682 = vphi 0, %v3288
          %v3683 = vphi 0, %v3289
          %v3684 = vphi 0, %v3290
          %v3685 = vphi 0, %v3291
          %v3686 = vphi 0, %v3292
          %v3687 = vphi 0, %v3293
          %v3688 = vphi 0, %v3294
          %v3689 = vphi 0, %v3295
          %v3690 = vphi 0, %v3296
          %v3691 = vphi 0, %v3297
          %v3692 = vphi 0, %v3298
          %v3693 = vphi 0, %v3299
          %v3694 = vphi 0, %v3300
          %v3695 = vphi 0, %v3301
          %v3696 = vphi 0, %v3302
          %v3697 = vphi 0, %v3303
          %v3698 = vphi 0, %v3304
          %v3699 = vphi 0, %v3305
          %v3700 = vphi 0, %v3306
          %v3701 = vphi 0, %v3307
          %v3702 = vphi 0, %v3308
          %v3703 = vphi 0, %v3309
          %v3704 = vphi 0, %v3310
          %v3705 = vphi 0, %v3311
          %v3706 = vphi 0, %v3312
          %v3707 = vphi 0, %v3313
          %v3708 = vphi 0, %v3314
          %v3709 = vphi 0, %v3315
          %v3710 = vphi 0, %v3316
          %v3711 = vphi 0, %v3317
          %v3712 = vphi 0, %v3318
          %v3713 = vphi 0, %v3319
          %v3714 = vphi 0, %v3320
          %v3715 = vphi 0, %v3321
        %p3716 = pneg %p729
        // Predicated region
        $region53: #{tpu_custom_call.1} parent=35 // pred_check
          _
        $region54: #{tpu_custom_call.1} parent=35 // pred_check_branch
          %3718 = sbr.rel (%p729) target = $region56
        $region55: #{tpu_custom_call.1} parent=35 // pred_region
          %v3744 = vlaneseq
          %v3745 = vshrl.u32 %v3744, 7
          %v3746 = vsub.s32 0, %v3745
          %v3747 = vrot.slane %v310, %v3746
          %v3748 = vlaneseq
          %v3749 = vshrl.u32 %v3748, 7
          %v3750 = vsub.s32 1, %v3749
          %v3751 = vrot.slane %v310, %v3750
          %v3752 = vlaneseq
          %v3753 = vshrl.u32 %v3752, 7
          %v3754 = vsub.s32 2, %v3753
          %v3755 = vrot.slane %v310, %v3754
          %v3756 = vlaneseq
          %v3757 = vshrl.u32 %v3756, 7
          %v3758 = vsub.s32 3, %v3757
          %v3759 = vrot.slane %v310, %v3758
          %v3760 = vlaneseq
          %v3761 = vshrl.u32 %v3760, 7
          %v3762 = vsub.s32 4, %v3761
          %v3763 = vrot.slane %v310, %v3762
          %v3764 = vlaneseq
          %v3765 = vshrl.u32 %v3764, 7
          %v3766 = vsub.s32 5, %v3765
          %v3767 = vrot.slane %v310, %v3766
          %v3768 = vlaneseq
          %v3769 = vshrl.u32 %v3768, 7
          %v3770 = vsub.s32 6, %v3769
          %v3771 = vrot.slane %v310, %v3770
          %v3772 = vlaneseq
          %v3773 = vshrl.u32 %v3772, 7
          %v3774 = vsub.s32 7, %v3773
          %v3775 = vrot.slane %v310, %v3774
          %v3776 = vlaneseq
          %v3777 = vshrl.u32 %v3776, 7
          %v3778 = vsub.s32 0, %v3777
          %v3779 = vrot.slane %v311, %v3778
          %v3780 = vlaneseq
          %v3781 = vshrl.u32 %v3780, 7
          %v3782 = vsub.s32 1, %v3781
          %v3783 = vrot.slane %v311, %v3782
          %v3784 = vlaneseq
          %v3785 = vshrl.u32 %v3784, 7
          %v3786 = vsub.s32 2, %v3785
          %v3787 = vrot.slane %v311, %v3786
          %v3788 = vlaneseq
          %v3789 = vshrl.u32 %v3788, 7
          %v3790 = vsub.s32 3, %v3789
          %v3791 = vrot.slane %v311, %v3790
          %v3792 = vlaneseq
          %v3793 = vshrl.u32 %v3792, 7
          %v3794 = vsub.s32 4, %v3793
          %v3795 = vrot.slane %v311, %v3794
          %v3796 = vlaneseq
          %v3797 = vshrl.u32 %v3796, 7
          %v3798 = vsub.s32 5, %v3797
          %v3799 = vrot.slane %v311, %v3798
          %v3800 = vlaneseq
          %v3801 = vshrl.u32 %v3800, 7
          %v3802 = vsub.s32 6, %v3801
          %v3803 = vrot.slane %v311, %v3802
          %v3804 = vlaneseq
          %v3805 = vshrl.u32 %v3804, 7
          %v3806 = vsub.s32 7, %v3805
          %v3807 = vrot.slane %v311, %v3806
          %v3808 = vlaneseq
          %v3809 = vshrl.u32 %v3808, 7
          %v3810 = vsub.s32 0, %v3809
          %v3811 = vrot.slane %v312, %v3810
          %v3812 = vlaneseq
          %v3813 = vshrl.u32 %v3812, 7
          %v3814 = vsub.s32 1, %v3813
          %v3815 = vrot.slane %v312, %v3814
          %v3816 = vlaneseq
          %v3817 = vshrl.u32 %v3816, 7
          %v3818 = vsub.s32 2, %v3817
          %v3819 = vrot.slane %v312, %v3818
          %v3820 = vlaneseq
          %v3821 = vshrl.u32 %v3820, 7
          %v3822 = vsub.s32 3, %v3821
          %v3823 = vrot.slane %v312, %v3822
          %v3824 = vlaneseq
          %v3825 = vshrl.u32 %v3824, 7
          %v3826 = vsub.s32 4, %v3825
          %v3827 = vrot.slane %v312, %v3826
          %v3828 = vlaneseq
          %v3829 = vshrl.u32 %v3828, 7
          %v3830 = vsub.s32 5, %v3829
          %v3831 = vrot.slane %v312, %v3830
          %v3832 = vlaneseq
          %v3833 = vshrl.u32 %v3832, 7
          %v3834 = vsub.s32 6, %v3833
          %v3835 = vrot.slane %v312, %v3834
          %v3836 = vlaneseq
          %v3837 = vshrl.u32 %v3836, 7
          %v3838 = vsub.s32 7, %v3837
          %v3839 = vrot.slane %v312, %v3838
          %v3840 = vlaneseq
          %v3841 = vshrl.u32 %v3840, 7
          %v3842 = vsub.s32 0, %v3841
          %v3843 = vrot.slane %v313, %v3842
          %v3844 = vlaneseq
          %v3845 = vshrl.u32 %v3844, 7
          %v3846 = vsub.s32 1, %v3845
          %v3847 = vrot.slane %v313, %v3846
          %v3848 = vlaneseq
          %v3849 = vshrl.u32 %v3848, 7
          %v3850 = vsub.s32 2, %v3849
          %v3851 = vrot.slane %v313, %v3850
          %v3852 = vlaneseq
          %v3853 = vshrl.u32 %v3852, 7
          %v3854 = vsub.s32 3, %v3853
          %v3855 = vrot.slane %v313, %v3854
          %v3856 = vlaneseq
          %v3857 = vshrl.u32 %v3856, 7
          %v3858 = vsub.s32 4, %v3857
          %v3859 = vrot.slane %v313, %v3858
          %v3860 = vlaneseq
          %v3861 = vshrl.u32 %v3860, 7
          %v3862 = vsub.s32 5, %v3861
          %v3863 = vrot.slane %v313, %v3862
          %v3864 = vlaneseq
          %v3865 = vshrl.u32 %v3864, 7
          %v3866 = vsub.s32 6, %v3865
          %v3867 = vrot.slane %v313, %v3866
          %v3868 = vlaneseq
          %v3869 = vshrl.u32 %v3868, 7
          %v3870 = vsub.s32 7, %v3869
          %v3871 = vrot.slane %v313, %v3870
          %v3872 = vlaneseq
          %v3873 = vshrl.u32 %v3872, 7
          %v3874 = vsub.s32 0, %v3873
          %v3875 = vrot.slane %v314, %v3874
          %v3876 = vlaneseq
          %v3877 = vshrl.u32 %v3876, 7
          %v3878 = vsub.s32 1, %v3877
          %v3879 = vrot.slane %v314, %v3878
          %v3880 = vlaneseq
          %v3881 = vshrl.u32 %v3880, 7
          %v3882 = vsub.s32 2, %v3881
          %v3883 = vrot.slane %v314, %v3882
          %v3884 = vlaneseq
          %v3885 = vshrl.u32 %v3884, 7
          %v3886 = vsub.s32 3, %v3885
          %v3887 = vrot.slane %v314, %v3886
          %v3888 = vlaneseq
          %v3889 = vshrl.u32 %v3888, 7
          %v3890 = vsub.s32 4, %v3889
          %v3891 = vrot.slane %v314, %v3890
          %v3892 = vlaneseq
          %v3893 = vshrl.u32 %v3892, 7
          %v3894 = vsub.s32 5, %v3893
          %v3895 = vrot.slane %v314, %v3894
          %v3896 = vlaneseq
          %v3897 = vshrl.u32 %v3896, 7
          %v3898 = vsub.s32 6, %v3897
          %v3899 = vrot.slane %v314, %v3898
          %v3900 = vlaneseq
          %v3901 = vshrl.u32 %v3900, 7
          %v3902 = vsub.s32 7, %v3901
          %v3903 = vrot.slane %v314, %v3902
          %v3904 = vlaneseq
          %v3905 = vshrl.u32 %v3904, 7
          %v3906 = vsub.s32 0, %v3905
          %v3907 = vrot.slane %v315, %v3906
          %v3908 = vlaneseq
          %v3909 = vshrl.u32 %v3908, 7
          %v3910 = vsub.s32 1, %v3909
          %v3911 = vrot.slane %v315, %v3910
          %v3912 = vlaneseq
          %v3913 = vshrl.u32 %v3912, 7
          %v3914 = vsub.s32 2, %v3913
          %v3915 = vrot.slane %v315, %v3914
          %v3916 = vlaneseq
          %v3917 = vshrl.u32 %v3916, 7
          %v3918 = vsub.s32 3, %v3917
          %v3919 = vrot.slane %v315, %v3918
          %v3920 = vlaneseq
          %v3921 = vshrl.u32 %v3920, 7
          %v3922 = vsub.s32 4, %v3921
          %v3923 = vrot.slane %v315, %v3922
          %v3924 = vlaneseq
          %v3925 = vshrl.u32 %v3924, 7
          %v3926 = vsub.s32 5, %v3925
          %v3927 = vrot.slane %v315, %v3926
          %v3928 = vlaneseq
          %v3929 = vshrl.u32 %v3928, 7
          %v3930 = vsub.s32 6, %v3929
          %v3931 = vrot.slane %v315, %v3930
          %v3932 = vlaneseq
          %v3933 = vshrl.u32 %v3932, 7
          %v3934 = vsub.s32 7, %v3933
          %v3935 = vrot.slane %v315, %v3934
          %v3936 = vlaneseq
          %v3937 = vshrl.u32 %v3936, 7
          %v3938 = vsub.s32 0, %v3937
          %v3939 = vrot.slane %v316, %v3938
          %v3940 = vlaneseq
          %v3941 = vshrl.u32 %v3940, 7
          %v3942 = vsub.s32 1, %v3941
          %v3943 = vrot.slane %v316, %v3942
          %v3944 = vlaneseq
          %v3945 = vshrl.u32 %v3944, 7
          %v3946 = vsub.s32 2, %v3945
          %v3947 = vrot.slane %v316, %v3946
          %v3948 = vlaneseq
          %v3949 = vshrl.u32 %v3948, 7
          %v3950 = vsub.s32 3, %v3949
          %v3951 = vrot.slane %v316, %v3950
          %v3952 = vlaneseq
          %v3953 = vshrl.u32 %v3952, 7
          %v3954 = vsub.s32 4, %v3953
          %v3955 = vrot.slane %v316, %v3954
          %v3956 = vlaneseq
          %v3957 = vshrl.u32 %v3956, 7
          %v3958 = vsub.s32 5, %v3957
          %v3959 = vrot.slane %v316, %v3958
          %v3960 = vlaneseq
          %v3961 = vshrl.u32 %v3960, 7
          %v3962 = vsub.s32 6, %v3961
          %v3963 = vrot.slane %v316, %v3962
          %v3964 = vlaneseq
          %v3965 = vshrl.u32 %v3964, 7
          %v3966 = vsub.s32 7, %v3965
          %v3967 = vrot.slane %v316, %v3966
          %v3968 = vlaneseq
          %v3969 = vshrl.u32 %v3968, 7
          %v3970 = vsub.s32 0, %v3969
          %v3971 = vrot.slane %v317, %v3970
          %v3972 = vlaneseq
          %v3973 = vshrl.u32 %v3972, 7
          %v3974 = vsub.s32 1, %v3973
          %v3975 = vrot.slane %v317, %v3974
          %v3976 = vlaneseq
          %v3977 = vshrl.u32 %v3976, 7
          %v3978 = vsub.s32 2, %v3977
          %v3979 = vrot.slane %v317, %v3978
          %v3980 = vlaneseq
          %v3981 = vshrl.u32 %v3980, 7
          %v3982 = vsub.s32 3, %v3981
          %v3983 = vrot.slane %v317, %v3982
          %v3984 = vlaneseq
          %v3985 = vshrl.u32 %v3984, 7
          %v3986 = vsub.s32 4, %v3985
          %v3987 = vrot.slane %v317, %v3986
          %v3988 = vlaneseq
          %v3989 = vshrl.u32 %v3988, 7
          %v3990 = vsub.s32 5, %v3989
          %v3991 = vrot.slane %v317, %v3990
          %v3992 = vlaneseq
          %v3993 = vshrl.u32 %v3992, 7
          %v3994 = vsub.s32 6, %v3993
          %v3995 = vrot.slane %v317, %v3994
          %v3996 = vlaneseq
          %v3997 = vshrl.u32 %v3996, 7
          %v3998 = vsub.s32 7, %v3997
          %v3999 = vrot.slane %v317, %v3998
          %v4000 = vlaneseq
          %v4001 = vshrl.u32 %v4000, 7
          %v4002 = vsub.s32 0, %v4001
          %v4003 = vrot.slane %v318, %v4002
          %v4004 = vlaneseq
          %v4005 = vshrl.u32 %v4004, 7
          %v4006 = vsub.s32 1, %v4005
          %v4007 = vrot.slane %v318, %v4006
          %v4008 = vlaneseq
          %v4009 = vshrl.u32 %v4008, 7
          %v4010 = vsub.s32 2, %v4009
          %v4011 = vrot.slane %v318, %v4010
          %v4012 = vlaneseq
          %v4013 = vshrl.u32 %v4012, 7
          %v4014 = vsub.s32 3, %v4013
          %v4015 = vrot.slane %v318, %v4014
          %v4016 = vlaneseq
          %v4017 = vshrl.u32 %v4016, 7
          %v4018 = vsub.s32 4, %v4017
          %v4019 = vrot.slane %v318, %v4018
          %v4020 = vlaneseq
          %v4021 = vshrl.u32 %v4020, 7
          %v4022 = vsub.s32 5, %v4021
          %v4023 = vrot.slane %v318, %v4022
          %v4024 = vlaneseq
          %v4025 = vshrl.u32 %v4024, 7
          %v4026 = vsub.s32 6, %v4025
          %v4027 = vrot.slane %v318, %v4026
          %v4028 = vlaneseq
          %v4029 = vshrl.u32 %v4028, 7
          %v4030 = vsub.s32 7, %v4029
          %v4031 = vrot.slane %v318, %v4030
          %v4032 = vlaneseq
          %v4033 = vshrl.u32 %v4032, 7
          %v4034 = vsub.s32 0, %v4033
          %v4035 = vrot.slane %v319, %v4034
          %v4036 = vlaneseq
          %v4037 = vshrl.u32 %v4036, 7
          %v4038 = vsub.s32 1, %v4037
          %v4039 = vrot.slane %v319, %v4038
          %v4040 = vlaneseq
          %v4041 = vshrl.u32 %v4040, 7
          %v4042 = vsub.s32 2, %v4041
          %v4043 = vrot.slane %v319, %v4042
          %v4044 = vlaneseq
          %v4045 = vshrl.u32 %v4044, 7
          %v4046 = vsub.s32 3, %v4045
          %v4047 = vrot.slane %v319, %v4046
          %v4048 = vlaneseq
          %v4049 = vshrl.u32 %v4048, 7
          %v4050 = vsub.s32 4, %v4049
          %v4051 = vrot.slane %v319, %v4050
          %v4052 = vlaneseq
          %v4053 = vshrl.u32 %v4052, 7
          %v4054 = vsub.s32 5, %v4053
          %v4055 = vrot.slane %v319, %v4054
          %v4056 = vlaneseq
          %v4057 = vshrl.u32 %v4056, 7
          %v4058 = vsub.s32 6, %v4057
          %v4059 = vrot.slane %v319, %v4058
          %v4060 = vlaneseq
          %v4061 = vshrl.u32 %v4060, 7
          %v4062 = vsub.s32 7, %v4061
          %v4063 = vrot.slane %v319, %v4062
          %v4064 = vlaneseq
          %v4065 = vshrl.u32 %v4064, 7
          %v4066 = vsub.s32 0, %v4065
          %v4067 = vrot.slane %v320, %v4066
          %v4068 = vlaneseq
          %v4069 = vshrl.u32 %v4068, 7
          %v4070 = vsub.s32 1, %v4069
          %v4071 = vrot.slane %v320, %v4070
          %v4072 = vlaneseq
          %v4073 = vshrl.u32 %v4072, 7
          %v4074 = vsub.s32 2, %v4073
          %v4075 = vrot.slane %v320, %v4074
          %v4076 = vlaneseq
          %v4077 = vshrl.u32 %v4076, 7
          %v4078 = vsub.s32 3, %v4077
          %v4079 = vrot.slane %v320, %v4078
          %v4080 = vlaneseq
          %v4081 = vshrl.u32 %v4080, 7
          %v4082 = vsub.s32 4, %v4081
          %v4083 = vrot.slane %v320, %v4082
          %v4084 = vlaneseq
          %v4085 = vshrl.u32 %v4084, 7
          %v4086 = vsub.s32 5, %v4085
          %v4087 = vrot.slane %v320, %v4086
          %v4088 = vlaneseq
          %v4089 = vshrl.u32 %v4088, 7
          %v4090 = vsub.s32 6, %v4089
          %v4091 = vrot.slane %v320, %v4090
          %v4092 = vlaneseq
          %v4093 = vshrl.u32 %v4092, 7
          %v4094 = vsub.s32 7, %v4093
          %v4095 = vrot.slane %v320, %v4094
          %v4096 = vlaneseq
          %v4097 = vshrl.u32 %v4096, 7
          %v4098 = vsub.s32 0, %v4097
          %v4099 = vrot.slane %v321, %v4098
          %v4100 = vlaneseq
          %v4101 = vshrl.u32 %v4100, 7
          %v4102 = vsub.s32 1, %v4101
          %v4103 = vrot.slane %v321, %v4102
          %v4104 = vlaneseq
          %v4105 = vshrl.u32 %v4104, 7
          %v4106 = vsub.s32 2, %v4105
          %v4107 = vrot.slane %v321, %v4106
          %v4108 = vlaneseq
          %v4109 = vshrl.u32 %v4108, 7
          %v4110 = vsub.s32 3, %v4109
          %v4111 = vrot.slane %v321, %v4110
          %v4112 = vlaneseq
          %v4113 = vshrl.u32 %v4112, 7
          %v4114 = vsub.s32 4, %v4113
          %v4115 = vrot.slane %v321, %v4114
          %v4116 = vlaneseq
          %v4117 = vshrl.u32 %v4116, 7
          %v4118 = vsub.s32 5, %v4117
          %v4119 = vrot.slane %v321, %v4118
          %v4120 = vlaneseq
          %v4121 = vshrl.u32 %v4120, 7
          %v4122 = vsub.s32 6, %v4121
          %v4123 = vrot.slane %v321, %v4122
          %v4124 = vlaneseq
          %v4125 = vshrl.u32 %v4124, 7
          %v4126 = vsub.s32 7, %v4125
          %v4127 = vrot.slane %v321, %v4126
          %v4128 = vlaneseq
          %v4129 = vshrl.u32 %v4128, 7
          %v4130 = vsub.s32 0, %v4129
          %v4131 = vrot.slane %v322, %v4130
          %v4132 = vlaneseq
          %v4133 = vshrl.u32 %v4132, 7
          %v4134 = vsub.s32 1, %v4133
          %v4135 = vrot.slane %v322, %v4134
          %v4136 = vlaneseq
          %v4137 = vshrl.u32 %v4136, 7
          %v4138 = vsub.s32 2, %v4137
          %v4139 = vrot.slane %v322, %v4138
          %v4140 = vlaneseq
          %v4141 = vshrl.u32 %v4140, 7
          %v4142 = vsub.s32 3, %v4141
          %v4143 = vrot.slane %v322, %v4142
          %v4144 = vlaneseq
          %v4145 = vshrl.u32 %v4144, 7
          %v4146 = vsub.s32 4, %v4145
          %v4147 = vrot.slane %v322, %v4146
          %v4148 = vlaneseq
          %v4149 = vshrl.u32 %v4148, 7
          %v4150 = vsub.s32 5, %v4149
          %v4151 = vrot.slane %v322, %v4150
          %v4152 = vlaneseq
          %v4153 = vshrl.u32 %v4152, 7
          %v4154 = vsub.s32 6, %v4153
          %v4155 = vrot.slane %v322, %v4154
          %v4156 = vlaneseq
          %v4157 = vshrl.u32 %v4156, 7
          %v4158 = vsub.s32 7, %v4157
          %v4159 = vrot.slane %v322, %v4158
          %v4160 = vlaneseq
          %v4161 = vshrl.u32 %v4160, 7
          %v4162 = vsub.s32 0, %v4161
          %v4163 = vrot.slane %v323, %v4162
          %v4164 = vlaneseq
          %v4165 = vshrl.u32 %v4164, 7
          %v4166 = vsub.s32 1, %v4165
          %v4167 = vrot.slane %v323, %v4166
          %v4168 = vlaneseq
          %v4169 = vshrl.u32 %v4168, 7
          %v4170 = vsub.s32 2, %v4169
          %v4171 = vrot.slane %v323, %v4170
          %v4172 = vlaneseq
          %v4173 = vshrl.u32 %v4172, 7
          %v4174 = vsub.s32 3, %v4173
          %v4175 = vrot.slane %v323, %v4174
          %v4176 = vlaneseq
          %v4177 = vshrl.u32 %v4176, 7
          %v4178 = vsub.s32 4, %v4177
          %v4179 = vrot.slane %v323, %v4178
          %v4180 = vlaneseq
          %v4181 = vshrl.u32 %v4180, 7
          %v4182 = vsub.s32 5, %v4181
          %v4183 = vrot.slane %v323, %v4182
          %v4184 = vlaneseq
          %v4185 = vshrl.u32 %v4184, 7
          %v4186 = vsub.s32 6, %v4185
          %v4187 = vrot.slane %v323, %v4186
          %v4188 = vlaneseq
          %v4189 = vshrl.u32 %v4188, 7
          %v4190 = vsub.s32 7, %v4189
          %v4191 = vrot.slane %v323, %v4190
          %v4192 = vlaneseq
          %v4193 = vshrl.u32 %v4192, 7
          %v4194 = vsub.s32 0, %v4193
          %v4195 = vrot.slane %v324, %v4194
          %v4196 = vlaneseq
          %v4197 = vshrl.u32 %v4196, 7
          %v4198 = vsub.s32 1, %v4197
          %v4199 = vrot.slane %v324, %v4198
          %v4200 = vlaneseq
          %v4201 = vshrl.u32 %v4200, 7
          %v4202 = vsub.s32 2, %v4201
          %v4203 = vrot.slane %v324, %v4202
          %v4204 = vlaneseq
          %v4205 = vshrl.u32 %v4204, 7
          %v4206 = vsub.s32 3, %v4205
          %v4207 = vrot.slane %v324, %v4206
          %v4208 = vlaneseq
          %v4209 = vshrl.u32 %v4208, 7
          %v4210 = vsub.s32 4, %v4209
          %v4211 = vrot.slane %v324, %v4210
          %v4212 = vlaneseq
          %v4213 = vshrl.u32 %v4212, 7
          %v4214 = vsub.s32 5, %v4213
          %v4215 = vrot.slane %v324, %v4214
          %v4216 = vlaneseq
          %v4217 = vshrl.u32 %v4216, 7
          %v4218 = vsub.s32 6, %v4217
          %v4219 = vrot.slane %v324, %v4218
          %v4220 = vlaneseq
          %v4221 = vshrl.u32 %v4220, 7
          %v4222 = vsub.s32 7, %v4221
          %v4223 = vrot.slane %v324, %v4222
          %v4224 = vlaneseq
          %v4225 = vshrl.u32 %v4224, 7
          %v4226 = vsub.s32 0, %v4225
          %v4227 = vrot.slane %v325, %v4226
          %v4228 = vlaneseq
          %v4229 = vshrl.u32 %v4228, 7
          %v4230 = vsub.s32 1, %v4229
          %v4231 = vrot.slane %v325, %v4230
          %v4232 = vlaneseq
          %v4233 = vshrl.u32 %v4232, 7
          %v4234 = vsub.s32 2, %v4233
          %v4235 = vrot.slane %v325, %v4234
          %v4236 = vlaneseq
          %v4237 = vshrl.u32 %v4236, 7
          %v4238 = vsub.s32 3, %v4237
          %v4239 = vrot.slane %v325, %v4238
          %v4240 = vlaneseq
          %v4241 = vshrl.u32 %v4240, 7
          %v4242 = vsub.s32 4, %v4241
          %v4243 = vrot.slane %v325, %v4242
          %v4244 = vlaneseq
          %v4245 = vshrl.u32 %v4244, 7
          %v4246 = vsub.s32 5, %v4245
          %v4247 = vrot.slane %v325, %v4246
          %v4248 = vlaneseq
          %v4249 = vshrl.u32 %v4248, 7
          %v4250 = vsub.s32 6, %v4249
          %v4251 = vrot.slane %v325, %v4250
          %v4252 = vlaneseq
          %v4253 = vshrl.u32 %v4252, 7
          %v4254 = vsub.s32 7, %v4253
          %v4255 = vrot.slane %v325, %v4254
          %v4256 = vlaneseq
          %v4257 = vshrl.u32 %v4256, 7
          %v4258 = vsub.s32 0, %v4257
          %v4259 = vrot.slane %v326, %v4258
          %v4260 = vlaneseq
          %v4261 = vshrl.u32 %v4260, 7
          %v4262 = vsub.s32 1, %v4261
          %v4263 = vrot.slane %v326, %v4262
          %v4264 = vlaneseq
          %v4265 = vshrl.u32 %v4264, 7
          %v4266 = vsub.s32 2, %v4265
          %v4267 = vrot.slane %v326, %v4266
          %v4268 = vlaneseq
          %v4269 = vshrl.u32 %v4268, 7
          %v4270 = vsub.s32 3, %v4269
          %v4271 = vrot.slane %v326, %v4270
          %v4272 = vlaneseq
          %v4273 = vshrl.u32 %v4272, 7
          %v4274 = vsub.s32 4, %v4273
          %v4275 = vrot.slane %v326, %v4274
          %v4276 = vlaneseq
          %v4277 = vshrl.u32 %v4276, 7
          %v4278 = vsub.s32 5, %v4277
          %v4279 = vrot.slane %v326, %v4278
          %v4280 = vlaneseq
          %v4281 = vshrl.u32 %v4280, 7
          %v4282 = vsub.s32 6, %v4281
          %v4283 = vrot.slane %v326, %v4282
          %v4284 = vlaneseq
          %v4285 = vshrl.u32 %v4284, 7
          %v4286 = vsub.s32 7, %v4285
          %v4287 = vrot.slane %v326, %v4286
          %v4288 = vlaneseq
          %v4289 = vshrl.u32 %v4288, 7
          %v4290 = vsub.s32 0, %v4289
          %v4291 = vrot.slane %v327, %v4290
          %v4292 = vlaneseq
          %v4293 = vshrl.u32 %v4292, 7
          %v4294 = vsub.s32 1, %v4293
          %v4295 = vrot.slane %v327, %v4294
          %v4296 = vlaneseq
          %v4297 = vshrl.u32 %v4296, 7
          %v4298 = vsub.s32 2, %v4297
          %v4299 = vrot.slane %v327, %v4298
          %v4300 = vlaneseq
          %v4301 = vshrl.u32 %v4300, 7
          %v4302 = vsub.s32 3, %v4301
          %v4303 = vrot.slane %v327, %v4302
          %v4304 = vlaneseq
          %v4305 = vshrl.u32 %v4304, 7
          %v4306 = vsub.s32 4, %v4305
          %v4307 = vrot.slane %v327, %v4306
          %v4308 = vlaneseq
          %v4309 = vshrl.u32 %v4308, 7
          %v4310 = vsub.s32 5, %v4309
          %v4311 = vrot.slane %v327, %v4310
          %v4312 = vlaneseq
          %v4313 = vshrl.u32 %v4312, 7
          %v4314 = vsub.s32 6, %v4313
          %v4315 = vrot.slane %v327, %v4314
          %v4316 = vlaneseq
          %v4317 = vshrl.u32 %v4316, 7
          %v4318 = vsub.s32 7, %v4317
          %v4319 = vrot.slane %v327, %v4318
          %v4320 = vlaneseq
          %v4321 = vshrl.u32 %v4320, 7
          %v4322 = vsub.s32 0, %v4321
          %v4323 = vrot.slane %v328, %v4322
          %v4324 = vlaneseq
          %v4325 = vshrl.u32 %v4324, 7
          %v4326 = vsub.s32 1, %v4325
          %v4327 = vrot.slane %v328, %v4326
          %v4328 = vlaneseq
          %v4329 = vshrl.u32 %v4328, 7
          %v4330 = vsub.s32 2, %v4329
          %v4331 = vrot.slane %v328, %v4330
          %v4332 = vlaneseq
          %v4333 = vshrl.u32 %v4332, 7
          %v4334 = vsub.s32 3, %v4333
          %v4335 = vrot.slane %v328, %v4334
          %v4336 = vlaneseq
          %v4337 = vshrl.u32 %v4336, 7
          %v4338 = vsub.s32 4, %v4337
          %v4339 = vrot.slane %v328, %v4338
          %v4340 = vlaneseq
          %v4341 = vshrl.u32 %v4340, 7
          %v4342 = vsub.s32 5, %v4341
          %v4343 = vrot.slane %v328, %v4342
          %v4344 = vlaneseq
          %v4345 = vshrl.u32 %v4344, 7
          %v4346 = vsub.s32 6, %v4345
          %v4347 = vrot.slane %v328, %v4346
          %v4348 = vlaneseq
          %v4349 = vshrl.u32 %v4348, 7
          %v4350 = vsub.s32 7, %v4349
          %v4351 = vrot.slane %v328, %v4350
          %v4352 = vlaneseq
          %v4353 = vshrl.u32 %v4352, 7
          %v4354 = vsub.s32 0, %v4353
          %v4355 = vrot.slane %v329, %v4354
          %v4356 = vlaneseq
          %v4357 = vshrl.u32 %v4356, 7
          %v4358 = vsub.s32 1, %v4357
          %v4359 = vrot.slane %v329, %v4358
          %v4360 = vlaneseq
          %v4361 = vshrl.u32 %v4360, 7
          %v4362 = vsub.s32 2, %v4361
          %v4363 = vrot.slane %v329, %v4362
          %v4364 = vlaneseq
          %v4365 = vshrl.u32 %v4364, 7
          %v4366 = vsub.s32 3, %v4365
          %v4367 = vrot.slane %v329, %v4366
          %v4368 = vlaneseq
          %v4369 = vshrl.u32 %v4368, 7
          %v4370 = vsub.s32 4, %v4369
          %v4371 = vrot.slane %v329, %v4370
          %v4372 = vlaneseq
          %v4373 = vshrl.u32 %v4372, 7
          %v4374 = vsub.s32 5, %v4373
          %v4375 = vrot.slane %v329, %v4374
          %v4376 = vlaneseq
          %v4377 = vshrl.u32 %v4376, 7
          %v4378 = vsub.s32 6, %v4377
          %v4379 = vrot.slane %v329, %v4378
          %v4380 = vlaneseq
          %v4381 = vshrl.u32 %v4380, 7
          %v4382 = vsub.s32 7, %v4381
          %v4383 = vrot.slane %v329, %v4382
          %v4384 = vlaneseq
          %v4385 = vshrl.u32 %v4384, 7
          %v4386 = vsub.s32 0, %v4385
          %v4387 = vrot.slane %v330, %v4386
          %v4388 = vlaneseq
          %v4389 = vshrl.u32 %v4388, 7
          %v4390 = vsub.s32 1, %v4389
          %v4391 = vrot.slane %v330, %v4390
          %v4392 = vlaneseq
          %v4393 = vshrl.u32 %v4392, 7
          %v4394 = vsub.s32 2, %v4393
          %v4395 = vrot.slane %v330, %v4394
          %v4396 = vlaneseq
          %v4397 = vshrl.u32 %v4396, 7
          %v4398 = vsub.s32 3, %v4397
          %v4399 = vrot.slane %v330, %v4398
          %v4400 = vlaneseq
          %v4401 = vshrl.u32 %v4400, 7
          %v4402 = vsub.s32 4, %v4401
          %v4403 = vrot.slane %v330, %v4402
          %v4404 = vlaneseq
          %v4405 = vshrl.u32 %v4404, 7
          %v4406 = vsub.s32 5, %v4405
          %v4407 = vrot.slane %v330, %v4406
          %v4408 = vlaneseq
          %v4409 = vshrl.u32 %v4408, 7
          %v4410 = vsub.s32 6, %v4409
          %v4411 = vrot.slane %v330, %v4410
          %v4412 = vlaneseq
          %v4413 = vshrl.u32 %v4412, 7
          %v4414 = vsub.s32 7, %v4413
          %v4415 = vrot.slane %v330, %v4414
          %v4416 = vlaneseq
          %v4417 = vshrl.u32 %v4416, 7
          %v4418 = vsub.s32 0, %v4417
          %v4419 = vrot.slane %v331, %v4418
          %v4420 = vlaneseq
          %v4421 = vshrl.u32 %v4420, 7
          %v4422 = vsub.s32 1, %v4421
          %v4423 = vrot.slane %v331, %v4422
          %v4424 = vlaneseq
          %v4425 = vshrl.u32 %v4424, 7
          %v4426 = vsub.s32 2, %v4425
          %v4427 = vrot.slane %v331, %v4426
          %v4428 = vlaneseq
          %v4429 = vshrl.u32 %v4428, 7
          %v4430 = vsub.s32 3, %v4429
          %v4431 = vrot.slane %v331, %v4430
          %v4432 = vlaneseq
          %v4433 = vshrl.u32 %v4432, 7
          %v4434 = vsub.s32 4, %v4433
          %v4435 = vrot.slane %v331, %v4434
          %v4436 = vlaneseq
          %v4437 = vshrl.u32 %v4436, 7
          %v4438 = vsub.s32 5, %v4437
          %v4439 = vrot.slane %v331, %v4438
          %v4440 = vlaneseq
          %v4441 = vshrl.u32 %v4440, 7
          %v4442 = vsub.s32 6, %v4441
          %v4443 = vrot.slane %v331, %v4442
          %v4444 = vlaneseq
          %v4445 = vshrl.u32 %v4444, 7
          %v4446 = vsub.s32 7, %v4445
          %v4447 = vrot.slane %v331, %v4446
          %v4448 = vlaneseq
          %v4449 = vshrl.u32 %v4448, 7
          %v4450 = vsub.s32 0, %v4449
          %v4451 = vrot.slane %v332, %v4450
          %v4452 = vlaneseq
          %v4453 = vshrl.u32 %v4452, 7
          %v4454 = vsub.s32 1, %v4453
          %v4455 = vrot.slane %v332, %v4454
          %v4456 = vlaneseq
          %v4457 = vshrl.u32 %v4456, 7
          %v4458 = vsub.s32 2, %v4457
          %v4459 = vrot.slane %v332, %v4458
          %v4460 = vlaneseq
          %v4461 = vshrl.u32 %v4460, 7
          %v4462 = vsub.s32 3, %v4461
          %v4463 = vrot.slane %v332, %v4462
          %v4464 = vlaneseq
          %v4465 = vshrl.u32 %v4464, 7
          %v4466 = vsub.s32 4, %v4465
          %v4467 = vrot.slane %v332, %v4466
          %v4468 = vlaneseq
          %v4469 = vshrl.u32 %v4468, 7
          %v4470 = vsub.s32 5, %v4469
          %v4471 = vrot.slane %v332, %v4470
          %v4472 = vlaneseq
          %v4473 = vshrl.u32 %v4472, 7
          %v4474 = vsub.s32 6, %v4473
          %v4475 = vrot.slane %v332, %v4474
          %v4476 = vlaneseq
          %v4477 = vshrl.u32 %v4476, 7
          %v4478 = vsub.s32 7, %v4477
          %v4479 = vrot.slane %v332, %v4478
          %v4480 = vlaneseq
          %v4481 = vshrl.u32 %v4480, 7
          %v4482 = vsub.s32 0, %v4481
          %v4483 = vrot.slane %v333, %v4482
          %v4484 = vlaneseq
          %v4485 = vshrl.u32 %v4484, 7
          %v4486 = vsub.s32 1, %v4485
          %v4487 = vrot.slane %v333, %v4486
          %v4488 = vlaneseq
          %v4489 = vshrl.u32 %v4488, 7
          %v4490 = vsub.s32 2, %v4489
          %v4491 = vrot.slane %v333, %v4490
          %v4492 = vlaneseq
          %v4493 = vshrl.u32 %v4492, 7
          %v4494 = vsub.s32 3, %v4493
          %v4495 = vrot.slane %v333, %v4494
          %v4496 = vlaneseq
          %v4497 = vshrl.u32 %v4496, 7
          %v4498 = vsub.s32 4, %v4497
          %v4499 = vrot.slane %v333, %v4498
          %v4500 = vlaneseq
          %v4501 = vshrl.u32 %v4500, 7
          %v4502 = vsub.s32 5, %v4501
          %v4503 = vrot.slane %v333, %v4502
          %v4504 = vlaneseq
          %v4505 = vshrl.u32 %v4504, 7
          %v4506 = vsub.s32 6, %v4505
          %v4507 = vrot.slane %v333, %v4506
          %v4508 = vlaneseq
          %v4509 = vshrl.u32 %v4508, 7
          %v4510 = vsub.s32 7, %v4509
          %v4511 = vrot.slane %v333, %v4510
          %v4512 = vlaneseq
          %v4513 = vshrl.u32 %v4512, 7
          %v4514 = vsub.s32 0, %v4513
          %v4515 = vrot.slane %v334, %v4514
          %v4516 = vlaneseq
          %v4517 = vshrl.u32 %v4516, 7
          %v4518 = vsub.s32 1, %v4517
          %v4519 = vrot.slane %v334, %v4518
          %v4520 = vlaneseq
          %v4521 = vshrl.u32 %v4520, 7
          %v4522 = vsub.s32 2, %v4521
          %v4523 = vrot.slane %v334, %v4522
          %v4524 = vlaneseq
          %v4525 = vshrl.u32 %v4524, 7
          %v4526 = vsub.s32 3, %v4525
          %v4527 = vrot.slane %v334, %v4526
          %v4528 = vlaneseq
          %v4529 = vshrl.u32 %v4528, 7
          %v4530 = vsub.s32 4, %v4529
          %v4531 = vrot.slane %v334, %v4530
          %v4729 = vmul.f32 %v3747, %v335
          %v4730 = vmul.f32 %v3751, %v336
          %v4731 = vmul.f32 %v3755, %v337
          %v4732 = vmul.f32 %v3759, %v338
          %v4733 = vmul.f32 %v3763, %v339
          %v4734 = vmul.f32 %v3767, %v340
          %v4735 = vmul.f32 %v3771, %v341
          %v4736 = vmul.f32 %v3775, %v342
          %v4737 = vmul.f32 %v3779, %v343
          %v4738 = vmul.f32 %v3783, %v344
          %v4739 = vmul.f32 %v3787, %v345
          %v4740 = vmul.f32 %v3791, %v346
          %v4741 = vmul.f32 %v3795, %v347
          %v4742 = vmul.f32 %v3799, %v348
          %v4743 = vmul.f32 %v3803, %v349
          %v4744 = vmul.f32 %v3807, %v350
          %v4745 = vmul.f32 %v3811, %v351
          %v4746 = vmul.f32 %v3815, %v352
          %v4747 = vmul.f32 %v3819, %v353
          %v4748 = vmul.f32 %v3823, %v354
          %v4749 = vmul.f32 %v3827, %v355
          %v4750 = vmul.f32 %v3831, %v356
          %v4751 = vmul.f32 %v3835, %v357
          %v4752 = vmul.f32 %v3839, %v358
          %v4753 = vmul.f32 %v3843, %v359
          %v4754 = vmul.f32 %v3847, %v360
          %v4755 = vmul.f32 %v3851, %v361
          %v4756 = vmul.f32 %v3855, %v362
          %v4757 = vmul.f32 %v3859, %v363
          %v4758 = vmul.f32 %v3863, %v364
          %v4759 = vmul.f32 %v3867, %v365
          %v4760 = vmul.f32 %v3871, %v366
          %v4761 = vmul.f32 %v3875, %v367
          %v4762 = vmul.f32 %v3879, %v368
          %v4763 = vmul.f32 %v3883, %v369
          %v4764 = vmul.f32 %v3887, %v370
          %v4765 = vmul.f32 %v3891, %v371
          %v4766 = vmul.f32 %v3895, %v372
          %v4767 = vmul.f32 %v3899, %v373
          %v4768 = vmul.f32 %v3903, %v374
          %v4769 = vmul.f32 %v3907, %v375
          %v4770 = vmul.f32 %v3911, %v376
          %v4771 = vmul.f32 %v3915, %v377
          %v4772 = vmul.f32 %v3919, %v378
          %v4773 = vmul.f32 %v3923, %v379
          %v4774 = vmul.f32 %v3927, %v380
          %v4775 = vmul.f32 %v3931, %v381
          %v4776 = vmul.f32 %v3935, %v382
          %v4777 = vmul.f32 %v3939, %v383
          %v4778 = vmul.f32 %v3943, %v384
          %v4779 = vmul.f32 %v3947, %v385
          %v4780 = vmul.f32 %v3951, %v386
          %v4781 = vmul.f32 %v3955, %v387
          %v4782 = vmul.f32 %v3959, %v388
          %v4783 = vmul.f32 %v3963, %v389
          %v4784 = vmul.f32 %v3967, %v390
          %v4785 = vmul.f32 %v3971, %v391
          %v4786 = vmul.f32 %v3975, %v392
          %v4787 = vmul.f32 %v3979, %v393
          %v4788 = vmul.f32 %v3983, %v394
          %v4789 = vmul.f32 %v3987, %v395
          %v4790 = vmul.f32 %v3991, %v396
          %v4791 = vmul.f32 %v3995, %v397
          %v4792 = vmul.f32 %v3999, %v398
          %v4793 = vmul.f32 %v4003, %v399
          %v4794 = vmul.f32 %v4007, %v400
          %v4795 = vmul.f32 %v4011, %v401
          %v4796 = vmul.f32 %v4015, %v402
          %v4797 = vmul.f32 %v4019, %v403
          %v4798 = vmul.f32 %v4023, %v404
          %v4799 = vmul.f32 %v4027, %v405
          %v4800 = vmul.f32 %v4031, %v406
          %v4801 = vmul.f32 %v4035, %v407
          %v4802 = vmul.f32 %v4039, %v408
          %v4803 = vmul.f32 %v4043, %v409
          %v4804 = vmul.f32 %v4047, %v410
          %v4805 = vmul.f32 %v4051, %v411
          %v4806 = vmul.f32 %v4055, %v412
          %v4807 = vmul.f32 %v4059, %v413
          %v4808 = vmul.f32 %v4063, %v414
          %v4809 = vmul.f32 %v4067, %v415
          %v4810 = vmul.f32 %v4071, %v416
          %v4811 = vmul.f32 %v4075, %v417
          %v4812 = vmul.f32 %v4079, %v418
          %v4813 = vmul.f32 %v4083, %v419
          %v4814 = vmul.f32 %v4087, %v420
          %v4815 = vmul.f32 %v4091, %v421
          %v4816 = vmul.f32 %v4095, %v422
          %v4817 = vmul.f32 %v4099, %v423
          %v4818 = vmul.f32 %v4103, %v424
          %v4819 = vmul.f32 %v4107, %v425
          %v4820 = vmul.f32 %v4111, %v426
          %v4821 = vmul.f32 %v4115, %v427
          %v4822 = vmul.f32 %v4119, %v428
          %v4823 = vmul.f32 %v4123, %v429
          %v4824 = vmul.f32 %v4127, %v430
          %v4825 = vmul.f32 %v4131, %v431
          %v4826 = vmul.f32 %v4135, %v432
          %v4827 = vmul.f32 %v4139, %v433
          %v4828 = vmul.f32 %v4143, %v434
          %v4829 = vmul.f32 %v4147, %v435
          %v4830 = vmul.f32 %v4151, %v436
          %v4831 = vmul.f32 %v4155, %v437
          %v4832 = vmul.f32 %v4159, %v438
          %v4833 = vmul.f32 %v4163, %v439
          %v4834 = vmul.f32 %v4167, %v440
          %v4835 = vmul.f32 %v4171, %v441
          %v4836 = vmul.f32 %v4175, %v442
          %v4837 = vmul.f32 %v4179, %v443
          %v4838 = vmul.f32 %v4183, %v444
          %v4839 = vmul.f32 %v4187, %v445
          %v4840 = vmul.f32 %v4191, %v446
          %v4841 = vmul.f32 %v4195, %v447
          %v4842 = vmul.f32 %v4199, %v448
          %v4843 = vmul.f32 %v4203, %v449
          %v4844 = vmul.f32 %v4207, %v450
          %v4845 = vmul.f32 %v4211, %v451
          %v4846 = vmul.f32 %v4215, %v452
          %v4847 = vmul.f32 %v4219, %v453
          %v4848 = vmul.f32 %v4223, %v454
          %v4849 = vmul.f32 %v4227, %v455
          %v4850 = vmul.f32 %v4231, %v456
          %v4851 = vmul.f32 %v4235, %v457
          %v4852 = vmul.f32 %v4239, %v458
          %v4853 = vmul.f32 %v4243, %v459
          %v4854 = vmul.f32 %v4247, %v460
          %v4855 = vmul.f32 %v4251, %v461
          %v4856 = vmul.f32 %v4255, %v462
          %v4857 = vmul.f32 %v4259, %v463
          %v4858 = vmul.f32 %v4263, %v464
          %v4859 = vmul.f32 %v4267, %v465
          %v4860 = vmul.f32 %v4271, %v466
          %v4861 = vmul.f32 %v4275, %v467
          %v4862 = vmul.f32 %v4279, %v468
          %v4863 = vmul.f32 %v4283, %v469
          %v4864 = vmul.f32 %v4287, %v470
          %v4865 = vmul.f32 %v4291, %v471
          %v4866 = vmul.f32 %v4295, %v472
          %v4867 = vmul.f32 %v4299, %v473
          %v4868 = vmul.f32 %v4303, %v474
          %v4869 = vmul.f32 %v4307, %v475
          %v4870 = vmul.f32 %v4311, %v476
          %v4871 = vmul.f32 %v4315, %v477
          %v4872 = vmul.f32 %v4319, %v478
          %v4873 = vmul.f32 %v4323, %v479
          %v4874 = vmul.f32 %v4327, %v480
          %v4875 = vmul.f32 %v4331, %v481
          %v4876 = vmul.f32 %v4335, %v482
          %v4877 = vmul.f32 %v4339, %v483
          %v4878 = vmul.f32 %v4343, %v484
          %v4879 = vmul.f32 %v4347, %v485
          %v4880 = vmul.f32 %v4351, %v486
          %v4881 = vmul.f32 %v4355, %v487
          %v4882 = vmul.f32 %v4359, %v488
          %v4883 = vmul.f32 %v4363, %v489
          %v4884 = vmul.f32 %v4367, %v490
          %v4885 = vmul.f32 %v4371, %v491
          %v4886 = vmul.f32 %v4375, %v492
          %v4887 = vmul.f32 %v4379, %v493
          %v4888 = vmul.f32 %v4383, %v494
          %v4889 = vmul.f32 %v4387, %v495
          %v4890 = vmul.f32 %v4391, %v496
          %v4891 = vmul.f32 %v4395, %v497
          %v4892 = vmul.f32 %v4399, %v498
          %v4893 = vmul.f32 %v4403, %v499
          %v4894 = vmul.f32 %v4407, %v500
          %v4895 = vmul.f32 %v4411, %v501
          %v4896 = vmul.f32 %v4415, %v502
          %v4897 = vmul.f32 %v4419, %v503
          %v4898 = vmul.f32 %v4423, %v504
          %v4899 = vmul.f32 %v4427, %v505
          %v4900 = vmul.f32 %v4431, %v506
          %v4901 = vmul.f32 %v4435, %v507
          %v4902 = vmul.f32 %v4439, %v508
          %v4903 = vmul.f32 %v4443, %v509
          %v4904 = vmul.f32 %v4447, %v510
          %v4905 = vmul.f32 %v4451, %v511
          %v4906 = vmul.f32 %v4455, %v512
          %v4907 = vmul.f32 %v4459, %v513
          %v4908 = vmul.f32 %v4463, %v514
          %v4909 = vmul.f32 %v4467, %v515
          %v4910 = vmul.f32 %v4471, %v516
          %v4911 = vmul.f32 %v4475, %v517
          %v4912 = vmul.f32 %v4479, %v518
          %v4913 = vmul.f32 %v4483, %v519
          %v4914 = vmul.f32 %v4487, %v520
          %v4915 = vmul.f32 %v4491, %v521
          %v4916 = vmul.f32 %v4495, %v522
          %v4917 = vmul.f32 %v4499, %v523
          %v4918 = vmul.f32 %v4503, %v524
          %v4919 = vmul.f32 %v4507, %v525
          %v4920 = vmul.f32 %v4511, %v526
          %v4921 = vmul.f32 %v4515, %v527
          %v4922 = vmul.f32 %v4519, %v528
          %v4923 = vmul.f32 %v4523, %v529
          %v4924 = vmul.f32 %v4527, %v530
          %v4925 = vmul.f32 %v4531, %v531
        $region56: #{tpu_custom_call.1} parent=35 // pred_fallthru
          %v4926 = vphi %v3322, %v4729
          %v4927 = vphi %v3323, %v4730
          %v4928 = vphi %v3324, %v4731
          %v4929 = vphi %v3325, %v4732
          %v4930 = vphi %v3326, %v4733
          %v4931 = vphi %v3327, %v4734
          %v4932 = vphi %v3328, %v4735
          %v4933 = vphi %v3329, %v4736
          %v4934 = vphi %v3330, %v4737
          %v4935 = vphi %v3331, %v4738
          %v4936 = vphi %v3332, %v4739
          %v4937 = vphi %v3333, %v4740
          %v4938 = vphi %v3334, %v4741
          %v4939 = vphi %v3335, %v4742
          %v4940 = vphi %v3336, %v4743
          %v4941 = vphi %v3337, %v4744
          %v4942 = vphi %v3338, %v4745
          %v4943 = vphi %v3339, %v4746
          %v4944 = vphi %v3340, %v4747
          %v4945 = vphi %v3341, %v4748
          %v4946 = vphi %v3342, %v4749
          %v4947 = vphi %v3343, %v4750
          %v4948 = vphi %v3344, %v4751
          %v4949 = vphi %v3345, %v4752
          %v4950 = vphi %v3346, %v4753
          %v4951 = vphi %v3347, %v4754
          %v4952 = vphi %v3348, %v4755
          %v4953 = vphi %v3349, %v4756
          %v4954 = vphi %v3350, %v4757
          %v4955 = vphi %v3351, %v4758
          %v4956 = vphi %v3352, %v4759
          %v4957 = vphi %v3353, %v4760
          %v4958 = vphi %v3354, %v4761
          %v4959 = vphi %v3355, %v4762
          %v4960 = vphi %v3356, %v4763
          %v4961 = vphi %v3357, %v4764
          %v4962 = vphi %v3358, %v4765
          %v4963 = vphi %v3359, %v4766
          %v4964 = vphi %v3360, %v4767
          %v4965 = vphi %v3361, %v4768
          %v4966 = vphi %v3362, %v4769
          %v4967 = vphi %v3363, %v4770
          %v4968 = vphi %v3364, %v4771
          %v4969 = vphi %v3365, %v4772
          %v4970 = vphi %v3366, %v4773
          %v4971 = vphi %v3367, %v4774
          %v4972 = vphi %v3368, %v4775
          %v4973 = vphi %v3369, %v4776
          %v4974 = vphi %v3370, %v4777
          %v4975 = vphi %v3371, %v4778
          %v4976 = vphi %v3372, %v4779
          %v4977 = vphi %v3373, %v4780
          %v4978 = vphi %v3374, %v4781
          %v4979 = vphi %v3375, %v4782
          %v4980 = vphi %v3376, %v4783
          %v4981 = vphi %v3377, %v4784
          %v4982 = vphi %v3378, %v4785
          %v4983 = vphi %v3379, %v4786
          %v4984 = vphi %v3380, %v4787
          %v4985 = vphi %v3381, %v4788
          %v4986 = vphi %v3382, %v4789
          %v4987 = vphi %v3383, %v4790
          %v4988 = vphi %v3384, %v4791
          %v4989 = vphi %v3385, %v4792
          %v4990 = vphi %v3386, %v4793
          %v4991 = vphi %v3387, %v4794
          %v4992 = vphi %v3388, %v4795
          %v4993 = vphi %v3389, %v4796
          %v4994 = vphi %v3390, %v4797
          %v4995 = vphi %v3391, %v4798
          %v4996 = vphi %v3392, %v4799
          %v4997 = vphi %v3393, %v4800
          %v4998 = vphi %v3394, %v4801
          %v4999 = vphi %v3395, %v4802
          %v5000 = vphi %v3396, %v4803
          %v5001 = vphi %v3397, %v4804
          %v5002 = vphi %v3398, %v4805
          %v5003 = vphi %v3399, %v4806
          %v5004 = vphi %v3400, %v4807
          %v5005 = vphi %v3401, %v4808
          %v5006 = vphi %v3402, %v4809
          %v5007 = vphi %v3403, %v4810
          %v5008 = vphi %v3404, %v4811
          %v5009 = vphi %v3405, %v4812
          %v5010 = vphi %v3406, %v4813
          %v5011 = vphi %v3407, %v4814
          %v5012 = vphi %v3408, %v4815
          %v5013 = vphi %v3409, %v4816
          %v5014 = vphi %v3410, %v4817
          %v5015 = vphi %v3411, %v4818
          %v5016 = vphi %v3412, %v4819
          %v5017 = vphi %v3413, %v4820
          %v5018 = vphi %v3414, %v4821
          %v5019 = vphi %v3415, %v4822
          %v5020 = vphi %v3416, %v4823
          %v5021 = vphi %v3417, %v4824
          %v5022 = vphi %v3418, %v4825
          %v5023 = vphi %v3419, %v4826
          %v5024 = vphi %v3420, %v4827
          %v5025 = vphi %v3421, %v4828
          %v5026 = vphi %v3422, %v4829
          %v5027 = vphi %v3423, %v4830
          %v5028 = vphi %v3424, %v4831
          %v5029 = vphi %v3425, %v4832
          %v5030 = vphi %v3426, %v4833
          %v5031 = vphi %v3427, %v4834
          %v5032 = vphi %v3428, %v4835
          %v5033 = vphi %v3429, %v4836
          %v5034 = vphi %v3430, %v4837
          %v5035 = vphi %v3431, %v4838
          %v5036 = vphi %v3432, %v4839
          %v5037 = vphi %v3433, %v4840
          %v5038 = vphi %v3434, %v4841
          %v5039 = vphi %v3435, %v4842
          %v5040 = vphi %v3436, %v4843
          %v5041 = vphi %v3437, %v4844
          %v5042 = vphi %v3438, %v4845
          %v5043 = vphi %v3439, %v4846
          %v5044 = vphi %v3440, %v4847
          %v5045 = vphi %v3441, %v4848
          %v5046 = vphi %v3442, %v4849
          %v5047 = vphi %v3443, %v4850
          %v5048 = vphi %v3444, %v4851
          %v5049 = vphi %v3445, %v4852
          %v5050 = vphi %v3446, %v4853
          %v5051 = vphi %v3447, %v4854
          %v5052 = vphi %v3448, %v4855
          %v5053 = vphi %v3449, %v4856
          %v5054 = vphi %v3450, %v4857
          %v5055 = vphi %v3451, %v4858
          %v5056 = vphi %v3452, %v4859
          %v5057 = vphi %v3453, %v4860
          %v5058 = vphi %v3454, %v4861
          %v5059 = vphi %v3455, %v4862
          %v5060 = vphi %v3456, %v4863
          %v5061 = vphi %v3457, %v4864
          %v5062 = vphi %v3458, %v4865
          %v5063 = vphi %v3459, %v4866
          %v5064 = vphi %v3460, %v4867
          %v5065 = vphi %v3461, %v4868
          %v5066 = vphi %v3462, %v4869
          %v5067 = vphi %v3463, %v4870
          %v5068 = vphi %v3464, %v4871
          %v5069 = vphi %v3465, %v4872
          %v5070 = vphi %v3466, %v4873
          %v5071 = vphi %v3467, %v4874
          %v5072 = vphi %v3468, %v4875
          %v5073 = vphi %v3469, %v4876
          %v5074 = vphi %v3470, %v4877
          %v5075 = vphi %v3471, %v4878
          %v5076 = vphi %v3472, %v4879
          %v5077 = vphi %v3473, %v4880
          %v5078 = vphi %v3474, %v4881
          %v5079 = vphi %v3475, %v4882
          %v5080 = vphi %v3476, %v4883
          %v5081 = vphi %v3477, %v4884
          %v5082 = vphi %v3478, %v4885
          %v5083 = vphi %v3479, %v4886
          %v5084 = vphi %v3480, %v4887
          %v5085 = vphi %v3481, %v4888
          %v5086 = vphi %v3482, %v4889
          %v5087 = vphi %v3483, %v4890
          %v5088 = vphi %v3484, %v4891
          %v5089 = vphi %v3485, %v4892
          %v5090 = vphi %v3486, %v4893
          %v5091 = vphi %v3487, %v4894
          %v5092 = vphi %v3488, %v4895
          %v5093 = vphi %v3489, %v4896
          %v5094 = vphi %v3490, %v4897
          %v5095 = vphi %v3491, %v4898
          %v5096 = vphi %v3492, %v4899
          %v5097 = vphi %v3493, %v4900
          %v5098 = vphi %v3494, %v4901
          %v5099 = vphi %v3495, %v4902
          %v5100 = vphi %v3496, %v4903
          %v5101 = vphi %v3497, %v4904
          %v5102 = vphi %v3498, %v4905
          %v5103 = vphi %v3499, %v4906
          %v5104 = vphi %v3500, %v4907
          %v5105 = vphi %v3501, %v4908
          %v5106 = vphi %v3502, %v4909
          %v5107 = vphi %v3503, %v4910
          %v5108 = vphi %v3504, %v4911
          %v5109 = vphi %v3505, %v4912
          %v5110 = vphi %v3506, %v4913
          %v5111 = vphi %v3507, %v4914
          %v5112 = vphi %v3508, %v4915
          %v5113 = vphi %v3509, %v4916
          %v5114 = vphi %v3510, %v4917
          %v5115 = vphi %v3511, %v4918
          %v5116 = vphi %v3512, %v4919
          %v5117 = vphi %v3513, %v4920
          %v5118 = vphi %v3514, %v4921
          %v5119 = vphi %v3515, %v4922
          %v5120 = vphi %v3516, %v4923
          %v5121 = vphi %v3517, %v4924
          %v5122 = vphi %v3518, %v4925
          %v5123 = vphi %v3519, %v532
          %v5124 = vphi %v3520, %v533
          %v5125 = vphi %v3521, %v534
          %v5126 = vphi %v3522, %v535
          %v5127 = vphi %v3523, %v536
          %v5128 = vphi %v3524, %v537
          %v5129 = vphi %v3525, %v538
          %v5130 = vphi %v3526, %v539
          %v5131 = vphi %v3527, %v540
          %v5132 = vphi %v3528, %v541
          %v5133 = vphi %v3529, %v542
          %v5134 = vphi %v3530, %v543
          %v5135 = vphi %v3531, %v544
          %v5136 = vphi %v3532, %v545
          %v5137 = vphi %v3533, %v546
          %v5138 = vphi %v3534, %v547
          %v5139 = vphi %v3535, %v548
          %v5140 = vphi %v3536, %v549
          %v5141 = vphi %v3537, %v550
          %v5142 = vphi %v3538, %v551
          %v5143 = vphi %v3539, %v552
          %v5144 = vphi %v3540, %v553
          %v5145 = vphi %v3541, %v554
          %v5146 = vphi %v3542, %v555
          %v5147 = vphi %v3543, %v556
          %v5148 = vphi %v3544, %v557
          %v5149 = vphi %v3545, %v558
          %v5150 = vphi %v3546, %v559
          %v5151 = vphi %v3547, %v560
          %v5152 = vphi %v3548, %v561
          %v5153 = vphi %v3549, %v562
          %v5154 = vphi %v3550, %v563
          %v5155 = vphi %v3551, %v564
          %v5156 = vphi %v3552, %v565
          %v5157 = vphi %v3553, %v566
          %v5158 = vphi %v3554, %v567
          %v5159 = vphi %v3555, %v568
          %v5160 = vphi %v3556, %v569
          %v5161 = vphi %v3557, %v570
          %v5162 = vphi %v3558, %v571
          %v5163 = vphi %v3559, %v572
          %v5164 = vphi %v3560, %v573
          %v5165 = vphi %v3561, %v574
          %v5166 = vphi %v3562, %v575
          %v5167 = vphi %v3563, %v576
          %v5168 = vphi %v3564, %v577
          %v5169 = vphi %v3565, %v578
          %v5170 = vphi %v3566, %v579
          %v5171 = vphi %v3567, %v580
          %v5172 = vphi %v3568, %v581
          %v5173 = vphi %v3569, %v582
          %v5174 = vphi %v3570, %v583
          %v5175 = vphi %v3571, %v584
          %v5176 = vphi %v3572, %v585
          %v5177 = vphi %v3573, %v586
          %v5178 = vphi %v3574, %v587
          %v5179 = vphi %v3575, %v588
          %v5180 = vphi %v3576, %v589
          %v5181 = vphi %v3577, %v590
          %v5182 = vphi %v3578, %v591
          %v5183 = vphi %v3579, %v592
          %v5184 = vphi %v3580, %v593
          %v5185 = vphi %v3581, %v594
          %v5186 = vphi %v3582, %v595
          %v5187 = vphi %v3583, %v596
          %v5188 = vphi %v3584, %v597
          %v5189 = vphi %v3585, %v598
          %v5190 = vphi %v3586, %v599
          %v5191 = vphi %v3587, %v600
          %v5192 = vphi %v3588, %v601
          %v5193 = vphi %v3589, %v602
          %v5194 = vphi %v3590, %v603
          %v5195 = vphi %v3591, %v604
          %v5196 = vphi %v3592, %v605
          %v5197 = vphi %v3593, %v606
          %v5198 = vphi %v3594, %v607
          %v5199 = vphi %v3595, %v608
          %v5200 = vphi %v3596, %v609
          %v5201 = vphi %v3597, %v610
          %v5202 = vphi %v3598, %v611
          %v5203 = vphi %v3599, %v612
          %v5204 = vphi %v3600, %v613
          %v5205 = vphi %v3601, %v614
          %v5206 = vphi %v3602, %v615
          %v5207 = vphi %v3603, %v616
          %v5208 = vphi %v3604, %v617
          %v5209 = vphi %v3605, %v618
          %v5210 = vphi %v3606, %v619
          %v5211 = vphi %v3607, %v620
          %v5212 = vphi %v3608, %v621
          %v5213 = vphi %v3609, %v622
          %v5214 = vphi %v3610, %v623
          %v5215 = vphi %v3611, %v624
          %v5216 = vphi %v3612, %v625
          %v5217 = vphi %v3613, %v626
          %v5218 = vphi %v3614, %v627
          %v5219 = vphi %v3615, %v628
          %v5220 = vphi %v3616, %v629
          %v5221 = vphi %v3617, %v630
          %v5222 = vphi %v3618, %v631
          %v5223 = vphi %v3619, %v632
          %v5224 = vphi %v3620, %v633
          %v5225 = vphi %v3621, %v634
          %v5226 = vphi %v3622, %v635
          %v5227 = vphi %v3623, %v636
          %v5228 = vphi %v3624, %v637
          %v5229 = vphi %v3625, %v638
          %v5230 = vphi %v3626, %v639
          %v5231 = vphi %v3627, %v640
          %v5232 = vphi %v3628, %v641
          %v5233 = vphi %v3629, %v642
          %v5234 = vphi %v3630, %v643
          %v5235 = vphi %v3631, %v644
          %v5236 = vphi %v3632, %v645
          %v5237 = vphi %v3633, %v646
          %v5238 = vphi %v3634, %v647
          %v5239 = vphi %v3635, %v648
          %v5240 = vphi %v3636, %v649
          %v5241 = vphi %v3637, %v650
          %v5242 = vphi %v3638, %v651
          %v5243 = vphi %v3639, %v652
          %v5244 = vphi %v3640, %v653
          %v5245 = vphi %v3641, %v654
          %v5246 = vphi %v3642, %v655
          %v5247 = vphi %v3643, %v656
          %v5248 = vphi %v3644, %v657
          %v5249 = vphi %v3645, %v658
          %v5250 = vphi %v3646, %v659
          %v5251 = vphi %v3647, %v660
          %v5252 = vphi %v3648, %v661
          %v5253 = vphi %v3649, %v662
          %v5254 = vphi %v3650, %v663
          %v5255 = vphi %v3651, %v664
          %v5256 = vphi %v3652, %v665
          %v5257 = vphi %v3653, %v666
          %v5258 = vphi %v3654, %v667
          %v5259 = vphi %v3655, %v668
          %v5260 = vphi %v3656, %v669
          %v5261 = vphi %v3657, %v670
          %v5262 = vphi %v3658, %v671
          %v5263 = vphi %v3659, %v672
          %v5264 = vphi %v3660, %v673
          %v5265 = vphi %v3661, %v674
          %v5266 = vphi %v3662, %v675
          %v5267 = vphi %v3663, %v676
          %v5268 = vphi %v3664, %v677
          %v5269 = vphi %v3665, %v678
          %v5270 = vphi %v3666, %v679
          %v5271 = vphi %v3667, %v680
          %v5272 = vphi %v3668, %v681
          %v5273 = vphi %v3669, %v682
          %v5274 = vphi %v3670, %v683
          %v5275 = vphi %v3671, %v684
          %v5276 = vphi %v3672, %v685
          %v5277 = vphi %v3673, %v686
          %v5278 = vphi %v3674, %v687
          %v5279 = vphi %v3675, %v688
          %v5280 = vphi %v3676, %v689
          %v5281 = vphi %v3677, %v690
          %v5282 = vphi %v3678, %v691
          %v5283 = vphi %v3679, %v692
          %v5284 = vphi %v3680, %v693
          %v5285 = vphi %v3681, %v694
          %v5286 = vphi %v3682, %v695
          %v5287 = vphi %v3683, %v696
          %v5288 = vphi %v3684, %v697
          %v5289 = vphi %v3685, %v698
          %v5290 = vphi %v3686, %v699
          %v5291 = vphi %v3687, %v700
          %v5292 = vphi %v3688, %v701
          %v5293 = vphi %v3689, %v702
          %v5294 = vphi %v3690, %v703
          %v5295 = vphi %v3691, %v704
          %v5296 = vphi %v3692, %v705
          %v5297 = vphi %v3693, %v706
          %v5298 = vphi %v3694, %v707
          %v5299 = vphi %v3695, %v708
          %v5300 = vphi %v3696, %v709
          %v5301 = vphi %v3697, %v710
          %v5302 = vphi %v3698, %v711
          %v5303 = vphi %v3699, %v712
          %v5304 = vphi %v3700, %v713
          %v5305 = vphi %v3701, %v714
          %v5306 = vphi %v3702, %v715
          %v5307 = vphi %v3703, %v716
          %v5308 = vphi %v3704, %v717
          %v5309 = vphi %v3705, %v718
          %v5310 = vphi %v3706, %v719
          %v5311 = vphi %v3707, %v720
          %v5312 = vphi %v3708, %v721
          %v5313 = vphi %v3709, %v722
          %v5314 = vphi %v3710, %v723
          %v5315 = vphi %v3711, %v724
          %v5316 = vphi %v3712, %v725
          %v5317 = vphi %v3713, %v726
          %v5318 = vphi %v3714, %v727
          %v5319 = vphi %v3715, %v728
        %v5320 = vstv %s309
        %v5321 = vadd.f32 %v5123, %v5320
        %v5322 = vadd.f32 %v5124, %v5320
        %v5323 = vadd.f32 %v5125, %v5320
        %v5324 = vadd.f32 %v5126, %v5320
        %v5325 = vadd.f32 %v5127, %v5320
        %v5326 = vadd.f32 %v5128, %v5320
        %v5327 = vadd.f32 %v5129, %v5320
        %v5328 = vadd.f32 %v5130, %v5320
        %v5329 = vadd.f32 %v5131, %v5320
        %v5330 = vadd.f32 %v5132, %v5320
        %v5331 = vadd.f32 %v5133, %v5320
        %v5332 = vadd.f32 %v5134, %v5320
        %v5333 = vadd.f32 %v5135, %v5320
        %v5334 = vadd.f32 %v5136, %v5320
        %v5335 = vadd.f32 %v5137, %v5320
        %v5336 = vadd.f32 %v5138, %v5320
        %v5337 = vadd.f32 %v5139, %v5320
        %v5338 = vadd.f32 %v5140, %v5320
        %v5339 = vadd.f32 %v5141, %v5320
        %v5340 = vadd.f32 %v5142, %v5320
        %v5341 = vadd.f32 %v5143, %v5320
        %v5342 = vadd.f32 %v5144, %v5320
        %v5343 = vadd.f32 %v5145, %v5320
        %v5344 = vadd.f32 %v5146, %v5320
        %v5345 = vadd.f32 %v5147, %v5320
        %v5346 = vadd.f32 %v5148, %v5320
        %v5347 = vadd.f32 %v5149, %v5320
        %v5348 = vadd.f32 %v5150, %v5320
        %v5349 = vadd.f32 %v5151, %v5320
        %v5350 = vadd.f32 %v5152, %v5320
        %v5351 = vadd.f32 %v5153, %v5320
        %v5352 = vadd.f32 %v5154, %v5320
        %v5353 = vadd.f32 %v5155, %v5320
        %v5354 = vadd.f32 %v5156, %v5320
        %v5355 = vadd.f32 %v5157, %v5320
        %v5356 = vadd.f32 %v5158, %v5320
        %v5357 = vadd.f32 %v5159, %v5320
        %v5358 = vadd.f32 %v5160, %v5320
        %v5359 = vadd.f32 %v5161, %v5320
        %v5360 = vadd.f32 %v5162, %v5320
        %v5361 = vadd.f32 %v5163, %v5320
        %v5362 = vadd.f32 %v5164, %v5320
        %v5363 = vadd.f32 %v5165, %v5320
        %v5364 = vadd.f32 %v5166, %v5320
        %v5365 = vadd.f32 %v5167, %v5320
        %v5366 = vadd.f32 %v5168, %v5320
        %v5367 = vadd.f32 %v5169, %v5320
        %v5368 = vadd.f32 %v5170, %v5320
        %v5369 = vadd.f32 %v5171, %v5320
        %v5370 = vadd.f32 %v5172, %v5320
        %v5371 = vadd.f32 %v5173, %v5320
        %v5372 = vadd.f32 %v5174, %v5320
        %v5373 = vadd.f32 %v5175, %v5320
        %v5374 = vadd.f32 %v5176, %v5320
        %v5375 = vadd.f32 %v5177, %v5320
        %v5376 = vadd.f32 %v5178, %v5320
        %v5377 = vadd.f32 %v5179, %v5320
        %v5378 = vadd.f32 %v5180, %v5320
        %v5379 = vadd.f32 %v5181, %v5320
        %v5380 = vadd.f32 %v5182, %v5320
        %v5381 = vadd.f32 %v5183, %v5320
        %v5382 = vadd.f32 %v5184, %v5320
        %v5383 = vadd.f32 %v5185, %v5320
        %v5384 = vadd.f32 %v5186, %v5320
        %v5385 = vadd.f32 %v5187, %v5320
        %v5386 = vadd.f32 %v5188, %v5320
        %v5387 = vadd.f32 %v5189, %v5320
        %v5388 = vadd.f32 %v5190, %v5320
        %v5389 = vadd.f32 %v5191, %v5320
        %v5390 = vadd.f32 %v5192, %v5320
        %v5391 = vadd.f32 %v5193, %v5320
        %v5392 = vadd.f32 %v5194, %v5320
        %v5393 = vadd.f32 %v5195, %v5320
        %v5394 = vadd.f32 %v5196, %v5320
        %v5395 = vadd.f32 %v5197, %v5320
        %v5396 = vadd.f32 %v5198, %v5320
        %v5397 = vadd.f32 %v5199, %v5320
        %v5398 = vadd.f32 %v5200, %v5320
        %v5399 = vadd.f32 %v5201, %v5320
        %v5400 = vadd.f32 %v5202, %v5320
        %v5401 = vadd.f32 %v5203, %v5320
        %v5402 = vadd.f32 %v5204, %v5320
        %v5403 = vadd.f32 %v5205, %v5320
        %v5404 = vadd.f32 %v5206, %v5320
        %v5405 = vadd.f32 %v5207, %v5320
        %v5406 = vadd.f32 %v5208, %v5320
        %v5407 = vadd.f32 %v5209, %v5320
        %v5408 = vadd.f32 %v5210, %v5320
        %v5409 = vadd.f32 %v5211, %v5320
        %v5410 = vadd.f32 %v5212, %v5320
        %v5411 = vadd.f32 %v5213, %v5320
        %v5412 = vadd.f32 %v5214, %v5320
        %v5413 = vadd.f32 %v5215, %v5320
        %v5414 = vadd.f32 %v5216, %v5320
        %v5415 = vadd.f32 %v5217, %v5320
        %v5416 = vadd.f32 %v5218, %v5320
        %v5417 = vadd.f32 %v5219, %v5320
        %v5418 = vadd.f32 %v5220, %v5320
        %v5419 = vadd.f32 %v5221, %v5320
        %v5420 = vadd.f32 %v5222, %v5320
        %v5421 = vadd.f32 %v5223, %v5320
        %v5422 = vadd.f32 %v5224, %v5320
        %v5423 = vadd.f32 %v5225, %v5320
        %v5424 = vadd.f32 %v5226, %v5320
        %v5425 = vadd.f32 %v5227, %v5320
        %v5426 = vadd.f32 %v5228, %v5320
        %v5427 = vadd.f32 %v5229, %v5320
        %v5428 = vadd.f32 %v5230, %v5320
        %v5429 = vadd.f32 %v5231, %v5320
        %v5430 = vadd.f32 %v5232, %v5320
        %v5431 = vadd.f32 %v5233, %v5320
        %v5432 = vadd.f32 %v5234, %v5320
        %v5433 = vadd.f32 %v5235, %v5320
        %v5434 = vadd.f32 %v5236, %v5320
        %v5435 = vadd.f32 %v5237, %v5320
        %v5436 = vadd.f32 %v5238, %v5320
        %v5437 = vadd.f32 %v5239, %v5320
        %v5438 = vadd.f32 %v5240, %v5320
        %v5439 = vadd.f32 %v5241, %v5320
        %v5440 = vadd.f32 %v5242, %v5320
        %v5441 = vadd.f32 %v5243, %v5320
        %v5442 = vadd.f32 %v5244, %v5320
        %v5443 = vadd.f32 %v5245, %v5320
        %v5444 = vadd.f32 %v5246, %v5320
        %v5445 = vadd.f32 %v5247, %v5320
        %v5446 = vadd.f32 %v5248, %v5320
        %v5447 = vadd.f32 %v5249, %v5320
        %v5448 = vadd.f32 %v5250, %v5320
        %v5449 = vadd.f32 %v5251, %v5320
        %v5450 = vadd.f32 %v5252, %v5320
        %v5451 = vadd.f32 %v5253, %v5320
        %v5452 = vadd.f32 %v5254, %v5320
        %v5453 = vadd.f32 %v5255, %v5320
        %v5454 = vadd.f32 %v5256, %v5320
        %v5455 = vadd.f32 %v5257, %v5320
        %v5456 = vadd.f32 %v5258, %v5320
        %v5457 = vadd.f32 %v5259, %v5320
        %v5458 = vadd.f32 %v5260, %v5320
        %v5459 = vadd.f32 %v5261, %v5320
        %v5460 = vadd.f32 %v5262, %v5320
        %v5461 = vadd.f32 %v5263, %v5320
        %v5462 = vadd.f32 %v5264, %v5320
        %v5463 = vadd.f32 %v5265, %v5320
        %v5464 = vadd.f32 %v5266, %v5320
        %v5465 = vadd.f32 %v5267, %v5320
        %v5466 = vadd.f32 %v5268, %v5320
        %v5467 = vadd.f32 %v5269, %v5320
        %v5468 = vadd.f32 %v5270, %v5320
        %v5469 = vadd.f32 %v5271, %v5320
        %v5470 = vadd.f32 %v5272, %v5320
        %v5471 = vadd.f32 %v5273, %v5320
        %v5472 = vadd.f32 %v5274, %v5320
        %v5473 = vadd.f32 %v5275, %v5320
        %v5474 = vadd.f32 %v5276, %v5320
        %v5475 = vadd.f32 %v5277, %v5320
        %v5476 = vadd.f32 %v5278, %v5320
        %v5477 = vadd.f32 %v5279, %v5320
        %v5478 = vadd.f32 %v5280, %v5320
        %v5479 = vadd.f32 %v5281, %v5320
        %v5480 = vadd.f32 %v5282, %v5320
        %v5481 = vadd.f32 %v5283, %v5320
        %v5482 = vadd.f32 %v5284, %v5320
        %v5483 = vadd.f32 %v5285, %v5320
        %v5484 = vadd.f32 %v5286, %v5320
        %v5485 = vadd.f32 %v5287, %v5320
        %v5486 = vadd.f32 %v5288, %v5320
        %v5487 = vadd.f32 %v5289, %v5320
        %v5488 = vadd.f32 %v5290, %v5320
        %v5489 = vadd.f32 %v5291, %v5320
        %v5490 = vadd.f32 %v5292, %v5320
        %v5491 = vadd.f32 %v5293, %v5320
        %v5492 = vadd.f32 %v5294, %v5320
        %v5493 = vadd.f32 %v5295, %v5320
        %v5494 = vadd.f32 %v5296, %v5320
        %v5495 = vadd.f32 %v5297, %v5320
        %v5496 = vadd.f32 %v5298, %v5320
        %v5497 = vadd.f32 %v5299, %v5320
        %v5498 = vadd.f32 %v5300, %v5320
        %v5499 = vadd.f32 %v5301, %v5320
        %v5500 = vadd.f32 %v5302, %v5320
        %v5501 = vadd.f32 %v5303, %v5320
        %v5502 = vadd.f32 %v5304, %v5320
        %v5503 = vadd.f32 %v5305, %v5320
        %v5504 = vadd.f32 %v5306, %v5320
        %v5505 = vadd.f32 %v5307, %v5320
        %v5506 = vadd.f32 %v5308, %v5320
        %v5507 = vadd.f32 %v5309, %v5320
        %v5508 = vadd.f32 %v5310, %v5320
        %v5509 = vadd.f32 %v5311, %v5320
        %v5510 = vadd.f32 %v5312, %v5320
        %v5511 = vadd.f32 %v5313, %v5320
        %v5512 = vadd.f32 %v5314, %v5320
        %v5513 = vadd.f32 %v5315, %v5320
        %v5514 = vadd.f32 %v5316, %v5320
        %v5515 = vadd.f32 %v5317, %v5320
        %v5516 = vadd.f32 %v5318, %v5320
        %v5517 = vadd.f32 %v5319, %v5320
        %v5518 = vrcp.pop %v5321
        %v5519 = vrcp.pop %v5322
        %v5520 = vrcp.pop %v5323
        %v5521 = vrcp.pop %v5324
        %v5522 = vrcp.pop %v5325
        %v5523 = vrcp.pop %v5326
        %v5524 = vrcp.pop %v5327
        %v5525 = vrcp.pop %v5328
        %v5526 = vrcp.pop %v5329
        %v5527 = vrcp.pop %v5330
        %v5528 = vrcp.pop %v5331
        %v5529 = vrcp.pop %v5332
        %v5530 = vrcp.pop %v5333
        %v5531 = vrcp.pop %v5334
        %v5532 = vrcp.pop %v5335
        %v5533 = vrcp.pop %v5336
        %v5534 = vrcp.pop %v5337
        %v5535 = vrcp.pop %v5338
        %v5536 = vrcp.pop %v5339
        %v5537 = vrcp.pop %v5340
        %v5538 = vrcp.pop %v5341
        %v5539 = vrcp.pop %v5342
        %v5540 = vrcp.pop %v5343
        %v5541 = vrcp.pop %v5344
        %v5542 = vrcp.pop %v5345
        %v5543 = vrcp.pop %v5346
        %v5544 = vrcp.pop %v5347
        %v5545 = vrcp.pop %v5348
        %v5546 = vrcp.pop %v5349
        %v5547 = vrcp.pop %v5350
        %v5548 = vrcp.pop %v5351
        %v5549 = vrcp.pop %v5352
        %v5550 = vrcp.pop %v5353
        %v5551 = vrcp.pop %v5354
        %v5552 = vrcp.pop %v5355
        %v5553 = vrcp.pop %v5356
        %v5554 = vrcp.pop %v5357
        %v5555 = vrcp.pop %v5358
        %v5556 = vrcp.pop %v5359
        %v5557 = vrcp.pop %v5360
        %v5558 = vrcp.pop %v5361
        %v5559 = vrcp.pop %v5362
        %v5560 = vrcp.pop %v5363
        %v5561 = vrcp.pop %v5364
        %v5562 = vrcp.pop %v5365
        %v5563 = vrcp.pop %v5366
        %v5564 = vrcp.pop %v5367
        %v5565 = vrcp.pop %v5368
        %v5566 = vrcp.pop %v5369
        %v5567 = vrcp.pop %v5370
        %v5568 = vrcp.pop %v5371
        %v5569 = vrcp.pop %v5372
        %v5570 = vrcp.pop %v5373
        %v5571 = vrcp.pop %v5374
        %v5572 = vrcp.pop %v5375
        %v5573 = vrcp.pop %v5376
        %v5574 = vrcp.pop %v5377
        %v5575 = vrcp.pop %v5378
        %v5576 = vrcp.pop %v5379
        %v5577 = vrcp.pop %v5380
        %v5578 = vrcp.pop %v5381
        %v5579 = vrcp.pop %v5382
        %v5580 = vrcp.pop %v5383
        %v5581 = vrcp.pop %v5384
        %v5582 = vrcp.pop %v5385
        %v5583 = vrcp.pop %v5386
        %v5584 = vrcp.pop %v5387
        %v5585 = vrcp.pop %v5388
        %v5586 = vrcp.pop %v5389
        %v5587 = vrcp.pop %v5390
        %v5588 = vrcp.pop %v5391
        %v5589 = vrcp.pop %v5392
        %v5590 = vrcp.pop %v5393
        %v5591 = vrcp.pop %v5394
        %v5592 = vrcp.pop %v5395
        %v5593 = vrcp.pop %v5396
        %v5594 = vrcp.pop %v5397
        %v5595 = vrcp.pop %v5398
        %v5596 = vrcp.pop %v5399
        %v5597 = vrcp.pop %v5400
        %v5598 = vrcp.pop %v5401
        %v5599 = vrcp.pop %v5402
        %v5600 = vrcp.pop %v5403
        %v5601 = vrcp.pop %v5404
        %v5602 = vrcp.pop %v5405
        %v5603 = vrcp.pop %v5406
        %v5604 = vrcp.pop %v5407
        %v5605 = vrcp.pop %v5408
        %v5606 = vrcp.pop %v5409
        %v5607 = vrcp.pop %v5410
        %v5608 = vrcp.pop %v5411
        %v5609 = vrcp.pop %v5412
        %v5610 = vrcp.pop %v5413
        %v5611 = vrcp.pop %v5414
        %v5612 = vrcp.pop %v5415
        %v5613 = vrcp.pop %v5416
        %v5614 = vrcp.pop %v5417
        %v5615 = vrcp.pop %v5418
        %v5616 = vrcp.pop %v5419
        %v5617 = vrcp.pop %v5420
        %v5618 = vrcp.pop %v5421
        %v5619 = vrcp.pop %v5422
        %v5620 = vrcp.pop %v5423
        %v5621 = vrcp.pop %v5424
        %v5622 = vrcp.pop %v5425
        %v5623 = vrcp.pop %v5426
        %v5624 = vrcp.pop %v5427
        %v5625 = vrcp.pop %v5428
        %v5626 = vrcp.pop %v5429
        %v5627 = vrcp.pop %v5430
        %v5628 = vrcp.pop %v5431
        %v5629 = vrcp.pop %v5432
        %v5630 = vrcp.pop %v5433
        %v5631 = vrcp.pop %v5434
        %v5632 = vrcp.pop %v5435
        %v5633 = vrcp.pop %v5436
        %v5634 = vrcp.pop %v5437
        %v5635 = vrcp.pop %v5438
        %v5636 = vrcp.pop %v5439
        %v5637 = vrcp.pop %v5440
        %v5638 = vrcp.pop %v5441
        %v5639 = vrcp.pop %v5442
        %v5640 = vrcp.pop %v5443
        %v5641 = vrcp.pop %v5444
        %v5642 = vrcp.pop %v5445
        %v5643 = vrcp.pop %v5446
        %v5644 = vrcp.pop %v5447
        %v5645 = vrcp.pop %v5448
        %v5646 = vrcp.pop %v5449
        %v5647 = vrcp.pop %v5450
        %v5648 = vrcp.pop %v5451
        %v5649 = vrcp.pop %v5452
        %v5650 = vrcp.pop %v5453
        %v5651 = vrcp.pop %v5454
        %v5652 = vrcp.pop %v5455
        %v5653 = vrcp.pop %v5456
        %v5654 = vrcp.pop %v5457
        %v5655 = vrcp.pop %v5458
        %v5656 = vrcp.pop %v5459
        %v5657 = vrcp.pop %v5460
        %v5658 = vrcp.pop %v5461
        %v5659 = vrcp.pop %v5462
        %v5660 = vrcp.pop %v5463
        %v5661 = vrcp.pop %v5464
        %v5662 = vrcp.pop %v5465
        %v5663 = vrcp.pop %v5466
        %v5664 = vrcp.pop %v5467
        %v5665 = vrcp.pop %v5468
        %v5666 = vrcp.pop %v5469
        %v5667 = vrcp.pop %v5470
        %v5668 = vrcp.pop %v5471
        %v5669 = vrcp.pop %v5472
        %v5670 = vrcp.pop %v5473
        %v5671 = vrcp.pop %v5474
        %v5672 = vrcp.pop %v5475
        %v5673 = vrcp.pop %v5476
        %v5674 = vrcp.pop %v5477
        %v5675 = vrcp.pop %v5478
        %v5676 = vrcp.pop %v5479
        %v5677 = vrcp.pop %v5480
        %v5678 = vrcp.pop %v5481
        %v5679 = vrcp.pop %v5482
        %v5680 = vrcp.pop %v5483
        %v5681 = vrcp.pop %v5484
        %v5682 = vrcp.pop %v5485
        %v5683 = vrcp.pop %v5486
        %v5684 = vrcp.pop %v5487
        %v5685 = vrcp.pop %v5488
        %v5686 = vrcp.pop %v5489
        %v5687 = vrcp.pop %v5490
        %v5688 = vrcp.pop %v5491
        %v5689 = vrcp.pop %v5492
        %v5690 = vrcp.pop %v5493
        %v5691 = vrcp.pop %v5494
        %v5692 = vrcp.pop %v5495
        %v5693 = vrcp.pop %v5496
        %v5694 = vrcp.pop %v5497
        %v5695 = vrcp.pop %v5498
        %v5696 = vrcp.pop %v5499
        %v5697 = vrcp.pop %v5500
        %v5698 = vrcp.pop %v5501
        %v5699 = vrcp.pop %v5502
        %v5700 = vrcp.pop %v5503
        %v5701 = vrcp.pop %v5504
        %v5702 = vrcp.pop %v5505
        %v5703 = vrcp.pop %v5506
        %v5704 = vrcp.pop %v5507
        %v5705 = vrcp.pop %v5508
        %v5706 = vrcp.pop %v5509
        %v5707 = vrcp.pop %v5510
        %v5708 = vrcp.pop %v5511
        %v5709 = vrcp.pop %v5512
        %v5710 = vrcp.pop %v5513
        %v5711 = vrcp.pop %v5514
        %v5712 = vrcp.pop %v5515
        %v5713 = vrcp.pop %v5516
        %v5714 = vrcp.pop %v5517
        %v5715 = vmul.f32 %v5123, %v5518
        %v5716 = vmul.f32 %v5124, %v5519
        %v5717 = vmul.f32 %v5125, %v5520
        %v5718 = vmul.f32 %v5126, %v5521
        %v5719 = vmul.f32 %v5127, %v5522
        %v5720 = vmul.f32 %v5128, %v5523
        %v5721 = vmul.f32 %v5129, %v5524
        %v5722 = vmul.f32 %v5130, %v5525
        %v5723 = vmul.f32 %v5131, %v5526
        %v5724 = vmul.f32 %v5132, %v5527
        %v5725 = vmul.f32 %v5133, %v5528
        %v5726 = vmul.f32 %v5134, %v5529
        %v5727 = vmul.f32 %v5135, %v5530
        %v5728 = vmul.f32 %v5136, %v5531
        %v5729 = vmul.f32 %v5137, %v5532
        %v5730 = vmul.f32 %v5138, %v5533
        %v5731 = vmul.f32 %v5139, %v5534
        %v5732 = vmul.f32 %v5140, %v5535
        %v5733 = vmul.f32 %v5141, %v5536
        %v5734 = vmul.f32 %v5142, %v5537
        %v5735 = vmul.f32 %v5143, %v5538
        %v5736 = vmul.f32 %v5144, %v5539
        %v5737 = vmul.f32 %v5145, %v5540
        %v5738 = vmul.f32 %v5146, %v5541
        %v5739 = vmul.f32 %v5147, %v5542
        %v5740 = vmul.f32 %v5148, %v5543
        %v5741 = vmul.f32 %v5149, %v5544
        %v5742 = vmul.f32 %v5150, %v5545
        %v5743 = vmul.f32 %v5151, %v5546
        %v5744 = vmul.f32 %v5152, %v5547
        %v5745 = vmul.f32 %v5153, %v5548
        %v5746 = vmul.f32 %v5154, %v5549
        %v5747 = vmul.f32 %v5155, %v5550
        %v5748 = vmul.f32 %v5156, %v5551
        %v5749 = vmul.f32 %v5157, %v5552
        %v5750 = vmul.f32 %v5158, %v5553
        %v5751 = vmul.f32 %v5159, %v5554
        %v5752 = vmul.f32 %v5160, %v5555
        %v5753 = vmul.f32 %v5161, %v5556
        %v5754 = vmul.f32 %v5162, %v5557
        %v5755 = vmul.f32 %v5163, %v5558
        %v5756 = vmul.f32 %v5164, %v5559
        %v5757 = vmul.f32 %v5165, %v5560
        %v5758 = vmul.f32 %v5166, %v5561
        %v5759 = vmul.f32 %v5167, %v5562
        %v5760 = vmul.f32 %v5168, %v5563
        %v5761 = vmul.f32 %v5169, %v5564
        %v5762 = vmul.f32 %v5170, %v5565
        %v5763 = vmul.f32 %v5171, %v5566
        %v5764 = vmul.f32 %v5172, %v5567
        %v5765 = vmul.f32 %v5173, %v5568
        %v5766 = vmul.f32 %v5174, %v5569
        %v5767 = vmul.f32 %v5175, %v5570
        %v5768 = vmul.f32 %v5176, %v5571
        %v5769 = vmul.f32 %v5177, %v5572
        %v5770 = vmul.f32 %v5178, %v5573
        %v5771 = vmul.f32 %v5179, %v5574
        %v5772 = vmul.f32 %v5180, %v5575
        %v5773 = vmul.f32 %v5181, %v5576
        %v5774 = vmul.f32 %v5182, %v5577
        %v5775 = vmul.f32 %v5183, %v5578
        %v5776 = vmul.f32 %v5184, %v5579
        %v5777 = vmul.f32 %v5185, %v5580
        %v5778 = vmul.f32 %v5186, %v5581
        %v5779 = vmul.f32 %v5187, %v5582
        %v5780 = vmul.f32 %v5188, %v5583
        %v5781 = vmul.f32 %v5189, %v5584
        %v5782 = vmul.f32 %v5190, %v5585
        %v5783 = vmul.f32 %v5191, %v5586
        %v5784 = vmul.f32 %v5192, %v5587
        %v5785 = vmul.f32 %v5193, %v5588
        %v5786 = vmul.f32 %v5194, %v5589
        %v5787 = vmul.f32 %v5195, %v5590
        %v5788 = vmul.f32 %v5196, %v5591
        %v5789 = vmul.f32 %v5197, %v5592
        %v5790 = vmul.f32 %v5198, %v5593
        %v5791 = vmul.f32 %v5199, %v5594
        %v5792 = vmul.f32 %v5200, %v5595
        %v5793 = vmul.f32 %v5201, %v5596
        %v5794 = vmul.f32 %v5202, %v5597
        %v5795 = vmul.f32 %v5203, %v5598
        %v5796 = vmul.f32 %v5204, %v5599
        %v5797 = vmul.f32 %v5205, %v5600
        %v5798 = vmul.f32 %v5206, %v5601
        %v5799 = vmul.f32 %v5207, %v5602
        %v5800 = vmul.f32 %v5208, %v5603
        %v5801 = vmul.f32 %v5209, %v5604
        %v5802 = vmul.f32 %v5210, %v5605
        %v5803 = vmul.f32 %v5211, %v5606
        %v5804 = vmul.f32 %v5212, %v5607
        %v5805 = vmul.f32 %v5213, %v5608
        %v5806 = vmul.f32 %v5214, %v5609
        %v5807 = vmul.f32 %v5215, %v5610
        %v5808 = vmul.f32 %v5216, %v5611
        %v5809 = vmul.f32 %v5217, %v5612
        %v5810 = vmul.f32 %v5218, %v5613
        %v5811 = vmul.f32 %v5219, %v5614
        %v5812 = vmul.f32 %v5220, %v5615
        %v5813 = vmul.f32 %v5221, %v5616
        %v5814 = vmul.f32 %v5222, %v5617
        %v5815 = vmul.f32 %v5223, %v5618
        %v5816 = vmul.f32 %v5224, %v5619
        %v5817 = vmul.f32 %v5225, %v5620
        %v5818 = vmul.f32 %v5226, %v5621
        %v5819 = vmul.f32 %v5227, %v5622
        %v5820 = vmul.f32 %v5228, %v5623
        %v5821 = vmul.f32 %v5229, %v5624
        %v5822 = vmul.f32 %v5230, %v5625
        %v5823 = vmul.f32 %v5231, %v5626
        %v5824 = vmul.f32 %v5232, %v5627
        %v5825 = vmul.f32 %v5233, %v5628
        %v5826 = vmul.f32 %v5234, %v5629
        %v5827 = vmul.f32 %v5235, %v5630
        %v5828 = vmul.f32 %v5236, %v5631
        %v5829 = vmul.f32 %v5237, %v5632
        %v5830 = vmul.f32 %v5238, %v5633
        %v5831 = vmul.f32 %v5239, %v5634
        %v5832 = vmul.f32 %v5240, %v5635
        %v5833 = vmul.f32 %v5241, %v5636
        %v5834 = vmul.f32 %v5242, %v5637
        %v5835 = vmul.f32 %v5243, %v5638
        %v5836 = vmul.f32 %v5244, %v5639
        %v5837 = vmul.f32 %v5245, %v5640
        %v5838 = vmul.f32 %v5246, %v5641
        %v5839 = vmul.f32 %v5247, %v5642
        %v5840 = vmul.f32 %v5248, %v5643
        %v5841 = vmul.f32 %v5249, %v5644
        %v5842 = vmul.f32 %v5250, %v5645
        %v5843 = vmul.f32 %v5251, %v5646
        %v5844 = vmul.f32 %v5252, %v5647
        %v5845 = vmul.f32 %v5253, %v5648
        %v5846 = vmul.f32 %v5254, %v5649
        %v5847 = vmul.f32 %v5255, %v5650
        %v5848 = vmul.f32 %v5256, %v5651
        %v5849 = vmul.f32 %v5257, %v5652
        %v5850 = vmul.f32 %v5258, %v5653
        %v5851 = vmul.f32 %v5259, %v5654
        %v5852 = vmul.f32 %v5260, %v5655
        %v5853 = vmul.f32 %v5261, %v5656
        %v5854 = vmul.f32 %v5262, %v5657
        %v5855 = vmul.f32 %v5263, %v5658
        %v5856 = vmul.f32 %v5264, %v5659
        %v5857 = vmul.f32 %v5265, %v5660
        %v5858 = vmul.f32 %v5266, %v5661
        %v5859 = vmul.f32 %v5267, %v5662
        %v5860 = vmul.f32 %v5268, %v5663
        %v5861 = vmul.f32 %v5269, %v5664
        %v5862 = vmul.f32 %v5270, %v5665
        %v5863 = vmul.f32 %v5271, %v5666
        %v5864 = vmul.f32 %v5272, %v5667
        %v5865 = vmul.f32 %v5273, %v5668
        %v5866 = vmul.f32 %v5274, %v5669
        %v5867 = vmul.f32 %v5275, %v5670
        %v5868 = vmul.f32 %v5276, %v5671
        %v5869 = vmul.f32 %v5277, %v5672
        %v5870 = vmul.f32 %v5278, %v5673
        %v5871 = vmul.f32 %v5279, %v5674
        %v5872 = vmul.f32 %v5280, %v5675
        %v5873 = vmul.f32 %v5281, %v5676
        %v5874 = vmul.f32 %v5282, %v5677
        %v5875 = vmul.f32 %v5283, %v5678
        %v5876 = vmul.f32 %v5284, %v5679
        %v5877 = vmul.f32 %v5285, %v5680
        %v5878 = vmul.f32 %v5286, %v5681
        %v5879 = vmul.f32 %v5287, %v5682
        %v5880 = vmul.f32 %v5288, %v5683
        %v5881 = vmul.f32 %v5289, %v5684
        %v5882 = vmul.f32 %v5290, %v5685
        %v5883 = vmul.f32 %v5291, %v5686
        %v5884 = vmul.f32 %v5292, %v5687
        %v5885 = vmul.f32 %v5293, %v5688
        %v5886 = vmul.f32 %v5294, %v5689
        %v5887 = vmul.f32 %v5295, %v5690
        %v5888 = vmul.f32 %v5296, %v5691
        %v5889 = vmul.f32 %v5297, %v5692
        %v5890 = vmul.f32 %v5298, %v5693
        %v5891 = vmul.f32 %v5299, %v5694
        %v5892 = vmul.f32 %v5300, %v5695
        %v5893 = vmul.f32 %v5301, %v5696
        %v5894 = vmul.f32 %v5302, %v5697
        %v5895 = vmul.f32 %v5303, %v5698
        %v5896 = vmul.f32 %v5304, %v5699
        %v5897 = vmul.f32 %v5305, %v5700
        %v5898 = vmul.f32 %v5306, %v5701
        %v5899 = vmul.f32 %v5307, %v5702
        %v5900 = vmul.f32 %v5308, %v5703
        %v5901 = vmul.f32 %v5309, %v5704
        %v5902 = vmul.f32 %v5310, %v5705
        %v5903 = vmul.f32 %v5311, %v5706
        %v5904 = vmul.f32 %v5312, %v5707
        %v5905 = vmul.f32 %v5313, %v5708
        %v5906 = vmul.f32 %v5314, %v5709
        %v5907 = vmul.f32 %v5315, %v5710
        %v5908 = vmul.f32 %v5316, %v5711
        %v5909 = vmul.f32 %v5317, %v5712
        %v5910 = vmul.f32 %v5318, %v5713
        %v5911 = vmul.f32 %v5319, %v5714
        %v5912 = vpack.c.bf16 %v5715, %v5715
        %v5913 = vpack.c.bf16 %v5716, %v5716
        %v5914 = vpack.c.bf16 %v5717, %v5717
        %v5915 = vpack.c.bf16 %v5718, %v5718
        %v5916 = vpack.c.bf16 %v5719, %v5719
        %v5917 = vpack.c.bf16 %v5720, %v5720
        %v5918 = vpack.c.bf16 %v5721, %v5721
        %v5919 = vpack.c.bf16 %v5722, %v5722
        %v5920 = vpack.c.bf16 %v5723, %v5723
        %v5921 = vpack.c.bf16 %v5724, %v5724
        %v5922 = vpack.c.bf16 %v5725, %v5725
        %v5923 = vpack.c.bf16 %v5726, %v5726
        %v5924 = vpack.c.bf16 %v5727, %v5727
        %v5925 = vpack.c.bf16 %v5728, %v5728
        %v5926 = vpack.c.bf16 %v5729, %v5729
        %v5927 = vpack.c.bf16 %v5730, %v5730
        %v5928 = vpack.c.bf16 %v5731, %v5731
        %v5929 = vpack.c.bf16 %v5732, %v5732
        %v5930 = vpack.c.bf16 %v5733, %v5733
        %v5931 = vpack.c.bf16 %v5734, %v5734
        %v5932 = vpack.c.bf16 %v5735, %v5735
        %v5933 = vpack.c.bf16 %v5736, %v5736
        %v5934 = vpack.c.bf16 %v5737, %v5737
        %v5935 = vpack.c.bf16 %v5738, %v5738
        %v5936 = vpack.c.bf16 %v5739, %v5739
        %v5937 = vpack.c.bf16 %v5740, %v5740
        %v5938 = vpack.c.bf16 %v5741, %v5741
        %v5939 = vpack.c.bf16 %v5742, %v5742
        %v5940 = vpack.c.bf16 %v5743, %v5743
        %v5941 = vpack.c.bf16 %v5744, %v5744
        %v5942 = vpack.c.bf16 %v5745, %v5745
        %v5943 = vpack.c.bf16 %v5746, %v5746
        %v5944 = vpack.c.bf16 %v5747, %v5747
        %v5945 = vpack.c.bf16 %v5748, %v5748
        %v5946 = vpack.c.bf16 %v5749, %v5749
        %v5947 = vpack.c.bf16 %v5750, %v5750
        %v5948 = vpack.c.bf16 %v5751, %v5751
        %v5949 = vpack.c.bf16 %v5752, %v5752
        %v5950 = vpack.c.bf16 %v5753, %v5753
        %v5951 = vpack.c.bf16 %v5754, %v5754
        %v5952 = vpack.c.bf16 %v5755, %v5755
        %v5953 = vpack.c.bf16 %v5756, %v5756
        %v5954 = vpack.c.bf16 %v5757, %v5757
        %v5955 = vpack.c.bf16 %v5758, %v5758
        %v5956 = vpack.c.bf16 %v5759, %v5759
        %v5957 = vpack.c.bf16 %v5760, %v5760
        %v5958 = vpack.c.bf16 %v5761, %v5761
        %v5959 = vpack.c.bf16 %v5762, %v5762
        %v5960 = vpack.c.bf16 %v5763, %v5763
        %v5961 = vpack.c.bf16 %v5764, %v5764
        %v5962 = vpack.c.bf16 %v5765, %v5765
        %v5963 = vpack.c.bf16 %v5766, %v5766
        %v5964 = vpack.c.bf16 %v5767, %v5767
        %v5965 = vpack.c.bf16 %v5768, %v5768
        %v5966 = vpack.c.bf16 %v5769, %v5769
        %v5967 = vpack.c.bf16 %v5770, %v5770
        %v5968 = vpack.c.bf16 %v5771, %v5771
        %v5969 = vpack.c.bf16 %v5772, %v5772
        %v5970 = vpack.c.bf16 %v5773, %v5773
        %v5971 = vpack.c.bf16 %v5774, %v5774
        %v5972 = vpack.c.bf16 %v5775, %v5775
        %v5973 = vpack.c.bf16 %v5776, %v5776
        %v5974 = vpack.c.bf16 %v5777, %v5777
        %v5975 = vpack.c.bf16 %v5778, %v5778
        %v5976 = vpack.c.bf16 %v5779, %v5779
        %v5977 = vpack.c.bf16 %v5780, %v5780
        %v5978 = vpack.c.bf16 %v5781, %v5781
        %v5979 = vpack.c.bf16 %v5782, %v5782
        %v5980 = vpack.c.bf16 %v5783, %v5783
        %v5981 = vpack.c.bf16 %v5784, %v5784
        %v5982 = vpack.c.bf16 %v5785, %v5785
        %v5983 = vpack.c.bf16 %v5786, %v5786
        %v5984 = vpack.c.bf16 %v5787, %v5787
        %v5985 = vpack.c.bf16 %v5788, %v5788
        %v5986 = vpack.c.bf16 %v5789, %v5789
        %v5987 = vpack.c.bf16 %v5790, %v5790
        %v5988 = vpack.c.bf16 %v5791, %v5791
        %v5989 = vpack.c.bf16 %v5792, %v5792
        %v5990 = vpack.c.bf16 %v5793, %v5793
        %v5991 = vpack.c.bf16 %v5794, %v5794
        %v5992 = vpack.c.bf16 %v5795, %v5795
        %v5993 = vpack.c.bf16 %v5796, %v5796
        %v5994 = vpack.c.bf16 %v5797, %v5797
        %v5995 = vpack.c.bf16 %v5798, %v5798
        %v5996 = vpack.c.bf16 %v5799, %v5799
        %v5997 = vpack.c.bf16 %v5800, %v5800
        %v5998 = vpack.c.bf16 %v5801, %v5801
        %v5999 = vpack.c.bf16 %v5802, %v5802
        %v6000 = vpack.c.bf16 %v5803, %v5803
        %v6001 = vpack.c.bf16 %v5804, %v5804
        %v6002 = vpack.c.bf16 %v5805, %v5805
        %v6003 = vpack.c.bf16 %v5806, %v5806
        %v6004 = vpack.c.bf16 %v5807, %v5807
        %v6005 = vpack.c.bf16 %v5808, %v5808
        %v6006 = vpack.c.bf16 %v5809, %v5809
        %v6007 = vpack.c.bf16 %v5810, %v5810
        %v6008 = vpack.c.bf16 %v5811, %v5811
        %v6009 = vpack.c.bf16 %v5812, %v5812
        %v6010 = vpack.c.bf16 %v5813, %v5813
        %v6011 = vpack.c.bf16 %v5814, %v5814
        %v6012 = vpack.c.bf16 %v5815, %v5815
        %v6013 = vpack.c.bf16 %v5816, %v5816
        %v6014 = vpack.c.bf16 %v5817, %v5817
        %v6015 = vpack.c.bf16 %v5818, %v5818
        %v6016 = vpack.c.bf16 %v5819, %v5819
        %v6017 = vpack.c.bf16 %v5820, %v5820
        %v6018 = vpack.c.bf16 %v5821, %v5821
        %v6019 = vpack.c.bf16 %v5822, %v5822
        %v6020 = vpack.c.bf16 %v5823, %v5823
        %v6021 = vpack.c.bf16 %v5824, %v5824
        %v6022 = vpack.c.bf16 %v5825, %v5825
        %v6023 = vpack.c.bf16 %v5826, %v5826
        %v6024 = vpack.c.bf16 %v5827, %v5827
        %v6025 = vpack.c.bf16 %v5828, %v5828
        %v6026 = vpack.c.bf16 %v5829, %v5829
        %v6027 = vpack.c.bf16 %v5830, %v5830
        %v6028 = vpack.c.bf16 %v5831, %v5831
        %v6029 = vpack.c.bf16 %v5832, %v5832
        %v6030 = vpack.c.bf16 %v5833, %v5833
        %v6031 = vpack.c.bf16 %v5834, %v5834
        %v6032 = vpack.c.bf16 %v5835, %v5835
        %v6033 = vpack.c.bf16 %v5836, %v5836
        %v6034 = vpack.c.bf16 %v5837, %v5837
        %v6035 = vpack.c.bf16 %v5838, %v5838
        %v6036 = vpack.c.bf16 %v5839, %v5839
        %v6037 = vpack.c.bf16 %v5840, %v5840
        %v6038 = vpack.c.bf16 %v5841, %v5841
        %v6039 = vpack.c.bf16 %v5842, %v5842
        %v6040 = vpack.c.bf16 %v5843, %v5843
        %v6041 = vpack.c.bf16 %v5844, %v5844
        %v6042 = vpack.c.bf16 %v5845, %v5845
        %v6043 = vpack.c.bf16 %v5846, %v5846
        %v6044 = vpack.c.bf16 %v5847, %v5847
        %v6045 = vpack.c.bf16 %v5848, %v5848
        %v6046 = vpack.c.bf16 %v5849, %v5849
        %v6047 = vpack.c.bf16 %v5850, %v5850
        %v6048 = vpack.c.bf16 %v5851, %v5851
        %v6049 = vpack.c.bf16 %v5852, %v5852
        %v6050 = vpack.c.bf16 %v5853, %v5853
        %v6051 = vpack.c.bf16 %v5854, %v5854
        %v6052 = vpack.c.bf16 %v5855, %v5855
        %v6053 = vpack.c.bf16 %v5856, %v5856
        %v6054 = vpack.c.bf16 %v5857, %v5857
        %v6055 = vpack.c.bf16 %v5858, %v5858
        %v6056 = vpack.c.bf16 %v5859, %v5859
        %v6057 = vpack.c.bf16 %v5860, %v5860
        %v6058 = vpack.c.bf16 %v5861, %v5861
        %v6059 = vpack.c.bf16 %v5862, %v5862
        %v6060 = vpack.c.bf16 %v5863, %v5863
        %v6061 = vpack.c.bf16 %v5864, %v5864
        %v6062 = vpack.c.bf16 %v5865, %v5865
        %v6063 = vpack.c.bf16 %v5866, %v5866
        %v6064 = vpack.c.bf16 %v5867, %v5867
        %v6065 = vpack.c.bf16 %v5868, %v5868
        %v6066 = vpack.c.bf16 %v5869, %v5869
        %v6067 = vpack.c.bf16 %v5870, %v5870
        %v6068 = vpack.c.bf16 %v5871, %v5871
        %v6069 = vpack.c.bf16 %v5872, %v5872
        %v6070 = vpack.c.bf16 %v5873, %v5873
        %v6071 = vpack.c.bf16 %v5874, %v5874
        %v6072 = vpack.c.bf16 %v5875, %v5875
        %v6073 = vpack.c.bf16 %v5876, %v5876
        %v6074 = vpack.c.bf16 %v5877, %v5877
        %v6075 = vpack.c.bf16 %v5878, %v5878
        %v6076 = vpack.c.bf16 %v5879, %v5879
        %v6077 = vpack.c.bf16 %v5880, %v5880
        %v6078 = vpack.c.bf16 %v5881, %v5881
        %v6079 = vpack.c.bf16 %v5882, %v5882
        %v6080 = vpack.c.bf16 %v5883, %v5883
        %v6081 = vpack.c.bf16 %v5884, %v5884
        %v6082 = vpack.c.bf16 %v5885, %v5885
        %v6083 = vpack.c.bf16 %v5886, %v5886
        %v6084 = vpack.c.bf16 %v5887, %v5887
        %v6085 = vpack.c.bf16 %v5888, %v5888
        %v6086 = vpack.c.bf16 %v5889, %v5889
        %v6087 = vpack.c.bf16 %v5890, %v5890
        %v6088 = vpack.c.bf16 %v5891, %v5891
        %v6089 = vpack.c.bf16 %v5892, %v5892
        %v6090 = vpack.c.bf16 %v5893, %v5893
        %v6091 = vpack.c.bf16 %v5894, %v5894
        %v6092 = vpack.c.bf16 %v5895, %v5895
        %v6093 = vpack.c.bf16 %v5896, %v5896
        %v6094 = vpack.c.bf16 %v5897, %v5897
        %v6095 = vpack.c.bf16 %v5898, %v5898
        %v6096 = vpack.c.bf16 %v5899, %v5899
        %v6097 = vpack.c.bf16 %v5900, %v5900
        %v6098 = vpack.c.bf16 %v5901, %v5901
        %v6099 = vpack.c.bf16 %v5902, %v5902
        %v6100 = vpack.c.bf16 %v5903, %v5903
        %v6101 = vpack.c.bf16 %v5904, %v5904
        %v6102 = vpack.c.bf16 %v5905, %v5905
        %v6103 = vpack.c.bf16 %v5906, %v5906
        %v6104 = vpack.c.bf16 %v5907, %v5907
        %v6105 = vpack.c.bf16 %v5908, %v5908
        %v6106 = vpack.c.bf16 %v5909, %v5909
        %v6107 = vpack.c.bf16 %v5910, %v5910
        %v6108 = vpack.c.bf16 %v5911, %v5911
        %v6109 = vpack.c.bf16 %v4926, %v4926
        %v6110 = vpack.c.bf16 %v4927, %v4927
        %v6111 = vpack.c.bf16 %v4928, %v4928
        %v6112 = vpack.c.bf16 %v4929, %v4929
        %v6113 = vpack.c.bf16 %v4930, %v4930
        %v6114 = vpack.c.bf16 %v4931, %v4931
        %v6115 = vpack.c.bf16 %v4932, %v4932
        %v6116 = vpack.c.bf16 %v4933, %v4933
        %v6117 = vpack.c.bf16 %v4934, %v4934
        %v6118 = vpack.c.bf16 %v4935, %v4935
        %v6119 = vpack.c.bf16 %v4936, %v4936
        %v6120 = vpack.c.bf16 %v4937, %v4937
        %v6121 = vpack.c.bf16 %v4938, %v4938
        %v6122 = vpack.c.bf16 %v4939, %v4939
        %v6123 = vpack.c.bf16 %v4940, %v4940
        %v6124 = vpack.c.bf16 %v4941, %v4941
        %v6125 = vpack.c.bf16 %v4942, %v4942
        %v6126 = vpack.c.bf16 %v4943, %v4943
        %v6127 = vpack.c.bf16 %v4944, %v4944
        %v6128 = vpack.c.bf16 %v4945, %v4945
        %v6129 = vpack.c.bf16 %v4946, %v4946
        %v6130 = vpack.c.bf16 %v4947, %v4947
        %v6131 = vpack.c.bf16 %v4948, %v4948
        %v6132 = vpack.c.bf16 %v4949, %v4949
        %v6133 = vpack.c.bf16 %v4950, %v4950
        %v6134 = vpack.c.bf16 %v4951, %v4951
        %v6135 = vpack.c.bf16 %v4952, %v4952
        %v6136 = vpack.c.bf16 %v4953, %v4953
        %v6137 = vpack.c.bf16 %v4954, %v4954
        %v6138 = vpack.c.bf16 %v4955, %v4955
        %v6139 = vpack.c.bf16 %v4956, %v4956
        %v6140 = vpack.c.bf16 %v4957, %v4957
        %v6141 = vpack.c.bf16 %v4958, %v4958
        %v6142 = vpack.c.bf16 %v4959, %v4959
        %v6143 = vpack.c.bf16 %v4960, %v4960
        %v6144 = vpack.c.bf16 %v4961, %v4961
        %v6145 = vpack.c.bf16 %v4962, %v4962
        %v6146 = vpack.c.bf16 %v4963, %v4963
        %v6147 = vpack.c.bf16 %v4964, %v4964
        %v6148 = vpack.c.bf16 %v4965, %v4965
        %v6149 = vpack.c.bf16 %v4966, %v4966
        %v6150 = vpack.c.bf16 %v4967, %v4967
        %v6151 = vpack.c.bf16 %v4968, %v4968
        %v6152 = vpack.c.bf16 %v4969, %v4969
        %v6153 = vpack.c.bf16 %v4970, %v4970
        %v6154 = vpack.c.bf16 %v4971, %v4971
        %v6155 = vpack.c.bf16 %v4972, %v4972
        %v6156 = vpack.c.bf16 %v4973, %v4973
        %v6157 = vpack.c.bf16 %v4974, %v4974
        %v6158 = vpack.c.bf16 %v4975, %v4975
        %v6159 = vpack.c.bf16 %v4976, %v4976
        %v6160 = vpack.c.bf16 %v4977, %v4977
        %v6161 = vpack.c.bf16 %v4978, %v4978
        %v6162 = vpack.c.bf16 %v4979, %v4979
        %v6163 = vpack.c.bf16 %v4980, %v4980
        %v6164 = vpack.c.bf16 %v4981, %v4981
        %v6165 = vpack.c.bf16 %v4982, %v4982
        %v6166 = vpack.c.bf16 %v4983, %v4983
        %v6167 = vpack.c.bf16 %v4984, %v4984
        %v6168 = vpack.c.bf16 %v4985, %v4985
        %v6169 = vpack.c.bf16 %v4986, %v4986
        %v6170 = vpack.c.bf16 %v4987, %v4987
        %v6171 = vpack.c.bf16 %v4988, %v4988
        %v6172 = vpack.c.bf16 %v4989, %v4989
        %v6173 = vpack.c.bf16 %v4990, %v4990
        %v6174 = vpack.c.bf16 %v4991, %v4991
        %v6175 = vpack.c.bf16 %v4992, %v4992
        %v6176 = vpack.c.bf16 %v4993, %v4993
        %v6177 = vpack.c.bf16 %v4994, %v4994
        %v6178 = vpack.c.bf16 %v4995, %v4995
        %v6179 = vpack.c.bf16 %v4996, %v4996
        %v6180 = vpack.c.bf16 %v4997, %v4997
        %v6181 = vpack.c.bf16 %v4998, %v4998
        %v6182 = vpack.c.bf16 %v4999, %v4999
        %v6183 = vpack.c.bf16 %v5000, %v5000
        %v6184 = vpack.c.bf16 %v5001, %v5001
        %v6185 = vpack.c.bf16 %v5002, %v5002
        %v6186 = vpack.c.bf16 %v5003, %v5003
        %v6187 = vpack.c.bf16 %v5004, %v5004
        %v6188 = vpack.c.bf16 %v5005, %v5005
        %v6189 = vpack.c.bf16 %v5006, %v5006
        %v6190 = vpack.c.bf16 %v5007, %v5007
        %v6191 = vpack.c.bf16 %v5008, %v5008
        %v6192 = vpack.c.bf16 %v5009, %v5009
        %v6193 = vpack.c.bf16 %v5010, %v5010
        %v6194 = vpack.c.bf16 %v5011, %v5011
        %v6195 = vpack.c.bf16 %v5012, %v5012
        %v6196 = vpack.c.bf16 %v5013, %v5013
        %v6197 = vpack.c.bf16 %v5014, %v5014
        %v6198 = vpack.c.bf16 %v5015, %v5015
        %v6199 = vpack.c.bf16 %v5016, %v5016
        %v6200 = vpack.c.bf16 %v5017, %v5017
        %v6201 = vpack.c.bf16 %v5018, %v5018
        %v6202 = vpack.c.bf16 %v5019, %v5019
        %v6203 = vpack.c.bf16 %v5020, %v5020
        %v6204 = vpack.c.bf16 %v5021, %v5021
        %v6205 = vpack.c.bf16 %v5022, %v5022
        %v6206 = vpack.c.bf16 %v5023, %v5023
        %v6207 = vpack.c.bf16 %v5024, %v5024
        %v6208 = vpack.c.bf16 %v5025, %v5025
        %v6209 = vpack.c.bf16 %v5026, %v5026
        %v6210 = vpack.c.bf16 %v5027, %v5027
        %v6211 = vpack.c.bf16 %v5028, %v5028
        %v6212 = vpack.c.bf16 %v5029, %v5029
        %v6213 = vpack.c.bf16 %v5030, %v5030
        %v6214 = vpack.c.bf16 %v5031, %v5031
        %v6215 = vpack.c.bf16 %v5032, %v5032
        %v6216 = vpack.c.bf16 %v5033, %v5033
        %v6217 = vpack.c.bf16 %v5034, %v5034
        %v6218 = vpack.c.bf16 %v5035, %v5035
        %v6219 = vpack.c.bf16 %v5036, %v5036
        %v6220 = vpack.c.bf16 %v5037, %v5037
        %v6221 = vpack.c.bf16 %v5038, %v5038
        %v6222 = vpack.c.bf16 %v5039, %v5039
        %v6223 = vpack.c.bf16 %v5040, %v5040
        %v6224 = vpack.c.bf16 %v5041, %v5041
        %v6225 = vpack.c.bf16 %v5042, %v5042
        %v6226 = vpack.c.bf16 %v5043, %v5043
        %v6227 = vpack.c.bf16 %v5044, %v5044
        %v6228 = vpack.c.bf16 %v5045, %v5045
        %v6229 = vpack.c.bf16 %v5046, %v5046
        %v6230 = vpack.c.bf16 %v5047, %v5047
        %v6231 = vpack.c.bf16 %v5048, %v5048
        %v6232 = vpack.c.bf16 %v5049, %v5049
        %v6233 = vpack.c.bf16 %v5050, %v5050
        %v6234 = vpack.c.bf16 %v5051, %v5051
        %v6235 = vpack.c.bf16 %v5052, %v5052
        %v6236 = vpack.c.bf16 %v5053, %v5053
        %v6237 = vpack.c.bf16 %v5054, %v5054
        %v6238 = vpack.c.bf16 %v5055, %v5055
        %v6239 = vpack.c.bf16 %v5056, %v5056
        %v6240 = vpack.c.bf16 %v5057, %v5057
        %v6241 = vpack.c.bf16 %v5058, %v5058
        %v6242 = vpack.c.bf16 %v5059, %v5059
        %v6243 = vpack.c.bf16 %v5060, %v5060
        %v6244 = vpack.c.bf16 %v5061, %v5061
        %v6245 = vpack.c.bf16 %v5062, %v5062
        %v6246 = vpack.c.bf16 %v5063, %v5063
        %v6247 = vpack.c.bf16 %v5064, %v5064
        %v6248 = vpack.c.bf16 %v5065, %v5065
        %v6249 = vpack.c.bf16 %v5066, %v5066
        %v6250 = vpack.c.bf16 %v5067, %v5067
        %v6251 = vpack.c.bf16 %v5068, %v5068
        %v6252 = vpack.c.bf16 %v5069, %v5069
        %v6253 = vpack.c.bf16 %v5070, %v5070
        %v6254 = vpack.c.bf16 %v5071, %v5071
        %v6255 = vpack.c.bf16 %v5072, %v5072
        %v6256 = vpack.c.bf16 %v5073, %v5073
        %v6257 = vpack.c.bf16 %v5074, %v5074
        %v6258 = vpack.c.bf16 %v5075, %v5075
        %v6259 = vpack.c.bf16 %v5076, %v5076
        %v6260 = vpack.c.bf16 %v5077, %v5077
        %v6261 = vpack.c.bf16 %v5078, %v5078
        %v6262 = vpack.c.bf16 %v5079, %v5079
        %v6263 = vpack.c.bf16 %v5080, %v5080
        %v6264 = vpack.c.bf16 %v5081, %v5081
        %v6265 = vpack.c.bf16 %v5082, %v5082
        %v6266 = vpack.c.bf16 %v5083, %v5083
        %v6267 = vpack.c.bf16 %v5084, %v5084
        %v6268 = vpack.c.bf16 %v5085, %v5085
        %v6269 = vpack.c.bf16 %v5086, %v5086
        %v6270 = vpack.c.bf16 %v5087, %v5087
        %v6271 = vpack.c.bf16 %v5088, %v5088
        %v6272 = vpack.c.bf16 %v5089, %v5089
        %v6273 = vpack.c.bf16 %v5090, %v5090
        %v6274 = vpack.c.bf16 %v5091, %v5091
        %v6275 = vpack.c.bf16 %v5092, %v5092
        %v6276 = vpack.c.bf16 %v5093, %v5093
        %v6277 = vpack.c.bf16 %v5094, %v5094
        %v6278 = vpack.c.bf16 %v5095, %v5095
        %v6279 = vpack.c.bf16 %v5096, %v5096
        %v6280 = vpack.c.bf16 %v5097, %v5097
        %v6281 = vpack.c.bf16 %v5098, %v5098
        %v6282 = vpack.c.bf16 %v5099, %v5099
        %v6283 = vpack.c.bf16 %v5100, %v5100
        %v6284 = vpack.c.bf16 %v5101, %v5101
        %v6285 = vpack.c.bf16 %v5102, %v5102
        %v6286 = vpack.c.bf16 %v5103, %v5103
        %v6287 = vpack.c.bf16 %v5104, %v5104
        %v6288 = vpack.c.bf16 %v5105, %v5105
        %v6289 = vpack.c.bf16 %v5106, %v5106
        %v6290 = vpack.c.bf16 %v5107, %v5107
        %v6291 = vpack.c.bf16 %v5108, %v5108
        %v6292 = vpack.c.bf16 %v5109, %v5109
        %v6293 = vpack.c.bf16 %v5110, %v5110
        %v6294 = vpack.c.bf16 %v5111, %v5111
        %v6295 = vpack.c.bf16 %v5112, %v5112
        %v6296 = vpack.c.bf16 %v5113, %v5113
        %v6297 = vpack.c.bf16 %v5114, %v5114
        %v6298 = vpack.c.bf16 %v5115, %v5115
        %v6299 = vpack.c.bf16 %v5116, %v5116
        %v6300 = vpack.c.bf16 %v5117, %v5117
        %v6301 = vpack.c.bf16 %v5118, %v5118
        %v6302 = vpack.c.bf16 %v5119, %v5119
        %v6303 = vpack.c.bf16 %v5120, %v5120
        %v6304 = vpack.c.bf16 %v5121, %v5121
        %v6305 = vpack.c.bf16 %v5122, %v5122
        %6306 = vmatprep.subr.bf16.mxu0 %v6110
        %6307 = vmatpush1.bf16.xpose.msra.mxu0 %v6109
        %6308 = vmatprep.subr.bf16.mxu0 0
        %6309 = vmatpush1.bf16.xpose.msra.mxu0 0
        %6310 = vmatprep.subr.bf16.mxu0 0
        %6311 = vmatpush1.bf16.xpose.msra.mxu0 0
        %6312 = vmatprep.subr.bf16.mxu0 0
        %6313 = vmatpush1.bf16.xpose.msra.mxu0 0
        %6314 = vmatprep.subr.bf16.mxu0 0
        %6315 = vmatpush1.bf16.xpose.msra.mxu0 0
        %6316 = vmatprep.subr.bf16.mxu0 0
        %6317 = vmatpush1.bf16.xpose.msra.mxu0 0
        %6318 = vmatprep.subr.bf16.mxu0 0
        %6319 = vmatpush1.bf16.xpose.msra.mxu0 0
        %6320 = vmatprep.subr.bf16.mxu0 0
        %6321 = vmatpush1.bf16.xpose.msra.mxu0 0
        %6322 = vmatprep.subr.bf16.mxu0 0
        %6323 = vmatpush1.bf16.xpose.msra.mxu0 0
        %6324 = vmatprep.subr.bf16.mxu0 0
        %6325 = vmatpush1.bf16.xpose.msra.mxu0 0
        %6326 = vmatprep.subr.bf16.mxu0 0
        %6327 = vmatpush1.bf16.xpose.msra.mxu0 0
        %6328 = vmatprep.subr.bf16.mxu0 0
        %6329 = vmatpush1.bf16.xpose.msra.mxu0 0
        %6330 = vmatprep.subr.bf16.mxu0 0
        %6331 = vmatpush1.bf16.xpose.msra.mxu0 0
        %6332 = vmatprep.subr.bf16.mxu0 0
        %6333 = vmatpush1.bf16.xpose.msra.mxu0 0
        %6334 = vmatprep.subr.bf16.mxu0 0
        %6335 = vmatpush1.bf16.xpose.msra.mxu0 0
        %6336 = vmatprep.subr.bf16.mxu0 0
        %6337 = vmatpush1.bf16.xpose.msra.mxu0 0
        %6338 = vmatprep.mubr.bf16.mxu0 %v5913
        %6339 = vmatmul.mubr.bf16.gmra.mrb[0].mxu0 %v5912
        %v6340 = vpop.f32.mrb[0].mxu0
        %v6341 = vadd.f32 0.0, %v6340
        %v6342 = vpop.f32.mrb[0].mxu0
        %v6343 = vpop.f32.mrb[0].mxu0
        %v6344 = vpop.f32.mrb[0].mxu0
        %6345 = vdwg.mxu0
        %6346 = vmatprep.subr.bf16.mxu0 %v6112
        %6347 = vmatpush1.bf16.xpose.msra.mxu0 %v6111
        %6348 = vmatprep.subr.bf16.mxu0 0
        %6349 = vmatpush1.bf16.xpose.msra.mxu0 0
        %6350 = vmatprep.subr.bf16.mxu0 0
        %6351 = vmatpush1.bf16.xpose.msra.mxu0 0
        %6352 = vmatprep.subr.bf16.mxu0 0
        %6353 = vmatpush1.bf16.xpose.msra.mxu0 0
        %6354 = vmatprep.subr.bf16.mxu0 0
        %6355 = vmatpush1.bf16.xpose.msra.mxu0 0
        %6356 = vmatprep.subr.bf16.mxu0 0
        %6357 = vmatpush1.bf16.xpose.msra.mxu0 0
        %6358 = vmatprep.subr.bf16.mxu0 0
        %6359 = vmatpush1.bf16.xpose.msra.mxu0 0
        %6360 = vmatprep.subr.bf16.mxu0 0
        %6361 = vmatpush1.bf16.xpose.msra.mxu0 0
        %6362 = vmatprep.subr.bf16.mxu0 0
        %6363 = vmatpush1.bf16.xpose.msra.mxu0 0
        %6364 = vmatprep.subr.bf16.mxu0 0
        %6365 = vmatpush1.bf16.xpose.msra.mxu0 0
        %6366 = vmatprep.subr.bf16.mxu0 0
        %6367 = vmatpush1.bf16.xpose.msra.mxu0 0
        %6368 = vmatprep.subr.bf16.mxu0 0
        %6369 = vmatpush1.bf16.xpose.msra.mxu0 0
        %6370 = vmatprep.subr.bf16.mxu0 0
        %6371 = vmatpush1.bf16.xpose.msra.mxu0 0
        %6372 = vmatprep.subr.bf16.mxu0 0
        %6373 = vmatpush1.bf16.xpose.msra.mxu0 0
        %6374 = vmatprep.subr.bf16.mxu0 0
        %6375 = vmatpush1.bf16.xpose.msra.mxu0 0
        %6376 = vmatprep.subr.bf16.mxu0 0
        %6377 = vmatpush1.bf16.xpose.msra.mxu0 0
        %6378 = vmatprep.mubr.bf16.mxu0 %v5915
        %6379 = vmatmul.mubr.bf16.gmra.mrb[0].mxu0 %v5914
        %v6380 = vpop.f32.mrb[0].mxu0
        %v6381 = vadd.f32 %v6341, %v6380
        %v6382 = vpop.f32.mrb[0].mxu0
        %v6383 = vpop.f32.mrb[0].mxu0
        %v6384 = vpop.f32.mrb[0].mxu0
        %6385 = vdwg.mxu0
        %6386 = vmatprep.subr.bf16.mxu0 %v6114
        %6387 = vmatpush1.bf16.xpose.msra.mxu0 %v6113
        %6388 = vmatprep.subr.bf16.mxu0 0
        %6389 = vmatpush1.bf16.xpose.msra.mxu0 0
        %6390 = vmatprep.subr.bf16.mxu0 0
        %6391 = vmatpush1.bf16.xpose.msra.mxu0 0
        %6392 = vmatprep.subr.bf16.mxu0 0
        %6393 = vmatpush1.bf16.xpose.msra.mxu0 0
        %6394 = vmatprep.subr.bf16.mxu0 0
        %6395 = vmatpush1.bf16.xpose.msra.mxu0 0
        %6396 = vmatprep.subr.bf16.mxu0 0
        %6397 = vmatpush1.bf16.xpose.msra.mxu0 0
        %6398 = vmatprep.subr.bf16.mxu0 0
        %6399 = vmatpush1.bf16.xpose.msra.mxu0 0
        %6400 = vmatprep.subr.bf16.mxu0 0
        %6401 = vmatpush1.bf16.xpose.msra.mxu0 0
        %6402 = vmatprep.subr.bf16.mxu0 0
        %6403 = vmatpush1.bf16.xpose.msra.mxu0 0
        %6404 = vmatprep.subr.bf16.mxu0 0
        %6405 = vmatpush1.bf16.xpose.msra.mxu0 0
        %6406 = vmatprep.subr.bf16.mxu0 0
        %6407 = vmatpush1.bf16.xpose.msra.mxu0 0
        %6408 = vmatprep.subr.bf16.mxu0 0
        %6409 = vmatpush1.bf16.xpose.msra.mxu0 0
        %6410 = vmatprep.subr.bf16.mxu0 0
        %6411 = vmatpush1.bf16.xpose.msra.mxu0 0
        %6412 = vmatprep.subr.bf16.mxu0 0
        %6413 = vmatpush1.bf16.xpose.msra.mxu0 0
        %6414 = vmatprep.subr.bf16.mxu0 0
        %6415 = vmatpush1.bf16.xpose.msra.mxu0 0
        %6416 = vmatprep.subr.bf16.mxu0 0
        %6417 = vmatpush1.bf16.xpose.msra.mxu0 0
        %6418 = vmatprep.mubr.bf16.mxu0 %v5917
        %6419 = vmatmul.mubr.bf16.gmra.mrb[0].mxu0 %v5916
        %v6420 = vpop.f32.mrb[0].mxu0
        %v6421 = vadd.f32 %v6381, %v6420
        %v6422 = vpop.f32.mrb[0].mxu0
        %v6423 = vpop.f32.mrb[0].mxu0
        %v6424 = vpop.f32.mrb[0].mxu0
        %6425 = vdwg.mxu0
        %6426 = vmatprep.subr.bf16.mxu0 %v6116
        %6427 = vmatpush1.bf16.xpose.msra.mxu0 %v6115
        %6428 = vmatprep.subr.bf16.mxu0 0
        %6429 = vmatpush1.bf16.xpose.msra.mxu0 0
        %6430 = vmatprep.subr.bf16.mxu0 0
        %6431 = vmatpush1.bf16.xpose.msra.mxu0 0
        %6432 = vmatprep.subr.bf16.mxu0 0
        %6433 = vmatpush1.bf16.xpose.msra.mxu0 0
        %6434 = vmatprep.subr.bf16.mxu0 0
        %6435 = vmatpush1.bf16.xpose.msra.mxu0 0
        %6436 = vmatprep.subr.bf16.mxu0 0
        %6437 = vmatpush1.bf16.xpose.msra.mxu0 0
        %6438 = vmatprep.subr.bf16.mxu0 0
        %6439 = vmatpush1.bf16.xpose.msra.mxu0 0
        %6440 = vmatprep.subr.bf16.mxu0 0
        %6441 = vmatpush1.bf16.xpose.msra.mxu0 0
        %6442 = vmatprep.subr.bf16.mxu0 0
        %6443 = vmatpush1.bf16.xpose.msra.mxu0 0
        %6444 = vmatprep.subr.bf16.mxu0 0
        %6445 = vmatpush1.bf16.xpose.msra.mxu0 0
        %6446 = vmatprep.subr.bf16.mxu0 0
        %6447 = vmatpush1.bf16.xpose.msra.mxu0 0
        %6448 = vmatprep.subr.bf16.mxu0 0
        %6449 = vmatpush1.bf16.xpose.msra.mxu0 0
        %6450 = vmatprep.subr.bf16.mxu0 0
        %6451 = vmatpush1.bf16.xpose.msra.mxu0 0
        %6452 = vmatprep.subr.bf16.mxu0 0
        %6453 = vmatpush1.bf16.xpose.msra.mxu0 0
        %6454 = vmatprep.subr.bf16.mxu0 0
        %6455 = vmatpush1.bf16.xpose.msra.mxu0 0
        %6456 = vmatprep.subr.bf16.mxu0 0
        %6457 = vmatpush1.bf16.xpose.msra.mxu0 0
        %6458 = vmatprep.mubr.bf16.mxu0 %v5919
        %6459 = vmatmul.mubr.bf16.gmra.mrb[0].mxu0 %v5918
        %v6460 = vpop.f32.mrb[0].mxu0
        %v6461 = vadd.f32 %v6421, %v6460
        %v6462 = vpop.f32.mrb[0].mxu0
        %v6463 = vpop.f32.mrb[0].mxu0
        %v6464 = vpop.f32.mrb[0].mxu0
        %6465 = vdwg.mxu0
        %6466 = vmatprep.subr.bf16.mxu0 %v6118
        %6467 = vmatpush1.bf16.xpose.msra.mxu0 %v6117
        %6468 = vmatprep.subr.bf16.mxu0 0
        %6469 = vmatpush1.bf16.xpose.msra.mxu0 0
        %6470 = vmatprep.subr.bf16.mxu0 0
        %6471 = vmatpush1.bf16.xpose.msra.mxu0 0
        %6472 = vmatprep.subr.bf16.mxu0 0
        %6473 = vmatpush1.bf16.xpose.msra.mxu0 0
        %6474 = vmatprep.subr.bf16.mxu0 0
        %6475 = vmatpush1.bf16.xpose.msra.mxu0 0
        %6476 = vmatprep.subr.bf16.mxu0 0
        %6477 = vmatpush1.bf16.xpose.msra.mxu0 0
        %6478 = vmatprep.subr.bf16.mxu0 0
        %6479 = vmatpush1.bf16.xpose.msra.mxu0 0
        %6480 = vmatprep.subr.bf16.mxu0 0
        %6481 = vmatpush1.bf16.xpose.msra.mxu0 0
        %6482 = vmatprep.subr.bf16.mxu0 0
        %6483 = vmatpush1.bf16.xpose.msra.mxu0 0
        %6484 = vmatprep.subr.bf16.mxu0 0
        %6485 = vmatpush1.bf16.xpose.msra.mxu0 0
        %6486 = vmatprep.subr.bf16.mxu0 0
        %6487 = vmatpush1.bf16.xpose.msra.mxu0 0
        %6488 = vmatprep.subr.bf16.mxu0 0
        %6489 = vmatpush1.bf16.xpose.msra.mxu0 0
        %6490 = vmatprep.subr.bf16.mxu0 0
        %6491 = vmatpush1.bf16.xpose.msra.mxu0 0
        %6492 = vmatprep.subr.bf16.mxu0 0
        %6493 = vmatpush1.bf16.xpose.msra.mxu0 0
        %6494 = vmatprep.subr.bf16.mxu0 0
        %6495 = vmatpush1.bf16.xpose.msra.mxu0 0
        %6496 = vmatprep.subr.bf16.mxu0 0
        %6497 = vmatpush1.bf16.xpose.msra.mxu0 0
        %6498 = vmatprep.mubr.bf16.mxu0 %v5921
        %6499 = vmatmul.mubr.bf16.gmra.mrb[0].mxu0 %v5920
        %v6500 = vpop.f32.mrb[0].mxu0
        %v6501 = vadd.f32 %v6461, %v6500
        %v6502 = vpop.f32.mrb[0].mxu0
        %v6503 = vpop.f32.mrb[0].mxu0
        %v6504 = vpop.f32.mrb[0].mxu0
        %6505 = vdwg.mxu0
        %6506 = vmatprep.subr.bf16.mxu0 %v6120
        %6507 = vmatpush1.bf16.xpose.msra.mxu0 %v6119
        %6508 = vmatprep.subr.bf16.mxu0 0
        %6509 = vmatpush1.bf16.xpose.msra.mxu0 0
        %6510 = vmatprep.subr.bf16.mxu0 0
        %6511 = vmatpush1.bf16.xpose.msra.mxu0 0
        %6512 = vmatprep.subr.bf16.mxu0 0
        %6513 = vmatpush1.bf16.xpose.msra.mxu0 0
        %6514 = vmatprep.subr.bf16.mxu0 0
        %6515 = vmatpush1.bf16.xpose.msra.mxu0 0
        %6516 = vmatprep.subr.bf16.mxu0 0
        %6517 = vmatpush1.bf16.xpose.msra.mxu0 0
        %6518 = vmatprep.subr.bf16.mxu0 0
        %6519 = vmatpush1.bf16.xpose.msra.mxu0 0
        %6520 = vmatprep.subr.bf16.mxu0 0
        %6521 = vmatpush1.bf16.xpose.msra.mxu0 0
        %6522 = vmatprep.subr.bf16.mxu0 0
        %6523 = vmatpush1.bf16.xpose.msra.mxu0 0
        %6524 = vmatprep.subr.bf16.mxu0 0
        %6525 = vmatpush1.bf16.xpose.msra.mxu0 0
        %6526 = vmatprep.subr.bf16.mxu0 0
        %6527 = vmatpush1.bf16.xpose.msra.mxu0 0
        %6528 = vmatprep.subr.bf16.mxu0 0
        %6529 = vmatpush1.bf16.xpose.msra.mxu0 0
        %6530 = vmatprep.subr.bf16.mxu0 0
        %6531 = vmatpush1.bf16.xpose.msra.mxu0 0
        %6532 = vmatprep.subr.bf16.mxu0 0
        %6533 = vmatpush1.bf16.xpose.msra.mxu0 0
        %6534 = vmatprep.subr.bf16.mxu0 0
        %6535 = vmatpush1.bf16.xpose.msra.mxu0 0
        %6536 = vmatprep.subr.bf16.mxu0 0
        %6537 = vmatpush1.bf16.xpose.msra.mxu0 0
        %6538 = vmatprep.mubr.bf16.mxu0 %v5923
        %6539 = vmatmul.mubr.bf16.gmra.mrb[0].mxu0 %v5922
        %v6540 = vpop.f32.mrb[0].mxu0
        %v6541 = vadd.f32 %v6501, %v6540
        %v6542 = vpop.f32.mrb[0].mxu0
        %v6543 = vpop.f32.mrb[0].mxu0
        %v6544 = vpop.f32.mrb[0].mxu0
        %6545 = vdwg.mxu0
        %6546 = vmatprep.subr.bf16.mxu0 %v6122
        %6547 = vmatpush1.bf16.xpose.msra.mxu0 %v6121
        %6548 = vmatprep.subr.bf16.mxu0 0
        %6549 = vmatpush1.bf16.xpose.msra.mxu0 0
        %6550 = vmatprep.subr.bf16.mxu0 0
        %6551 = vmatpush1.bf16.xpose.msra.mxu0 0
        %6552 = vmatprep.subr.bf16.mxu0 0
        %6553 = vmatpush1.bf16.xpose.msra.mxu0 0
        %6554 = vmatprep.subr.bf16.mxu0 0
        %6555 = vmatpush1.bf16.xpose.msra.mxu0 0
        %6556 = vmatprep.subr.bf16.mxu0 0
        %6557 = vmatpush1.bf16.xpose.msra.mxu0 0
        %6558 = vmatprep.subr.bf16.mxu0 0
        %6559 = vmatpush1.bf16.xpose.msra.mxu0 0
        %6560 = vmatprep.subr.bf16.mxu0 0
        %6561 = vmatpush1.bf16.xpose.msra.mxu0 0
        %6562 = vmatprep.subr.bf16.mxu0 0
        %6563 = vmatpush1.bf16.xpose.msra.mxu0 0
        %6564 = vmatprep.subr.bf16.mxu0 0
        %6565 = vmatpush1.bf16.xpose.msra.mxu0 0
        %6566 = vmatprep.subr.bf16.mxu0 0
        %6567 = vmatpush1.bf16.xpose.msra.mxu0 0
        %6568 = vmatprep.subr.bf16.mxu0 0
        %6569 = vmatpush1.bf16.xpose.msra.mxu0 0
        %6570 = vmatprep.subr.bf16.mxu0 0
        %6571 = vmatpush1.bf16.xpose.msra.mxu0 0
        %6572 = vmatprep.subr.bf16.mxu0 0
        %6573 = vmatpush1.bf16.xpose.msra.mxu0 0
        %6574 = vmatprep.subr.bf16.mxu0 0
        %6575 = vmatpush1.bf16.xpose.msra.mxu0 0
        %6576 = vmatprep.subr.bf16.mxu0 0
        %6577 = vmatpush1.bf16.xpose.msra.mxu0 0
        %6578 = vmatprep.mubr.bf16.mxu0 %v5925
        %6579 = vmatmul.mubr.bf16.gmra.mrb[0].mxu0 %v5924
        %v6580 = vpop.f32.mrb[0].mxu0
        %v6581 = vadd.f32 %v6541, %v6580
        %v6582 = vpop.f32.mrb[0].mxu0
        %v6583 = vpop.f32.mrb[0].mxu0
        %v6584 = vpop.f32.mrb[0].mxu0
        %6585 = vdwg.mxu0
        %6586 = vmatprep.subr.bf16.mxu0 %v6124
        %6587 = vmatpush1.bf16.xpose.msra.mxu0 %v6123
        %6588 = vmatprep.subr.bf16.mxu0 0
        %6589 = vmatpush1.bf16.xpose.msra.mxu0 0
        %6590 = vmatprep.subr.bf16.mxu0 0
        %6591 = vmatpush1.bf16.xpose.msra.mxu0 0
        %6592 = vmatprep.subr.bf16.mxu0 0
        %6593 = vmatpush1.bf16.xpose.msra.mxu0 0
        %6594 = vmatprep.subr.bf16.mxu0 0
        %6595 = vmatpush1.bf16.xpose.msra.mxu0 0
        %6596 = vmatprep.subr.bf16.mxu0 0
        %6597 = vmatpush1.bf16.xpose.msra.mxu0 0
        %6598 = vmatprep.subr.bf16.mxu0 0
        %6599 = vmatpush1.bf16.xpose.msra.mxu0 0
        %6600 = vmatprep.subr.bf16.mxu0 0
        %6601 = vmatpush1.bf16.xpose.msra.mxu0 0
        %6602 = vmatprep.subr.bf16.mxu0 0
        %6603 = vmatpush1.bf16.xpose.msra.mxu0 0
        %6604 = vmatprep.subr.bf16.mxu0 0
        %6605 = vmatpush1.bf16.xpose.msra.mxu0 0
        %6606 = vmatprep.subr.bf16.mxu0 0
        %6607 = vmatpush1.bf16.xpose.msra.mxu0 0
        %6608 = vmatprep.subr.bf16.mxu0 0
        %6609 = vmatpush1.bf16.xpose.msra.mxu0 0
        %6610 = vmatprep.subr.bf16.mxu0 0
        %6611 = vmatpush1.bf16.xpose.msra.mxu0 0
        %6612 = vmatprep.subr.bf16.mxu0 0
        %6613 = vmatpush1.bf16.xpose.msra.mxu0 0
        %6614 = vmatprep.subr.bf16.mxu0 0
        %6615 = vmatpush1.bf16.xpose.msra.mxu0 0
        %6616 = vmatprep.subr.bf16.mxu0 0
        %6617 = vmatpush1.bf16.xpose.msra.mxu0 0
        %6618 = vmatprep.mubr.bf16.mxu0 %v5927
        %6619 = vmatmul.mubr.bf16.gmra.mrb[0].mxu0 %v5926
        %v6620 = vpop.f32.mrb[0].mxu0
        %v6621 = vadd.f32 %v6581, %v6620
        %v6622 = vpop.f32.mrb[0].mxu0
        %v6623 = vpop.f32.mrb[0].mxu0
        %v6624 = vpop.f32.mrb[0].mxu0
        %6625 = vdwg.mxu0
        %6626 = vmatprep.subr.bf16.mxu0 %v6126
        %6627 = vmatpush1.bf16.xpose.msra.mxu0 %v6125
        %6628 = vmatprep.subr.bf16.mxu0 0
        %6629 = vmatpush1.bf16.xpose.msra.mxu0 0
        %6630 = vmatprep.subr.bf16.mxu0 0
        %6631 = vmatpush1.bf16.xpose.msra.mxu0 0
        %6632 = vmatprep.subr.bf16.mxu0 0
        %6633 = vmatpush1.bf16.xpose.msra.mxu0 0
        %6634 = vmatprep.subr.bf16.mxu0 0
        %6635 = vmatpush1.bf16.xpose.msra.mxu0 0
        %6636 = vmatprep.subr.bf16.mxu0 0
        %6637 = vmatpush1.bf16.xpose.msra.mxu0 0
        %6638 = vmatprep.subr.bf16.mxu0 0
        %6639 = vmatpush1.bf16.xpose.msra.mxu0 0
        %6640 = vmatprep.subr.bf16.mxu0 0
        %6641 = vmatpush1.bf16.xpose.msra.mxu0 0
        %6642 = vmatprep.subr.bf16.mxu0 0
        %6643 = vmatpush1.bf16.xpose.msra.mxu0 0
        %6644 = vmatprep.subr.bf16.mxu0 0
        %6645 = vmatpush1.bf16.xpose.msra.mxu0 0
        %6646 = vmatprep.subr.bf16.mxu0 0
        %6647 = vmatpush1.bf16.xpose.msra.mxu0 0
        %6648 = vmatprep.subr.bf16.mxu0 0
        %6649 = vmatpush1.bf16.xpose.msra.mxu0 0
        %6650 = vmatprep.subr.bf16.mxu0 0
        %6651 = vmatpush1.bf16.xpose.msra.mxu0 0
        %6652 = vmatprep.subr.bf16.mxu0 0
        %6653 = vmatpush1.bf16.xpose.msra.mxu0 0
        %6654 = vmatprep.subr.bf16.mxu0 0
        %6655 = vmatpush1.bf16.xpose.msra.mxu0 0
        %6656 = vmatprep.subr.bf16.mxu0 0
        %6657 = vmatpush1.bf16.xpose.msra.mxu0 0
        %6658 = vmatprep.mubr.bf16.mxu0 %v5929
        %6659 = vmatmul.mubr.bf16.gmra.mrb[0].mxu0 %v5928
        %v6660 = vpop.f32.mrb[0].mxu0
        %v6661 = vadd.f32 %v6621, %v6660
        %v6662 = vpop.f32.mrb[0].mxu0
        %v6663 = vpop.f32.mrb[0].mxu0
        %v6664 = vpop.f32.mrb[0].mxu0
        %6665 = vdwg.mxu0
        %6666 = vmatprep.subr.bf16.mxu0 %v6128
        %6667 = vmatpush1.bf16.xpose.msra.mxu0 %v6127
        %6668 = vmatprep.subr.bf16.mxu0 0
        %6669 = vmatpush1.bf16.xpose.msra.mxu0 0
        %6670 = vmatprep.subr.bf16.mxu0 0
        %6671 = vmatpush1.bf16.xpose.msra.mxu0 0
        %6672 = vmatprep.subr.bf16.mxu0 0
        %6673 = vmatpush1.bf16.xpose.msra.mxu0 0
        %6674 = vmatprep.subr.bf16.mxu0 0
        %6675 = vmatpush1.bf16.xpose.msra.mxu0 0
        %6676 = vmatprep.subr.bf16.mxu0 0
        %6677 = vmatpush1.bf16.xpose.msra.mxu0 0
        %6678 = vmatprep.subr.bf16.mxu0 0
        %6679 = vmatpush1.bf16.xpose.msra.mxu0 0
        %6680 = vmatprep.subr.bf16.mxu0 0
        %6681 = vmatpush1.bf16.xpose.msra.mxu0 0
        %6682 = vmatprep.subr.bf16.mxu0 0
        %6683 = vmatpush1.bf16.xpose.msra.mxu0 0
        %6684 = vmatprep.subr.bf16.mxu0 0
        %6685 = vmatpush1.bf16.xpose.msra.mxu0 0
        %6686 = vmatprep.subr.bf16.mxu0 0
        %6687 = vmatpush1.bf16.xpose.msra.mxu0 0
        %6688 = vmatprep.subr.bf16.mxu0 0
        %6689 = vmatpush1.bf16.xpose.msra.mxu0 0
        %6690 = vmatprep.subr.bf16.mxu0 0
        %6691 = vmatpush1.bf16.xpose.msra.mxu0 0
        %6692 = vmatprep.subr.bf16.mxu0 0
        %6693 = vmatpush1.bf16.xpose.msra.mxu0 0
        %6694 = vmatprep.subr.bf16.mxu0 0
        %6695 = vmatpush1.bf16.xpose.msra.mxu0 0
        %6696 = vmatprep.subr.bf16.mxu0 0
        %6697 = vmatpush1.bf16.xpose.msra.mxu0 0
        %6698 = vmatprep.mubr.bf16.mxu0 %v5931
        %6699 = vmatmul.mubr.bf16.gmra.mrb[0].mxu0 %v5930
        %v6700 = vpop.f32.mrb[0].mxu0
        %v6701 = vadd.f32 %v6661, %v6700
        %v6702 = vpop.f32.mrb[0].mxu0
        %v6703 = vpop.f32.mrb[0].mxu0
        %v6704 = vpop.f32.mrb[0].mxu0
        %6705 = vdwg.mxu0
        %6706 = vmatprep.subr.bf16.mxu0 %v6130
        %6707 = vmatpush1.bf16.xpose.msra.mxu0 %v6129
        %6708 = vmatprep.subr.bf16.mxu0 0
        %6709 = vmatpush1.bf16.xpose.msra.mxu0 0
        %6710 = vmatprep.subr.bf16.mxu0 0
        %6711 = vmatpush1.bf16.xpose.msra.mxu0 0
        %6712 = vmatprep.subr.bf16.mxu0 0
        %6713 = vmatpush1.bf16.xpose.msra.mxu0 0
        %6714 = vmatprep.subr.bf16.mxu0 0
        %6715 = vmatpush1.bf16.xpose.msra.mxu0 0
        %6716 = vmatprep.subr.bf16.mxu0 0
        %6717 = vmatpush1.bf16.xpose.msra.mxu0 0
        %6718 = vmatprep.subr.bf16.mxu0 0
        %6719 = vmatpush1.bf16.xpose.msra.mxu0 0
        %6720 = vmatprep.subr.bf16.mxu0 0
        %6721 = vmatpush1.bf16.xpose.msra.mxu0 0
        %6722 = vmatprep.subr.bf16.mxu0 0
        %6723 = vmatpush1.bf16.xpose.msra.mxu0 0
        %6724 = vmatprep.subr.bf16.mxu0 0
        %6725 = vmatpush1.bf16.xpose.msra.mxu0 0
        %6726 = vmatprep.subr.bf16.mxu0 0
        %6727 = vmatpush1.bf16.xpose.msra.mxu0 0
        %6728 = vmatprep.subr.bf16.mxu0 0
        %6729 = vmatpush1.bf16.xpose.msra.mxu0 0
        %6730 = vmatprep.subr.bf16.mxu0 0
        %6731 = vmatpush1.bf16.xpose.msra.mxu0 0
        %6732 = vmatprep.subr.bf16.mxu0 0
        %6733 = vmatpush1.bf16.xpose.msra.mxu0 0
        %6734 = vmatprep.subr.bf16.mxu0 0
        %6735 = vmatpush1.bf16.xpose.msra.mxu0 0
        %6736 = vmatprep.subr.bf16.mxu0 0
        %6737 = vmatpush1.bf16.xpose.msra.mxu0 0
        %6738 = vmatprep.mubr.bf16.mxu0 %v5933
        %6739 = vmatmul.mubr.bf16.gmra.mrb[0].mxu0 %v5932
        %v6740 = vpop.f32.mrb[0].mxu0
        %v6741 = vadd.f32 %v6701, %v6740
        %v6742 = vpop.f32.mrb[0].mxu0
        %v6743 = vpop.f32.mrb[0].mxu0
        %v6744 = vpop.f32.mrb[0].mxu0
        %6745 = vdwg.mxu0
        %6746 = vmatprep.subr.bf16.mxu0 %v6132
        %6747 = vmatpush1.bf16.xpose.msra.mxu0 %v6131
        %6748 = vmatprep.subr.bf16.mxu0 0
        %6749 = vmatpush1.bf16.xpose.msra.mxu0 0
        %6750 = vmatprep.subr.bf16.mxu0 0
        %6751 = vmatpush1.bf16.xpose.msra.mxu0 0
        %6752 = vmatprep.subr.bf16.mxu0 0
        %6753 = vmatpush1.bf16.xpose.msra.mxu0 0
        %6754 = vmatprep.subr.bf16.mxu0 0
        %6755 = vmatpush1.bf16.xpose.msra.mxu0 0
        %6756 = vmatprep.subr.bf16.mxu0 0
        %6757 = vmatpush1.bf16.xpose.msra.mxu0 0
        %6758 = vmatprep.subr.bf16.mxu0 0
        %6759 = vmatpush1.bf16.xpose.msra.mxu0 0
        %6760 = vmatprep.subr.bf16.mxu0 0
        %6761 = vmatpush1.bf16.xpose.msra.mxu0 0
        %6762 = vmatprep.subr.bf16.mxu0 0
        %6763 = vmatpush1.bf16.xpose.msra.mxu0 0
        %6764 = vmatprep.subr.bf16.mxu0 0
        %6765 = vmatpush1.bf16.xpose.msra.mxu0 0
        %6766 = vmatprep.subr.bf16.mxu0 0
        %6767 = vmatpush1.bf16.xpose.msra.mxu0 0
        %6768 = vmatprep.subr.bf16.mxu0 0
        %6769 = vmatpush1.bf16.xpose.msra.mxu0 0
        %6770 = vmatprep.subr.bf16.mxu0 0
        %6771 = vmatpush1.bf16.xpose.msra.mxu0 0
        %6772 = vmatprep.subr.bf16.mxu0 0
        %6773 = vmatpush1.bf16.xpose.msra.mxu0 0
        %6774 = vmatprep.subr.bf16.mxu0 0
        %6775 = vmatpush1.bf16.xpose.msra.mxu0 0
        %6776 = vmatprep.subr.bf16.mxu0 0
        %6777 = vmatpush1.bf16.xpose.msra.mxu0 0
        %6778 = vmatprep.mubr.bf16.mxu0 %v5935
        %6779 = vmatmul.mubr.bf16.gmra.mrb[0].mxu0 %v5934
        %v6780 = vpop.f32.mrb[0].mxu0
        %v6781 = vadd.f32 %v6741, %v6780
        %v6782 = vpop.f32.mrb[0].mxu0
        %v6783 = vpop.f32.mrb[0].mxu0
        %v6784 = vpop.f32.mrb[0].mxu0
        %6785 = vdwg.mxu0
        %6786 = vmatprep.subr.bf16.mxu0 %v6134
        %6787 = vmatpush1.bf16.xpose.msra.mxu0 %v6133
        %6788 = vmatprep.subr.bf16.mxu0 0
        %6789 = vmatpush1.bf16.xpose.msra.mxu0 0
        %6790 = vmatprep.subr.bf16.mxu0 0
        %6791 = vmatpush1.bf16.xpose.msra.mxu0 0
        %6792 = vmatprep.subr.bf16.mxu0 0
        %6793 = vmatpush1.bf16.xpose.msra.mxu0 0
        %6794 = vmatprep.subr.bf16.mxu0 0
        %6795 = vmatpush1.bf16.xpose.msra.mxu0 0
        %6796 = vmatprep.subr.bf16.mxu0 0
        %6797 = vmatpush1.bf16.xpose.msra.mxu0 0
        %6798 = vmatprep.subr.bf16.mxu0 0
        %6799 = vmatpush1.bf16.xpose.msra.mxu0 0
        %6800 = vmatprep.subr.bf16.mxu0 0
        %6801 = vmatpush1.bf16.xpose.msra.mxu0 0
        %6802 = vmatprep.subr.bf16.mxu0 0
        %6803 = vmatpush1.bf16.xpose.msra.mxu0 0
        %6804 = vmatprep.subr.bf16.mxu0 0
        %6805 = vmatpush1.bf16.xpose.msra.mxu0 0
        %6806 = vmatprep.subr.bf16.mxu0 0
        %6807 = vmatpush1.bf16.xpose.msra.mxu0 0
        %6808 = vmatprep.subr.bf16.mxu0 0
        %6809 = vmatpush1.bf16.xpose.msra.mxu0 0
        %6810 = vmatprep.subr.bf16.mxu0 0
        %6811 = vmatpush1.bf16.xpose.msra.mxu0 0
        %6812 = vmatprep.subr.bf16.mxu0 0
        %6813 = vmatpush1.bf16.xpose.msra.mxu0 0
        %6814 = vmatprep.subr.bf16.mxu0 0
        %6815 = vmatpush1.bf16.xpose.msra.mxu0 0
        %6816 = vmatprep.subr.bf16.mxu0 0
        %6817 = vmatpush1.bf16.xpose.msra.mxu0 0
        %6818 = vmatprep.mubr.bf16.mxu0 %v5937
        %6819 = vmatmul.mubr.bf16.gmra.mrb[0].mxu0 %v5936
        %v6820 = vpop.f32.mrb[0].mxu0
        %v6821 = vadd.f32 %v6781, %v6820
        %v6822 = vpop.f32.mrb[0].mxu0
        %v6823 = vpop.f32.mrb[0].mxu0
        %v6824 = vpop.f32.mrb[0].mxu0
        %6825 = vdwg.mxu0
        %6826 = vmatprep.subr.bf16.mxu0 %v6136
        %6827 = vmatpush1.bf16.xpose.msra.mxu0 %v6135
        %6828 = vmatprep.subr.bf16.mxu0 0
        %6829 = vmatpush1.bf16.xpose.msra.mxu0 0
        %6830 = vmatprep.subr.bf16.mxu0 0
        %6831 = vmatpush1.bf16.xpose.msra.mxu0 0
        %6832 = vmatprep.subr.bf16.mxu0 0
        %6833 = vmatpush1.bf16.xpose.msra.mxu0 0
        %6834 = vmatprep.subr.bf16.mxu0 0
        %6835 = vmatpush1.bf16.xpose.msra.mxu0 0
        %6836 = vmatprep.subr.bf16.mxu0 0
        %6837 = vmatpush1.bf16.xpose.msra.mxu0 0
        %6838 = vmatprep.subr.bf16.mxu0 0
        %6839 = vmatpush1.bf16.xpose.msra.mxu0 0
        %6840 = vmatprep.subr.bf16.mxu0 0
        %6841 = vmatpush1.bf16.xpose.msra.mxu0 0
        %6842 = vmatprep.subr.bf16.mxu0 0
        %6843 = vmatpush1.bf16.xpose.msra.mxu0 0
        %6844 = vmatprep.subr.bf16.mxu0 0
        %6845 = vmatpush1.bf16.xpose.msra.mxu0 0
        %6846 = vmatprep.subr.bf16.mxu0 0
        %6847 = vmatpush1.bf16.xpose.msra.mxu0 0
        %6848 = vmatprep.subr.bf16.mxu0 0
        %6849 = vmatpush1.bf16.xpose.msra.mxu0 0
        %6850 = vmatprep.subr.bf16.mxu0 0
        %6851 = vmatpush1.bf16.xpose.msra.mxu0 0
        %6852 = vmatprep.subr.bf16.mxu0 0
        %6853 = vmatpush1.bf16.xpose.msra.mxu0 0
        %6854 = vmatprep.subr.bf16.mxu0 0
        %6855 = vmatpush1.bf16.xpose.msra.mxu0 0
        %6856 = vmatprep.subr.bf16.mxu0 0
        %6857 = vmatpush1.bf16.xpose.msra.mxu0 0
        %6858 = vmatprep.mubr.bf16.mxu0 %v5939
        %6859 = vmatmul.mubr.bf16.gmra.mrb[0].mxu0 %v5938
        %v6860 = vpop.f32.mrb[0].mxu0
        %v6861 = vadd.f32 %v6821, %v6860
        %v6862 = vpop.f32.mrb[0].mxu0
        %v6863 = vpop.f32.mrb[0].mxu0
        %v6864 = vpop.f32.mrb[0].mxu0
        %6865 = vdwg.mxu0
        %6866 = vmatprep.subr.bf16.mxu0 %v6138
        %6867 = vmatpush1.bf16.xpose.msra.mxu0 %v6137
        %6868 = vmatprep.subr.bf16.mxu0 0
        %6869 = vmatpush1.bf16.xpose.msra.mxu0 0
        %6870 = vmatprep.subr.bf16.mxu0 0
        %6871 = vmatpush1.bf16.xpose.msra.mxu0 0
        %6872 = vmatprep.subr.bf16.mxu0 0
        %6873 = vmatpush1.bf16.xpose.msra.mxu0 0
        %6874 = vmatprep.subr.bf16.mxu0 0
        %6875 = vmatpush1.bf16.xpose.msra.mxu0 0
        %6876 = vmatprep.subr.bf16.mxu0 0
        %6877 = vmatpush1.bf16.xpose.msra.mxu0 0
        %6878 = vmatprep.subr.bf16.mxu0 0
        %6879 = vmatpush1.bf16.xpose.msra.mxu0 0
        %6880 = vmatprep.subr.bf16.mxu0 0
        %6881 = vmatpush1.bf16.xpose.msra.mxu0 0
        %6882 = vmatprep.subr.bf16.mxu0 0
        %6883 = vmatpush1.bf16.xpose.msra.mxu0 0
        %6884 = vmatprep.subr.bf16.mxu0 0
        %6885 = vmatpush1.bf16.xpose.msra.mxu0 0
        %6886 = vmatprep.subr.bf16.mxu0 0
        %6887 = vmatpush1.bf16.xpose.msra.mxu0 0
        %6888 = vmatprep.subr.bf16.mxu0 0
        %6889 = vmatpush1.bf16.xpose.msra.mxu0 0
        %6890 = vmatprep.subr.bf16.mxu0 0
        %6891 = vmatpush1.bf16.xpose.msra.mxu0 0
        %6892 = vmatprep.subr.bf16.mxu0 0
        %6893 = vmatpush1.bf16.xpose.msra.mxu0 0
        %6894 = vmatprep.subr.bf16.mxu0 0
        %6895 = vmatpush1.bf16.xpose.msra.mxu0 0
        %6896 = vmatprep.subr.bf16.mxu0 0
        %6897 = vmatpush1.bf16.xpose.msra.mxu0 0
        %6898 = vmatprep.mubr.bf16.mxu0 %v5941
        %6899 = vmatmul.mubr.bf16.gmra.mrb[0].mxu0 %v5940
        %v6900 = vpop.f32.mrb[0].mxu0
        %v6901 = vadd.f32 %v6861, %v6900
        %v6902 = vpop.f32.mrb[0].mxu0
        %v6903 = vpop.f32.mrb[0].mxu0
        %v6904 = vpop.f32.mrb[0].mxu0
        %6905 = vdwg.mxu0
        %6906 = vmatprep.subr.bf16.mxu0 %v6140
        %6907 = vmatpush1.bf16.xpose.msra.mxu0 %v6139
        %6908 = vmatprep.subr.bf16.mxu0 0
        %6909 = vmatpush1.bf16.xpose.msra.mxu0 0
        %6910 = vmatprep.subr.bf16.mxu0 0
        %6911 = vmatpush1.bf16.xpose.msra.mxu0 0
        %6912 = vmatprep.subr.bf16.mxu0 0
        %6913 = vmatpush1.bf16.xpose.msra.mxu0 0
        %6914 = vmatprep.subr.bf16.mxu0 0
        %6915 = vmatpush1.bf16.xpose.msra.mxu0 0
        %6916 = vmatprep.subr.bf16.mxu0 0
        %6917 = vmatpush1.bf16.xpose.msra.mxu0 0
        %6918 = vmatprep.subr.bf16.mxu0 0
        %6919 = vmatpush1.bf16.xpose.msra.mxu0 0
        %6920 = vmatprep.subr.bf16.mxu0 0
        %6921 = vmatpush1.bf16.xpose.msra.mxu0 0
        %6922 = vmatprep.subr.bf16.mxu0 0
        %6923 = vmatpush1.bf16.xpose.msra.mxu0 0
        %6924 = vmatprep.subr.bf16.mxu0 0
        %6925 = vmatpush1.bf16.xpose.msra.mxu0 0
        %6926 = vmatprep.subr.bf16.mxu0 0
        %6927 = vmatpush1.bf16.xpose.msra.mxu0 0
        %6928 = vmatprep.subr.bf16.mxu0 0
        %6929 = vmatpush1.bf16.xpose.msra.mxu0 0
        %6930 = vmatprep.subr.bf16.mxu0 0
        %6931 = vmatpush1.bf16.xpose.msra.mxu0 0
        %6932 = vmatprep.subr.bf16.mxu0 0
        %6933 = vmatpush1.bf16.xpose.msra.mxu0 0
        %6934 = vmatprep.subr.bf16.mxu0 0
        %6935 = vmatpush1.bf16.xpose.msra.mxu0 0
        %6936 = vmatprep.subr.bf16.mxu0 0
        %6937 = vmatpush1.bf16.xpose.msra.mxu0 0
        %6938 = vmatprep.mubr.bf16.mxu0 %v5943
        %6939 = vmatmul.mubr.bf16.gmra.mrb[0].mxu0 %v5942
        %v6940 = vpop.f32.mrb[0].mxu0
        %v6941 = vadd.f32 %v6901, %v6940
        %v6942 = vpop.f32.mrb[0].mxu0
        %v6943 = vpop.f32.mrb[0].mxu0
        %v6944 = vpop.f32.mrb[0].mxu0
        %6945 = vdwg.mxu0
        %6946 = vmatprep.subr.bf16.mxu0 %v6142
        %6947 = vmatpush1.bf16.xpose.msra.mxu0 %v6141
        %6948 = vmatprep.subr.bf16.mxu0 0
        %6949 = vmatpush1.bf16.xpose.msra.mxu0 0
        %6950 = vmatprep.subr.bf16.mxu0 0
        %6951 = vmatpush1.bf16.xpose.msra.mxu0 0
        %6952 = vmatprep.subr.bf16.mxu0 0
        %6953 = vmatpush1.bf16.xpose.msra.mxu0 0
        %6954 = vmatprep.subr.bf16.mxu0 0
        %6955 = vmatpush1.bf16.xpose.msra.mxu0 0
        %6956 = vmatprep.subr.bf16.mxu0 0
        %6957 = vmatpush1.bf16.xpose.msra.mxu0 0
        %6958 = vmatprep.subr.bf16.mxu0 0
        %6959 = vmatpush1.bf16.xpose.msra.mxu0 0
        %6960 = vmatprep.subr.bf16.mxu0 0
        %6961 = vmatpush1.bf16.xpose.msra.mxu0 0
        %6962 = vmatprep.subr.bf16.mxu0 0
        %6963 = vmatpush1.bf16.xpose.msra.mxu0 0
        %6964 = vmatprep.subr.bf16.mxu0 0
        %6965 = vmatpush1.bf16.xpose.msra.mxu0 0
        %6966 = vmatprep.subr.bf16.mxu0 0
        %6967 = vmatpush1.bf16.xpose.msra.mxu0 0
        %6968 = vmatprep.subr.bf16.mxu0 0
        %6969 = vmatpush1.bf16.xpose.msra.mxu0 0
        %6970 = vmatprep.subr.bf16.mxu0 0
        %6971 = vmatpush1.bf16.xpose.msra.mxu0 0
        %6972 = vmatprep.subr.bf16.mxu0 0
        %6973 = vmatpush1.bf16.xpose.msra.mxu0 0
        %6974 = vmatprep.subr.bf16.mxu0 0
        %6975 = vmatpush1.bf16.xpose.msra.mxu0 0
        %6976 = vmatprep.subr.bf16.mxu0 0
        %6977 = vmatpush1.bf16.xpose.msra.mxu0 0
        %6978 = vmatprep.mubr.bf16.mxu0 %v5945
        %6979 = vmatmul.mubr.bf16.gmra.mrb[0].mxu0 %v5944
        %v6980 = vpop.f32.mrb[0].mxu0
        %v6981 = vadd.f32 %v6941, %v6980
        %v6982 = vpop.f32.mrb[0].mxu0
        %v6983 = vpop.f32.mrb[0].mxu0
        %v6984 = vpop.f32.mrb[0].mxu0
        %6985 = vdwg.mxu0
        %6986 = vmatprep.subr.bf16.mxu0 %v6144
        %6987 = vmatpush1.bf16.xpose.msra.mxu0 %v6143
        %6988 = vmatprep.subr.bf16.mxu0 0
        %6989 = vmatpush1.bf16.xpose.msra.mxu0 0
        %6990 = vmatprep.subr.bf16.mxu0 0
        %6991 = vmatpush1.bf16.xpose.msra.mxu0 0
        %6992 = vmatprep.subr.bf16.mxu0 0
        %6993 = vmatpush1.bf16.xpose.msra.mxu0 0
        %6994 = vmatprep.subr.bf16.mxu0 0
        %6995 = vmatpush1.bf16.xpose.msra.mxu0 0
        %6996 = vmatprep.subr.bf16.mxu0 0
        %6997 = vmatpush1.bf16.xpose.msra.mxu0 0
        %6998 = vmatprep.subr.bf16.mxu0 0
        %6999 = vmatpush1.bf16.xpose.msra.mxu0 0
        %7000 = vmatprep.subr.bf16.mxu0 0
        %7001 = vmatpush1.bf16.xpose.msra.mxu0 0
        %7002 = vmatprep.subr.bf16.mxu0 0
        %7003 = vmatpush1.bf16.xpose.msra.mxu0 0
        %7004 = vmatprep.subr.bf16.mxu0 0
        %7005 = vmatpush1.bf16.xpose.msra.mxu0 0
        %7006 = vmatprep.subr.bf16.mxu0 0
        %7007 = vmatpush1.bf16.xpose.msra.mxu0 0
        %7008 = vmatprep.subr.bf16.mxu0 0
        %7009 = vmatpush1.bf16.xpose.msra.mxu0 0
        %7010 = vmatprep.subr.bf16.mxu0 0
        %7011 = vmatpush1.bf16.xpose.msra.mxu0 0
        %7012 = vmatprep.subr.bf16.mxu0 0
        %7013 = vmatpush1.bf16.xpose.msra.mxu0 0
        %7014 = vmatprep.subr.bf16.mxu0 0
        %7015 = vmatpush1.bf16.xpose.msra.mxu0 0
        %7016 = vmatprep.subr.bf16.mxu0 0
        %7017 = vmatpush1.bf16.xpose.msra.mxu0 0
        %7018 = vmatprep.mubr.bf16.mxu0 %v5947
        %7019 = vmatmul.mubr.bf16.gmra.mrb[0].mxu0 %v5946
        %v7020 = vpop.f32.mrb[0].mxu0
        %v7021 = vadd.f32 %v6981, %v7020
        %v7022 = vpop.f32.mrb[0].mxu0
        %v7023 = vpop.f32.mrb[0].mxu0
        %v7024 = vpop.f32.mrb[0].mxu0
        %7025 = vdwg.mxu0
        %7026 = vmatprep.subr.bf16.mxu0 %v6146
        %7027 = vmatpush1.bf16.xpose.msra.mxu0 %v6145
        %7028 = vmatprep.subr.bf16.mxu0 0
        %7029 = vmatpush1.bf16.xpose.msra.mxu0 0
        %7030 = vmatprep.subr.bf16.mxu0 0
        %7031 = vmatpush1.bf16.xpose.msra.mxu0 0
        %7032 = vmatprep.subr.bf16.mxu0 0
        %7033 = vmatpush1.bf16.xpose.msra.mxu0 0
        %7034 = vmatprep.subr.bf16.mxu0 0
        %7035 = vmatpush1.bf16.xpose.msra.mxu0 0
        %7036 = vmatprep.subr.bf16.mxu0 0
        %7037 = vmatpush1.bf16.xpose.msra.mxu0 0
        %7038 = vmatprep.subr.bf16.mxu0 0
        %7039 = vmatpush1.bf16.xpose.msra.mxu0 0
        %7040 = vmatprep.subr.bf16.mxu0 0
        %7041 = vmatpush1.bf16.xpose.msra.mxu0 0
        %7042 = vmatprep.subr.bf16.mxu0 0
        %7043 = vmatpush1.bf16.xpose.msra.mxu0 0
        %7044 = vmatprep.subr.bf16.mxu0 0
        %7045 = vmatpush1.bf16.xpose.msra.mxu0 0
        %7046 = vmatprep.subr.bf16.mxu0 0
        %7047 = vmatpush1.bf16.xpose.msra.mxu0 0
        %7048 = vmatprep.subr.bf16.mxu0 0
        %7049 = vmatpush1.bf16.xpose.msra.mxu0 0
        %7050 = vmatprep.subr.bf16.mxu0 0
        %7051 = vmatpush1.bf16.xpose.msra.mxu0 0
        %7052 = vmatprep.subr.bf16.mxu0 0
        %7053 = vmatpush1.bf16.xpose.msra.mxu0 0
        %7054 = vmatprep.subr.bf16.mxu0 0
        %7055 = vmatpush1.bf16.xpose.msra.mxu0 0
        %7056 = vmatprep.subr.bf16.mxu0 0
        %7057 = vmatpush1.bf16.xpose.msra.mxu0 0
        %7058 = vmatprep.mubr.bf16.mxu0 %v5949
        %7059 = vmatmul.mubr.bf16.gmra.mrb[0].mxu0 %v5948
        %v7060 = vpop.f32.mrb[0].mxu0
        %v7061 = vadd.f32 %v7021, %v7060
        %v7062 = vpop.f32.mrb[0].mxu0
        %v7063 = vpop.f32.mrb[0].mxu0
        %v7064 = vpop.f32.mrb[0].mxu0
        %7065 = vdwg.mxu0
        %7066 = vmatprep.subr.bf16.mxu0 %v6148
        %7067 = vmatpush1.bf16.xpose.msra.mxu0 %v6147
        %7068 = vmatprep.subr.bf16.mxu0 0
        %7069 = vmatpush1.bf16.xpose.msra.mxu0 0
        %7070 = vmatprep.subr.bf16.mxu0 0
        %7071 = vmatpush1.bf16.xpose.msra.mxu0 0
        %7072 = vmatprep.subr.bf16.mxu0 0
        %7073 = vmatpush1.bf16.xpose.msra.mxu0 0
        %7074 = vmatprep.subr.bf16.mxu0 0
        %7075 = vmatpush1.bf16.xpose.msra.mxu0 0
        %7076 = vmatprep.subr.bf16.mxu0 0
        %7077 = vmatpush1.bf16.xpose.msra.mxu0 0
        %7078 = vmatprep.subr.bf16.mxu0 0
        %7079 = vmatpush1.bf16.xpose.msra.mxu0 0
        %7080 = vmatprep.subr.bf16.mxu0 0
        %7081 = vmatpush1.bf16.xpose.msra.mxu0 0
        %7082 = vmatprep.subr.bf16.mxu0 0
        %7083 = vmatpush1.bf16.xpose.msra.mxu0 0
        %7084 = vmatprep.subr.bf16.mxu0 0
        %7085 = vmatpush1.bf16.xpose.msra.mxu0 0
        %7086 = vmatprep.subr.bf16.mxu0 0
        %7087 = vmatpush1.bf16.xpose.msra.mxu0 0
        %7088 = vmatprep.subr.bf16.mxu0 0
        %7089 = vmatpush1.bf16.xpose.msra.mxu0 0
        %7090 = vmatprep.subr.bf16.mxu0 0
        %7091 = vmatpush1.bf16.xpose.msra.mxu0 0
        %7092 = vmatprep.subr.bf16.mxu0 0
        %7093 = vmatpush1.bf16.xpose.msra.mxu0 0
        %7094 = vmatprep.subr.bf16.mxu0 0
        %7095 = vmatpush1.bf16.xpose.msra.mxu0 0
        %7096 = vmatprep.subr.bf16.mxu0 0
        %7097 = vmatpush1.bf16.xpose.msra.mxu0 0
        %7098 = vmatprep.mubr.bf16.mxu0 %v5951
        %7099 = vmatmul.mubr.bf16.gmra.mrb[0].mxu0 %v5950
        %v7100 = vpop.f32.mrb[0].mxu0
        %v7101 = vadd.f32 %v7061, %v7100
        %v7102 = vpop.f32.mrb[0].mxu0
        %v7103 = vpop.f32.mrb[0].mxu0
        %v7104 = vpop.f32.mrb[0].mxu0
        %7105 = vdwg.mxu0
        %7106 = vmatprep.subr.bf16.mxu0 %v6150
        %7107 = vmatpush1.bf16.xpose.msra.mxu0 %v6149
        %7108 = vmatprep.subr.bf16.mxu0 0
        %7109 = vmatpush1.bf16.xpose.msra.mxu0 0
        %7110 = vmatprep.subr.bf16.mxu0 0
        %7111 = vmatpush1.bf16.xpose.msra.mxu0 0
        %7112 = vmatprep.subr.bf16.mxu0 0
        %7113 = vmatpush1.bf16.xpose.msra.mxu0 0
        %7114 = vmatprep.subr.bf16.mxu0 0
        %7115 = vmatpush1.bf16.xpose.msra.mxu0 0
        %7116 = vmatprep.subr.bf16.mxu0 0
        %7117 = vmatpush1.bf16.xpose.msra.mxu0 0
        %7118 = vmatprep.subr.bf16.mxu0 0
        %7119 = vmatpush1.bf16.xpose.msra.mxu0 0
        %7120 = vmatprep.subr.bf16.mxu0 0
        %7121 = vmatpush1.bf16.xpose.msra.mxu0 0
        %7122 = vmatprep.subr.bf16.mxu0 0
        %7123 = vmatpush1.bf16.xpose.msra.mxu0 0
        %7124 = vmatprep.subr.bf16.mxu0 0
        %7125 = vmatpush1.bf16.xpose.msra.mxu0 0
        %7126 = vmatprep.subr.bf16.mxu0 0
        %7127 = vmatpush1.bf16.xpose.msra.mxu0 0
        %7128 = vmatprep.subr.bf16.mxu0 0
        %7129 = vmatpush1.bf16.xpose.msra.mxu0 0
        %7130 = vmatprep.subr.bf16.mxu0 0
        %7131 = vmatpush1.bf16.xpose.msra.mxu0 0
        %7132 = vmatprep.subr.bf16.mxu0 0
        %7133 = vmatpush1.bf16.xpose.msra.mxu0 0
        %7134 = vmatprep.subr.bf16.mxu0 0
        %7135 = vmatpush1.bf16.xpose.msra.mxu0 0
        %7136 = vmatprep.subr.bf16.mxu0 0
        %7137 = vmatpush1.bf16.xpose.msra.mxu0 0
        %7138 = vmatprep.mubr.bf16.mxu0 %v5953
        %7139 = vmatmul.mubr.bf16.gmra.mrb[0].mxu0 %v5952
        %v7140 = vpop.f32.mrb[0].mxu0
        %v7141 = vadd.f32 %v7101, %v7140
        %v7142 = vpop.f32.mrb[0].mxu0
        %v7143 = vpop.f32.mrb[0].mxu0
        %v7144 = vpop.f32.mrb[0].mxu0
        %7145 = vdwg.mxu0
        %7146 = vmatprep.subr.bf16.mxu0 %v6152
        %7147 = vmatpush1.bf16.xpose.msra.mxu0 %v6151
        %7148 = vmatprep.subr.bf16.mxu0 0
        %7149 = vmatpush1.bf16.xpose.msra.mxu0 0
        %7150 = vmatprep.subr.bf16.mxu0 0
        %7151 = vmatpush1.bf16.xpose.msra.mxu0 0
        %7152 = vmatprep.subr.bf16.mxu0 0
        %7153 = vmatpush1.bf16.xpose.msra.mxu0 0
        %7154 = vmatprep.subr.bf16.mxu0 0
        %7155 = vmatpush1.bf16.xpose.msra.mxu0 0
        %7156 = vmatprep.subr.bf16.mxu0 0
        %7157 = vmatpush1.bf16.xpose.msra.mxu0 0
        %7158 = vmatprep.subr.bf16.mxu0 0
        %7159 = vmatpush1.bf16.xpose.msra.mxu0 0
        %7160 = vmatprep.subr.bf16.mxu0 0
        %7161 = vmatpush1.bf16.xpose.msra.mxu0 0
        %7162 = vmatprep.subr.bf16.mxu0 0
        %7163 = vmatpush1.bf16.xpose.msra.mxu0 0
        %7164 = vmatprep.subr.bf16.mxu0 0
        %7165 = vmatpush1.bf16.xpose.msra.mxu0 0
        %7166 = vmatprep.subr.bf16.mxu0 0
        %7167 = vmatpush1.bf16.xpose.msra.mxu0 0
        %7168 = vmatprep.subr.bf16.mxu0 0
        %7169 = vmatpush1.bf16.xpose.msra.mxu0 0
        %7170 = vmatprep.subr.bf16.mxu0 0
        %7171 = vmatpush1.bf16.xpose.msra.mxu0 0
        %7172 = vmatprep.subr.bf16.mxu0 0
        %7173 = vmatpush1.bf16.xpose.msra.mxu0 0
        %7174 = vmatprep.subr.bf16.mxu0 0
        %7175 = vmatpush1.bf16.xpose.msra.mxu0 0
        %7176 = vmatprep.subr.bf16.mxu0 0
        %7177 = vmatpush1.bf16.xpose.msra.mxu0 0
        %7178 = vmatprep.mubr.bf16.mxu0 %v5955
        %7179 = vmatmul.mubr.bf16.gmra.mrb[0].mxu0 %v5954
        %v7180 = vpop.f32.mrb[0].mxu0
        %v7181 = vadd.f32 %v7141, %v7180
        %v7182 = vpop.f32.mrb[0].mxu0
        %v7183 = vpop.f32.mrb[0].mxu0
        %v7184 = vpop.f32.mrb[0].mxu0
        %7185 = vdwg.mxu0
        %7186 = vmatprep.subr.bf16.mxu0 %v6154
        %7187 = vmatpush1.bf16.xpose.msra.mxu0 %v6153
        %7188 = vmatprep.subr.bf16.mxu0 0
        %7189 = vmatpush1.bf16.xpose.msra.mxu0 0
        %7190 = vmatprep.subr.bf16.mxu0 0
        %7191 = vmatpush1.bf16.xpose.msra.mxu0 0
        %7192 = vmatprep.subr.bf16.mxu0 0
        %7193 = vmatpush1.bf16.xpose.msra.mxu0 0
        %7194 = vmatprep.subr.bf16.mxu0 0
        %7195 = vmatpush1.bf16.xpose.msra.mxu0 0
        %7196 = vmatprep.subr.bf16.mxu0 0
        %7197 = vmatpush1.bf16.xpose.msra.mxu0 0
        %7198 = vmatprep.subr.bf16.mxu0 0
        %7199 = vmatpush1.bf16.xpose.msra.mxu0 0
        %7200 = vmatprep.subr.bf16.mxu0 0
        %7201 = vmatpush1.bf16.xpose.msra.mxu0 0
        %7202 = vmatprep.subr.bf16.mxu0 0
        %7203 = vmatpush1.bf16.xpose.msra.mxu0 0
        %7204 = vmatprep.subr.bf16.mxu0 0
        %7205 = vmatpush1.bf16.xpose.msra.mxu0 0
        %7206 = vmatprep.subr.bf16.mxu0 0
        %7207 = vmatpush1.bf16.xpose.msra.mxu0 0
        %7208 = vmatprep.subr.bf16.mxu0 0
        %7209 = vmatpush1.bf16.xpose.msra.mxu0 0
        %7210 = vmatprep.subr.bf16.mxu0 0
        %7211 = vmatpush1.bf16.xpose.msra.mxu0 0
        %7212 = vmatprep.subr.bf16.mxu0 0
        %7213 = vmatpush1.bf16.xpose.msra.mxu0 0
        %7214 = vmatprep.subr.bf16.mxu0 0
        %7215 = vmatpush1.bf16.xpose.msra.mxu0 0
        %7216 = vmatprep.subr.bf16.mxu0 0
        %7217 = vmatpush1.bf16.xpose.msra.mxu0 0
        %7218 = vmatprep.mubr.bf16.mxu0 %v5957
        %7219 = vmatmul.mubr.bf16.gmra.mrb[0].mxu0 %v5956
        %v7220 = vpop.f32.mrb[0].mxu0
        %v7221 = vadd.f32 %v7181, %v7220
        %v7222 = vpop.f32.mrb[0].mxu0
        %v7223 = vpop.f32.mrb[0].mxu0
        %v7224 = vpop.f32.mrb[0].mxu0
        %7225 = vdwg.mxu0
        %7226 = vmatprep.subr.bf16.mxu0 %v6156
        %7227 = vmatpush1.bf16.xpose.msra.mxu0 %v6155
        %7228 = vmatprep.subr.bf16.mxu0 0
        %7229 = vmatpush1.bf16.xpose.msra.mxu0 0
        %7230 = vmatprep.subr.bf16.mxu0 0
        %7231 = vmatpush1.bf16.xpose.msra.mxu0 0
        %7232 = vmatprep.subr.bf16.mxu0 0
        %7233 = vmatpush1.bf16.xpose.msra.mxu0 0
        %7234 = vmatprep.subr.bf16.mxu0 0
        %7235 = vmatpush1.bf16.xpose.msra.mxu0 0
        %7236 = vmatprep.subr.bf16.mxu0 0
        %7237 = vmatpush1.bf16.xpose.msra.mxu0 0
        %7238 = vmatprep.subr.bf16.mxu0 0
        %7239 = vmatpush1.bf16.xpose.msra.mxu0 0
        %7240 = vmatprep.subr.bf16.mxu0 0
        %7241 = vmatpush1.bf16.xpose.msra.mxu0 0
        %7242 = vmatprep.subr.bf16.mxu0 0
        %7243 = vmatpush1.bf16.xpose.msra.mxu0 0
        %7244 = vmatprep.subr.bf16.mxu0 0
        %7245 = vmatpush1.bf16.xpose.msra.mxu0 0
        %7246 = vmatprep.subr.bf16.mxu0 0
        %7247 = vmatpush1.bf16.xpose.msra.mxu0 0
        %7248 = vmatprep.subr.bf16.mxu0 0
        %7249 = vmatpush1.bf16.xpose.msra.mxu0 0
        %7250 = vmatprep.subr.bf16.mxu0 0
        %7251 = vmatpush1.bf16.xpose.msra.mxu0 0
        %7252 = vmatprep.subr.bf16.mxu0 0
        %7253 = vmatpush1.bf16.xpose.msra.mxu0 0
        %7254 = vmatprep.subr.bf16.mxu0 0
        %7255 = vmatpush1.bf16.xpose.msra.mxu0 0
        %7256 = vmatprep.subr.bf16.mxu0 0
        %7257 = vmatpush1.bf16.xpose.msra.mxu0 0
        %7258 = vmatprep.mubr.bf16.mxu0 %v5959
        %7259 = vmatmul.mubr.bf16.gmra.mrb[0].mxu0 %v5958
        %v7260 = vpop.f32.mrb[0].mxu0
        %v7261 = vadd.f32 %v7221, %v7260
        %v7262 = vpop.f32.mrb[0].mxu0
        %v7263 = vpop.f32.mrb[0].mxu0
        %v7264 = vpop.f32.mrb[0].mxu0
        %7265 = vdwg.mxu0
        %7266 = vmatprep.subr.bf16.mxu0 %v6158
        %7267 = vmatpush1.bf16.xpose.msra.mxu0 %v6157
        %7268 = vmatprep.subr.bf16.mxu0 0
        %7269 = vmatpush1.bf16.xpose.msra.mxu0 0
        %7270 = vmatprep.subr.bf16.mxu0 0
        %7271 = vmatpush1.bf16.xpose.msra.mxu0 0
        %7272 = vmatprep.subr.bf16.mxu0 0
        %7273 = vmatpush1.bf16.xpose.msra.mxu0 0
        %7274 = vmatprep.subr.bf16.mxu0 0
        %7275 = vmatpush1.bf16.xpose.msra.mxu0 0
        %7276 = vmatprep.subr.bf16.mxu0 0
        %7277 = vmatpush1.bf16.xpose.msra.mxu0 0
        %7278 = vmatprep.subr.bf16.mxu0 0
        %7279 = vmatpush1.bf16.xpose.msra.mxu0 0
        %7280 = vmatprep.subr.bf16.mxu0 0
        %7281 = vmatpush1.bf16.xpose.msra.mxu0 0
        %7282 = vmatprep.subr.bf16.mxu0 0
        %7283 = vmatpush1.bf16.xpose.msra.mxu0 0
        %7284 = vmatprep.subr.bf16.mxu0 0
        %7285 = vmatpush1.bf16.xpose.msra.mxu0 0
        %7286 = vmatprep.subr.bf16.mxu0 0
        %7287 = vmatpush1.bf16.xpose.msra.mxu0 0
        %7288 = vmatprep.subr.bf16.mxu0 0
        %7289 = vmatpush1.bf16.xpose.msra.mxu0 0
        %7290 = vmatprep.subr.bf16.mxu0 0
        %7291 = vmatpush1.bf16.xpose.msra.mxu0 0
        %7292 = vmatprep.subr.bf16.mxu0 0
        %7293 = vmatpush1.bf16.xpose.msra.mxu0 0
        %7294 = vmatprep.subr.bf16.mxu0 0
        %7295 = vmatpush1.bf16.xpose.msra.mxu0 0
        %7296 = vmatprep.subr.bf16.mxu0 0
        %7297 = vmatpush1.bf16.xpose.msra.mxu0 0
        %7298 = vmatprep.mubr.bf16.mxu0 %v5961
        %7299 = vmatmul.mubr.bf16.gmra.mrb[0].mxu0 %v5960
        %v7300 = vpop.f32.mrb[0].mxu0
        %v7301 = vadd.f32 %v7261, %v7300
        %v7302 = vpop.f32.mrb[0].mxu0
        %v7303 = vpop.f32.mrb[0].mxu0
        %v7304 = vpop.f32.mrb[0].mxu0
        %7305 = vdwg.mxu0
        %7306 = vmatprep.subr.bf16.mxu0 %v6160
        %7307 = vmatpush1.bf16.xpose.msra.mxu0 %v6159
        %7308 = vmatprep.subr.bf16.mxu0 0
        %7309 = vmatpush1.bf16.xpose.msra.mxu0 0
        %7310 = vmatprep.subr.bf16.mxu0 0
        %7311 = vmatpush1.bf16.xpose.msra.mxu0 0
        %7312 = vmatprep.subr.bf16.mxu0 0
        %7313 = vmatpush1.bf16.xpose.msra.mxu0 0
        %7314 = vmatprep.subr.bf16.mxu0 0
        %7315 = vmatpush1.bf16.xpose.msra.mxu0 0
        %7316 = vmatprep.subr.bf16.mxu0 0
        %7317 = vmatpush1.bf16.xpose.msra.mxu0 0
        %7318 = vmatprep.subr.bf16.mxu0 0
        %7319 = vmatpush1.bf16.xpose.msra.mxu0 0
        %7320 = vmatprep.subr.bf16.mxu0 0
        %7321 = vmatpush1.bf16.xpose.msra.mxu0 0
        %7322 = vmatprep.subr.bf16.mxu0 0
        %7323 = vmatpush1.bf16.xpose.msra.mxu0 0
        %7324 = vmatprep.subr.bf16.mxu0 0
        %7325 = vmatpush1.bf16.xpose.msra.mxu0 0
        %7326 = vmatprep.subr.bf16.mxu0 0
        %7327 = vmatpush1.bf16.xpose.msra.mxu0 0
        %7328 = vmatprep.subr.bf16.mxu0 0
        %7329 = vmatpush1.bf16.xpose.msra.mxu0 0
        %7330 = vmatprep.subr.bf16.mxu0 0
        %7331 = vmatpush1.bf16.xpose.msra.mxu0 0
        %7332 = vmatprep.subr.bf16.mxu0 0
        %7333 = vmatpush1.bf16.xpose.msra.mxu0 0
        %7334 = vmatprep.subr.bf16.mxu0 0
        %7335 = vmatpush1.bf16.xpose.msra.mxu0 0
        %7336 = vmatprep.subr.bf16.mxu0 0
        %7337 = vmatpush1.bf16.xpose.msra.mxu0 0
        %7338 = vmatprep.mubr.bf16.mxu0 %v5963
        %7339 = vmatmul.mubr.bf16.gmra.mrb[0].mxu0 %v5962
        %v7340 = vpop.f32.mrb[0].mxu0
        %v7341 = vadd.f32 %v7301, %v7340
        %v7342 = vpop.f32.mrb[0].mxu0
        %v7343 = vpop.f32.mrb[0].mxu0
        %v7344 = vpop.f32.mrb[0].mxu0
        %7345 = vdwg.mxu0
        %7346 = vmatprep.subr.bf16.mxu0 %v6162
        %7347 = vmatpush1.bf16.xpose.msra.mxu0 %v6161
        %7348 = vmatprep.subr.bf16.mxu0 0
        %7349 = vmatpush1.bf16.xpose.msra.mxu0 0
        %7350 = vmatprep.subr.bf16.mxu0 0
        %7351 = vmatpush1.bf16.xpose.msra.mxu0 0
        %7352 = vmatprep.subr.bf16.mxu0 0
        %7353 = vmatpush1.bf16.xpose.msra.mxu0 0
        %7354 = vmatprep.subr.bf16.mxu0 0
        %7355 = vmatpush1.bf16.xpose.msra.mxu0 0
        %7356 = vmatprep.subr.bf16.mxu0 0
        %7357 = vmatpush1.bf16.xpose.msra.mxu0 0
        %7358 = vmatprep.subr.bf16.mxu0 0
        %7359 = vmatpush1.bf16.xpose.msra.mxu0 0
        %7360 = vmatprep.subr.bf16.mxu0 0
        %7361 = vmatpush1.bf16.xpose.msra.mxu0 0
        %7362 = vmatprep.subr.bf16.mxu0 0
        %7363 = vmatpush1.bf16.xpose.msra.mxu0 0
        %7364 = vmatprep.subr.bf16.mxu0 0
        %7365 = vmatpush1.bf16.xpose.msra.mxu0 0
        %7366 = vmatprep.subr.bf16.mxu0 0
        %7367 = vmatpush1.bf16.xpose.msra.mxu0 0
        %7368 = vmatprep.subr.bf16.mxu0 0
        %7369 = vmatpush1.bf16.xpose.msra.mxu0 0
        %7370 = vmatprep.subr.bf16.mxu0 0
        %7371 = vmatpush1.bf16.xpose.msra.mxu0 0
        %7372 = vmatprep.subr.bf16.mxu0 0
        %7373 = vmatpush1.bf16.xpose.msra.mxu0 0
        %7374 = vmatprep.subr.bf16.mxu0 0
        %7375 = vmatpush1.bf16.xpose.msra.mxu0 0
        %7376 = vmatprep.subr.bf16.mxu0 0
        %7377 = vmatpush1.bf16.xpose.msra.mxu0 0
        %7378 = vmatprep.mubr.bf16.mxu0 %v5965
        %7379 = vmatmul.mubr.bf16.gmra.mrb[0].mxu0 %v5964
        %v7380 = vpop.f32.mrb[0].mxu0
        %v7381 = vadd.f32 %v7341, %v7380
        %v7382 = vpop.f32.mrb[0].mxu0
        %v7383 = vpop.f32.mrb[0].mxu0
        %v7384 = vpop.f32.mrb[0].mxu0
        %7385 = vdwg.mxu0
        %7386 = vmatprep.subr.bf16.mxu0 %v6164
        %7387 = vmatpush1.bf16.xpose.msra.mxu0 %v6163
        %7388 = vmatprep.subr.bf16.mxu0 0
        %7389 = vmatpush1.bf16.xpose.msra.mxu0 0
        %7390 = vmatprep.subr.bf16.mxu0 0
        %7391 = vmatpush1.bf16.xpose.msra.mxu0 0
        %7392 = vmatprep.subr.bf16.mxu0 0
        %7393 = vmatpush1.bf16.xpose.msra.mxu0 0
        %7394 = vmatprep.subr.bf16.mxu0 0
        %7395 = vmatpush1.bf16.xpose.msra.mxu0 0
        %7396 = vmatprep.subr.bf16.mxu0 0
        %7397 = vmatpush1.bf16.xpose.msra.mxu0 0
        %7398 = vmatprep.subr.bf16.mxu0 0
        %7399 = vmatpush1.bf16.xpose.msra.mxu0 0
        %7400 = vmatprep.subr.bf16.mxu0 0
        %7401 = vmatpush1.bf16.xpose.msra.mxu0 0
        %7402 = vmatprep.subr.bf16.mxu0 0
        %7403 = vmatpush1.bf16.xpose.msra.mxu0 0
        %7404 = vmatprep.subr.bf16.mxu0 0
        %7405 = vmatpush1.bf16.xpose.msra.mxu0 0
        %7406 = vmatprep.subr.bf16.mxu0 0
        %7407 = vmatpush1.bf16.xpose.msra.mxu0 0
        %7408 = vmatprep.subr.bf16.mxu0 0
        %7409 = vmatpush1.bf16.xpose.msra.mxu0 0
        %7410 = vmatprep.subr.bf16.mxu0 0
        %7411 = vmatpush1.bf16.xpose.msra.mxu0 0
        %7412 = vmatprep.subr.bf16.mxu0 0
        %7413 = vmatpush1.bf16.xpose.msra.mxu0 0
        %7414 = vmatprep.subr.bf16.mxu0 0
        %7415 = vmatpush1.bf16.xpose.msra.mxu0 0
        %7416 = vmatprep.subr.bf16.mxu0 0
        %7417 = vmatpush1.bf16.xpose.msra.mxu0 0
        %7418 = vmatprep.mubr.bf16.mxu0 %v5967
        %7419 = vmatmul.mubr.bf16.gmra.mrb[0].mxu0 %v5966
        %v7420 = vpop.f32.mrb[0].mxu0
        %v7421 = vadd.f32 %v7381, %v7420
        %v7422 = vpop.f32.mrb[0].mxu0
        %v7423 = vpop.f32.mrb[0].mxu0
        %v7424 = vpop.f32.mrb[0].mxu0
        %7425 = vdwg.mxu0
        %7426 = vmatprep.subr.bf16.mxu0 %v6166
        %7427 = vmatpush1.bf16.xpose.msra.mxu0 %v6165
        %7428 = vmatprep.subr.bf16.mxu0 0
        %7429 = vmatpush1.bf16.xpose.msra.mxu0 0
        %7430 = vmatprep.subr.bf16.mxu0 0
        %7431 = vmatpush1.bf16.xpose.msra.mxu0 0
        %7432 = vmatprep.subr.bf16.mxu0 0
        %7433 = vmatpush1.bf16.xpose.msra.mxu0 0
        %7434 = vmatprep.subr.bf16.mxu0 0
        %7435 = vmatpush1.bf16.xpose.msra.mxu0 0
        %7436 = vmatprep.subr.bf16.mxu0 0
        %7437 = vmatpush1.bf16.xpose.msra.mxu0 0
        %7438 = vmatprep.subr.bf16.mxu0 0
        %7439 = vmatpush1.bf16.xpose.msra.mxu0 0
        %7440 = vmatprep.subr.bf16.mxu0 0
        %7441 = vmatpush1.bf16.xpose.msra.mxu0 0
        %7442 = vmatprep.subr.bf16.mxu0 0
        %7443 = vmatpush1.bf16.xpose.msra.mxu0 0
        %7444 = vmatprep.subr.bf16.mxu0 0
        %7445 = vmatpush1.bf16.xpose.msra.mxu0 0
        %7446 = vmatprep.subr.bf16.mxu0 0
        %7447 = vmatpush1.bf16.xpose.msra.mxu0 0
        %7448 = vmatprep.subr.bf16.mxu0 0
        %7449 = vmatpush1.bf16.xpose.msra.mxu0 0
        %7450 = vmatprep.subr.bf16.mxu0 0
        %7451 = vmatpush1.bf16.xpose.msra.mxu0 0
        %7452 = vmatprep.subr.bf16.mxu0 0
        %7453 = vmatpush1.bf16.xpose.msra.mxu0 0
        %7454 = vmatprep.subr.bf16.mxu0 0
        %7455 = vmatpush1.bf16.xpose.msra.mxu0 0
        %7456 = vmatprep.subr.bf16.mxu0 0
        %7457 = vmatpush1.bf16.xpose.msra.mxu0 0
        %7458 = vmatprep.mubr.bf16.mxu0 %v5969
        %7459 = vmatmul.mubr.bf16.gmra.mrb[0].mxu0 %v5968
        %v7460 = vpop.f32.mrb[0].mxu0
        %v7461 = vadd.f32 %v7421, %v7460
        %v7462 = vpop.f32.mrb[0].mxu0
        %v7463 = vpop.f32.mrb[0].mxu0
        %v7464 = vpop.f32.mrb[0].mxu0
        %7465 = vdwg.mxu0
        %7466 = vmatprep.subr.bf16.mxu0 %v6168
        %7467 = vmatpush1.bf16.xpose.msra.mxu0 %v6167
        %7468 = vmatprep.subr.bf16.mxu0 0
        %7469 = vmatpush1.bf16.xpose.msra.mxu0 0
        %7470 = vmatprep.subr.bf16.mxu0 0
        %7471 = vmatpush1.bf16.xpose.msra.mxu0 0
        %7472 = vmatprep.subr.bf16.mxu0 0
        %7473 = vmatpush1.bf16.xpose.msra.mxu0 0
        %7474 = vmatprep.subr.bf16.mxu0 0
        %7475 = vmatpush1.bf16.xpose.msra.mxu0 0
        %7476 = vmatprep.subr.bf16.mxu0 0
        %7477 = vmatpush1.bf16.xpose.msra.mxu0 0
        %7478 = vmatprep.subr.bf16.mxu0 0
        %7479 = vmatpush1.bf16.xpose.msra.mxu0 0
        %7480 = vmatprep.subr.bf16.mxu0 0
        %7481 = vmatpush1.bf16.xpose.msra.mxu0 0
        %7482 = vmatprep.subr.bf16.mxu0 0
        %7483 = vmatpush1.bf16.xpose.msra.mxu0 0
        %7484 = vmatprep.subr.bf16.mxu0 0
        %7485 = vmatpush1.bf16.xpose.msra.mxu0 0
        %7486 = vmatprep.subr.bf16.mxu0 0
        %7487 = vmatpush1.bf16.xpose.msra.mxu0 0
        %7488 = vmatprep.subr.bf16.mxu0 0
        %7489 = vmatpush1.bf16.xpose.msra.mxu0 0
        %7490 = vmatprep.subr.bf16.mxu0 0
        %7491 = vmatpush1.bf16.xpose.msra.mxu0 0
        %7492 = vmatprep.subr.bf16.mxu0 0
        %7493 = vmatpush1.bf16.xpose.msra.mxu0 0
        %7494 = vmatprep.subr.bf16.mxu0 0
        %7495 = vmatpush1.bf16.xpose.msra.mxu0 0
        %7496 = vmatprep.subr.bf16.mxu0 0
        %7497 = vmatpush1.bf16.xpose.msra.mxu0 0
        %7498 = vmatprep.mubr.bf16.mxu0 %v5971
        %7499 = vmatmul.mubr.bf16.gmra.mrb[0].mxu0 %v5970
        %v7500 = vpop.f32.mrb[0].mxu0
        %v7501 = vadd.f32 %v7461, %v7500
        %v7502 = vpop.f32.mrb[0].mxu0
        %v7503 = vpop.f32.mrb[0].mxu0
        %v7504 = vpop.f32.mrb[0].mxu0
        %7505 = vdwg.mxu0
        %7506 = vmatprep.subr.bf16.mxu0 %v6170
        %7507 = vmatpush1.bf16.xpose.msra.mxu0 %v6169
        %7508 = vmatprep.subr.bf16.mxu0 0
        %7509 = vmatpush1.bf16.xpose.msra.mxu0 0
        %7510 = vmatprep.subr.bf16.mxu0 0
        %7511 = vmatpush1.bf16.xpose.msra.mxu0 0
        %7512 = vmatprep.subr.bf16.mxu0 0
        %7513 = vmatpush1.bf16.xpose.msra.mxu0 0
        %7514 = vmatprep.subr.bf16.mxu0 0
        %7515 = vmatpush1.bf16.xpose.msra.mxu0 0
        %7516 = vmatprep.subr.bf16.mxu0 0
        %7517 = vmatpush1.bf16.xpose.msra.mxu0 0
        %7518 = vmatprep.subr.bf16.mxu0 0
        %7519 = vmatpush1.bf16.xpose.msra.mxu0 0
        %7520 = vmatprep.subr.bf16.mxu0 0
        %7521 = vmatpush1.bf16.xpose.msra.mxu0 0
        %7522 = vmatprep.subr.bf16.mxu0 0
        %7523 = vmatpush1.bf16.xpose.msra.mxu0 0
        %7524 = vmatprep.subr.bf16.mxu0 0
        %7525 = vmatpush1.bf16.xpose.msra.mxu0 0
        %7526 = vmatprep.subr.bf16.mxu0 0
        %7527 = vmatpush1.bf16.xpose.msra.mxu0 0
        %7528 = vmatprep.subr.bf16.mxu0 0
        %7529 = vmatpush1.bf16.xpose.msra.mxu0 0
        %7530 = vmatprep.subr.bf16.mxu0 0
        %7531 = vmatpush1.bf16.xpose.msra.mxu0 0
        %7532 = vmatprep.subr.bf16.mxu0 0
        %7533 = vmatpush1.bf16.xpose.msra.mxu0 0
        %7534 = vmatprep.subr.bf16.mxu0 0
        %7535 = vmatpush1.bf16.xpose.msra.mxu0 0
        %7536 = vmatprep.subr.bf16.mxu0 0
        %7537 = vmatpush1.bf16.xpose.msra.mxu0 0
        %7538 = vmatprep.mubr.bf16.mxu0 %v5973
        %7539 = vmatmul.mubr.bf16.gmra.mrb[0].mxu0 %v5972
        %v7540 = vpop.f32.mrb[0].mxu0
        %v7541 = vadd.f32 %v7501, %v7540
        %v7542 = vpop.f32.mrb[0].mxu0
        %v7543 = vpop.f32.mrb[0].mxu0
        %v7544 = vpop.f32.mrb[0].mxu0
        %7545 = vdwg.mxu0
        %7546 = vmatprep.subr.bf16.mxu0 %v6172
        %7547 = vmatpush1.bf16.xpose.msra.mxu0 %v6171
        %7548 = vmatprep.subr.bf16.mxu0 0
        %7549 = vmatpush1.bf16.xpose.msra.mxu0 0
        %7550 = vmatprep.subr.bf16.mxu0 0
        %7551 = vmatpush1.bf16.xpose.msra.mxu0 0
        %7552 = vmatprep.subr.bf16.mxu0 0
        %7553 = vmatpush1.bf16.xpose.msra.mxu0 0
        %7554 = vmatprep.subr.bf16.mxu0 0
        %7555 = vmatpush1.bf16.xpose.msra.mxu0 0
        %7556 = vmatprep.subr.bf16.mxu0 0
        %7557 = vmatpush1.bf16.xpose.msra.mxu0 0
        %7558 = vmatprep.subr.bf16.mxu0 0
        %7559 = vmatpush1.bf16.xpose.msra.mxu0 0
        %7560 = vmatprep.subr.bf16.mxu0 0
        %7561 = vmatpush1.bf16.xpose.msra.mxu0 0
        %7562 = vmatprep.subr.bf16.mxu0 0
        %7563 = vmatpush1.bf16.xpose.msra.mxu0 0
        %7564 = vmatprep.subr.bf16.mxu0 0
        %7565 = vmatpush1.bf16.xpose.msra.mxu0 0
        %7566 = vmatprep.subr.bf16.mxu0 0
        %7567 = vmatpush1.bf16.xpose.msra.mxu0 0
        %7568 = vmatprep.subr.bf16.mxu0 0
        %7569 = vmatpush1.bf16.xpose.msra.mxu0 0
        %7570 = vmatprep.subr.bf16.mxu0 0
        %7571 = vmatpush1.bf16.xpose.msra.mxu0 0
        %7572 = vmatprep.subr.bf16.mxu0 0
        %7573 = vmatpush1.bf16.xpose.msra.mxu0 0
        %7574 = vmatprep.subr.bf16.mxu0 0
        %7575 = vmatpush1.bf16.xpose.msra.mxu0 0
        %7576 = vmatprep.subr.bf16.mxu0 0
        %7577 = vmatpush1.bf16.xpose.msra.mxu0 0
        %7578 = vmatprep.mubr.bf16.mxu0 %v5975
        %7579 = vmatmul.mubr.bf16.gmra.mrb[0].mxu0 %v5974
        %v7580 = vpop.f32.mrb[0].mxu0
        %v7581 = vadd.f32 %v7541, %v7580
        %v7582 = vpop.f32.mrb[0].mxu0
        %v7583 = vpop.f32.mrb[0].mxu0
        %v7584 = vpop.f32.mrb[0].mxu0
        %7585 = vdwg.mxu0
        %7586 = vmatprep.subr.bf16.mxu0 %v6174
        %7587 = vmatpush1.bf16.xpose.msra.mxu0 %v6173
        %7588 = vmatprep.subr.bf16.mxu0 0
        %7589 = vmatpush1.bf16.xpose.msra.mxu0 0
        %7590 = vmatprep.subr.bf16.mxu0 0
        %7591 = vmatpush1.bf16.xpose.msra.mxu0 0
        %7592 = vmatprep.subr.bf16.mxu0 0
        %7593 = vmatpush1.bf16.xpose.msra.mxu0 0
        %7594 = vmatprep.subr.bf16.mxu0 0
        %7595 = vmatpush1.bf16.xpose.msra.mxu0 0
        %7596 = vmatprep.subr.bf16.mxu0 0
        %7597 = vmatpush1.bf16.xpose.msra.mxu0 0
        %7598 = vmatprep.subr.bf16.mxu0 0
        %7599 = vmatpush1.bf16.xpose.msra.mxu0 0
        %7600 = vmatprep.subr.bf16.mxu0 0
        %7601 = vmatpush1.bf16.xpose.msra.mxu0 0
        %7602 = vmatprep.subr.bf16.mxu0 0
        %7603 = vmatpush1.bf16.xpose.msra.mxu0 0
        %7604 = vmatprep.subr.bf16.mxu0 0
        %7605 = vmatpush1.bf16.xpose.msra.mxu0 0
        %7606 = vmatprep.subr.bf16.mxu0 0
        %7607 = vmatpush1.bf16.xpose.msra.mxu0 0
        %7608 = vmatprep.subr.bf16.mxu0 0
        %7609 = vmatpush1.bf16.xpose.msra.mxu0 0
        %7610 = vmatprep.subr.bf16.mxu0 0
        %7611 = vmatpush1.bf16.xpose.msra.mxu0 0
        %7612 = vmatprep.subr.bf16.mxu0 0
        %7613 = vmatpush1.bf16.xpose.msra.mxu0 0
        %7614 = vmatprep.subr.bf16.mxu0 0
        %7615 = vmatpush1.bf16.xpose.msra.mxu0 0
        %7616 = vmatprep.subr.bf16.mxu0 0
        %7617 = vmatpush1.bf16.xpose.msra.mxu0 0
        %7618 = vmatprep.mubr.bf16.mxu0 %v5977
        %7619 = vmatmul.mubr.bf16.gmra.mrb[0].mxu0 %v5976
        %v7620 = vpop.f32.mrb[0].mxu0
        %v7621 = vadd.f32 %v7581, %v7620
        %v7622 = vpop.f32.mrb[0].mxu0
        %v7623 = vpop.f32.mrb[0].mxu0
        %v7624 = vpop.f32.mrb[0].mxu0
        %7625 = vdwg.mxu0
        %7626 = vmatprep.subr.bf16.mxu0 %v6176
        %7627 = vmatpush1.bf16.xpose.msra.mxu0 %v6175
        %7628 = vmatprep.subr.bf16.mxu0 0
        %7629 = vmatpush1.bf16.xpose.msra.mxu0 0
        %7630 = vmatprep.subr.bf16.mxu0 0
        %7631 = vmatpush1.bf16.xpose.msra.mxu0 0
        %7632 = vmatprep.subr.bf16.mxu0 0
        %7633 = vmatpush1.bf16.xpose.msra.mxu0 0
        %7634 = vmatprep.subr.bf16.mxu0 0
        %7635 = vmatpush1.bf16.xpose.msra.mxu0 0
        %7636 = vmatprep.subr.bf16.mxu0 0
        %7637 = vmatpush1.bf16.xpose.msra.mxu0 0
        %7638 = vmatprep.subr.bf16.mxu0 0
        %7639 = vmatpush1.bf16.xpose.msra.mxu0 0
        %7640 = vmatprep.subr.bf16.mxu0 0
        %7641 = vmatpush1.bf16.xpose.msra.mxu0 0
        %7642 = vmatprep.subr.bf16.mxu0 0
        %7643 = vmatpush1.bf16.xpose.msra.mxu0 0
        %7644 = vmatprep.subr.bf16.mxu0 0
        %7645 = vmatpush1.bf16.xpose.msra.mxu0 0
        %7646 = vmatprep.subr.bf16.mxu0 0
        %7647 = vmatpush1.bf16.xpose.msra.mxu0 0
        %7648 = vmatprep.subr.bf16.mxu0 0
        %7649 = vmatpush1.bf16.xpose.msra.mxu0 0
        %7650 = vmatprep.subr.bf16.mxu0 0
        %7651 = vmatpush1.bf16.xpose.msra.mxu0 0
        %7652 = vmatprep.subr.bf16.mxu0 0
        %7653 = vmatpush1.bf16.xpose.msra.mxu0 0
        %7654 = vmatprep.subr.bf16.mxu0 0
        %7655 = vmatpush1.bf16.xpose.msra.mxu0 0
        %7656 = vmatprep.subr.bf16.mxu0 0
        %7657 = vmatpush1.bf16.xpose.msra.mxu0 0
        %7658 = vmatprep.mubr.bf16.mxu0 %v5979
        %7659 = vmatmul.mubr.bf16.gmra.mrb[0].mxu0 %v5978
        %v7660 = vpop.f32.mrb[0].mxu0
        %v7661 = vadd.f32 %v7621, %v7660
        %v7662 = vpop.f32.mrb[0].mxu0
        %v7663 = vpop.f32.mrb[0].mxu0
        %v7664 = vpop.f32.mrb[0].mxu0
        %7665 = vdwg.mxu0
        %7666 = vmatprep.subr.bf16.mxu0 %v6178
        %7667 = vmatpush1.bf16.xpose.msra.mxu0 %v6177
        %7668 = vmatprep.subr.bf16.mxu0 0
        %7669 = vmatpush1.bf16.xpose.msra.mxu0 0
        %7670 = vmatprep.subr.bf16.mxu0 0
        %7671 = vmatpush1.bf16.xpose.msra.mxu0 0
        %7672 = vmatprep.subr.bf16.mxu0 0
        %7673 = vmatpush1.bf16.xpose.msra.mxu0 0
        %7674 = vmatprep.subr.bf16.mxu0 0
        %7675 = vmatpush1.bf16.xpose.msra.mxu0 0
        %7676 = vmatprep.subr.bf16.mxu0 0
        %7677 = vmatpush1.bf16.xpose.msra.mxu0 0
        %7678 = vmatprep.subr.bf16.mxu0 0
        %7679 = vmatpush1.bf16.xpose.msra.mxu0 0
        %7680 = vmatprep.subr.bf16.mxu0 0
        %7681 = vmatpush1.bf16.xpose.msra.mxu0 0
        %7682 = vmatprep.subr.bf16.mxu0 0
        %7683 = vmatpush1.bf16.xpose.msra.mxu0 0
        %7684 = vmatprep.subr.bf16.mxu0 0
        %7685 = vmatpush1.bf16.xpose.msra.mxu0 0
        %7686 = vmatprep.subr.bf16.mxu0 0
        %7687 = vmatpush1.bf16.xpose.msra.mxu0 0
        %7688 = vmatprep.subr.bf16.mxu0 0
        %7689 = vmatpush1.bf16.xpose.msra.mxu0 0
        %7690 = vmatprep.subr.bf16.mxu0 0
        %7691 = vmatpush1.bf16.xpose.msra.mxu0 0
        %7692 = vmatprep.subr.bf16.mxu0 0
        %7693 = vmatpush1.bf16.xpose.msra.mxu0 0
        %7694 = vmatprep.subr.bf16.mxu0 0
        %7695 = vmatpush1.bf16.xpose.msra.mxu0 0
        %7696 = vmatprep.subr.bf16.mxu0 0
        %7697 = vmatpush1.bf16.xpose.msra.mxu0 0
        %7698 = vmatprep.mubr.bf16.mxu0 %v5981
        %7699 = vmatmul.mubr.bf16.gmra.mrb[0].mxu0 %v5980
        %v7700 = vpop.f32.mrb[0].mxu0
        %v7701 = vadd.f32 %v7661, %v7700
        %v7702 = vpop.f32.mrb[0].mxu0
        %v7703 = vpop.f32.mrb[0].mxu0
        %v7704 = vpop.f32.mrb[0].mxu0
        %7705 = vdwg.mxu0
        %7706 = vmatprep.subr.bf16.mxu0 %v6180
        %7707 = vmatpush1.bf16.xpose.msra.mxu0 %v6179
        %7708 = vmatprep.subr.bf16.mxu0 0
        %7709 = vmatpush1.bf16.xpose.msra.mxu0 0
        %7710 = vmatprep.subr.bf16.mxu0 0
        %7711 = vmatpush1.bf16.xpose.msra.mxu0 0
        %7712 = vmatprep.subr.bf16.mxu0 0
        %7713 = vmatpush1.bf16.xpose.msra.mxu0 0
        %7714 = vmatprep.subr.bf16.mxu0 0
        %7715 = vmatpush1.bf16.xpose.msra.mxu0 0
        %7716 = vmatprep.subr.bf16.mxu0 0
        %7717 = vmatpush1.bf16.xpose.msra.mxu0 0
        %7718 = vmatprep.subr.bf16.mxu0 0
        %7719 = vmatpush1.bf16.xpose.msra.mxu0 0
        %7720 = vmatprep.subr.bf16.mxu0 0
        %7721 = vmatpush1.bf16.xpose.msra.mxu0 0
        %7722 = vmatprep.subr.bf16.mxu0 0
        %7723 = vmatpush1.bf16.xpose.msra.mxu0 0
        %7724 = vmatprep.subr.bf16.mxu0 0
        %7725 = vmatpush1.bf16.xpose.msra.mxu0 0
        %7726 = vmatprep.subr.bf16.mxu0 0
        %7727 = vmatpush1.bf16.xpose.msra.mxu0 0
        %7728 = vmatprep.subr.bf16.mxu0 0
        %7729 = vmatpush1.bf16.xpose.msra.mxu0 0
        %7730 = vmatprep.subr.bf16.mxu0 0
        %7731 = vmatpush1.bf16.xpose.msra.mxu0 0
        %7732 = vmatprep.subr.bf16.mxu0 0
        %7733 = vmatpush1.bf16.xpose.msra.mxu0 0
        %7734 = vmatprep.subr.bf16.mxu0 0
        %7735 = vmatpush1.bf16.xpose.msra.mxu0 0
        %7736 = vmatprep.subr.bf16.mxu0 0
        %7737 = vmatpush1.bf16.xpose.msra.mxu0 0
        %7738 = vmatprep.mubr.bf16.mxu0 %v5983
        %7739 = vmatmul.mubr.bf16.gmra.mrb[0].mxu0 %v5982
        %v7740 = vpop.f32.mrb[0].mxu0
        %v7741 = vadd.f32 %v7701, %v7740
        %v7742 = vpop.f32.mrb[0].mxu0
        %v7743 = vpop.f32.mrb[0].mxu0
        %v7744 = vpop.f32.mrb[0].mxu0
        %7745 = vdwg.mxu0
        %7746 = vmatprep.subr.bf16.mxu0 %v6182
        %7747 = vmatpush1.bf16.xpose.msra.mxu0 %v6181
        %7748 = vmatprep.subr.bf16.mxu0 0
        %7749 = vmatpush1.bf16.xpose.msra.mxu0 0
        %7750 = vmatprep.subr.bf16.mxu0 0
        %7751 = vmatpush1.bf16.xpose.msra.mxu0 0
        %7752 = vmatprep.subr.bf16.mxu0 0
        %7753 = vmatpush1.bf16.xpose.msra.mxu0 0
        %7754 = vmatprep.subr.bf16.mxu0 0
        %7755 = vmatpush1.bf16.xpose.msra.mxu0 0
        %7756 = vmatprep.subr.bf16.mxu0 0
        %7757 = vmatpush1.bf16.xpose.msra.mxu0 0
        %7758 = vmatprep.subr.bf16.mxu0 0
        %7759 = vmatpush1.bf16.xpose.msra.mxu0 0
        %7760 = vmatprep.subr.bf16.mxu0 0
        %7761 = vmatpush1.bf16.xpose.msra.mxu0 0
        %7762 = vmatprep.subr.bf16.mxu0 0
        %7763 = vmatpush1.bf16.xpose.msra.mxu0 0
        %7764 = vmatprep.subr.bf16.mxu0 0
        %7765 = vmatpush1.bf16.xpose.msra.mxu0 0
        %7766 = vmatprep.subr.bf16.mxu0 0
        %7767 = vmatpush1.bf16.xpose.msra.mxu0 0
        %7768 = vmatprep.subr.bf16.mxu0 0
        %7769 = vmatpush1.bf16.xpose.msra.mxu0 0
        %7770 = vmatprep.subr.bf16.mxu0 0
        %7771 = vmatpush1.bf16.xpose.msra.mxu0 0
        %7772 = vmatprep.subr.bf16.mxu0 0
        %7773 = vmatpush1.bf16.xpose.msra.mxu0 0
        %7774 = vmatprep.subr.bf16.mxu0 0
        %7775 = vmatpush1.bf16.xpose.msra.mxu0 0
        %7776 = vmatprep.subr.bf16.mxu0 0
        %7777 = vmatpush1.bf16.xpose.msra.mxu0 0
        %7778 = vmatprep.mubr.bf16.mxu0 %v5985
        %7779 = vmatmul.mubr.bf16.gmra.mrb[0].mxu0 %v5984
        %v7780 = vpop.f32.mrb[0].mxu0
        %v7781 = vadd.f32 %v7741, %v7780
        %v7782 = vpop.f32.mrb[0].mxu0
        %v7783 = vpop.f32.mrb[0].mxu0
        %v7784 = vpop.f32.mrb[0].mxu0
        %7785 = vdwg.mxu0
        %7786 = vmatprep.subr.bf16.mxu0 %v6184
        %7787 = vmatpush1.bf16.xpose.msra.mxu0 %v6183
        %7788 = vmatprep.subr.bf16.mxu0 0
        %7789 = vmatpush1.bf16.xpose.msra.mxu0 0
        %7790 = vmatprep.subr.bf16.mxu0 0
        %7791 = vmatpush1.bf16.xpose.msra.mxu0 0
        %7792 = vmatprep.subr.bf16.mxu0 0
        %7793 = vmatpush1.bf16.xpose.msra.mxu0 0
        %7794 = vmatprep.subr.bf16.mxu0 0
        %7795 = vmatpush1.bf16.xpose.msra.mxu0 0
        %7796 = vmatprep.subr.bf16.mxu0 0
        %7797 = vmatpush1.bf16.xpose.msra.mxu0 0
        %7798 = vmatprep.subr.bf16.mxu0 0
        %7799 = vmatpush1.bf16.xpose.msra.mxu0 0
        %7800 = vmatprep.subr.bf16.mxu0 0
        %7801 = vmatpush1.bf16.xpose.msra.mxu0 0
        %7802 = vmatprep.subr.bf16.mxu0 0
        %7803 = vmatpush1.bf16.xpose.msra.mxu0 0
        %7804 = vmatprep.subr.bf16.mxu0 0
        %7805 = vmatpush1.bf16.xpose.msra.mxu0 0
        %7806 = vmatprep.subr.bf16.mxu0 0
        %7807 = vmatpush1.bf16.xpose.msra.mxu0 0
        %7808 = vmatprep.subr.bf16.mxu0 0
        %7809 = vmatpush1.bf16.xpose.msra.mxu0 0
        %7810 = vmatprep.subr.bf16.mxu0 0
        %7811 = vmatpush1.bf16.xpose.msra.mxu0 0
        %7812 = vmatprep.subr.bf16.mxu0 0
        %7813 = vmatpush1.bf16.xpose.msra.mxu0 0
        %7814 = vmatprep.subr.bf16.mxu0 0
        %7815 = vmatpush1.bf16.xpose.msra.mxu0 0
        %7816 = vmatprep.subr.bf16.mxu0 0
        %7817 = vmatpush1.bf16.xpose.msra.mxu0 0
        %7818 = vmatprep.mubr.bf16.mxu0 %v5987
        %7819 = vmatmul.mubr.bf16.gmra.mrb[0].mxu0 %v5986
        %v7820 = vpop.f32.mrb[0].mxu0
        %v7821 = vadd.f32 %v7781, %v7820
        %v7822 = vpop.f32.mrb[0].mxu0
        %v7823 = vpop.f32.mrb[0].mxu0
        %v7824 = vpop.f32.mrb[0].mxu0
        %7825 = vdwg.mxu0
        %7826 = vmatprep.subr.bf16.mxu0 %v6186
        %7827 = vmatpush1.bf16.xpose.msra.mxu0 %v6185
        %7828 = vmatprep.subr.bf16.mxu0 0
        %7829 = vmatpush1.bf16.xpose.msra.mxu0 0
        %7830 = vmatprep.subr.bf16.mxu0 0
        %7831 = vmatpush1.bf16.xpose.msra.mxu0 0
        %7832 = vmatprep.subr.bf16.mxu0 0
        %7833 = vmatpush1.bf16.xpose.msra.mxu0 0
        %7834 = vmatprep.subr.bf16.mxu0 0
        %7835 = vmatpush1.bf16.xpose.msra.mxu0 0
        %7836 = vmatprep.subr.bf16.mxu0 0
        %7837 = vmatpush1.bf16.xpose.msra.mxu0 0
        %7838 = vmatprep.subr.bf16.mxu0 0
        %7839 = vmatpush1.bf16.xpose.msra.mxu0 0
        %7840 = vmatprep.subr.bf16.mxu0 0
        %7841 = vmatpush1.bf16.xpose.msra.mxu0 0
        %7842 = vmatprep.subr.bf16.mxu0 0
        %7843 = vmatpush1.bf16.xpose.msra.mxu0 0
        %7844 = vmatprep.subr.bf16.mxu0 0
        %7845 = vmatpush1.bf16.xpose.msra.mxu0 0
        %7846 = vmatprep.subr.bf16.mxu0 0
        %7847 = vmatpush1.bf16.xpose.msra.mxu0 0
        %7848 = vmatprep.subr.bf16.mxu0 0
        %7849 = vmatpush1.bf16.xpose.msra.mxu0 0
        %7850 = vmatprep.subr.bf16.mxu0 0
        %7851 = vmatpush1.bf16.xpose.msra.mxu0 0
        %7852 = vmatprep.subr.bf16.mxu0 0
        %7853 = vmatpush1.bf16.xpose.msra.mxu0 0
        %7854 = vmatprep.subr.bf16.mxu0 0
        %7855 = vmatpush1.bf16.xpose.msra.mxu0 0
        %7856 = vmatprep.subr.bf16.mxu0 0
        %7857 = vmatpush1.bf16.xpose.msra.mxu0 0
        %7858 = vmatprep.mubr.bf16.mxu0 %v5989
        %7859 = vmatmul.mubr.bf16.gmra.mrb[0].mxu0 %v5988
        %v7860 = vpop.f32.mrb[0].mxu0
        %v7861 = vadd.f32 %v7821, %v7860
        %v7862 = vpop.f32.mrb[0].mxu0
        %v7863 = vpop.f32.mrb[0].mxu0
        %v7864 = vpop.f32.mrb[0].mxu0
        %7865 = vdwg.mxu0
        %7866 = vmatprep.subr.bf16.mxu0 %v6188
        %7867 = vmatpush1.bf16.xpose.msra.mxu0 %v6187
        %7868 = vmatprep.subr.bf16.mxu0 0
        %7869 = vmatpush1.bf16.xpose.msra.mxu0 0
        %7870 = vmatprep.subr.bf16.mxu0 0
        %7871 = vmatpush1.bf16.xpose.msra.mxu0 0
        %7872 = vmatprep.subr.bf16.mxu0 0
        %7873 = vmatpush1.bf16.xpose.msra.mxu0 0
        %7874 = vmatprep.subr.bf16.mxu0 0
        %7875 = vmatpush1.bf16.xpose.msra.mxu0 0
        %7876 = vmatprep.subr.bf16.mxu0 0
        %7877 = vmatpush1.bf16.xpose.msra.mxu0 0
        %7878 = vmatprep.subr.bf16.mxu0 0
        %7879 = vmatpush1.bf16.xpose.msra.mxu0 0
        %7880 = vmatprep.subr.bf16.mxu0 0
        %7881 = vmatpush1.bf16.xpose.msra.mxu0 0
        %7882 = vmatprep.subr.bf16.mxu0 0
        %7883 = vmatpush1.bf16.xpose.msra.mxu0 0
        %7884 = vmatprep.subr.bf16.mxu0 0
        %7885 = vmatpush1.bf16.xpose.msra.mxu0 0
        %7886 = vmatprep.subr.bf16.mxu0 0
        %7887 = vmatpush1.bf16.xpose.msra.mxu0 0
        %7888 = vmatprep.subr.bf16.mxu0 0
        %7889 = vmatpush1.bf16.xpose.msra.mxu0 0
        %7890 = vmatprep.subr.bf16.mxu0 0
        %7891 = vmatpush1.bf16.xpose.msra.mxu0 0
        %7892 = vmatprep.subr.bf16.mxu0 0
        %7893 = vmatpush1.bf16.xpose.msra.mxu0 0
        %7894 = vmatprep.subr.bf16.mxu0 0
        %7895 = vmatpush1.bf16.xpose.msra.mxu0 0
        %7896 = vmatprep.subr.bf16.mxu0 0
        %7897 = vmatpush1.bf16.xpose.msra.mxu0 0
        %7898 = vmatprep.mubr.bf16.mxu0 %v5991
        %7899 = vmatmul.mubr.bf16.gmra.mrb[0].mxu0 %v5990
        %v7900 = vpop.f32.mrb[0].mxu0
        %v7901 = vadd.f32 %v7861, %v7900
        %v7902 = vpop.f32.mrb[0].mxu0
        %v7903 = vpop.f32.mrb[0].mxu0
        %v7904 = vpop.f32.mrb[0].mxu0
        %7905 = vdwg.mxu0
        %7906 = vmatprep.subr.bf16.mxu0 %v6190
        %7907 = vmatpush1.bf16.xpose.msra.mxu0 %v6189
        %7908 = vmatprep.subr.bf16.mxu0 0
        %7909 = vmatpush1.bf16.xpose.msra.mxu0 0
        %7910 = vmatprep.subr.bf16.mxu0 0
        %7911 = vmatpush1.bf16.xpose.msra.mxu0 0
        %7912 = vmatprep.subr.bf16.mxu0 0
        %7913 = vmatpush1.bf16.xpose.msra.mxu0 0
        %7914 = vmatprep.subr.bf16.mxu0 0
        %7915 = vmatpush1.bf16.xpose.msra.mxu0 0
        %7916 = vmatprep.subr.bf16.mxu0 0
        %7917 = vmatpush1.bf16.xpose.msra.mxu0 0
        %7918 = vmatprep.subr.bf16.mxu0 0
        %7919 = vmatpush1.bf16.xpose.msra.mxu0 0
        %7920 = vmatprep.subr.bf16.mxu0 0
        %7921 = vmatpush1.bf16.xpose.msra.mxu0 0
        %7922 = vmatprep.subr.bf16.mxu0 0
        %7923 = vmatpush1.bf16.xpose.msra.mxu0 0
        %7924 = vmatprep.subr.bf16.mxu0 0
        %7925 = vmatpush1.bf16.xpose.msra.mxu0 0
        %7926 = vmatprep.subr.bf16.mxu0 0
        %7927 = vmatpush1.bf16.xpose.msra.mxu0 0
        %7928 = vmatprep.subr.bf16.mxu0 0
        %7929 = vmatpush1.bf16.xpose.msra.mxu0 0
        %7930 = vmatprep.subr.bf16.mxu0 0
        %7931 = vmatpush1.bf16.xpose.msra.mxu0 0
        %7932 = vmatprep.subr.bf16.mxu0 0
        %7933 = vmatpush1.bf16.xpose.msra.mxu0 0
        %7934 = vmatprep.subr.bf16.mxu0 0
        %7935 = vmatpush1.bf16.xpose.msra.mxu0 0
        %7936 = vmatprep.subr.bf16.mxu0 0
        %7937 = vmatpush1.bf16.xpose.msra.mxu0 0
        %7938 = vmatprep.mubr.bf16.mxu0 %v5993
        %7939 = vmatmul.mubr.bf16.gmra.mrb[0].mxu0 %v5992
        %v7940 = vpop.f32.mrb[0].mxu0
        %v7941 = vadd.f32 %v7901, %v7940
        %v7942 = vpop.f32.mrb[0].mxu0
        %v7943 = vpop.f32.mrb[0].mxu0
        %v7944 = vpop.f32.mrb[0].mxu0
        %7945 = vdwg.mxu0
        %7946 = vmatprep.subr.bf16.mxu0 %v6192
        %7947 = vmatpush1.bf16.xpose.msra.mxu0 %v6191
        %7948 = vmatprep.subr.bf16.mxu0 0
        %7949 = vmatpush1.bf16.xpose.msra.mxu0 0
        %7950 = vmatprep.subr.bf16.mxu0 0
        %7951 = vmatpush1.bf16.xpose.msra.mxu0 0
        %7952 = vmatprep.subr.bf16.mxu0 0
        %7953 = vmatpush1.bf16.xpose.msra.mxu0 0
        %7954 = vmatprep.subr.bf16.mxu0 0
        %7955 = vmatpush1.bf16.xpose.msra.mxu0 0
        %7956 = vmatprep.subr.bf16.mxu0 0
        %7957 = vmatpush1.bf16.xpose.msra.mxu0 0
        %7958 = vmatprep.subr.bf16.mxu0 0
        %7959 = vmatpush1.bf16.xpose.msra.mxu0 0
        %7960 = vmatprep.subr.bf16.mxu0 0
        %7961 = vmatpush1.bf16.xpose.msra.mxu0 0
        %7962 = vmatprep.subr.bf16.mxu0 0
        %7963 = vmatpush1.bf16.xpose.msra.mxu0 0
        %7964 = vmatprep.subr.bf16.mxu0 0
        %7965 = vmatpush1.bf16.xpose.msra.mxu0 0
        %7966 = vmatprep.subr.bf16.mxu0 0
        %7967 = vmatpush1.bf16.xpose.msra.mxu0 0
        %7968 = vmatprep.subr.bf16.mxu0 0
        %7969 = vmatpush1.bf16.xpose.msra.mxu0 0
        %7970 = vmatprep.subr.bf16.mxu0 0
        %7971 = vmatpush1.bf16.xpose.msra.mxu0 0
        %7972 = vmatprep.subr.bf16.mxu0 0
        %7973 = vmatpush1.bf16.xpose.msra.mxu0 0
        %7974 = vmatprep.subr.bf16.mxu0 0
        %7975 = vmatpush1.bf16.xpose.msra.mxu0 0
        %7976 = vmatprep.subr.bf16.mxu0 0
        %7977 = vmatpush1.bf16.xpose.msra.mxu0 0
        %7978 = vmatprep.mubr.bf16.mxu0 %v5995
        %7979 = vmatmul.mubr.bf16.gmra.mrb[0].mxu0 %v5994
        %v7980 = vpop.f32.mrb[0].mxu0
        %v7981 = vadd.f32 %v7941, %v7980
        %v7982 = vpop.f32.mrb[0].mxu0
        %v7983 = vpop.f32.mrb[0].mxu0
        %v7984 = vpop.f32.mrb[0].mxu0
        %7985 = vdwg.mxu0
        %7986 = vmatprep.subr.bf16.mxu0 %v6194
        %7987 = vmatpush1.bf16.xpose.msra.mxu0 %v6193
        %7988 = vmatprep.subr.bf16.mxu0 0
        %7989 = vmatpush1.bf16.xpose.msra.mxu0 0
        %7990 = vmatprep.subr.bf16.mxu0 0
        %7991 = vmatpush1.bf16.xpose.msra.mxu0 0
        %7992 = vmatprep.subr.bf16.mxu0 0
        %7993 = vmatpush1.bf16.xpose.msra.mxu0 0
        %7994 = vmatprep.subr.bf16.mxu0 0
        %7995 = vmatpush1.bf16.xpose.msra.mxu0 0
        %7996 = vmatprep.subr.bf16.mxu0 0
        %7997 = vmatpush1.bf16.xpose.msra.mxu0 0
        %7998 = vmatprep.subr.bf16.mxu0 0
        %7999 = vmatpush1.bf16.xpose.msra.mxu0 0
        %8000 = vmatprep.subr.bf16.mxu0 0
        %8001 = vmatpush1.bf16.xpose.msra.mxu0 0
        %8002 = vmatprep.subr.bf16.mxu0 0
        %8003 = vmatpush1.bf16.xpose.msra.mxu0 0
        %8004 = vmatprep.subr.bf16.mxu0 0
        %8005 = vmatpush1.bf16.xpose.msra.mxu0 0
        %8006 = vmatprep.subr.bf16.mxu0 0
        %8007 = vmatpush1.bf16.xpose.msra.mxu0 0
        %8008 = vmatprep.subr.bf16.mxu0 0
        %8009 = vmatpush1.bf16.xpose.msra.mxu0 0
        %8010 = vmatprep.subr.bf16.mxu0 0
        %8011 = vmatpush1.bf16.xpose.msra.mxu0 0
        %8012 = vmatprep.subr.bf16.mxu0 0
        %8013 = vmatpush1.bf16.xpose.msra.mxu0 0
        %8014 = vmatprep.subr.bf16.mxu0 0
        %8015 = vmatpush1.bf16.xpose.msra.mxu0 0
        %8016 = vmatprep.subr.bf16.mxu0 0
        %8017 = vmatpush1.bf16.xpose.msra.mxu0 0
        %8018 = vmatprep.mubr.bf16.mxu0 %v5997
        %8019 = vmatmul.mubr.bf16.gmra.mrb[0].mxu0 %v5996
        %v8020 = vpop.f32.mrb[0].mxu0
        %v8021 = vadd.f32 %v7981, %v8020
        %v8022 = vpop.f32.mrb[0].mxu0
        %v8023 = vpop.f32.mrb[0].mxu0
        %v8024 = vpop.f32.mrb[0].mxu0
        %8025 = vdwg.mxu0
        %8026 = vmatprep.subr.bf16.mxu0 %v6196
        %8027 = vmatpush1.bf16.xpose.msra.mxu0 %v6195
        %8028 = vmatprep.subr.bf16.mxu0 0
        %8029 = vmatpush1.bf16.xpose.msra.mxu0 0
        %8030 = vmatprep.subr.bf16.mxu0 0
        %8031 = vmatpush1.bf16.xpose.msra.mxu0 0
        %8032 = vmatprep.subr.bf16.mxu0 0
        %8033 = vmatpush1.bf16.xpose.msra.mxu0 0
        %8034 = vmatprep.subr.bf16.mxu0 0
        %8035 = vmatpush1.bf16.xpose.msra.mxu0 0
        %8036 = vmatprep.subr.bf16.mxu0 0
        %8037 = vmatpush1.bf16.xpose.msra.mxu0 0
        %8038 = vmatprep.subr.bf16.mxu0 0
        %8039 = vmatpush1.bf16.xpose.msra.mxu0 0
        %8040 = vmatprep.subr.bf16.mxu0 0
        %8041 = vmatpush1.bf16.xpose.msra.mxu0 0
        %8042 = vmatprep.subr.bf16.mxu0 0
        %8043 = vmatpush1.bf16.xpose.msra.mxu0 0
        %8044 = vmatprep.subr.bf16.mxu0 0
        %8045 = vmatpush1.bf16.xpose.msra.mxu0 0
        %8046 = vmatprep.subr.bf16.mxu0 0
        %8047 = vmatpush1.bf16.xpose.msra.mxu0 0
        %8048 = vmatprep.subr.bf16.mxu0 0
        %8049 = vmatpush1.bf16.xpose.msra.mxu0 0
        %8050 = vmatprep.subr.bf16.mxu0 0
        %8051 = vmatpush1.bf16.xpose.msra.mxu0 0
        %8052 = vmatprep.subr.bf16.mxu0 0
        %8053 = vmatpush1.bf16.xpose.msra.mxu0 0
        %8054 = vmatprep.subr.bf16.mxu0 0
        %8055 = vmatpush1.bf16.xpose.msra.mxu0 0
        %8056 = vmatprep.subr.bf16.mxu0 0
        %8057 = vmatpush1.bf16.xpose.msra.mxu0 0
        %8058 = vmatprep.mubr.bf16.mxu0 %v5999
        %8059 = vmatmul.mubr.bf16.gmra.mrb[0].mxu0 %v5998
        %v8060 = vpop.f32.mrb[0].mxu0
        %v8061 = vadd.f32 %v8021, %v8060
        %v8062 = vpop.f32.mrb[0].mxu0
        %v8063 = vpop.f32.mrb[0].mxu0
        %v8064 = vpop.f32.mrb[0].mxu0
        %8065 = vdwg.mxu0
        %8066 = vmatprep.subr.bf16.mxu0 %v6198
        %8067 = vmatpush1.bf16.xpose.msra.mxu0 %v6197
        %8068 = vmatprep.subr.bf16.mxu0 0
        %8069 = vmatpush1.bf16.xpose.msra.mxu0 0
        %8070 = vmatprep.subr.bf16.mxu0 0
        %8071 = vmatpush1.bf16.xpose.msra.mxu0 0
        %8072 = vmatprep.subr.bf16.mxu0 0
        %8073 = vmatpush1.bf16.xpose.msra.mxu0 0
        %8074 = vmatprep.subr.bf16.mxu0 0
        %8075 = vmatpush1.bf16.xpose.msra.mxu0 0
        %8076 = vmatprep.subr.bf16.mxu0 0
        %8077 = vmatpush1.bf16.xpose.msra.mxu0 0
        %8078 = vmatprep.subr.bf16.mxu0 0
        %8079 = vmatpush1.bf16.xpose.msra.mxu0 0
        %8080 = vmatprep.subr.bf16.mxu0 0
        %8081 = vmatpush1.bf16.xpose.msra.mxu0 0
        %8082 = vmatprep.subr.bf16.mxu0 0
        %8083 = vmatpush1.bf16.xpose.msra.mxu0 0
        %8084 = vmatprep.subr.bf16.mxu0 0
        %8085 = vmatpush1.bf16.xpose.msra.mxu0 0
        %8086 = vmatprep.subr.bf16.mxu0 0
        %8087 = vmatpush1.bf16.xpose.msra.mxu0 0
        %8088 = vmatprep.subr.bf16.mxu0 0
        %8089 = vmatpush1.bf16.xpose.msra.mxu0 0
        %8090 = vmatprep.subr.bf16.mxu0 0
        %8091 = vmatpush1.bf16.xpose.msra.mxu0 0
        %8092 = vmatprep.subr.bf16.mxu0 0
        %8093 = vmatpush1.bf16.xpose.msra.mxu0 0
        %8094 = vmatprep.subr.bf16.mxu0 0
        %8095 = vmatpush1.bf16.xpose.msra.mxu0 0
        %8096 = vmatprep.subr.bf16.mxu0 0
        %8097 = vmatpush1.bf16.xpose.msra.mxu0 0
        %8098 = vmatprep.mubr.bf16.mxu0 %v6001
        %8099 = vmatmul.mubr.bf16.gmra.mrb[0].mxu0 %v6000
        %v8100 = vpop.f32.mrb[0].mxu0
        %v8101 = vadd.f32 %v8061, %v8100
        %v8102 = vpop.f32.mrb[0].mxu0
        %v8103 = vpop.f32.mrb[0].mxu0
        %v8104 = vpop.f32.mrb[0].mxu0
        %8105 = vdwg.mxu0
        %8106 = vmatprep.subr.bf16.mxu0 %v6200
        %8107 = vmatpush1.bf16.xpose.msra.mxu0 %v6199
        %8108 = vmatprep.subr.bf16.mxu0 0
        %8109 = vmatpush1.bf16.xpose.msra.mxu0 0
        %8110 = vmatprep.subr.bf16.mxu0 0
        %8111 = vmatpush1.bf16.xpose.msra.mxu0 0
        %8112 = vmatprep.subr.bf16.mxu0 0
        %8113 = vmatpush1.bf16.xpose.msra.mxu0 0
        %8114 = vmatprep.subr.bf16.mxu0 0
        %8115 = vmatpush1.bf16.xpose.msra.mxu0 0
        %8116 = vmatprep.subr.bf16.mxu0 0
        %8117 = vmatpush1.bf16.xpose.msra.mxu0 0
        %8118 = vmatprep.subr.bf16.mxu0 0
        %8119 = vmatpush1.bf16.xpose.msra.mxu0 0
        %8120 = vmatprep.subr.bf16.mxu0 0
        %8121 = vmatpush1.bf16.xpose.msra.mxu0 0
        %8122 = vmatprep.subr.bf16.mxu0 0
        %8123 = vmatpush1.bf16.xpose.msra.mxu0 0
        %8124 = vmatprep.subr.bf16.mxu0 0
        %8125 = vmatpush1.bf16.xpose.msra.mxu0 0
        %8126 = vmatprep.subr.bf16.mxu0 0
        %8127 = vmatpush1.bf16.xpose.msra.mxu0 0
        %8128 = vmatprep.subr.bf16.mxu0 0
        %8129 = vmatpush1.bf16.xpose.msra.mxu0 0
        %8130 = vmatprep.subr.bf16.mxu0 0
        %8131 = vmatpush1.bf16.xpose.msra.mxu0 0
        %8132 = vmatprep.subr.bf16.mxu0 0
        %8133 = vmatpush1.bf16.xpose.msra.mxu0 0
        %8134 = vmatprep.subr.bf16.mxu0 0
        %8135 = vmatpush1.bf16.xpose.msra.mxu0 0
        %8136 = vmatprep.subr.bf16.mxu0 0
        %8137 = vmatpush1.bf16.xpose.msra.mxu0 0
        %8138 = vmatprep.mubr.bf16.mxu0 %v6003
        %8139 = vmatmul.mubr.bf16.gmra.mrb[0].mxu0 %v6002
        %v8140 = vpop.f32.mrb[0].mxu0
        %v8141 = vadd.f32 %v8101, %v8140
        %v8142 = vpop.f32.mrb[0].mxu0
        %v8143 = vpop.f32.mrb[0].mxu0
        %v8144 = vpop.f32.mrb[0].mxu0
        %8145 = vdwg.mxu0
        %8146 = vmatprep.subr.bf16.mxu0 %v6202
        %8147 = vmatpush1.bf16.xpose.msra.mxu0 %v6201
        %8148 = vmatprep.subr.bf16.mxu0 0
        %8149 = vmatpush1.bf16.xpose.msra.mxu0 0
        %8150 = vmatprep.subr.bf16.mxu0 0
        %8151 = vmatpush1.bf16.xpose.msra.mxu0 0
        %8152 = vmatprep.subr.bf16.mxu0 0
        %8153 = vmatpush1.bf16.xpose.msra.mxu0 0
        %8154 = vmatprep.subr.bf16.mxu0 0
        %8155 = vmatpush1.bf16.xpose.msra.mxu0 0
        %8156 = vmatprep.subr.bf16.mxu0 0
        %8157 = vmatpush1.bf16.xpose.msra.mxu0 0
        %8158 = vmatprep.subr.bf16.mxu0 0
        %8159 = vmatpush1.bf16.xpose.msra.mxu0 0
        %8160 = vmatprep.subr.bf16.mxu0 0
        %8161 = vmatpush1.bf16.xpose.msra.mxu0 0
        %8162 = vmatprep.subr.bf16.mxu0 0
        %8163 = vmatpush1.bf16.xpose.msra.mxu0 0
        %8164 = vmatprep.subr.bf16.mxu0 0
        %8165 = vmatpush1.bf16.xpose.msra.mxu0 0
        %8166 = vmatprep.subr.bf16.mxu0 0
        %8167 = vmatpush1.bf16.xpose.msra.mxu0 0
        %8168 = vmatprep.subr.bf16.mxu0 0
        %8169 = vmatpush1.bf16.xpose.msra.mxu0 0
        %8170 = vmatprep.subr.bf16.mxu0 0
        %8171 = vmatpush1.bf16.xpose.msra.mxu0 0
        %8172 = vmatprep.subr.bf16.mxu0 0
        %8173 = vmatpush1.bf16.xpose.msra.mxu0 0
        %8174 = vmatprep.subr.bf16.mxu0 0
        %8175 = vmatpush1.bf16.xpose.msra.mxu0 0
        %8176 = vmatprep.subr.bf16.mxu0 0
        %8177 = vmatpush1.bf16.xpose.msra.mxu0 0
        %8178 = vmatprep.mubr.bf16.mxu0 %v6005
        %8179 = vmatmul.mubr.bf16.gmra.mrb[0].mxu0 %v6004
        %v8180 = vpop.f32.mrb[0].mxu0
        %v8181 = vadd.f32 %v8141, %v8180
        %v8182 = vpop.f32.mrb[0].mxu0
        %v8183 = vpop.f32.mrb[0].mxu0
        %v8184 = vpop.f32.mrb[0].mxu0
        %8185 = vdwg.mxu0
        %8186 = vmatprep.subr.bf16.mxu0 %v6204
        %8187 = vmatpush1.bf16.xpose.msra.mxu0 %v6203
        %8188 = vmatprep.subr.bf16.mxu0 0
        %8189 = vmatpush1.bf16.xpose.msra.mxu0 0
        %8190 = vmatprep.subr.bf16.mxu0 0
        %8191 = vmatpush1.bf16.xpose.msra.mxu0 0
        %8192 = vmatprep.subr.bf16.mxu0 0
        %8193 = vmatpush1.bf16.xpose.msra.mxu0 0
        %8194 = vmatprep.subr.bf16.mxu0 0
        %8195 = vmatpush1.bf16.xpose.msra.mxu0 0
        %8196 = vmatprep.subr.bf16.mxu0 0
        %8197 = vmatpush1.bf16.xpose.msra.mxu0 0
        %8198 = vmatprep.subr.bf16.mxu0 0
        %8199 = vmatpush1.bf16.xpose.msra.mxu0 0
        %8200 = vmatprep.subr.bf16.mxu0 0
        %8201 = vmatpush1.bf16.xpose.msra.mxu0 0
        %8202 = vmatprep.subr.bf16.mxu0 0
        %8203 = vmatpush1.bf16.xpose.msra.mxu0 0
        %8204 = vmatprep.subr.bf16.mxu0 0
        %8205 = vmatpush1.bf16.xpose.msra.mxu0 0
        %8206 = vmatprep.subr.bf16.mxu0 0
        %8207 = vmatpush1.bf16.xpose.msra.mxu0 0
        %8208 = vmatprep.subr.bf16.mxu0 0
        %8209 = vmatpush1.bf16.xpose.msra.mxu0 0
        %8210 = vmatprep.subr.bf16.mxu0 0
        %8211 = vmatpush1.bf16.xpose.msra.mxu0 0
        %8212 = vmatprep.subr.bf16.mxu0 0
        %8213 = vmatpush1.bf16.xpose.msra.mxu0 0
        %8214 = vmatprep.subr.bf16.mxu0 0
        %8215 = vmatpush1.bf16.xpose.msra.mxu0 0
        %8216 = vmatprep.subr.bf16.mxu0 0
        %8217 = vmatpush1.bf16.xpose.msra.mxu0 0
        %8218 = vmatprep.mubr.bf16.mxu0 %v6007
        %8219 = vmatmul.mubr.bf16.gmra.mrb[0].mxu0 %v6006
        %v8220 = vpop.f32.mrb[0].mxu0
        %v8221 = vadd.f32 %v8181, %v8220
        %v8222 = vpop.f32.mrb[0].mxu0
        %v8223 = vpop.f32.mrb[0].mxu0
        %v8224 = vpop.f32.mrb[0].mxu0
        %8225 = vdwg.mxu0
        %8226 = vmatprep.subr.bf16.mxu0 %v6206
        %8227 = vmatpush1.bf16.xpose.msra.mxu0 %v6205
        %8228 = vmatprep.subr.bf16.mxu0 0
        %8229 = vmatpush1.bf16.xpose.msra.mxu0 0
        %8230 = vmatprep.subr.bf16.mxu0 0
        %8231 = vmatpush1.bf16.xpose.msra.mxu0 0
        %8232 = vmatprep.subr.bf16.mxu0 0
        %8233 = vmatpush1.bf16.xpose.msra.mxu0 0
        %8234 = vmatprep.subr.bf16.mxu0 0
        %8235 = vmatpush1.bf16.xpose.msra.mxu0 0
        %8236 = vmatprep.subr.bf16.mxu0 0
        %8237 = vmatpush1.bf16.xpose.msra.mxu0 0
        %8238 = vmatprep.subr.bf16.mxu0 0
        %8239 = vmatpush1.bf16.xpose.msra.mxu0 0
        %8240 = vmatprep.subr.bf16.mxu0 0
        %8241 = vmatpush1.bf16.xpose.msra.mxu0 0
        %8242 = vmatprep.subr.bf16.mxu0 0
        %8243 = vmatpush1.bf16.xpose.msra.mxu0 0
        %8244 = vmatprep.subr.bf16.mxu0 0
        %8245 = vmatpush1.bf16.xpose.msra.mxu0 0
        %8246 = vmatprep.subr.bf16.mxu0 0
        %8247 = vmatpush1.bf16.xpose.msra.mxu0 0
        %8248 = vmatprep.subr.bf16.mxu0 0
        %8249 = vmatpush1.bf16.xpose.msra.mxu0 0
        %8250 = vmatprep.subr.bf16.mxu0 0
        %8251 = vmatpush1.bf16.xpose.msra.mxu0 0
        %8252 = vmatprep.subr.bf16.mxu0 0
        %8253 = vmatpush1.bf16.xpose.msra.mxu0 0
        %8254 = vmatprep.subr.bf16.mxu0 0
        %8255 = vmatpush1.bf16.xpose.msra.mxu0 0
        %8256 = vmatprep.subr.bf16.mxu0 0
        %8257 = vmatpush1.bf16.xpose.msra.mxu0 0
        %8258 = vmatprep.mubr.bf16.mxu0 %v6009
        %8259 = vmatmul.mubr.bf16.gmra.mrb[0].mxu0 %v6008
        %v8260 = vpop.f32.mrb[0].mxu0
        %v8261 = vadd.f32 %v8221, %v8260
        %v8262 = vpop.f32.mrb[0].mxu0
        %v8263 = vpop.f32.mrb[0].mxu0
        %v8264 = vpop.f32.mrb[0].mxu0
        %8265 = vdwg.mxu0
        %8266 = vmatprep.subr.bf16.mxu0 %v6208
        %8267 = vmatpush1.bf16.xpose.msra.mxu0 %v6207
        %8268 = vmatprep.subr.bf16.mxu0 0
        %8269 = vmatpush1.bf16.xpose.msra.mxu0 0
        %8270 = vmatprep.subr.bf16.mxu0 0
        %8271 = vmatpush1.bf16.xpose.msra.mxu0 0
        %8272 = vmatprep.subr.bf16.mxu0 0
        %8273 = vmatpush1.bf16.xpose.msra.mxu0 0
        %8274 = vmatprep.subr.bf16.mxu0 0
        %8275 = vmatpush1.bf16.xpose.msra.mxu0 0
        %8276 = vmatprep.subr.bf16.mxu0 0
        %8277 = vmatpush1.bf16.xpose.msra.mxu0 0
        %8278 = vmatprep.subr.bf16.mxu0 0
        %8279 = vmatpush1.bf16.xpose.msra.mxu0 0
        %8280 = vmatprep.subr.bf16.mxu0 0
        %8281 = vmatpush1.bf16.xpose.msra.mxu0 0
        %8282 = vmatprep.subr.bf16.mxu0 0
        %8283 = vmatpush1.bf16.xpose.msra.mxu0 0
        %8284 = vmatprep.subr.bf16.mxu0 0
        %8285 = vmatpush1.bf16.xpose.msra.mxu0 0
        %8286 = vmatprep.subr.bf16.mxu0 0
        %8287 = vmatpush1.bf16.xpose.msra.mxu0 0
        %8288 = vmatprep.subr.bf16.mxu0 0
        %8289 = vmatpush1.bf16.xpose.msra.mxu0 0
        %8290 = vmatprep.subr.bf16.mxu0 0
        %8291 = vmatpush1.bf16.xpose.msra.mxu0 0
        %8292 = vmatprep.subr.bf16.mxu0 0
        %8293 = vmatpush1.bf16.xpose.msra.mxu0 0
        %8294 = vmatprep.subr.bf16.mxu0 0
        %8295 = vmatpush1.bf16.xpose.msra.mxu0 0
        %8296 = vmatprep.subr.bf16.mxu0 0
        %8297 = vmatpush1.bf16.xpose.msra.mxu0 0
        %8298 = vmatprep.mubr.bf16.mxu0 %v6011
        %8299 = vmatmul.mubr.bf16.gmra.mrb[0].mxu0 %v6010
        %v8300 = vpop.f32.mrb[0].mxu0
        %v8301 = vadd.f32 %v8261, %v8300
        %v8302 = vpop.f32.mrb[0].mxu0
        %v8303 = vpop.f32.mrb[0].mxu0
        %v8304 = vpop.f32.mrb[0].mxu0
        %8305 = vdwg.mxu0
        %8306 = vmatprep.subr.bf16.mxu0 %v6210
        %8307 = vmatpush1.bf16.xpose.msra.mxu0 %v6209
        %8308 = vmatprep.subr.bf16.mxu0 0
        %8309 = vmatpush1.bf16.xpose.msra.mxu0 0
        %8310 = vmatprep.subr.bf16.mxu0 0
        %8311 = vmatpush1.bf16.xpose.msra.mxu0 0
        %8312 = vmatprep.subr.bf16.mxu0 0
        %8313 = vmatpush1.bf16.xpose.msra.mxu0 0
        %8314 = vmatprep.subr.bf16.mxu0 0
        %8315 = vmatpush1.bf16.xpose.msra.mxu0 0
        %8316 = vmatprep.subr.bf16.mxu0 0
        %8317 = vmatpush1.bf16.xpose.msra.mxu0 0
        %8318 = vmatprep.subr.bf16.mxu0 0
        %8319 = vmatpush1.bf16.xpose.msra.mxu0 0
        %8320 = vmatprep.subr.bf16.mxu0 0
        %8321 = vmatpush1.bf16.xpose.msra.mxu0 0
        %8322 = vmatprep.subr.bf16.mxu0 0
        %8323 = vmatpush1.bf16.xpose.msra.mxu0 0
        %8324 = vmatprep.subr.bf16.mxu0 0
        %8325 = vmatpush1.bf16.xpose.msra.mxu0 0
        %8326 = vmatprep.subr.bf16.mxu0 0
        %8327 = vmatpush1.bf16.xpose.msra.mxu0 0
        %8328 = vmatprep.subr.bf16.mxu0 0
        %8329 = vmatpush1.bf16.xpose.msra.mxu0 0
        %8330 = vmatprep.subr.bf16.mxu0 0
        %8331 = vmatpush1.bf16.xpose.msra.mxu0 0
        %8332 = vmatprep.subr.bf16.mxu0 0
        %8333 = vmatpush1.bf16.xpose.msra.mxu0 0
        %8334 = vmatprep.subr.bf16.mxu0 0
        %8335 = vmatpush1.bf16.xpose.msra.mxu0 0
        %8336 = vmatprep.subr.bf16.mxu0 0
        %8337 = vmatpush1.bf16.xpose.msra.mxu0 0
        %8338 = vmatprep.mubr.bf16.mxu0 %v6013
        %8339 = vmatmul.mubr.bf16.gmra.mrb[0].mxu0 %v6012
        %v8340 = vpop.f32.mrb[0].mxu0
        %v8341 = vadd.f32 %v8301, %v8340
        %v8342 = vpop.f32.mrb[0].mxu0
        %v8343 = vpop.f32.mrb[0].mxu0
        %v8344 = vpop.f32.mrb[0].mxu0
        %8345 = vdwg.mxu0
        %8346 = vmatprep.subr.bf16.mxu0 %v6212
        %8347 = vmatpush1.bf16.xpose.msra.mxu0 %v6211
        %8348 = vmatprep.subr.bf16.mxu0 0
        %8349 = vmatpush1.bf16.xpose.msra.mxu0 0
        %8350 = vmatprep.subr.bf16.mxu0 0
        %8351 = vmatpush1.bf16.xpose.msra.mxu0 0
        %8352 = vmatprep.subr.bf16.mxu0 0
        %8353 = vmatpush1.bf16.xpose.msra.mxu0 0
        %8354 = vmatprep.subr.bf16.mxu0 0
        %8355 = vmatpush1.bf16.xpose.msra.mxu0 0
        %8356 = vmatprep.subr.bf16.mxu0 0
        %8357 = vmatpush1.bf16.xpose.msra.mxu0 0
        %8358 = vmatprep.subr.bf16.mxu0 0
        %8359 = vmatpush1.bf16.xpose.msra.mxu0 0
        %8360 = vmatprep.subr.bf16.mxu0 0
        %8361 = vmatpush1.bf16.xpose.msra.mxu0 0
        %8362 = vmatprep.subr.bf16.mxu0 0
        %8363 = vmatpush1.bf16.xpose.msra.mxu0 0
        %8364 = vmatprep.subr.bf16.mxu0 0
        %8365 = vmatpush1.bf16.xpose.msra.mxu0 0
        %8366 = vmatprep.subr.bf16.mxu0 0
        %8367 = vmatpush1.bf16.xpose.msra.mxu0 0
        %8368 = vmatprep.subr.bf16.mxu0 0
        %8369 = vmatpush1.bf16.xpose.msra.mxu0 0
        %8370 = vmatprep.subr.bf16.mxu0 0
        %8371 = vmatpush1.bf16.xpose.msra.mxu0 0
        %8372 = vmatprep.subr.bf16.mxu0 0
        %8373 = vmatpush1.bf16.xpose.msra.mxu0 0
        %8374 = vmatprep.subr.bf16.mxu0 0
        %8375 = vmatpush1.bf16.xpose.msra.mxu0 0
        %8376 = vmatprep.subr.bf16.mxu0 0
        %8377 = vmatpush1.bf16.xpose.msra.mxu0 0
        %8378 = vmatprep.mubr.bf16.mxu0 %v6015
        %8379 = vmatmul.mubr.bf16.gmra.mrb[0].mxu0 %v6014
        %v8380 = vpop.f32.mrb[0].mxu0
        %v8381 = vadd.f32 %v8341, %v8380
        %v8382 = vpop.f32.mrb[0].mxu0
        %v8383 = vpop.f32.mrb[0].mxu0
        %v8384 = vpop.f32.mrb[0].mxu0
        %8385 = vdwg.mxu0
        %8386 = vmatprep.subr.bf16.mxu0 %v6214
        %8387 = vmatpush1.bf16.xpose.msra.mxu0 %v6213
        %8388 = vmatprep.subr.bf16.mxu0 0
        %8389 = vmatpush1.bf16.xpose.msra.mxu0 0
        %8390 = vmatprep.subr.bf16.mxu0 0
        %8391 = vmatpush1.bf16.xpose.msra.mxu0 0
        %8392 = vmatprep.subr.bf16.mxu0 0
        %8393 = vmatpush1.bf16.xpose.msra.mxu0 0
        %8394 = vmatprep.subr.bf16.mxu0 0
        %8395 = vmatpush1.bf16.xpose.msra.mxu0 0
        %8396 = vmatprep.subr.bf16.mxu0 0
        %8397 = vmatpush1.bf16.xpose.msra.mxu0 0
        %8398 = vmatprep.subr.bf16.mxu0 0
        %8399 = vmatpush1.bf16.xpose.msra.mxu0 0
        %8400 = vmatprep.subr.bf16.mxu0 0
        %8401 = vmatpush1.bf16.xpose.msra.mxu0 0
        %8402 = vmatprep.subr.bf16.mxu0 0
        %8403 = vmatpush1.bf16.xpose.msra.mxu0 0
        %8404 = vmatprep.subr.bf16.mxu0 0
        %8405 = vmatpush1.bf16.xpose.msra.mxu0 0
        %8406 = vmatprep.subr.bf16.mxu0 0
        %8407 = vmatpush1.bf16.xpose.msra.mxu0 0
        %8408 = vmatprep.subr.bf16.mxu0 0
        %8409 = vmatpush1.bf16.xpose.msra.mxu0 0
        %8410 = vmatprep.subr.bf16.mxu0 0
        %8411 = vmatpush1.bf16.xpose.msra.mxu0 0
        %8412 = vmatprep.subr.bf16.mxu0 0
        %8413 = vmatpush1.bf16.xpose.msra.mxu0 0
        %8414 = vmatprep.subr.bf16.mxu0 0
        %8415 = vmatpush1.bf16.xpose.msra.mxu0 0
        %8416 = vmatprep.subr.bf16.mxu0 0
        %8417 = vmatpush1.bf16.xpose.msra.mxu0 0
        %8418 = vmatprep.mubr.bf16.mxu0 %v6017
        %8419 = vmatmul.mubr.bf16.gmra.mrb[0].mxu0 %v6016
        %v8420 = vpop.f32.mrb[0].mxu0
        %v8421 = vadd.f32 %v8381, %v8420
        %v8422 = vpop.f32.mrb[0].mxu0
        %v8423 = vpop.f32.mrb[0].mxu0
        %v8424 = vpop.f32.mrb[0].mxu0
        %8425 = vdwg.mxu0
        %8426 = vmatprep.subr.bf16.mxu0 %v6216
        %8427 = vmatpush1.bf16.xpose.msra.mxu0 %v6215
        %8428 = vmatprep.subr.bf16.mxu0 0
        %8429 = vmatpush1.bf16.xpose.msra.mxu0 0
        %8430 = vmatprep.subr.bf16.mxu0 0
        %8431 = vmatpush1.bf16.xpose.msra.mxu0 0
        %8432 = vmatprep.subr.bf16.mxu0 0
        %8433 = vmatpush1.bf16.xpose.msra.mxu0 0
        %8434 = vmatprep.subr.bf16.mxu0 0
        %8435 = vmatpush1.bf16.xpose.msra.mxu0 0
        %8436 = vmatprep.subr.bf16.mxu0 0
        %8437 = vmatpush1.bf16.xpose.msra.mxu0 0
        %8438 = vmatprep.subr.bf16.mxu0 0
        %8439 = vmatpush1.bf16.xpose.msra.mxu0 0
        %8440 = vmatprep.subr.bf16.mxu0 0
        %8441 = vmatpush1.bf16.xpose.msra.mxu0 0
        %8442 = vmatprep.subr.bf16.mxu0 0
        %8443 = vmatpush1.bf16.xpose.msra.mxu0 0
        %8444 = vmatprep.subr.bf16.mxu0 0
        %8445 = vmatpush1.bf16.xpose.msra.mxu0 0
        %8446 = vmatprep.subr.bf16.mxu0 0
        %8447 = vmatpush1.bf16.xpose.msra.mxu0 0
        %8448 = vmatprep.subr.bf16.mxu0 0
        %8449 = vmatpush1.bf16.xpose.msra.mxu0 0
        %8450 = vmatprep.subr.bf16.mxu0 0
        %8451 = vmatpush1.bf16.xpose.msra.mxu0 0
        %8452 = vmatprep.subr.bf16.mxu0 0
        %8453 = vmatpush1.bf16.xpose.msra.mxu0 0
        %8454 = vmatprep.subr.bf16.mxu0 0
        %8455 = vmatpush1.bf16.xpose.msra.mxu0 0
        %8456 = vmatprep.subr.bf16.mxu0 0
        %8457 = vmatpush1.bf16.xpose.msra.mxu0 0
        %8458 = vmatprep.mubr.bf16.mxu0 %v6019
        %8459 = vmatmul.mubr.bf16.gmra.mrb[0].mxu0 %v6018
        %v8460 = vpop.f32.mrb[0].mxu0
        %v8461 = vadd.f32 %v8421, %v8460
        %v8462 = vpop.f32.mrb[0].mxu0
        %v8463 = vpop.f32.mrb[0].mxu0
        %v8464 = vpop.f32.mrb[0].mxu0
        %8465 = vdwg.mxu0
        %8466 = vmatprep.subr.bf16.mxu0 %v6218
        %8467 = vmatpush1.bf16.xpose.msra.mxu0 %v6217
        %8468 = vmatprep.subr.bf16.mxu0 0
        %8469 = vmatpush1.bf16.xpose.msra.mxu0 0
        %8470 = vmatprep.subr.bf16.mxu0 0
        %8471 = vmatpush1.bf16.xpose.msra.mxu0 0
        %8472 = vmatprep.subr.bf16.mxu0 0
        %8473 = vmatpush1.bf16.xpose.msra.mxu0 0
        %8474 = vmatprep.subr.bf16.mxu0 0
        %8475 = vmatpush1.bf16.xpose.msra.mxu0 0
        %8476 = vmatprep.subr.bf16.mxu0 0
        %8477 = vmatpush1.bf16.xpose.msra.mxu0 0
        %8478 = vmatprep.subr.bf16.mxu0 0
        %8479 = vmatpush1.bf16.xpose.msra.mxu0 0
        %8480 = vmatprep.subr.bf16.mxu0 0
        %8481 = vmatpush1.bf16.xpose.msra.mxu0 0
        %8482 = vmatprep.subr.bf16.mxu0 0
        %8483 = vmatpush1.bf16.xpose.msra.mxu0 0
        %8484 = vmatprep.subr.bf16.mxu0 0
        %8485 = vmatpush1.bf16.xpose.msra.mxu0 0
        %8486 = vmatprep.subr.bf16.mxu0 0
        %8487 = vmatpush1.bf16.xpose.msra.mxu0 0
        %8488 = vmatprep.subr.bf16.mxu0 0
        %8489 = vmatpush1.bf16.xpose.msra.mxu0 0
        %8490 = vmatprep.subr.bf16.mxu0 0
        %8491 = vmatpush1.bf16.xpose.msra.mxu0 0
        %8492 = vmatprep.subr.bf16.mxu0 0
        %8493 = vmatpush1.bf16.xpose.msra.mxu0 0
        %8494 = vmatprep.subr.bf16.mxu0 0
        %8495 = vmatpush1.bf16.xpose.msra.mxu0 0
        %8496 = vmatprep.subr.bf16.mxu0 0
        %8497 = vmatpush1.bf16.xpose.msra.mxu0 0
        %8498 = vmatprep.mubr.bf16.mxu0 %v6021
        %8499 = vmatmul.mubr.bf16.gmra.mrb[0].mxu0 %v6020
        %v8500 = vpop.f32.mrb[0].mxu0
        %v8501 = vadd.f32 %v8461, %v8500
        %v8502 = vpop.f32.mrb[0].mxu0
        %v8503 = vpop.f32.mrb[0].mxu0
        %v8504 = vpop.f32.mrb[0].mxu0
        %8505 = vdwg.mxu0
        %8506 = vmatprep.subr.bf16.mxu0 %v6220
        %8507 = vmatpush1.bf16.xpose.msra.mxu0 %v6219
        %8508 = vmatprep.subr.bf16.mxu0 0
        %8509 = vmatpush1.bf16.xpose.msra.mxu0 0
        %8510 = vmatprep.subr.bf16.mxu0 0
        %8511 = vmatpush1.bf16.xpose.msra.mxu0 0
        %8512 = vmatprep.subr.bf16.mxu0 0
        %8513 = vmatpush1.bf16.xpose.msra.mxu0 0
        %8514 = vmatprep.subr.bf16.mxu0 0
        %8515 = vmatpush1.bf16.xpose.msra.mxu0 0
        %8516 = vmatprep.subr.bf16.mxu0 0
        %8517 = vmatpush1.bf16.xpose.msra.mxu0 0
        %8518 = vmatprep.subr.bf16.mxu0 0
        %8519 = vmatpush1.bf16.xpose.msra.mxu0 0
        %8520 = vmatprep.subr.bf16.mxu0 0
        %8521 = vmatpush1.bf16.xpose.msra.mxu0 0
        %8522 = vmatprep.subr.bf16.mxu0 0
        %8523 = vmatpush1.bf16.xpose.msra.mxu0 0
        %8524 = vmatprep.subr.bf16.mxu0 0
        %8525 = vmatpush1.bf16.xpose.msra.mxu0 0
        %8526 = vmatprep.subr.bf16.mxu0 0
        %8527 = vmatpush1.bf16.xpose.msra.mxu0 0
        %8528 = vmatprep.subr.bf16.mxu0 0
        %8529 = vmatpush1.bf16.xpose.msra.mxu0 0
        %8530 = vmatprep.subr.bf16.mxu0 0
        %8531 = vmatpush1.bf16.xpose.msra.mxu0 0
        %8532 = vmatprep.subr.bf16.mxu0 0
        %8533 = vmatpush1.bf16.xpose.msra.mxu0 0
        %8534 = vmatprep.subr.bf16.mxu0 0
        %8535 = vmatpush1.bf16.xpose.msra.mxu0 0
        %8536 = vmatprep.subr.bf16.mxu0 0
        %8537 = vmatpush1.bf16.xpose.msra.mxu0 0
        %8538 = vmatprep.mubr.bf16.mxu0 %v6023
        %8539 = vmatmul.mubr.bf16.gmra.mrb[0].mxu0 %v6022
        %v8540 = vpop.f32.mrb[0].mxu0
        %v8541 = vadd.f32 %v8501, %v8540
        %v8542 = vpop.f32.mrb[0].mxu0
        %v8543 = vpop.f32.mrb[0].mxu0
        %v8544 = vpop.f32.mrb[0].mxu0
        %8545 = vdwg.mxu0
        %8546 = vmatprep.subr.bf16.mxu0 %v6222
        %8547 = vmatpush1.bf16.xpose.msra.mxu0 %v6221
        %8548 = vmatprep.subr.bf16.mxu0 0
        %8549 = vmatpush1.bf16.xpose.msra.mxu0 0
        %8550 = vmatprep.subr.bf16.mxu0 0
        %8551 = vmatpush1.bf16.xpose.msra.mxu0 0
        %8552 = vmatprep.subr.bf16.mxu0 0
        %8553 = vmatpush1.bf16.xpose.msra.mxu0 0
        %8554 = vmatprep.subr.bf16.mxu0 0
        %8555 = vmatpush1.bf16.xpose.msra.mxu0 0
        %8556 = vmatprep.subr.bf16.mxu0 0
        %8557 = vmatpush1.bf16.xpose.msra.mxu0 0
        %8558 = vmatprep.subr.bf16.mxu0 0
        %8559 = vmatpush1.bf16.xpose.msra.mxu0 0
        %8560 = vmatprep.subr.bf16.mxu0 0
        %8561 = vmatpush1.bf16.xpose.msra.mxu0 0
        %8562 = vmatprep.subr.bf16.mxu0 0
        %8563 = vmatpush1.bf16.xpose.msra.mxu0 0
        %8564 = vmatprep.subr.bf16.mxu0 0
        %8565 = vmatpush1.bf16.xpose.msra.mxu0 0
        %8566 = vmatprep.subr.bf16.mxu0 0
        %8567 = vmatpush1.bf16.xpose.msra.mxu0 0
        %8568 = vmatprep.subr.bf16.mxu0 0
        %8569 = vmatpush1.bf16.xpose.msra.mxu0 0
        %8570 = vmatprep.subr.bf16.mxu0 0
        %8571 = vmatpush1.bf16.xpose.msra.mxu0 0
        %8572 = vmatprep.subr.bf16.mxu0 0
        %8573 = vmatpush1.bf16.xpose.msra.mxu0 0
        %8574 = vmatprep.subr.bf16.mxu0 0
        %8575 = vmatpush1.bf16.xpose.msra.mxu0 0
        %8576 = vmatprep.subr.bf16.mxu0 0
        %8577 = vmatpush1.bf16.xpose.msra.mxu0 0
        %8578 = vmatprep.mubr.bf16.mxu0 %v6025
        %8579 = vmatmul.mubr.bf16.gmra.mrb[0].mxu0 %v6024
        %v8580 = vpop.f32.mrb[0].mxu0
        %v8581 = vadd.f32 %v8541, %v8580
        %v8582 = vpop.f32.mrb[0].mxu0
        %v8583 = vpop.f32.mrb[0].mxu0
        %v8584 = vpop.f32.mrb[0].mxu0
        %8585 = vdwg.mxu0
        %8586 = vmatprep.subr.bf16.mxu0 %v6224
        %8587 = vmatpush1.bf16.xpose.msra.mxu0 %v6223
        %8588 = vmatprep.subr.bf16.mxu0 0
        %8589 = vmatpush1.bf16.xpose.msra.mxu0 0
        %8590 = vmatprep.subr.bf16.mxu0 0
        %8591 = vmatpush1.bf16.xpose.msra.mxu0 0
        %8592 = vmatprep.subr.bf16.mxu0 0
        %8593 = vmatpush1.bf16.xpose.msra.mxu0 0
        %8594 = vmatprep.subr.bf16.mxu0 0
        %8595 = vmatpush1.bf16.xpose.msra.mxu0 0
        %8596 = vmatprep.subr.bf16.mxu0 0
        %8597 = vmatpush1.bf16.xpose.msra.mxu0 0
        %8598 = vmatprep.subr.bf16.mxu0 0
        %8599 = vmatpush1.bf16.xpose.msra.mxu0 0
        %8600 = vmatprep.subr.bf16.mxu0 0
        %8601 = vmatpush1.bf16.xpose.msra.mxu0 0
        %8602 = vmatprep.subr.bf16.mxu0 0
        %8603 = vmatpush1.bf16.xpose.msra.mxu0 0
        %8604 = vmatprep.subr.bf16.mxu0 0
        %8605 = vmatpush1.bf16.xpose.msra.mxu0 0
        %8606 = vmatprep.subr.bf16.mxu0 0
        %8607 = vmatpush1.bf16.xpose.msra.mxu0 0
        %8608 = vmatprep.subr.bf16.mxu0 0
        %8609 = vmatpush1.bf16.xpose.msra.mxu0 0
        %8610 = vmatprep.subr.bf16.mxu0 0
        %8611 = vmatpush1.bf16.xpose.msra.mxu0 0
        %8612 = vmatprep.subr.bf16.mxu0 0
        %8613 = vmatpush1.bf16.xpose.msra.mxu0 0
        %8614 = vmatprep.subr.bf16.mxu0 0
        %8615 = vmatpush1.bf16.xpose.msra.mxu0 0
        %8616 = vmatprep.subr.bf16.mxu0 0
        %8617 = vmatpush1.bf16.xpose.msra.mxu0 0
        %8618 = vmatprep.mubr.bf16.mxu0 %v6027
        %8619 = vmatmul.mubr.bf16.gmra.mrb[0].mxu0 %v6026
        %v8620 = vpop.f32.mrb[0].mxu0
        %v8621 = vadd.f32 %v8581, %v8620
        %v8622 = vpop.f32.mrb[0].mxu0
        %v8623 = vpop.f32.mrb[0].mxu0
        %v8624 = vpop.f32.mrb[0].mxu0
        %8625 = vdwg.mxu0
        %8626 = vmatprep.subr.bf16.mxu0 %v6226
        %8627 = vmatpush1.bf16.xpose.msra.mxu0 %v6225
        %8628 = vmatprep.subr.bf16.mxu0 0
        %8629 = vmatpush1.bf16.xpose.msra.mxu0 0
        %8630 = vmatprep.subr.bf16.mxu0 0
        %8631 = vmatpush1.bf16.xpose.msra.mxu0 0
        %8632 = vmatprep.subr.bf16.mxu0 0
        %8633 = vmatpush1.bf16.xpose.msra.mxu0 0
        %8634 = vmatprep.subr.bf16.mxu0 0
        %8635 = vmatpush1.bf16.xpose.msra.mxu0 0
        %8636 = vmatprep.subr.bf16.mxu0 0
        %8637 = vmatpush1.bf16.xpose.msra.mxu0 0
        %8638 = vmatprep.subr.bf16.mxu0 0
        %8639 = vmatpush1.bf16.xpose.msra.mxu0 0
        %8640 = vmatprep.subr.bf16.mxu0 0
        %8641 = vmatpush1.bf16.xpose.msra.mxu0 0
        %8642 = vmatprep.subr.bf16.mxu0 0
        %8643 = vmatpush1.bf16.xpose.msra.mxu0 0
        %8644 = vmatprep.subr.bf16.mxu0 0
        %8645 = vmatpush1.bf16.xpose.msra.mxu0 0
        %8646 = vmatprep.subr.bf16.mxu0 0
        %8647 = vmatpush1.bf16.xpose.msra.mxu0 0
        %8648 = vmatprep.subr.bf16.mxu0 0
        %8649 = vmatpush1.bf16.xpose.msra.mxu0 0
        %8650 = vmatprep.subr.bf16.mxu0 0
        %8651 = vmatpush1.bf16.xpose.msra.mxu0 0
        %8652 = vmatprep.subr.bf16.mxu0 0
        %8653 = vmatpush1.bf16.xpose.msra.mxu0 0
        %8654 = vmatprep.subr.bf16.mxu0 0
        %8655 = vmatpush1.bf16.xpose.msra.mxu0 0
        %8656 = vmatprep.subr.bf16.mxu0 0
        %8657 = vmatpush1.bf16.xpose.msra.mxu0 0
        %8658 = vmatprep.mubr.bf16.mxu0 %v6029
        %8659 = vmatmul.mubr.bf16.gmra.mrb[0].mxu0 %v6028
        %v8660 = vpop.f32.mrb[0].mxu0
        %v8661 = vadd.f32 %v8621, %v8660
        %v8662 = vpop.f32.mrb[0].mxu0
        %v8663 = vpop.f32.mrb[0].mxu0
        %v8664 = vpop.f32.mrb[0].mxu0
        %8665 = vdwg.mxu0
        %8666 = vmatprep.subr.bf16.mxu0 %v6228
        %8667 = vmatpush1.bf16.xpose.msra.mxu0 %v6227
        %8668 = vmatprep.subr.bf16.mxu0 0
        %8669 = vmatpush1.bf16.xpose.msra.mxu0 0
        %8670 = vmatprep.subr.bf16.mxu0 0
        %8671 = vmatpush1.bf16.xpose.msra.mxu0 0
        %8672 = vmatprep.subr.bf16.mxu0 0
        %8673 = vmatpush1.bf16.xpose.msra.mxu0 0
        %8674 = vmatprep.subr.bf16.mxu0 0
        %8675 = vmatpush1.bf16.xpose.msra.mxu0 0
        %8676 = vmatprep.subr.bf16.mxu0 0
        %8677 = vmatpush1.bf16.xpose.msra.mxu0 0
        %8678 = vmatprep.subr.bf16.mxu0 0
        %8679 = vmatpush1.bf16.xpose.msra.mxu0 0
        %8680 = vmatprep.subr.bf16.mxu0 0
        %8681 = vmatpush1.bf16.xpose.msra.mxu0 0
        %8682 = vmatprep.subr.bf16.mxu0 0
        %8683 = vmatpush1.bf16.xpose.msra.mxu0 0
        %8684 = vmatprep.subr.bf16.mxu0 0
        %8685 = vmatpush1.bf16.xpose.msra.mxu0 0
        %8686 = vmatprep.subr.bf16.mxu0 0
        %8687 = vmatpush1.bf16.xpose.msra.mxu0 0
        %8688 = vmatprep.subr.bf16.mxu0 0
        %8689 = vmatpush1.bf16.xpose.msra.mxu0 0
        %8690 = vmatprep.subr.bf16.mxu0 0
        %8691 = vmatpush1.bf16.xpose.msra.mxu0 0
        %8692 = vmatprep.subr.bf16.mxu0 0
        %8693 = vmatpush1.bf16.xpose.msra.mxu0 0
        %8694 = vmatprep.subr.bf16.mxu0 0
        %8695 = vmatpush1.bf16.xpose.msra.mxu0 0
        %8696 = vmatprep.subr.bf16.mxu0 0
        %8697 = vmatpush1.bf16.xpose.msra.mxu0 0
        %8698 = vmatprep.mubr.bf16.mxu0 %v6031
        %8699 = vmatmul.mubr.bf16.gmra.mrb[0].mxu0 %v6030
        %v8700 = vpop.f32.mrb[0].mxu0
        %v8701 = vadd.f32 %v8661, %v8700
        %v8702 = vpop.f32.mrb[0].mxu0
        %v8703 = vpop.f32.mrb[0].mxu0
        %v8704 = vpop.f32.mrb[0].mxu0
        %8705 = vdwg.mxu0
        %8706 = vmatprep.subr.bf16.mxu0 %v6230
        %8707 = vmatpush1.bf16.xpose.msra.mxu0 %v6229
        %8708 = vmatprep.subr.bf16.mxu0 0
        %8709 = vmatpush1.bf16.xpose.msra.mxu0 0
        %8710 = vmatprep.subr.bf16.mxu0 0
        %8711 = vmatpush1.bf16.xpose.msra.mxu0 0
        %8712 = vmatprep.subr.bf16.mxu0 0
        %8713 = vmatpush1.bf16.xpose.msra.mxu0 0
        %8714 = vmatprep.subr.bf16.mxu0 0
        %8715 = vmatpush1.bf16.xpose.msra.mxu0 0
        %8716 = vmatprep.subr.bf16.mxu0 0
        %8717 = vmatpush1.bf16.xpose.msra.mxu0 0
        %8718 = vmatprep.subr.bf16.mxu0 0
        %8719 = vmatpush1.bf16.xpose.msra.mxu0 0
        %8720 = vmatprep.subr.bf16.mxu0 0
        %8721 = vmatpush1.bf16.xpose.msra.mxu0 0
        %8722 = vmatprep.subr.bf16.mxu0 0
        %8723 = vmatpush1.bf16.xpose.msra.mxu0 0
        %8724 = vmatprep.subr.bf16.mxu0 0
        %8725 = vmatpush1.bf16.xpose.msra.mxu0 0
        %8726 = vmatprep.subr.bf16.mxu0 0
        %8727 = vmatpush1.bf16.xpose.msra.mxu0 0
        %8728 = vmatprep.subr.bf16.mxu0 0
        %8729 = vmatpush1.bf16.xpose.msra.mxu0 0
        %8730 = vmatprep.subr.bf16.mxu0 0
        %8731 = vmatpush1.bf16.xpose.msra.mxu0 0
        %8732 = vmatprep.subr.bf16.mxu0 0
        %8733 = vmatpush1.bf16.xpose.msra.mxu0 0
        %8734 = vmatprep.subr.bf16.mxu0 0
        %8735 = vmatpush1.bf16.xpose.msra.mxu0 0
        %8736 = vmatprep.subr.bf16.mxu0 0
        %8737 = vmatpush1.bf16.xpose.msra.mxu0 0
        %8738 = vmatprep.mubr.bf16.mxu0 %v6033
        %8739 = vmatmul.mubr.bf16.gmra.mrb[0].mxu0 %v6032
        %v8740 = vpop.f32.mrb[0].mxu0
        %v8741 = vadd.f32 %v8701, %v8740
        %v8742 = vpop.f32.mrb[0].mxu0
        %v8743 = vpop.f32.mrb[0].mxu0
        %v8744 = vpop.f32.mrb[0].mxu0
        %8745 = vdwg.mxu0
        %8746 = vmatprep.subr.bf16.mxu0 %v6232
        %8747 = vmatpush1.bf16.xpose.msra.mxu0 %v6231
        %8748 = vmatprep.subr.bf16.mxu0 0
        %8749 = vmatpush1.bf16.xpose.msra.mxu0 0
        %8750 = vmatprep.subr.bf16.mxu0 0
        %8751 = vmatpush1.bf16.xpose.msra.mxu0 0
        %8752 = vmatprep.subr.bf16.mxu0 0
        %8753 = vmatpush1.bf16.xpose.msra.mxu0 0
        %8754 = vmatprep.subr.bf16.mxu0 0
        %8755 = vmatpush1.bf16.xpose.msra.mxu0 0
        %8756 = vmatprep.subr.bf16.mxu0 0
        %8757 = vmatpush1.bf16.xpose.msra.mxu0 0
        %8758 = vmatprep.subr.bf16.mxu0 0
        %8759 = vmatpush1.bf16.xpose.msra.mxu0 0
        %8760 = vmatprep.subr.bf16.mxu0 0
        %8761 = vmatpush1.bf16.xpose.msra.mxu0 0
        %8762 = vmatprep.subr.bf16.mxu0 0
        %8763 = vmatpush1.bf16.xpose.msra.mxu0 0
        %8764 = vmatprep.subr.bf16.mxu0 0
        %8765 = vmatpush1.bf16.xpose.msra.mxu0 0
        %8766 = vmatprep.subr.bf16.mxu0 0
        %8767 = vmatpush1.bf16.xpose.msra.mxu0 0
        %8768 = vmatprep.subr.bf16.mxu0 0
        %8769 = vmatpush1.bf16.xpose.msra.mxu0 0
        %8770 = vmatprep.subr.bf16.mxu0 0
        %8771 = vmatpush1.bf16.xpose.msra.mxu0 0
        %8772 = vmatprep.subr.bf16.mxu0 0
        %8773 = vmatpush1.bf16.xpose.msra.mxu0 0
        %8774 = vmatprep.subr.bf16.mxu0 0
        %8775 = vmatpush1.bf16.xpose.msra.mxu0 0
        %8776 = vmatprep.subr.bf16.mxu0 0
        %8777 = vmatpush1.bf16.xpose.msra.mxu0 0
        %8778 = vmatprep.mubr.bf16.mxu0 %v6035
        %8779 = vmatmul.mubr.bf16.gmra.mrb[0].mxu0 %v6034
        %v8780 = vpop.f32.mrb[0].mxu0
        %v8781 = vadd.f32 %v8741, %v8780
        %v8782 = vpop.f32.mrb[0].mxu0
        %v8783 = vpop.f32.mrb[0].mxu0
        %v8784 = vpop.f32.mrb[0].mxu0
        %8785 = vdwg.mxu0
        %8786 = vmatprep.subr.bf16.mxu0 %v6234
        %8787 = vmatpush1.bf16.xpose.msra.mxu0 %v6233
        %8788 = vmatprep.subr.bf16.mxu0 0
        %8789 = vmatpush1.bf16.xpose.msra.mxu0 0
        %8790 = vmatprep.subr.bf16.mxu0 0
        %8791 = vmatpush1.bf16.xpose.msra.mxu0 0
        %8792 = vmatprep.subr.bf16.mxu0 0
        %8793 = vmatpush1.bf16.xpose.msra.mxu0 0
        %8794 = vmatprep.subr.bf16.mxu0 0
        %8795 = vmatpush1.bf16.xpose.msra.mxu0 0
        %8796 = vmatprep.subr.bf16.mxu0 0
        %8797 = vmatpush1.bf16.xpose.msra.mxu0 0
        %8798 = vmatprep.subr.bf16.mxu0 0
        %8799 = vmatpush1.bf16.xpose.msra.mxu0 0
        %8800 = vmatprep.subr.bf16.mxu0 0
        %8801 = vmatpush1.bf16.xpose.msra.mxu0 0
        %8802 = vmatprep.subr.bf16.mxu0 0
        %8803 = vmatpush1.bf16.xpose.msra.mxu0 0
        %8804 = vmatprep.subr.bf16.mxu0 0
        %8805 = vmatpush1.bf16.xpose.msra.mxu0 0
        %8806 = vmatprep.subr.bf16.mxu0 0
        %8807 = vmatpush1.bf16.xpose.msra.mxu0 0
        %8808 = vmatprep.subr.bf16.mxu0 0
        %8809 = vmatpush1.bf16.xpose.msra.mxu0 0
        %8810 = vmatprep.subr.bf16.mxu0 0
        %8811 = vmatpush1.bf16.xpose.msra.mxu0 0
        %8812 = vmatprep.subr.bf16.mxu0 0
        %8813 = vmatpush1.bf16.xpose.msra.mxu0 0
        %8814 = vmatprep.subr.bf16.mxu0 0
        %8815 = vmatpush1.bf16.xpose.msra.mxu0 0
        %8816 = vmatprep.subr.bf16.mxu0 0
        %8817 = vmatpush1.bf16.xpose.msra.mxu0 0
        %8818 = vmatprep.mubr.bf16.mxu0 %v6037
        %8819 = vmatmul.mubr.bf16.gmra.mrb[0].mxu0 %v6036
        %v8820 = vpop.f32.mrb[0].mxu0
        %v8821 = vadd.f32 %v8781, %v8820
        %v8822 = vpop.f32.mrb[0].mxu0
        %v8823 = vpop.f32.mrb[0].mxu0
        %v8824 = vpop.f32.mrb[0].mxu0
        %8825 = vdwg.mxu0
        %8826 = vmatprep.subr.bf16.mxu0 %v6236
        %8827 = vmatpush1.bf16.xpose.msra.mxu0 %v6235
        %8828 = vmatprep.subr.bf16.mxu0 0
        %8829 = vmatpush1.bf16.xpose.msra.mxu0 0
        %8830 = vmatprep.subr.bf16.mxu0 0
        %8831 = vmatpush1.bf16.xpose.msra.mxu0 0
        %8832 = vmatprep.subr.bf16.mxu0 0
        %8833 = vmatpush1.bf16.xpose.msra.mxu0 0
        %8834 = vmatprep.subr.bf16.mxu0 0
        %8835 = vmatpush1.bf16.xpose.msra.mxu0 0
        %8836 = vmatprep.subr.bf16.mxu0 0
        %8837 = vmatpush1.bf16.xpose.msra.mxu0 0
        %8838 = vmatprep.subr.bf16.mxu0 0
        %8839 = vmatpush1.bf16.xpose.msra.mxu0 0
        %8840 = vmatprep.subr.bf16.mxu0 0
        %8841 = vmatpush1.bf16.xpose.msra.mxu0 0
        %8842 = vmatprep.subr.bf16.mxu0 0
        %8843 = vmatpush1.bf16.xpose.msra.mxu0 0
        %8844 = vmatprep.subr.bf16.mxu0 0
        %8845 = vmatpush1.bf16.xpose.msra.mxu0 0
        %8846 = vmatprep.subr.bf16.mxu0 0
        %8847 = vmatpush1.bf16.xpose.msra.mxu0 0
        %8848 = vmatprep.subr.bf16.mxu0 0
        %8849 = vmatpush1.bf16.xpose.msra.mxu0 0
        %8850 = vmatprep.subr.bf16.mxu0 0
        %8851 = vmatpush1.bf16.xpose.msra.mxu0 0
        %8852 = vmatprep.subr.bf16.mxu0 0
        %8853 = vmatpush1.bf16.xpose.msra.mxu0 0
        %8854 = vmatprep.subr.bf16.mxu0 0
        %8855 = vmatpush1.bf16.xpose.msra.mxu0 0
        %8856 = vmatprep.subr.bf16.mxu0 0
        %8857 = vmatpush1.bf16.xpose.msra.mxu0 0
        %8858 = vmatprep.mubr.bf16.mxu0 %v6039
        %8859 = vmatmul.mubr.bf16.gmra.mrb[0].mxu0 %v6038
        %v8860 = vpop.f32.mrb[0].mxu0
        %v8861 = vadd.f32 %v8821, %v8860
        %v8862 = vpop.f32.mrb[0].mxu0
        %v8863 = vpop.f32.mrb[0].mxu0
        %v8864 = vpop.f32.mrb[0].mxu0
        %8865 = vdwg.mxu0
        %8866 = vmatprep.subr.bf16.mxu0 %v6238
        %8867 = vmatpush1.bf16.xpose.msra.mxu0 %v6237
        %8868 = vmatprep.subr.bf16.mxu0 0
        %8869 = vmatpush1.bf16.xpose.msra.mxu0 0
        %8870 = vmatprep.subr.bf16.mxu0 0
        %8871 = vmatpush1.bf16.xpose.msra.mxu0 0
        %8872 = vmatprep.subr.bf16.mxu0 0
        %8873 = vmatpush1.bf16.xpose.msra.mxu0 0
        %8874 = vmatprep.subr.bf16.mxu0 0
        %8875 = vmatpush1.bf16.xpose.msra.mxu0 0
        %8876 = vmatprep.subr.bf16.mxu0 0
        %8877 = vmatpush1.bf16.xpose.msra.mxu0 0
        %8878 = vmatprep.subr.bf16.mxu0 0
        %8879 = vmatpush1.bf16.xpose.msra.mxu0 0
        %8880 = vmatprep.subr.bf16.mxu0 0
        %8881 = vmatpush1.bf16.xpose.msra.mxu0 0
        %8882 = vmatprep.subr.bf16.mxu0 0
        %8883 = vmatpush1.bf16.xpose.msra.mxu0 0
        %8884 = vmatprep.subr.bf16.mxu0 0
        %8885 = vmatpush1.bf16.xpose.msra.mxu0 0
        %8886 = vmatprep.subr.bf16.mxu0 0
        %8887 = vmatpush1.bf16.xpose.msra.mxu0 0
        %8888 = vmatprep.subr.bf16.mxu0 0
        %8889 = vmatpush1.bf16.xpose.msra.mxu0 0
        %8890 = vmatprep.subr.bf16.mxu0 0
        %8891 = vmatpush1.bf16.xpose.msra.mxu0 0
        %8892 = vmatprep.subr.bf16.mxu0 0
        %8893 = vmatpush1.bf16.xpose.msra.mxu0 0
        %8894 = vmatprep.subr.bf16.mxu0 0
        %8895 = vmatpush1.bf16.xpose.msra.mxu0 0
        %8896 = vmatprep.subr.bf16.mxu0 0
        %8897 = vmatpush1.bf16.xpose.msra.mxu0 0
        %8898 = vmatprep.mubr.bf16.mxu0 %v6041
        %8899 = vmatmul.mubr.bf16.gmra.mrb[0].mxu0 %v6040
        %v8900 = vpop.f32.mrb[0].mxu0
        %v8901 = vadd.f32 %v8861, %v8900
        %v8902 = vpop.f32.mrb[0].mxu0
        %v8903 = vpop.f32.mrb[0].mxu0
        %v8904 = vpop.f32.mrb[0].mxu0
        %8905 = vdwg.mxu0
        %8906 = vmatprep.subr.bf16.mxu0 %v6240
        %8907 = vmatpush1.bf16.xpose.msra.mxu0 %v6239
        %8908 = vmatprep.subr.bf16.mxu0 0
        %8909 = vmatpush1.bf16.xpose.msra.mxu0 0
        %8910 = vmatprep.subr.bf16.mxu0 0
        %8911 = vmatpush1.bf16.xpose.msra.mxu0 0
        %8912 = vmatprep.subr.bf16.mxu0 0
        %8913 = vmatpush1.bf16.xpose.msra.mxu0 0
        %8914 = vmatprep.subr.bf16.mxu0 0
        %8915 = vmatpush1.bf16.xpose.msra.mxu0 0
        %8916 = vmatprep.subr.bf16.mxu0 0
        %8917 = vmatpush1.bf16.xpose.msra.mxu0 0
        %8918 = vmatprep.subr.bf16.mxu0 0
        %8919 = vmatpush1.bf16.xpose.msra.mxu0 0
        %8920 = vmatprep.subr.bf16.mxu0 0
        %8921 = vmatpush1.bf16.xpose.msra.mxu0 0
        %8922 = vmatprep.subr.bf16.mxu0 0
        %8923 = vmatpush1.bf16.xpose.msra.mxu0 0
        %8924 = vmatprep.subr.bf16.mxu0 0
        %8925 = vmatpush1.bf16.xpose.msra.mxu0 0
        %8926 = vmatprep.subr.bf16.mxu0 0
        %8927 = vmatpush1.bf16.xpose.msra.mxu0 0
        %8928 = vmatprep.subr.bf16.mxu0 0
        %8929 = vmatpush1.bf16.xpose.msra.mxu0 0
        %8930 = vmatprep.subr.bf16.mxu0 0
        %8931 = vmatpush1.bf16.xpose.msra.mxu0 0
        %8932 = vmatprep.subr.bf16.mxu0 0
        %8933 = vmatpush1.bf16.xpose.msra.mxu0 0
        %8934 = vmatprep.subr.bf16.mxu0 0
        %8935 = vmatpush1.bf16.xpose.msra.mxu0 0
        %8936 = vmatprep.subr.bf16.mxu0 0
        %8937 = vmatpush1.bf16.xpose.msra.mxu0 0
        %8938 = vmatprep.mubr.bf16.mxu0 %v6043
        %8939 = vmatmul.mubr.bf16.gmra.mrb[0].mxu0 %v6042
        %v8940 = vpop.f32.mrb[0].mxu0
        %v8941 = vadd.f32 %v8901, %v8940
        %v8942 = vpop.f32.mrb[0].mxu0
        %v8943 = vpop.f32.mrb[0].mxu0
        %v8944 = vpop.f32.mrb[0].mxu0
        %8945 = vdwg.mxu0
        %8946 = vmatprep.subr.bf16.mxu0 %v6242
        %8947 = vmatpush1.bf16.xpose.msra.mxu0 %v6241
        %8948 = vmatprep.subr.bf16.mxu0 0
        %8949 = vmatpush1.bf16.xpose.msra.mxu0 0
        %8950 = vmatprep.subr.bf16.mxu0 0
        %8951 = vmatpush1.bf16.xpose.msra.mxu0 0
        %8952 = vmatprep.subr.bf16.mxu0 0
        %8953 = vmatpush1.bf16.xpose.msra.mxu0 0
        %8954 = vmatprep.subr.bf16.mxu0 0
        %8955 = vmatpush1.bf16.xpose.msra.mxu0 0
        %8956 = vmatprep.subr.bf16.mxu0 0
        %8957 = vmatpush1.bf16.xpose.msra.mxu0 0
        %8958 = vmatprep.subr.bf16.mxu0 0
        %8959 = vmatpush1.bf16.xpose.msra.mxu0 0
        %8960 = vmatprep.subr.bf16.mxu0 0
        %8961 = vmatpush1.bf16.xpose.msra.mxu0 0
        %8962 = vmatprep.subr.bf16.mxu0 0
        %8963 = vmatpush1.bf16.xpose.msra.mxu0 0
        %8964 = vmatprep.subr.bf16.mxu0 0
        %8965 = vmatpush1.bf16.xpose.msra.mxu0 0
        %8966 = vmatprep.subr.bf16.mxu0 0
        %8967 = vmatpush1.bf16.xpose.msra.mxu0 0
        %8968 = vmatprep.subr.bf16.mxu0 0
        %8969 = vmatpush1.bf16.xpose.msra.mxu0 0
        %8970 = vmatprep.subr.bf16.mxu0 0
        %8971 = vmatpush1.bf16.xpose.msra.mxu0 0
        %8972 = vmatprep.subr.bf16.mxu0 0
        %8973 = vmatpush1.bf16.xpose.msra.mxu0 0
        %8974 = vmatprep.subr.bf16.mxu0 0
        %8975 = vmatpush1.bf16.xpose.msra.mxu0 0
        %8976 = vmatprep.subr.bf16.mxu0 0
        %8977 = vmatpush1.bf16.xpose.msra.mxu0 0
        %8978 = vmatprep.mubr.bf16.mxu0 %v6045
        %8979 = vmatmul.mubr.bf16.gmra.mrb[0].mxu0 %v6044
        %v8980 = vpop.f32.mrb[0].mxu0
        %v8981 = vadd.f32 %v8941, %v8980
        %v8982 = vpop.f32.mrb[0].mxu0
        %v8983 = vpop.f32.mrb[0].mxu0
        %v8984 = vpop.f32.mrb[0].mxu0
        %8985 = vdwg.mxu0
        %8986 = vmatprep.subr.bf16.mxu0 %v6244
        %8987 = vmatpush1.bf16.xpose.msra.mxu0 %v6243
        %8988 = vmatprep.subr.bf16.mxu0 0
        %8989 = vmatpush1.bf16.xpose.msra.mxu0 0
        %8990 = vmatprep.subr.bf16.mxu0 0
        %8991 = vmatpush1.bf16.xpose.msra.mxu0 0
        %8992 = vmatprep.subr.bf16.mxu0 0
        %8993 = vmatpush1.bf16.xpose.msra.mxu0 0
        %8994 = vmatprep.subr.bf16.mxu0 0
        %8995 = vmatpush1.bf16.xpose.msra.mxu0 0
        %8996 = vmatprep.subr.bf16.mxu0 0
        %8997 = vmatpush1.bf16.xpose.msra.mxu0 0
        %8998 = vmatprep.subr.bf16.mxu0 0
        %8999 = vmatpush1.bf16.xpose.msra.mxu0 0
        %9000 = vmatprep.subr.bf16.mxu0 0
        %9001 = vmatpush1.bf16.xpose.msra.mxu0 0
        %9002 = vmatprep.subr.bf16.mxu0 0
        %9003 = vmatpush1.bf16.xpose.msra.mxu0 0
        %9004 = vmatprep.subr.bf16.mxu0 0
        %9005 = vmatpush1.bf16.xpose.msra.mxu0 0
        %9006 = vmatprep.subr.bf16.mxu0 0
        %9007 = vmatpush1.bf16.xpose.msra.mxu0 0
        %9008 = vmatprep.subr.bf16.mxu0 0
        %9009 = vmatpush1.bf16.xpose.msra.mxu0 0
        %9010 = vmatprep.subr.bf16.mxu0 0
        %9011 = vmatpush1.bf16.xpose.msra.mxu0 0
        %9012 = vmatprep.subr.bf16.mxu0 0
        %9013 = vmatpush1.bf16.xpose.msra.mxu0 0
        %9014 = vmatprep.subr.bf16.mxu0 0
        %9015 = vmatpush1.bf16.xpose.msra.mxu0 0
        %9016 = vmatprep.subr.bf16.mxu0 0
        %9017 = vmatpush1.bf16.xpose.msra.mxu0 0
        %9018 = vmatprep.mubr.bf16.mxu0 %v6047
        %9019 = vmatmul.mubr.bf16.gmra.mrb[0].mxu0 %v6046
        %v9020 = vpop.f32.mrb[0].mxu0
        %v9021 = vadd.f32 %v8981, %v9020
        %v9022 = vpop.f32.mrb[0].mxu0
        %v9023 = vpop.f32.mrb[0].mxu0
        %v9024 = vpop.f32.mrb[0].mxu0
        %9025 = vdwg.mxu0
        %9026 = vmatprep.subr.bf16.mxu0 %v6246
        %9027 = vmatpush1.bf16.xpose.msra.mxu0 %v6245
        %9028 = vmatprep.subr.bf16.mxu0 0
        %9029 = vmatpush1.bf16.xpose.msra.mxu0 0
        %9030 = vmatprep.subr.bf16.mxu0 0
        %9031 = vmatpush1.bf16.xpose.msra.mxu0 0
        %9032 = vmatprep.subr.bf16.mxu0 0
        %9033 = vmatpush1.bf16.xpose.msra.mxu0 0
        %9034 = vmatprep.subr.bf16.mxu0 0
        %9035 = vmatpush1.bf16.xpose.msra.mxu0 0
        %9036 = vmatprep.subr.bf16.mxu0 0
        %9037 = vmatpush1.bf16.xpose.msra.mxu0 0
        %9038 = vmatprep.subr.bf16.mxu0 0
        %9039 = vmatpush1.bf16.xpose.msra.mxu0 0
        %9040 = vmatprep.subr.bf16.mxu0 0
        %9041 = vmatpush1.bf16.xpose.msra.mxu0 0
        %9042 = vmatprep.subr.bf16.mxu0 0
        %9043 = vmatpush1.bf16.xpose.msra.mxu0 0
        %9044 = vmatprep.subr.bf16.mxu0 0
        %9045 = vmatpush1.bf16.xpose.msra.mxu0 0
        %9046 = vmatprep.subr.bf16.mxu0 0
        %9047 = vmatpush1.bf16.xpose.msra.mxu0 0
        %9048 = vmatprep.subr.bf16.mxu0 0
        %9049 = vmatpush1.bf16.xpose.msra.mxu0 0
        %9050 = vmatprep.subr.bf16.mxu0 0
        %9051 = vmatpush1.bf16.xpose.msra.mxu0 0
        %9052 = vmatprep.subr.bf16.mxu0 0
        %9053 = vmatpush1.bf16.xpose.msra.mxu0 0
        %9054 = vmatprep.subr.bf16.mxu0 0
        %9055 = vmatpush1.bf16.xpose.msra.mxu0 0
        %9056 = vmatprep.subr.bf16.mxu0 0
        %9057 = vmatpush1.bf16.xpose.msra.mxu0 0
        %9058 = vmatprep.mubr.bf16.mxu0 %v6049
        %9059 = vmatmul.mubr.bf16.gmra.mrb[0].mxu0 %v6048
        %v9060 = vpop.f32.mrb[0].mxu0
        %v9061 = vadd.f32 %v9021, %v9060
        %v9062 = vpop.f32.mrb[0].mxu0
        %v9063 = vpop.f32.mrb[0].mxu0
        %v9064 = vpop.f32.mrb[0].mxu0
        %9065 = vdwg.mxu0
        %9066 = vmatprep.subr.bf16.mxu0 %v6248
        %9067 = vmatpush1.bf16.xpose.msra.mxu0 %v6247
        %9068 = vmatprep.subr.bf16.mxu0 0
        %9069 = vmatpush1.bf16.xpose.msra.mxu0 0
        %9070 = vmatprep.subr.bf16.mxu0 0
        %9071 = vmatpush1.bf16.xpose.msra.mxu0 0
        %9072 = vmatprep.subr.bf16.mxu0 0
        %9073 = vmatpush1.bf16.xpose.msra.mxu0 0
        %9074 = vmatprep.subr.bf16.mxu0 0
        %9075 = vmatpush1.bf16.xpose.msra.mxu0 0
        %9076 = vmatprep.subr.bf16.mxu0 0
        %9077 = vmatpush1.bf16.xpose.msra.mxu0 0
        %9078 = vmatprep.subr.bf16.mxu0 0
        %9079 = vmatpush1.bf16.xpose.msra.mxu0 0
        %9080 = vmatprep.subr.bf16.mxu0 0
        %9081 = vmatpush1.bf16.xpose.msra.mxu0 0
        %9082 = vmatprep.subr.bf16.mxu0 0
        %9083 = vmatpush1.bf16.xpose.msra.mxu0 0
        %9084 = vmatprep.subr.bf16.mxu0 0
        %9085 = vmatpush1.bf16.xpose.msra.mxu0 0
        %9086 = vmatprep.subr.bf16.mxu0 0
        %9087 = vmatpush1.bf16.xpose.msra.mxu0 0
        %9088 = vmatprep.subr.bf16.mxu0 0
        %9089 = vmatpush1.bf16.xpose.msra.mxu0 0
        %9090 = vmatprep.subr.bf16.mxu0 0
        %9091 = vmatpush1.bf16.xpose.msra.mxu0 0
        %9092 = vmatprep.subr.bf16.mxu0 0
        %9093 = vmatpush1.bf16.xpose.msra.mxu0 0
        %9094 = vmatprep.subr.bf16.mxu0 0
        %9095 = vmatpush1.bf16.xpose.msra.mxu0 0
        %9096 = vmatprep.subr.bf16.mxu0 0
        %9097 = vmatpush1.bf16.xpose.msra.mxu0 0
        %9098 = vmatprep.mubr.bf16.mxu0 %v6051
        %9099 = vmatmul.mubr.bf16.gmra.mrb[0].mxu0 %v6050
        %v9100 = vpop.f32.mrb[0].mxu0
        %v9101 = vadd.f32 %v9061, %v9100
        %v9102 = vpop.f32.mrb[0].mxu0
        %v9103 = vpop.f32.mrb[0].mxu0
        %v9104 = vpop.f32.mrb[0].mxu0
        %9105 = vdwg.mxu0
        %9106 = vmatprep.subr.bf16.mxu0 %v6250
        %9107 = vmatpush1.bf16.xpose.msra.mxu0 %v6249
        %9108 = vmatprep.subr.bf16.mxu0 0
        %9109 = vmatpush1.bf16.xpose.msra.mxu0 0
        %9110 = vmatprep.subr.bf16.mxu0 0
        %9111 = vmatpush1.bf16.xpose.msra.mxu0 0
        %9112 = vmatprep.subr.bf16.mxu0 0
        %9113 = vmatpush1.bf16.xpose.msra.mxu0 0
        %9114 = vmatprep.subr.bf16.mxu0 0
        %9115 = vmatpush1.bf16.xpose.msra.mxu0 0
        %9116 = vmatprep.subr.bf16.mxu0 0
        %9117 = vmatpush1.bf16.xpose.msra.mxu0 0
        %9118 = vmatprep.subr.bf16.mxu0 0
        %9119 = vmatpush1.bf16.xpose.msra.mxu0 0
        %9120 = vmatprep.subr.bf16.mxu0 0
        %9121 = vmatpush1.bf16.xpose.msra.mxu0 0
        %9122 = vmatprep.subr.bf16.mxu0 0
        %9123 = vmatpush1.bf16.xpose.msra.mxu0 0
        %9124 = vmatprep.subr.bf16.mxu0 0
        %9125 = vmatpush1.bf16.xpose.msra.mxu0 0
        %9126 = vmatprep.subr.bf16.mxu0 0
        %9127 = vmatpush1.bf16.xpose.msra.mxu0 0
        %9128 = vmatprep.subr.bf16.mxu0 0
        %9129 = vmatpush1.bf16.xpose.msra.mxu0 0
        %9130 = vmatprep.subr.bf16.mxu0 0
        %9131 = vmatpush1.bf16.xpose.msra.mxu0 0
        %9132 = vmatprep.subr.bf16.mxu0 0
        %9133 = vmatpush1.bf16.xpose.msra.mxu0 0
        %9134 = vmatprep.subr.bf16.mxu0 0
        %9135 = vmatpush1.bf16.xpose.msra.mxu0 0
        %9136 = vmatprep.subr.bf16.mxu0 0
        %9137 = vmatpush1.bf16.xpose.msra.mxu0 0
        %9138 = vmatprep.mubr.bf16.mxu0 %v6053
        %9139 = vmatmul.mubr.bf16.gmra.mrb[0].mxu0 %v6052
        %v9140 = vpop.f32.mrb[0].mxu0
        %v9141 = vadd.f32 %v9101, %v9140
        %v9142 = vpop.f32.mrb[0].mxu0
        %v9143 = vpop.f32.mrb[0].mxu0
        %v9144 = vpop.f32.mrb[0].mxu0
        %9145 = vdwg.mxu0
        %9146 = vmatprep.subr.bf16.mxu0 %v6252
        %9147 = vmatpush1.bf16.xpose.msra.mxu0 %v6251
        %9148 = vmatprep.subr.bf16.mxu0 0
        %9149 = vmatpush1.bf16.xpose.msra.mxu0 0
        %9150 = vmatprep.subr.bf16.mxu0 0
        %9151 = vmatpush1.bf16.xpose.msra.mxu0 0
        %9152 = vmatprep.subr.bf16.mxu0 0
        %9153 = vmatpush1.bf16.xpose.msra.mxu0 0
        %9154 = vmatprep.subr.bf16.mxu0 0
        %9155 = vmatpush1.bf16.xpose.msra.mxu0 0
        %9156 = vmatprep.subr.bf16.mxu0 0
        %9157 = vmatpush1.bf16.xpose.msra.mxu0 0
        %9158 = vmatprep.subr.bf16.mxu0 0
        %9159 = vmatpush1.bf16.xpose.msra.mxu0 0
        %9160 = vmatprep.subr.bf16.mxu0 0
        %9161 = vmatpush1.bf16.xpose.msra.mxu0 0
        %9162 = vmatprep.subr.bf16.mxu0 0
        %9163 = vmatpush1.bf16.xpose.msra.mxu0 0
        %9164 = vmatprep.subr.bf16.mxu0 0
        %9165 = vmatpush1.bf16.xpose.msra.mxu0 0
        %9166 = vmatprep.subr.bf16.mxu0 0
        %9167 = vmatpush1.bf16.xpose.msra.mxu0 0
        %9168 = vmatprep.subr.bf16.mxu0 0
        %9169 = vmatpush1.bf16.xpose.msra.mxu0 0
        %9170 = vmatprep.subr.bf16.mxu0 0
        %9171 = vmatpush1.bf16.xpose.msra.mxu0 0
        %9172 = vmatprep.subr.bf16.mxu0 0
        %9173 = vmatpush1.bf16.xpose.msra.mxu0 0
        %9174 = vmatprep.subr.bf16.mxu0 0
        %9175 = vmatpush1.bf16.xpose.msra.mxu0 0
        %9176 = vmatprep.subr.bf16.mxu0 0
        %9177 = vmatpush1.bf16.xpose.msra.mxu0 0
        %9178 = vmatprep.mubr.bf16.mxu0 %v6055
        %9179 = vmatmul.mubr.bf16.gmra.mrb[0].mxu0 %v6054
        %v9180 = vpop.f32.mrb[0].mxu0
        %v9181 = vadd.f32 %v9141, %v9180
        %v9182 = vpop.f32.mrb[0].mxu0
        %v9183 = vpop.f32.mrb[0].mxu0
        %v9184 = vpop.f32.mrb[0].mxu0
        %9185 = vdwg.mxu0
        %9186 = vmatprep.subr.bf16.mxu0 %v6254
        %9187 = vmatpush1.bf16.xpose.msra.mxu0 %v6253
        %9188 = vmatprep.subr.bf16.mxu0 0
        %9189 = vmatpush1.bf16.xpose.msra.mxu0 0
        %9190 = vmatprep.subr.bf16.mxu0 0
        %9191 = vmatpush1.bf16.xpose.msra.mxu0 0
        %9192 = vmatprep.subr.bf16.mxu0 0
        %9193 = vmatpush1.bf16.xpose.msra.mxu0 0
        %9194 = vmatprep.subr.bf16.mxu0 0
        %9195 = vmatpush1.bf16.xpose.msra.mxu0 0
        %9196 = vmatprep.subr.bf16.mxu0 0
        %9197 = vmatpush1.bf16.xpose.msra.mxu0 0
        %9198 = vmatprep.subr.bf16.mxu0 0
        %9199 = vmatpush1.bf16.xpose.msra.mxu0 0
        %9200 = vmatprep.subr.bf16.mxu0 0
        %9201 = vmatpush1.bf16.xpose.msra.mxu0 0
        %9202 = vmatprep.subr.bf16.mxu0 0
        %9203 = vmatpush1.bf16.xpose.msra.mxu0 0
        %9204 = vmatprep.subr.bf16.mxu0 0
        %9205 = vmatpush1.bf16.xpose.msra.mxu0 0
        %9206 = vmatprep.subr.bf16.mxu0 0
        %9207 = vmatpush1.bf16.xpose.msra.mxu0 0
        %9208 = vmatprep.subr.bf16.mxu0 0
        %9209 = vmatpush1.bf16.xpose.msra.mxu0 0
        %9210 = vmatprep.subr.bf16.mxu0 0
        %9211 = vmatpush1.bf16.xpose.msra.mxu0 0
        %9212 = vmatprep.subr.bf16.mxu0 0
        %9213 = vmatpush1.bf16.xpose.msra.mxu0 0
        %9214 = vmatprep.subr.bf16.mxu0 0
        %9215 = vmatpush1.bf16.xpose.msra.mxu0 0
        %9216 = vmatprep.subr.bf16.mxu0 0
        %9217 = vmatpush1.bf16.xpose.msra.mxu0 0
        %9218 = vmatprep.mubr.bf16.mxu0 %v6057
        %9219 = vmatmul.mubr.bf16.gmra.mrb[0].mxu0 %v6056
        %v9220 = vpop.f32.mrb[0].mxu0
        %v9221 = vadd.f32 %v9181, %v9220
        %v9222 = vpop.f32.mrb[0].mxu0
        %v9223 = vpop.f32.mrb[0].mxu0
        %v9224 = vpop.f32.mrb[0].mxu0
        %9225 = vdwg.mxu0
        %9226 = vmatprep.subr.bf16.mxu0 %v6256
        %9227 = vmatpush1.bf16.xpose.msra.mxu0 %v6255
        %9228 = vmatprep.subr.bf16.mxu0 0
        %9229 = vmatpush1.bf16.xpose.msra.mxu0 0
        %9230 = vmatprep.subr.bf16.mxu0 0
        %9231 = vmatpush1.bf16.xpose.msra.mxu0 0
        %9232 = vmatprep.subr.bf16.mxu0 0
        %9233 = vmatpush1.bf16.xpose.msra.mxu0 0
        %9234 = vmatprep.subr.bf16.mxu0 0
        %9235 = vmatpush1.bf16.xpose.msra.mxu0 0
        %9236 = vmatprep.subr.bf16.mxu0 0
        %9237 = vmatpush1.bf16.xpose.msra.mxu0 0
        %9238 = vmatprep.subr.bf16.mxu0 0
        %9239 = vmatpush1.bf16.xpose.msra.mxu0 0
        %9240 = vmatprep.subr.bf16.mxu0 0
        %9241 = vmatpush1.bf16.xpose.msra.mxu0 0
        %9242 = vmatprep.subr.bf16.mxu0 0
        %9243 = vmatpush1.bf16.xpose.msra.mxu0 0
        %9244 = vmatprep.subr.bf16.mxu0 0
        %9245 = vmatpush1.bf16.xpose.msra.mxu0 0
        %9246 = vmatprep.subr.bf16.mxu0 0
        %9247 = vmatpush1.bf16.xpose.msra.mxu0 0
        %9248 = vmatprep.subr.bf16.mxu0 0
        %9249 = vmatpush1.bf16.xpose.msra.mxu0 0
        %9250 = vmatprep.subr.bf16.mxu0 0
        %9251 = vmatpush1.bf16.xpose.msra.mxu0 0
        %9252 = vmatprep.subr.bf16.mxu0 0
        %9253 = vmatpush1.bf16.xpose.msra.mxu0 0
        %9254 = vmatprep.subr.bf16.mxu0 0
        %9255 = vmatpush1.bf16.xpose.msra.mxu0 0
        %9256 = vmatprep.subr.bf16.mxu0 0
        %9257 = vmatpush1.bf16.xpose.msra.mxu0 0
        %9258 = vmatprep.mubr.bf16.mxu0 %v6059
        %9259 = vmatmul.mubr.bf16.gmra.mrb[0].mxu0 %v6058
        %v9260 = vpop.f32.mrb[0].mxu0
        %v9261 = vadd.f32 %v9221, %v9260
        %v9262 = vpop.f32.mrb[0].mxu0
        %v9263 = vpop.f32.mrb[0].mxu0
        %v9264 = vpop.f32.mrb[0].mxu0
        %9265 = vdwg.mxu0
        %9266 = vmatprep.subr.bf16.mxu0 %v6258
        %9267 = vmatpush1.bf16.xpose.msra.mxu0 %v6257
        %9268 = vmatprep.subr.bf16.mxu0 0
        %9269 = vmatpush1.bf16.xpose.msra.mxu0 0
        %9270 = vmatprep.subr.bf16.mxu0 0
        %9271 = vmatpush1.bf16.xpose.msra.mxu0 0
        %9272 = vmatprep.subr.bf16.mxu0 0
        %9273 = vmatpush1.bf16.xpose.msra.mxu0 0
        %9274 = vmatprep.subr.bf16.mxu0 0
        %9275 = vmatpush1.bf16.xpose.msra.mxu0 0
        %9276 = vmatprep.subr.bf16.mxu0 0
        %9277 = vmatpush1.bf16.xpose.msra.mxu0 0
        %9278 = vmatprep.subr.bf16.mxu0 0
        %9279 = vmatpush1.bf16.xpose.msra.mxu0 0
        %9280 = vmatprep.subr.bf16.mxu0 0
        %9281 = vmatpush1.bf16.xpose.msra.mxu0 0
        %9282 = vmatprep.subr.bf16.mxu0 0
        %9283 = vmatpush1.bf16.xpose.msra.mxu0 0
        %9284 = vmatprep.subr.bf16.mxu0 0
        %9285 = vmatpush1.bf16.xpose.msra.mxu0 0
        %9286 = vmatprep.subr.bf16.mxu0 0
        %9287 = vmatpush1.bf16.xpose.msra.mxu0 0
        %9288 = vmatprep.subr.bf16.mxu0 0
        %9289 = vmatpush1.bf16.xpose.msra.mxu0 0
        %9290 = vmatprep.subr.bf16.mxu0 0
        %9291 = vmatpush1.bf16.xpose.msra.mxu0 0
        %9292 = vmatprep.subr.bf16.mxu0 0
        %9293 = vmatpush1.bf16.xpose.msra.mxu0 0
        %9294 = vmatprep.subr.bf16.mxu0 0
        %9295 = vmatpush1.bf16.xpose.msra.mxu0 0
        %9296 = vmatprep.subr.bf16.mxu0 0
        %9297 = vmatpush1.bf16.xpose.msra.mxu0 0
        %9298 = vmatprep.mubr.bf16.mxu0 %v6061
        %9299 = vmatmul.mubr.bf16.gmra.mrb[0].mxu0 %v6060
        %v9300 = vpop.f32.mrb[0].mxu0
        %v9301 = vadd.f32 %v9261, %v9300
        %v9302 = vpop.f32.mrb[0].mxu0
        %v9303 = vpop.f32.mrb[0].mxu0
        %v9304 = vpop.f32.mrb[0].mxu0
        %9305 = vdwg.mxu0
        %9306 = vmatprep.subr.bf16.mxu0 %v6260
        %9307 = vmatpush1.bf16.xpose.msra.mxu0 %v6259
        %9308 = vmatprep.subr.bf16.mxu0 0
        %9309 = vmatpush1.bf16.xpose.msra.mxu0 0
        %9310 = vmatprep.subr.bf16.mxu0 0
        %9311 = vmatpush1.bf16.xpose.msra.mxu0 0
        %9312 = vmatprep.subr.bf16.mxu0 0
        %9313 = vmatpush1.bf16.xpose.msra.mxu0 0
        %9314 = vmatprep.subr.bf16.mxu0 0
        %9315 = vmatpush1.bf16.xpose.msra.mxu0 0
        %9316 = vmatprep.subr.bf16.mxu0 0
        %9317 = vmatpush1.bf16.xpose.msra.mxu0 0
        %9318 = vmatprep.subr.bf16.mxu0 0
        %9319 = vmatpush1.bf16.xpose.msra.mxu0 0
        %9320 = vmatprep.subr.bf16.mxu0 0
        %9321 = vmatpush1.bf16.xpose.msra.mxu0 0
        %9322 = vmatprep.subr.bf16.mxu0 0
        %9323 = vmatpush1.bf16.xpose.msra.mxu0 0
        %9324 = vmatprep.subr.bf16.mxu0 0
        %9325 = vmatpush1.bf16.xpose.msra.mxu0 0
        %9326 = vmatprep.subr.bf16.mxu0 0
        %9327 = vmatpush1.bf16.xpose.msra.mxu0 0
        %9328 = vmatprep.subr.bf16.mxu0 0
        %9329 = vmatpush1.bf16.xpose.msra.mxu0 0
        %9330 = vmatprep.subr.bf16.mxu0 0
        %9331 = vmatpush1.bf16.xpose.msra.mxu0 0
        %9332 = vmatprep.subr.bf16.mxu0 0
        %9333 = vmatpush1.bf16.xpose.msra.mxu0 0
        %9334 = vmatprep.subr.bf16.mxu0 0
        %9335 = vmatpush1.bf16.xpose.msra.mxu0 0
        %9336 = vmatprep.subr.bf16.mxu0 0
        %9337 = vmatpush1.bf16.xpose.msra.mxu0 0
        %9338 = vmatprep.mubr.bf16.mxu0 %v6063
        %9339 = vmatmul.mubr.bf16.gmra.mrb[0].mxu0 %v6062
        %v9340 = vpop.f32.mrb[0].mxu0
        %v9341 = vadd.f32 %v9301, %v9340
        %v9342 = vpop.f32.mrb[0].mxu0
        %v9343 = vpop.f32.mrb[0].mxu0
        %v9344 = vpop.f32.mrb[0].mxu0
        %9345 = vdwg.mxu0
        %9346 = vmatprep.subr.bf16.mxu0 %v6262
        %9347 = vmatpush1.bf16.xpose.msra.mxu0 %v6261
        %9348 = vmatprep.subr.bf16.mxu0 0
        %9349 = vmatpush1.bf16.xpose.msra.mxu0 0
        %9350 = vmatprep.subr.bf16.mxu0 0
        %9351 = vmatpush1.bf16.xpose.msra.mxu0 0
        %9352 = vmatprep.subr.bf16.mxu0 0
        %9353 = vmatpush1.bf16.xpose.msra.mxu0 0
        %9354 = vmatprep.subr.bf16.mxu0 0
        %9355 = vmatpush1.bf16.xpose.msra.mxu0 0
        %9356 = vmatprep.subr.bf16.mxu0 0
        %9357 = vmatpush1.bf16.xpose.msra.mxu0 0
        %9358 = vmatprep.subr.bf16.mxu0 0
        %9359 = vmatpush1.bf16.xpose.msra.mxu0 0
        %9360 = vmatprep.subr.bf16.mxu0 0
        %9361 = vmatpush1.bf16.xpose.msra.mxu0 0
        %9362 = vmatprep.subr.bf16.mxu0 0
        %9363 = vmatpush1.bf16.xpose.msra.mxu0 0
        %9364 = vmatprep.subr.bf16.mxu0 0
        %9365 = vmatpush1.bf16.xpose.msra.mxu0 0
        %9366 = vmatprep.subr.bf16.mxu0 0
        %9367 = vmatpush1.bf16.xpose.msra.mxu0 0
        %9368 = vmatprep.subr.bf16.mxu0 0
        %9369 = vmatpush1.bf16.xpose.msra.mxu0 0
        %9370 = vmatprep.subr.bf16.mxu0 0
        %9371 = vmatpush1.bf16.xpose.msra.mxu0 0
        %9372 = vmatprep.subr.bf16.mxu0 0
        %9373 = vmatpush1.bf16.xpose.msra.mxu0 0
        %9374 = vmatprep.subr.bf16.mxu0 0
        %9375 = vmatpush1.bf16.xpose.msra.mxu0 0
        %9376 = vmatprep.subr.bf16.mxu0 0
        %9377 = vmatpush1.bf16.xpose.msra.mxu0 0
        %9378 = vmatprep.mubr.bf16.mxu0 %v6065
        %9379 = vmatmul.mubr.bf16.gmra.mrb[0].mxu0 %v6064
        %v9380 = vpop.f32.mrb[0].mxu0
        %v9381 = vadd.f32 %v9341, %v9380
        %v9382 = vpop.f32.mrb[0].mxu0
        %v9383 = vpop.f32.mrb[0].mxu0
        %v9384 = vpop.f32.mrb[0].mxu0
        %9385 = vdwg.mxu0
        %9386 = vmatprep.subr.bf16.mxu0 %v6264
        %9387 = vmatpush1.bf16.xpose.msra.mxu0 %v6263
        %9388 = vmatprep.subr.bf16.mxu0 0
        %9389 = vmatpush1.bf16.xpose.msra.mxu0 0
        %9390 = vmatprep.subr.bf16.mxu0 0
        %9391 = vmatpush1.bf16.xpose.msra.mxu0 0
        %9392 = vmatprep.subr.bf16.mxu0 0
        %9393 = vmatpush1.bf16.xpose.msra.mxu0 0
        %9394 = vmatprep.subr.bf16.mxu0 0
        %9395 = vmatpush1.bf16.xpose.msra.mxu0 0
        %9396 = vmatprep.subr.bf16.mxu0 0
        %9397 = vmatpush1.bf16.xpose.msra.mxu0 0
        %9398 = vmatprep.subr.bf16.mxu0 0
        %9399 = vmatpush1.bf16.xpose.msra.mxu0 0
        %9400 = vmatprep.subr.bf16.mxu0 0
        %9401 = vmatpush1.bf16.xpose.msra.mxu0 0
        %9402 = vmatprep.subr.bf16.mxu0 0
        %9403 = vmatpush1.bf16.xpose.msra.mxu0 0
        %9404 = vmatprep.subr.bf16.mxu0 0
        %9405 = vmatpush1.bf16.xpose.msra.mxu0 0
        %9406 = vmatprep.subr.bf16.mxu0 0
        %9407 = vmatpush1.bf16.xpose.msra.mxu0 0
        %9408 = vmatprep.subr.bf16.mxu0 0
        %9409 = vmatpush1.bf16.xpose.msra.mxu0 0
        %9410 = vmatprep.subr.bf16.mxu0 0
        %9411 = vmatpush1.bf16.xpose.msra.mxu0 0
        %9412 = vmatprep.subr.bf16.mxu0 0
        %9413 = vmatpush1.bf16.xpose.msra.mxu0 0
        %9414 = vmatprep.subr.bf16.mxu0 0
        %9415 = vmatpush1.bf16.xpose.msra.mxu0 0
        %9416 = vmatprep.subr.bf16.mxu0 0
        %9417 = vmatpush1.bf16.xpose.msra.mxu0 0
        %9418 = vmatprep.mubr.bf16.mxu0 %v6067
        %9419 = vmatmul.mubr.bf16.gmra.mrb[0].mxu0 %v6066
        %v9420 = vpop.f32.mrb[0].mxu0
        %v9421 = vadd.f32 %v9381, %v9420
        %v9422 = vpop.f32.mrb[0].mxu0
        %v9423 = vpop.f32.mrb[0].mxu0
        %v9424 = vpop.f32.mrb[0].mxu0
        %9425 = vdwg.mxu0
        %9426 = vmatprep.subr.bf16.mxu0 %v6266
        %9427 = vmatpush1.bf16.xpose.msra.mxu0 %v6265
        %9428 = vmatprep.subr.bf16.mxu0 0
        %9429 = vmatpush1.bf16.xpose.msra.mxu0 0
        %9430 = vmatprep.subr.bf16.mxu0 0
        %9431 = vmatpush1.bf16.xpose.msra.mxu0 0
        %9432 = vmatprep.subr.bf16.mxu0 0
        %9433 = vmatpush1.bf16.xpose.msra.mxu0 0
        %9434 = vmatprep.subr.bf16.mxu0 0
        %9435 = vmatpush1.bf16.xpose.msra.mxu0 0
        %9436 = vmatprep.subr.bf16.mxu0 0
        %9437 = vmatpush1.bf16.xpose.msra.mxu0 0
        %9438 = vmatprep.subr.bf16.mxu0 0
        %9439 = vmatpush1.bf16.xpose.msra.mxu0 0
        %9440 = vmatprep.subr.bf16.mxu0 0
        %9441 = vmatpush1.bf16.xpose.msra.mxu0 0
        %9442 = vmatprep.subr.bf16.mxu0 0
        %9443 = vmatpush1.bf16.xpose.msra.mxu0 0
        %9444 = vmatprep.subr.bf16.mxu0 0
        %9445 = vmatpush1.bf16.xpose.msra.mxu0 0
        %9446 = vmatprep.subr.bf16.mxu0 0
        %9447 = vmatpush1.bf16.xpose.msra.mxu0 0
        %9448 = vmatprep.subr.bf16.mxu0 0
        %9449 = vmatpush1.bf16.xpose.msra.mxu0 0
        %9450 = vmatprep.subr.bf16.mxu0 0
        %9451 = vmatpush1.bf16.xpose.msra.mxu0 0
        %9452 = vmatprep.subr.bf16.mxu0 0
        %9453 = vmatpush1.bf16.xpose.msra.mxu0 0
        %9454 = vmatprep.subr.bf16.mxu0 0
        %9455 = vmatpush1.bf16.xpose.msra.mxu0 0
        %9456 = vmatprep.subr.bf16.mxu0 0
        %9457 = vmatpush1.bf16.xpose.msra.mxu0 0
        %9458 = vmatprep.mubr.bf16.mxu0 %v6069
        %9459 = vmatmul.mubr.bf16.gmra.mrb[0].mxu0 %v6068
        %v9460 = vpop.f32.mrb[0].mxu0
        %v9461 = vadd.f32 %v9421, %v9460
        %v9462 = vpop.f32.mrb[0].mxu0
        %v9463 = vpop.f32.mrb[0].mxu0
        %v9464 = vpop.f32.mrb[0].mxu0
        %9465 = vdwg.mxu0
        %9466 = vmatprep.subr.bf16.mxu0 %v6268
        %9467 = vmatpush1.bf16.xpose.msra.mxu0 %v6267
        %9468 = vmatprep.subr.bf16.mxu0 0
        %9469 = vmatpush1.bf16.xpose.msra.mxu0 0
        %9470 = vmatprep.subr.bf16.mxu0 0
        %9471 = vmatpush1.bf16.xpose.msra.mxu0 0
        %9472 = vmatprep.subr.bf16.mxu0 0
        %9473 = vmatpush1.bf16.xpose.msra.mxu0 0
        %9474 = vmatprep.subr.bf16.mxu0 0
        %9475 = vmatpush1.bf16.xpose.msra.mxu0 0
        %9476 = vmatprep.subr.bf16.mxu0 0
        %9477 = vmatpush1.bf16.xpose.msra.mxu0 0
        %9478 = vmatprep.subr.bf16.mxu0 0
        %9479 = vmatpush1.bf16.xpose.msra.mxu0 0
        %9480 = vmatprep.subr.bf16.mxu0 0
        %9481 = vmatpush1.bf16.xpose.msra.mxu0 0
        %9482 = vmatprep.subr.bf16.mxu0 0
        %9483 = vmatpush1.bf16.xpose.msra.mxu0 0
        %9484 = vmatprep.subr.bf16.mxu0 0
        %9485 = vmatpush1.bf16.xpose.msra.mxu0 0
        %9486 = vmatprep.subr.bf16.mxu0 0
        %9487 = vmatpush1.bf16.xpose.msra.mxu0 0
        %9488 = vmatprep.subr.bf16.mxu0 0
        %9489 = vmatpush1.bf16.xpose.msra.mxu0 0
        %9490 = vmatprep.subr.bf16.mxu0 0
        %9491 = vmatpush1.bf16.xpose.msra.mxu0 0
        %9492 = vmatprep.subr.bf16.mxu0 0
        %9493 = vmatpush1.bf16.xpose.msra.mxu0 0
        %9494 = vmatprep.subr.bf16.mxu0 0
        %9495 = vmatpush1.bf16.xpose.msra.mxu0 0
        %9496 = vmatprep.subr.bf16.mxu0 0
        %9497 = vmatpush1.bf16.xpose.msra.mxu0 0
        %9498 = vmatprep.mubr.bf16.mxu0 %v6071
        %9499 = vmatmul.mubr.bf16.gmra.mrb[0].mxu0 %v6070
        %v9500 = vpop.f32.mrb[0].mxu0
        %v9501 = vadd.f32 %v9461, %v9500
        %v9502 = vpop.f32.mrb[0].mxu0
        %v9503 = vpop.f32.mrb[0].mxu0
        %v9504 = vpop.f32.mrb[0].mxu0
        %9505 = vdwg.mxu0
        %9506 = vmatprep.subr.bf16.mxu0 %v6270
        %9507 = vmatpush1.bf16.xpose.msra.mxu0 %v6269
        %9508 = vmatprep.subr.bf16.mxu0 0
        %9509 = vmatpush1.bf16.xpose.msra.mxu0 0
        %9510 = vmatprep.subr.bf16.mxu0 0
        %9511 = vmatpush1.bf16.xpose.msra.mxu0 0
        %9512 = vmatprep.subr.bf16.mxu0 0
        %9513 = vmatpush1.bf16.xpose.msra.mxu0 0
        %9514 = vmatprep.subr.bf16.mxu0 0
        %9515 = vmatpush1.bf16.xpose.msra.mxu0 0
        %9516 = vmatprep.subr.bf16.mxu0 0
        %9517 = vmatpush1.bf16.xpose.msra.mxu0 0
        %9518 = vmatprep.subr.bf16.mxu0 0
        %9519 = vmatpush1.bf16.xpose.msra.mxu0 0
        %9520 = vmatprep.subr.bf16.mxu0 0
        %9521 = vmatpush1.bf16.xpose.msra.mxu0 0
        %9522 = vmatprep.subr.bf16.mxu0 0
        %9523 = vmatpush1.bf16.xpose.msra.mxu0 0
        %9524 = vmatprep.subr.bf16.mxu0 0
        %9525 = vmatpush1.bf16.xpose.msra.mxu0 0
        %9526 = vmatprep.subr.bf16.mxu0 0
        %9527 = vmatpush1.bf16.xpose.msra.mxu0 0
        %9528 = vmatprep.subr.bf16.mxu0 0
        %9529 = vmatpush1.bf16.xpose.msra.mxu0 0
        %9530 = vmatprep.subr.bf16.mxu0 0
        %9531 = vmatpush1.bf16.xpose.msra.mxu0 0
        %9532 = vmatprep.subr.bf16.mxu0 0
        %9533 = vmatpush1.bf16.xpose.msra.mxu0 0
        %9534 = vmatprep.subr.bf16.mxu0 0
        %9535 = vmatpush1.bf16.xpose.msra.mxu0 0
        %9536 = vmatprep.subr.bf16.mxu0 0
        %9537 = vmatpush1.bf16.xpose.msra.mxu0 0
        %9538 = vmatprep.mubr.bf16.mxu0 %v6073
        %9539 = vmatmul.mubr.bf16.gmra.mrb[0].mxu0 %v6072
        %v9540 = vpop.f32.mrb[0].mxu0
        %v9541 = vadd.f32 %v9501, %v9540
        %v9542 = vpop.f32.mrb[0].mxu0
        %v9543 = vpop.f32.mrb[0].mxu0
        %v9544 = vpop.f32.mrb[0].mxu0
        %9545 = vdwg.mxu0
        %9546 = vmatprep.subr.bf16.mxu0 %v6272
        %9547 = vmatpush1.bf16.xpose.msra.mxu0 %v6271
        %9548 = vmatprep.subr.bf16.mxu0 0
        %9549 = vmatpush1.bf16.xpose.msra.mxu0 0
        %9550 = vmatprep.subr.bf16.mxu0 0
        %9551 = vmatpush1.bf16.xpose.msra.mxu0 0
        %9552 = vmatprep.subr.bf16.mxu0 0
        %9553 = vmatpush1.bf16.xpose.msra.mxu0 0
        %9554 = vmatprep.subr.bf16.mxu0 0
        %9555 = vmatpush1.bf16.xpose.msra.mxu0 0
        %9556 = vmatprep.subr.bf16.mxu0 0
        %9557 = vmatpush1.bf16.xpose.msra.mxu0 0
        %9558 = vmatprep.subr.bf16.mxu0 0
        %9559 = vmatpush1.bf16.xpose.msra.mxu0 0
        %9560 = vmatprep.subr.bf16.mxu0 0
        %9561 = vmatpush1.bf16.xpose.msra.mxu0 0
        %9562 = vmatprep.subr.bf16.mxu0 0
        %9563 = vmatpush1.bf16.xpose.msra.mxu0 0
        %9564 = vmatprep.subr.bf16.mxu0 0
        %9565 = vmatpush1.bf16.xpose.msra.mxu0 0
        %9566 = vmatprep.subr.bf16.mxu0 0
        %9567 = vmatpush1.bf16.xpose.msra.mxu0 0
        %9568 = vmatprep.subr.bf16.mxu0 0
        %9569 = vmatpush1.bf16.xpose.msra.mxu0 0
        %9570 = vmatprep.subr.bf16.mxu0 0
        %9571 = vmatpush1.bf16.xpose.msra.mxu0 0
        %9572 = vmatprep.subr.bf16.mxu0 0
        %9573 = vmatpush1.bf16.xpose.msra.mxu0 0
        %9574 = vmatprep.subr.bf16.mxu0 0
        %9575 = vmatpush1.bf16.xpose.msra.mxu0 0
        %9576 = vmatprep.subr.bf16.mxu0 0
        %9577 = vmatpush1.bf16.xpose.msra.mxu0 0
        %9578 = vmatprep.mubr.bf16.mxu0 %v6075
        %9579 = vmatmul.mubr.bf16.gmra.mrb[0].mxu0 %v6074
        %v9580 = vpop.f32.mrb[0].mxu0
        %v9581 = vadd.f32 %v9541, %v9580
        %v9582 = vpop.f32.mrb[0].mxu0
        %v9583 = vpop.f32.mrb[0].mxu0
        %v9584 = vpop.f32.mrb[0].mxu0
        %9585 = vdwg.mxu0
        %9586 = vmatprep.subr.bf16.mxu0 %v6274
        %9587 = vmatpush1.bf16.xpose.msra.mxu0 %v6273
        %9588 = vmatprep.subr.bf16.mxu0 0
        %9589 = vmatpush1.bf16.xpose.msra.mxu0 0
        %9590 = vmatprep.subr.bf16.mxu0 0
        %9591 = vmatpush1.bf16.xpose.msra.mxu0 0
        %9592 = vmatprep.subr.bf16.mxu0 0
        %9593 = vmatpush1.bf16.xpose.msra.mxu0 0
        %9594 = vmatprep.subr.bf16.mxu0 0
        %9595 = vmatpush1.bf16.xpose.msra.mxu0 0
        %9596 = vmatprep.subr.bf16.mxu0 0
        %9597 = vmatpush1.bf16.xpose.msra.mxu0 0
        %9598 = vmatprep.subr.bf16.mxu0 0
        %9599 = vmatpush1.bf16.xpose.msra.mxu0 0
        %9600 = vmatprep.subr.bf16.mxu0 0
        %9601 = vmatpush1.bf16.xpose.msra.mxu0 0
        %9602 = vmatprep.subr.bf16.mxu0 0
        %9603 = vmatpush1.bf16.xpose.msra.mxu0 0
        %9604 = vmatprep.subr.bf16.mxu0 0
        %9605 = vmatpush1.bf16.xpose.msra.mxu0 0
        %9606 = vmatprep.subr.bf16.mxu0 0
        %9607 = vmatpush1.bf16.xpose.msra.mxu0 0
        %9608 = vmatprep.subr.bf16.mxu0 0
        %9609 = vmatpush1.bf16.xpose.msra.mxu0 0
        %9610 = vmatprep.subr.bf16.mxu0 0
        %9611 = vmatpush1.bf16.xpose.msra.mxu0 0
        %9612 = vmatprep.subr.bf16.mxu0 0
        %9613 = vmatpush1.bf16.xpose.msra.mxu0 0
        %9614 = vmatprep.subr.bf16.mxu0 0
        %9615 = vmatpush1.bf16.xpose.msra.mxu0 0
        %9616 = vmatprep.subr.bf16.mxu0 0
        %9617 = vmatpush1.bf16.xpose.msra.mxu0 0
        %9618 = vmatprep.mubr.bf16.mxu0 %v6077
        %9619 = vmatmul.mubr.bf16.gmra.mrb[0].mxu0 %v6076
        %v9620 = vpop.f32.mrb[0].mxu0
        %v9621 = vadd.f32 %v9581, %v9620
        %v9622 = vpop.f32.mrb[0].mxu0
        %v9623 = vpop.f32.mrb[0].mxu0
        %v9624 = vpop.f32.mrb[0].mxu0
        %9625 = vdwg.mxu0
        %9626 = vmatprep.subr.bf16.mxu0 %v6276
        %9627 = vmatpush1.bf16.xpose.msra.mxu0 %v6275
        %9628 = vmatprep.subr.bf16.mxu0 0
        %9629 = vmatpush1.bf16.xpose.msra.mxu0 0
        %9630 = vmatprep.subr.bf16.mxu0 0
        %9631 = vmatpush1.bf16.xpose.msra.mxu0 0
        %9632 = vmatprep.subr.bf16.mxu0 0
        %9633 = vmatpush1.bf16.xpose.msra.mxu0 0
        %9634 = vmatprep.subr.bf16.mxu0 0
        %9635 = vmatpush1.bf16.xpose.msra.mxu0 0
        %9636 = vmatprep.subr.bf16.mxu0 0
        %9637 = vmatpush1.bf16.xpose.msra.mxu0 0
        %9638 = vmatprep.subr.bf16.mxu0 0
        %9639 = vmatpush1.bf16.xpose.msra.mxu0 0
        %9640 = vmatprep.subr.bf16.mxu0 0
        %9641 = vmatpush1.bf16.xpose.msra.mxu0 0
        %9642 = vmatprep.subr.bf16.mxu0 0
        %9643 = vmatpush1.bf16.xpose.msra.mxu0 0
        %9644 = vmatprep.subr.bf16.mxu0 0
        %9645 = vmatpush1.bf16.xpose.msra.mxu0 0
        %9646 = vmatprep.subr.bf16.mxu0 0
        %9647 = vmatpush1.bf16.xpose.msra.mxu0 0
        %9648 = vmatprep.subr.bf16.mxu0 0
        %9649 = vmatpush1.bf16.xpose.msra.mxu0 0
        %9650 = vmatprep.subr.bf16.mxu0 0
        %9651 = vmatpush1.bf16.xpose.msra.mxu0 0
        %9652 = vmatprep.subr.bf16.mxu0 0
        %9653 = vmatpush1.bf16.xpose.msra.mxu0 0
        %9654 = vmatprep.subr.bf16.mxu0 0
        %9655 = vmatpush1.bf16.xpose.msra.mxu0 0
        %9656 = vmatprep.subr.bf16.mxu0 0
        %9657 = vmatpush1.bf16.xpose.msra.mxu0 0
        %9658 = vmatprep.mubr.bf16.mxu0 %v6079
        %9659 = vmatmul.mubr.bf16.gmra.mrb[0].mxu0 %v6078
        %v9660 = vpop.f32.mrb[0].mxu0
        %v9661 = vadd.f32 %v9621, %v9660
        %v9662 = vpop.f32.mrb[0].mxu0
        %v9663 = vpop.f32.mrb[0].mxu0
        %v9664 = vpop.f32.mrb[0].mxu0
        %9665 = vdwg.mxu0
        %9666 = vmatprep.subr.bf16.mxu0 %v6278
        %9667 = vmatpush1.bf16.xpose.msra.mxu0 %v6277
        %9668 = vmatprep.subr.bf16.mxu0 0
        %9669 = vmatpush1.bf16.xpose.msra.mxu0 0
        %9670 = vmatprep.subr.bf16.mxu0 0
        %9671 = vmatpush1.bf16.xpose.msra.mxu0 0
        %9672 = vmatprep.subr.bf16.mxu0 0
        %9673 = vmatpush1.bf16.xpose.msra.mxu0 0
        %9674 = vmatprep.subr.bf16.mxu0 0
        %9675 = vmatpush1.bf16.xpose.msra.mxu0 0
        %9676 = vmatprep.subr.bf16.mxu0 0
        %9677 = vmatpush1.bf16.xpose.msra.mxu0 0
        %9678 = vmatprep.subr.bf16.mxu0 0
        %9679 = vmatpush1.bf16.xpose.msra.mxu0 0
        %9680 = vmatprep.subr.bf16.mxu0 0
        %9681 = vmatpush1.bf16.xpose.msra.mxu0 0
        %9682 = vmatprep.subr.bf16.mxu0 0
        %9683 = vmatpush1.bf16.xpose.msra.mxu0 0
        %9684 = vmatprep.subr.bf16.mxu0 0
        %9685 = vmatpush1.bf16.xpose.msra.mxu0 0
        %9686 = vmatprep.subr.bf16.mxu0 0
        %9687 = vmatpush1.bf16.xpose.msra.mxu0 0
        %9688 = vmatprep.subr.bf16.mxu0 0
        %9689 = vmatpush1.bf16.xpose.msra.mxu0 0
        %9690 = vmatprep.subr.bf16.mxu0 0
        %9691 = vmatpush1.bf16.xpose.msra.mxu0 0
        %9692 = vmatprep.subr.bf16.mxu0 0
        %9693 = vmatpush1.bf16.xpose.msra.mxu0 0
        %9694 = vmatprep.subr.bf16.mxu0 0
        %9695 = vmatpush1.bf16.xpose.msra.mxu0 0
        %9696 = vmatprep.subr.bf16.mxu0 0
        %9697 = vmatpush1.bf16.xpose.msra.mxu0 0
        %9698 = vmatprep.mubr.bf16.mxu0 %v6081
        %9699 = vmatmul.mubr.bf16.gmra.mrb[0].mxu0 %v6080
        %v9700 = vpop.f32.mrb[0].mxu0
        %v9701 = vadd.f32 %v9661, %v9700
        %v9702 = vpop.f32.mrb[0].mxu0
        %v9703 = vpop.f32.mrb[0].mxu0
        %v9704 = vpop.f32.mrb[0].mxu0
        %9705 = vdwg.mxu0
        %9706 = vmatprep.subr.bf16.mxu0 %v6280
        %9707 = vmatpush1.bf16.xpose.msra.mxu0 %v6279
        %9708 = vmatprep.subr.bf16.mxu0 0
        %9709 = vmatpush1.bf16.xpose.msra.mxu0 0
        %9710 = vmatprep.subr.bf16.mxu0 0
        %9711 = vmatpush1.bf16.xpose.msra.mxu0 0
        %9712 = vmatprep.subr.bf16.mxu0 0
        %9713 = vmatpush1.bf16.xpose.msra.mxu0 0
        %9714 = vmatprep.subr.bf16.mxu0 0
        %9715 = vmatpush1.bf16.xpose.msra.mxu0 0
        %9716 = vmatprep.subr.bf16.mxu0 0
        %9717 = vmatpush1.bf16.xpose.msra.mxu0 0
        %9718 = vmatprep.subr.bf16.mxu0 0
        %9719 = vmatpush1.bf16.xpose.msra.mxu0 0
        %9720 = vmatprep.subr.bf16.mxu0 0
        %9721 = vmatpush1.bf16.xpose.msra.mxu0 0
        %9722 = vmatprep.subr.bf16.mxu0 0
        %9723 = vmatpush1.bf16.xpose.msra.mxu0 0
        %9724 = vmatprep.subr.bf16.mxu0 0
        %9725 = vmatpush1.bf16.xpose.msra.mxu0 0
        %9726 = vmatprep.subr.bf16.mxu0 0
        %9727 = vmatpush1.bf16.xpose.msra.mxu0 0
        %9728 = vmatprep.subr.bf16.mxu0 0
        %9729 = vmatpush1.bf16.xpose.msra.mxu0 0
        %9730 = vmatprep.subr.bf16.mxu0 0
        %9731 = vmatpush1.bf16.xpose.msra.mxu0 0
        %9732 = vmatprep.subr.bf16.mxu0 0
        %9733 = vmatpush1.bf16.xpose.msra.mxu0 0
        %9734 = vmatprep.subr.bf16.mxu0 0
        %9735 = vmatpush1.bf16.xpose.msra.mxu0 0
        %9736 = vmatprep.subr.bf16.mxu0 0
        %9737 = vmatpush1.bf16.xpose.msra.mxu0 0
        %9738 = vmatprep.mubr.bf16.mxu0 %v6083
        %9739 = vmatmul.mubr.bf16.gmra.mrb[0].mxu0 %v6082
        %v9740 = vpop.f32.mrb[0].mxu0
        %v9741 = vadd.f32 %v9701, %v9740
        %v9742 = vpop.f32.mrb[0].mxu0
        %v9743 = vpop.f32.mrb[0].mxu0
        %v9744 = vpop.f32.mrb[0].mxu0
        %9745 = vdwg.mxu0
        %9746 = vmatprep.subr.bf16.mxu0 %v6282
        %9747 = vmatpush1.bf16.xpose.msra.mxu0 %v6281
        %9748 = vmatprep.subr.bf16.mxu0 0
        %9749 = vmatpush1.bf16.xpose.msra.mxu0 0
        %9750 = vmatprep.subr.bf16.mxu0 0
        %9751 = vmatpush1.bf16.xpose.msra.mxu0 0
        %9752 = vmatprep.subr.bf16.mxu0 0
        %9753 = vmatpush1.bf16.xpose.msra.mxu0 0
        %9754 = vmatprep.subr.bf16.mxu0 0
        %9755 = vmatpush1.bf16.xpose.msra.mxu0 0
        %9756 = vmatprep.subr.bf16.mxu0 0
        %9757 = vmatpush1.bf16.xpose.msra.mxu0 0
        %9758 = vmatprep.subr.bf16.mxu0 0
        %9759 = vmatpush1.bf16.xpose.msra.mxu0 0
        %9760 = vmatprep.subr.bf16.mxu0 0
        %9761 = vmatpush1.bf16.xpose.msra.mxu0 0
        %9762 = vmatprep.subr.bf16.mxu0 0
        %9763 = vmatpush1.bf16.xpose.msra.mxu0 0
        %9764 = vmatprep.subr.bf16.mxu0 0
        %9765 = vmatpush1.bf16.xpose.msra.mxu0 0
        %9766 = vmatprep.subr.bf16.mxu0 0
        %9767 = vmatpush1.bf16.xpose.msra.mxu0 0
        %9768 = vmatprep.subr.bf16.mxu0 0
        %9769 = vmatpush1.bf16.xpose.msra.mxu0 0
        %9770 = vmatprep.subr.bf16.mxu0 0
        %9771 = vmatpush1.bf16.xpose.msra.mxu0 0
        %9772 = vmatprep.subr.bf16.mxu0 0
        %9773 = vmatpush1.bf16.xpose.msra.mxu0 0
        %9774 = vmatprep.subr.bf16.mxu0 0
        %9775 = vmatpush1.bf16.xpose.msra.mxu0 0
        %9776 = vmatprep.subr.bf16.mxu0 0
        %9777 = vmatpush1.bf16.xpose.msra.mxu0 0
        %9778 = vmatprep.mubr.bf16.mxu0 %v6085
        %9779 = vmatmul.mubr.bf16.gmra.mrb[0].mxu0 %v6084
        %v9780 = vpop.f32.mrb[0].mxu0
        %v9781 = vadd.f32 %v9741, %v9780
        %v9782 = vpop.f32.mrb[0].mxu0
        %v9783 = vpop.f32.mrb[0].mxu0
        %v9784 = vpop.f32.mrb[0].mxu0
        %9785 = vdwg.mxu0
        %9786 = vmatprep.subr.bf16.mxu0 %v6284
        %9787 = vmatpush1.bf16.xpose.msra.mxu0 %v6283
        %9788 = vmatprep.subr.bf16.mxu0 0
        %9789 = vmatpush1.bf16.xpose.msra.mxu0 0
        %9790 = vmatprep.subr.bf16.mxu0 0
        %9791 = vmatpush1.bf16.xpose.msra.mxu0 0
        %9792 = vmatprep.subr.bf16.mxu0 0
        %9793 = vmatpush1.bf16.xpose.msra.mxu0 0
        %9794 = vmatprep.subr.bf16.mxu0 0
        %9795 = vmatpush1.bf16.xpose.msra.mxu0 0
        %9796 = vmatprep.subr.bf16.mxu0 0
        %9797 = vmatpush1.bf16.xpose.msra.mxu0 0
        %9798 = vmatprep.subr.bf16.mxu0 0
        %9799 = vmatpush1.bf16.xpose.msra.mxu0 0
        %9800 = vmatprep.subr.bf16.mxu0 0
        %9801 = vmatpush1.bf16.xpose.msra.mxu0 0
        %9802 = vmatprep.subr.bf16.mxu0 0
        %9803 = vmatpush1.bf16.xpose.msra.mxu0 0
        %9804 = vmatprep.subr.bf16.mxu0 0
        %9805 = vmatpush1.bf16.xpose.msra.mxu0 0
        %9806 = vmatprep.subr.bf16.mxu0 0
        %9807 = vmatpush1.bf16.xpose.msra.mxu0 0
        %9808 = vmatprep.subr.bf16.mxu0 0
        %9809 = vmatpush1.bf16.xpose.msra.mxu0 0
        %9810 = vmatprep.subr.bf16.mxu0 0
        %9811 = vmatpush1.bf16.xpose.msra.mxu0 0
        %9812 = vmatprep.subr.bf16.mxu0 0
        %9813 = vmatpush1.bf16.xpose.msra.mxu0 0
        %9814 = vmatprep.subr.bf16.mxu0 0
        %9815 = vmatpush1.bf16.xpose.msra.mxu0 0
        %9816 = vmatprep.subr.bf16.mxu0 0
        %9817 = vmatpush1.bf16.xpose.msra.mxu0 0
        %9818 = vmatprep.mubr.bf16.mxu0 %v6087
        %9819 = vmatmul.mubr.bf16.gmra.mrb[0].mxu0 %v6086
        %v9820 = vpop.f32.mrb[0].mxu0
        %v9821 = vadd.f32 %v9781, %v9820
        %v9822 = vpop.f32.mrb[0].mxu0
        %v9823 = vpop.f32.mrb[0].mxu0
        %v9824 = vpop.f32.mrb[0].mxu0
        %9825 = vdwg.mxu0
        %9826 = vmatprep.subr.bf16.mxu0 %v6286
        %9827 = vmatpush1.bf16.xpose.msra.mxu0 %v6285
        %9828 = vmatprep.subr.bf16.mxu0 0
        %9829 = vmatpush1.bf16.xpose.msra.mxu0 0
        %9830 = vmatprep.subr.bf16.mxu0 0
        %9831 = vmatpush1.bf16.xpose.msra.mxu0 0
        %9832 = vmatprep.subr.bf16.mxu0 0
        %9833 = vmatpush1.bf16.xpose.msra.mxu0 0
        %9834 = vmatprep.subr.bf16.mxu0 0
        %9835 = vmatpush1.bf16.xpose.msra.mxu0 0
        %9836 = vmatprep.subr.bf16.mxu0 0
        %9837 = vmatpush1.bf16.xpose.msra.mxu0 0
        %9838 = vmatprep.subr.bf16.mxu0 0
        %9839 = vmatpush1.bf16.xpose.msra.mxu0 0
        %9840 = vmatprep.subr.bf16.mxu0 0
        %9841 = vmatpush1.bf16.xpose.msra.mxu0 0
        %9842 = vmatprep.subr.bf16.mxu0 0
        %9843 = vmatpush1.bf16.xpose.msra.mxu0 0
        %9844 = vmatprep.subr.bf16.mxu0 0
        %9845 = vmatpush1.bf16.xpose.msra.mxu0 0
        %9846 = vmatprep.subr.bf16.mxu0 0
        %9847 = vmatpush1.bf16.xpose.msra.mxu0 0
        %9848 = vmatprep.subr.bf16.mxu0 0
        %9849 = vmatpush1.bf16.xpose.msra.mxu0 0
        %9850 = vmatprep.subr.bf16.mxu0 0
        %9851 = vmatpush1.bf16.xpose.msra.mxu0 0
        %9852 = vmatprep.subr.bf16.mxu0 0
        %9853 = vmatpush1.bf16.xpose.msra.mxu0 0
        %9854 = vmatprep.subr.bf16.mxu0 0
        %9855 = vmatpush1.bf16.xpose.msra.mxu0 0
        %9856 = vmatprep.subr.bf16.mxu0 0
        %9857 = vmatpush1.bf16.xpose.msra.mxu0 0
        %9858 = vmatprep.mubr.bf16.mxu0 %v6089
        %9859 = vmatmul.mubr.bf16.gmra.mrb[0].mxu0 %v6088
        %v9860 = vpop.f32.mrb[0].mxu0
        %v9861 = vadd.f32 %v9821, %v9860
        %v9862 = vpop.f32.mrb[0].mxu0
        %v9863 = vpop.f32.mrb[0].mxu0
        %v9864 = vpop.f32.mrb[0].mxu0
        %9865 = vdwg.mxu0
        %9866 = vmatprep.subr.bf16.mxu0 %v6288
        %9867 = vmatpush1.bf16.xpose.msra.mxu0 %v6287
        %9868 = vmatprep.subr.bf16.mxu0 0
        %9869 = vmatpush1.bf16.xpose.msra.mxu0 0
        %9870 = vmatprep.subr.bf16.mxu0 0
        %9871 = vmatpush1.bf16.xpose.msra.mxu0 0
        %9872 = vmatprep.subr.bf16.mxu0 0
        %9873 = vmatpush1.bf16.xpose.msra.mxu0 0
        %9874 = vmatprep.subr.bf16.mxu0 0
        %9875 = vmatpush1.bf16.xpose.msra.mxu0 0
        %9876 = vmatprep.subr.bf16.mxu0 0
        %9877 = vmatpush1.bf16.xpose.msra.mxu0 0
        %9878 = vmatprep.subr.bf16.mxu0 0
        %9879 = vmatpush1.bf16.xpose.msra.mxu0 0
        %9880 = vmatprep.subr.bf16.mxu0 0
        %9881 = vmatpush1.bf16.xpose.msra.mxu0 0
        %9882 = vmatprep.subr.bf16.mxu0 0
        %9883 = vmatpush1.bf16.xpose.msra.mxu0 0
        %9884 = vmatprep.subr.bf16.mxu0 0
        %9885 = vmatpush1.bf16.xpose.msra.mxu0 0
        %9886 = vmatprep.subr.bf16.mxu0 0
        %9887 = vmatpush1.bf16.xpose.msra.mxu0 0
        %9888 = vmatprep.subr.bf16.mxu0 0
        %9889 = vmatpush1.bf16.xpose.msra.mxu0 0
        %9890 = vmatprep.subr.bf16.mxu0 0
        %9891 = vmatpush1.bf16.xpose.msra.mxu0 0
        %9892 = vmatprep.subr.bf16.mxu0 0
        %9893 = vmatpush1.bf16.xpose.msra.mxu0 0
        %9894 = vmatprep.subr.bf16.mxu0 0
        %9895 = vmatpush1.bf16.xpose.msra.mxu0 0
        %9896 = vmatprep.subr.bf16.mxu0 0
        %9897 = vmatpush1.bf16.xpose.msra.mxu0 0
        %9898 = vmatprep.mubr.bf16.mxu0 %v6091
        %9899 = vmatmul.mubr.bf16.gmra.mrb[0].mxu0 %v6090
        %v9900 = vpop.f32.mrb[0].mxu0
        %v9901 = vadd.f32 %v9861, %v9900
        %v9902 = vpop.f32.mrb[0].mxu0
        %v9903 = vpop.f32.mrb[0].mxu0
        %v9904 = vpop.f32.mrb[0].mxu0
        %9905 = vdwg.mxu0
        %9906 = vmatprep.subr.bf16.mxu0 %v6290
        %9907 = vmatpush1.bf16.xpose.msra.mxu0 %v6289
        %9908 = vmatprep.subr.bf16.mxu0 0
        %9909 = vmatpush1.bf16.xpose.msra.mxu0 0
        %9910 = vmatprep.subr.bf16.mxu0 0
        %9911 = vmatpush1.bf16.xpose.msra.mxu0 0
        %9912 = vmatprep.subr.bf16.mxu0 0
        %9913 = vmatpush1.bf16.xpose.msra.mxu0 0
        %9914 = vmatprep.subr.bf16.mxu0 0
        %9915 = vmatpush1.bf16.xpose.msra.mxu0 0
        %9916 = vmatprep.subr.bf16.mxu0 0
        %9917 = vmatpush1.bf16.xpose.msra.mxu0 0
        %9918 = vmatprep.subr.bf16.mxu0 0
        %9919 = vmatpush1.bf16.xpose.msra.mxu0 0
        %9920 = vmatprep.subr.bf16.mxu0 0
        %9921 = vmatpush1.bf16.xpose.msra.mxu0 0
        %9922 = vmatprep.subr.bf16.mxu0 0
        %9923 = vmatpush1.bf16.xpose.msra.mxu0 0
        %9924 = vmatprep.subr.bf16.mxu0 0
        %9925 = vmatpush1.bf16.xpose.msra.mxu0 0
        %9926 = vmatprep.subr.bf16.mxu0 0
        %9927 = vmatpush1.bf16.xpose.msra.mxu0 0
        %9928 = vmatprep.subr.bf16.mxu0 0
        %9929 = vmatpush1.bf16.xpose.msra.mxu0 0
        %9930 = vmatprep.subr.bf16.mxu0 0
        %9931 = vmatpush1.bf16.xpose.msra.mxu0 0
        %9932 = vmatprep.subr.bf16.mxu0 0
        %9933 = vmatpush1.bf16.xpose.msra.mxu0 0
        %9934 = vmatprep.subr.bf16.mxu0 0
        %9935 = vmatpush1.bf16.xpose.msra.mxu0 0
        %9936 = vmatprep.subr.bf16.mxu0 0
        %9937 = vmatpush1.bf16.xpose.msra.mxu0 0
        %9938 = vmatprep.mubr.bf16.mxu0 %v6093
        %9939 = vmatmul.mubr.bf16.gmra.mrb[0].mxu0 %v6092
        %v9940 = vpop.f32.mrb[0].mxu0
        %v9941 = vadd.f32 %v9901, %v9940
        %v9942 = vpop.f32.mrb[0].mxu0
        %v9943 = vpop.f32.mrb[0].mxu0
        %v9944 = vpop.f32.mrb[0].mxu0
        %9945 = vdwg.mxu0
        %9946 = vmatprep.subr.bf16.mxu0 %v6292
        %9947 = vmatpush1.bf16.xpose.msra.mxu0 %v6291
        %9948 = vmatprep.subr.bf16.mxu0 0
        %9949 = vmatpush1.bf16.xpose.msra.mxu0 0
        %9950 = vmatprep.subr.bf16.mxu0 0
        %9951 = vmatpush1.bf16.xpose.msra.mxu0 0
        %9952 = vmatprep.subr.bf16.mxu0 0
        %9953 = vmatpush1.bf16.xpose.msra.mxu0 0
        %9954 = vmatprep.subr.bf16.mxu0 0
        %9955 = vmatpush1.bf16.xpose.msra.mxu0 0
        %9956 = vmatprep.subr.bf16.mxu0 0
        %9957 = vmatpush1.bf16.xpose.msra.mxu0 0
        %9958 = vmatprep.subr.bf16.mxu0 0
        %9959 = vmatpush1.bf16.xpose.msra.mxu0 0
        %9960 = vmatprep.subr.bf16.mxu0 0
        %9961 = vmatpush1.bf16.xpose.msra.mxu0 0
        %9962 = vmatprep.subr.bf16.mxu0 0
        %9963 = vmatpush1.bf16.xpose.msra.mxu0 0
        %9964 = vmatprep.subr.bf16.mxu0 0
        %9965 = vmatpush1.bf16.xpose.msra.mxu0 0
        %9966 = vmatprep.subr.bf16.mxu0 0
        %9967 = vmatpush1.bf16.xpose.msra.mxu0 0
        %9968 = vmatprep.subr.bf16.mxu0 0
        %9969 = vmatpush1.bf16.xpose.msra.mxu0 0
        %9970 = vmatprep.subr.bf16.mxu0 0
        %9971 = vmatpush1.bf16.xpose.msra.mxu0 0
        %9972 = vmatprep.subr.bf16.mxu0 0
        %9973 = vmatpush1.bf16.xpose.msra.mxu0 0
        %9974 = vmatprep.subr.bf16.mxu0 0
        %9975 = vmatpush1.bf16.xpose.msra.mxu0 0
        %9976 = vmatprep.subr.bf16.mxu0 0
        %9977 = vmatpush1.bf16.xpose.msra.mxu0 0
        %9978 = vmatprep.mubr.bf16.mxu0 %v6095
        %9979 = vmatmul.mubr.bf16.gmra.mrb[0].mxu0 %v6094
        %v9980 = vpop.f32.mrb[0].mxu0
        %v9981 = vadd.f32 %v9941, %v9980
        %v9982 = vpop.f32.mrb[0].mxu0
        %v9983 = vpop.f32.mrb[0].mxu0
        %v9984 = vpop.f32.mrb[0].mxu0
        %9985 = vdwg.mxu0
        %9986 = vmatprep.subr.bf16.mxu0 %v6294
        %9987 = vmatpush1.bf16.xpose.msra.mxu0 %v6293
        %9988 = vmatprep.subr.bf16.mxu0 0
        %9989 = vmatpush1.bf16.xpose.msra.mxu0 0
        %9990 = vmatprep.subr.bf16.mxu0 0
        %9991 = vmatpush1.bf16.xpose.msra.mxu0 0
        %9992 = vmatprep.subr.bf16.mxu0 0
        %9993 = vmatpush1.bf16.xpose.msra.mxu0 0
        %9994 = vmatprep.subr.bf16.mxu0 0
        %9995 = vmatpush1.bf16.xpose.msra.mxu0 0
        %9996 = vmatprep.subr.bf16.mxu0 0
        %9997 = vmatpush1.bf16.xpose.msra.mxu0 0
        %9998 = vmatprep.subr.bf16.mxu0 0
        %9999 = vmatpush1.bf16.xpose.msra.mxu0 0
        %10000 = vmatprep.subr.bf16.mxu0 0
        %10001 = vmatpush1.bf16.xpose.msra.mxu0 0
        %10002 = vmatprep.subr.bf16.mxu0 0
        %10003 = vmatpush1.bf16.xpose.msra.mxu0 0
        %10004 = vmatprep.subr.bf16.mxu0 0
        %10005 = vmatpush1.bf16.xpose.msra.mxu0 0
        %10006 = vmatprep.subr.bf16.mxu0 0
        %10007 = vmatpush1.bf16.xpose.msra.mxu0 0
        %10008 = vmatprep.subr.bf16.mxu0 0
        %10009 = vmatpush1.bf16.xpose.msra.mxu0 0
        %10010 = vmatprep.subr.bf16.mxu0 0
        %10011 = vmatpush1.bf16.xpose.msra.mxu0 0
        %10012 = vmatprep.subr.bf16.mxu0 0
        %10013 = vmatpush1.bf16.xpose.msra.mxu0 0
        %10014 = vmatprep.subr.bf16.mxu0 0
        %10015 = vmatpush1.bf16.xpose.msra.mxu0 0
        %10016 = vmatprep.subr.bf16.mxu0 0
        %10017 = vmatpush1.bf16.xpose.msra.mxu0 0
        %10018 = vmatprep.mubr.bf16.mxu0 %v6097
        %10019 = vmatmul.mubr.bf16.gmra.mrb[0].mxu0 %v6096
        %v10020 = vpop.f32.mrb[0].mxu0
        %v10021 = vadd.f32 %v9981, %v10020
        %v10022 = vpop.f32.mrb[0].mxu0
        %v10023 = vpop.f32.mrb[0].mxu0
        %v10024 = vpop.f32.mrb[0].mxu0
        %10025 = vdwg.mxu0
        %10026 = vmatprep.subr.bf16.mxu0 %v6296
        %10027 = vmatpush1.bf16.xpose.msra.mxu0 %v6295
        %10028 = vmatprep.subr.bf16.mxu0 0
        %10029 = vmatpush1.bf16.xpose.msra.mxu0 0
        %10030 = vmatprep.subr.bf16.mxu0 0
        %10031 = vmatpush1.bf16.xpose.msra.mxu0 0
        %10032 = vmatprep.subr.bf16.mxu0 0
        %10033 = vmatpush1.bf16.xpose.msra.mxu0 0
        %10034 = vmatprep.subr.bf16.mxu0 0
        %10035 = vmatpush1.bf16.xpose.msra.mxu0 0
        %10036 = vmatprep.subr.bf16.mxu0 0
        %10037 = vmatpush1.bf16.xpose.msra.mxu0 0
        %10038 = vmatprep.subr.bf16.mxu0 0
        %10039 = vmatpush1.bf16.xpose.msra.mxu0 0
        %10040 = vmatprep.subr.bf16.mxu0 0
        %10041 = vmatpush1.bf16.xpose.msra.mxu0 0
        %10042 = vmatprep.subr.bf16.mxu0 0
        %10043 = vmatpush1.bf16.xpose.msra.mxu0 0
        %10044 = vmatprep.subr.bf16.mxu0 0
        %10045 = vmatpush1.bf16.xpose.msra.mxu0 0
        %10046 = vmatprep.subr.bf16.mxu0 0
        %10047 = vmatpush1.bf16.xpose.msra.mxu0 0
        %10048 = vmatprep.subr.bf16.mxu0 0
        %10049 = vmatpush1.bf16.xpose.msra.mxu0 0
        %10050 = vmatprep.subr.bf16.mxu0 0
        %10051 = vmatpush1.bf16.xpose.msra.mxu0 0
        %10052 = vmatprep.subr.bf16.mxu0 0
        %10053 = vmatpush1.bf16.xpose.msra.mxu0 0
        %10054 = vmatprep.subr.bf16.mxu0 0
        %10055 = vmatpush1.bf16.xpose.msra.mxu0 0
        %10056 = vmatprep.subr.bf16.mxu0 0
        %10057 = vmatpush1.bf16.xpose.msra.mxu0 0
        %10058 = vmatprep.mubr.bf16.mxu0 %v6099
        %10059 = vmatmul.mubr.bf16.gmra.mrb[0].mxu0 %v6098
        %v10060 = vpop.f32.mrb[0].mxu0
        %v10061 = vadd.f32 %v10021, %v10060
        %v10062 = vpop.f32.mrb[0].mxu0
        %v10063 = vpop.f32.mrb[0].mxu0
        %v10064 = vpop.f32.mrb[0].mxu0
        %10065 = vdwg.mxu0
        %10066 = vmatprep.subr.bf16.mxu0 %v6298
        %10067 = vmatpush1.bf16.xpose.msra.mxu0 %v6297
        %10068 = vmatprep.subr.bf16.mxu0 0
        %10069 = vmatpush1.bf16.xpose.msra.mxu0 0
        %10070 = vmatprep.subr.bf16.mxu0 0
        %10071 = vmatpush1.bf16.xpose.msra.mxu0 0
        %10072 = vmatprep.subr.bf16.mxu0 0
        %10073 = vmatpush1.bf16.xpose.msra.mxu0 0
        %10074 = vmatprep.subr.bf16.mxu0 0
        %10075 = vmatpush1.bf16.xpose.msra.mxu0 0
        %10076 = vmatprep.subr.bf16.mxu0 0
        %10077 = vmatpush1.bf16.xpose.msra.mxu0 0
        %10078 = vmatprep.subr.bf16.mxu0 0
        %10079 = vmatpush1.bf16.xpose.msra.mxu0 0
        %10080 = vmatprep.subr.bf16.mxu0 0
        %10081 = vmatpush1.bf16.xpose.msra.mxu0 0
        %10082 = vmatprep.subr.bf16.mxu0 0
        %10083 = vmatpush1.bf16.xpose.msra.mxu0 0
        %10084 = vmatprep.subr.bf16.mxu0 0
        %10085 = vmatpush1.bf16.xpose.msra.mxu0 0
        %10086 = vmatprep.subr.bf16.mxu0 0
        %10087 = vmatpush1.bf16.xpose.msra.mxu0 0
        %10088 = vmatprep.subr.bf16.mxu0 0
        %10089 = vmatpush1.bf16.xpose.msra.mxu0 0
        %10090 = vmatprep.subr.bf16.mxu0 0
        %10091 = vmatpush1.bf16.xpose.msra.mxu0 0
        %10092 = vmatprep.subr.bf16.mxu0 0
        %10093 = vmatpush1.bf16.xpose.msra.mxu0 0
        %10094 = vmatprep.subr.bf16.mxu0 0
        %10095 = vmatpush1.bf16.xpose.msra.mxu0 0
        %10096 = vmatprep.subr.bf16.mxu0 0
        %10097 = vmatpush1.bf16.xpose.msra.mxu0 0
        %10098 = vmatprep.mubr.bf16.mxu0 %v6101
        %10099 = vmatmul.mubr.bf16.gmra.mrb[0].mxu0 %v6100
        %v10100 = vpop.f32.mrb[0].mxu0
        %v10101 = vadd.f32 %v10061, %v10100
        %v10102 = vpop.f32.mrb[0].mxu0
        %v10103 = vpop.f32.mrb[0].mxu0
        %v10104 = vpop.f32.mrb[0].mxu0
        %10105 = vdwg.mxu0
        %10106 = vmatprep.subr.bf16.mxu0 %v6300
        %10107 = vmatpush1.bf16.xpose.msra.mxu0 %v6299
        %10108 = vmatprep.subr.bf16.mxu0 0
        %10109 = vmatpush1.bf16.xpose.msra.mxu0 0
        %10110 = vmatprep.subr.bf16.mxu0 0
        %10111 = vmatpush1.bf16.xpose.msra.mxu0 0
        %10112 = vmatprep.subr.bf16.mxu0 0
        %10113 = vmatpush1.bf16.xpose.msra.mxu0 0
        %10114 = vmatprep.subr.bf16.mxu0 0
        %10115 = vmatpush1.bf16.xpose.msra.mxu0 0
        %10116 = vmatprep.subr.bf16.mxu0 0
        %10117 = vmatpush1.bf16.xpose.msra.mxu0 0
        %10118 = vmatprep.subr.bf16.mxu0 0
        %10119 = vmatpush1.bf16.xpose.msra.mxu0 0
        %10120 = vmatprep.subr.bf16.mxu0 0
        %10121 = vmatpush1.bf16.xpose.msra.mxu0 0
        %10122 = vmatprep.subr.bf16.mxu0 0
        %10123 = vmatpush1.bf16.xpose.msra.mxu0 0
        %10124 = vmatprep.subr.bf16.mxu0 0
        %10125 = vmatpush1.bf16.xpose.msra.mxu0 0
        %10126 = vmatprep.subr.bf16.mxu0 0
        %10127 = vmatpush1.bf16.xpose.msra.mxu0 0
        %10128 = vmatprep.subr.bf16.mxu0 0
        %10129 = vmatpush1.bf16.xpose.msra.mxu0 0
        %10130 = vmatprep.subr.bf16.mxu0 0
        %10131 = vmatpush1.bf16.xpose.msra.mxu0 0
        %10132 = vmatprep.subr.bf16.mxu0 0
        %10133 = vmatpush1.bf16.xpose.msra.mxu0 0
        %10134 = vmatprep.subr.bf16.mxu0 0
        %10135 = vmatpush1.bf16.xpose.msra.mxu0 0
        %10136 = vmatprep.subr.bf16.mxu0 0
        %10137 = vmatpush1.bf16.xpose.msra.mxu0 0
        %10138 = vmatprep.mubr.bf16.mxu0 %v6103
        %10139 = vmatmul.mubr.bf16.gmra.mrb[0].mxu0 %v6102
        %v10140 = vpop.f32.mrb[0].mxu0
        %v10141 = vadd.f32 %v10101, %v10140
        %v10142 = vpop.f32.mrb[0].mxu0
        %v10143 = vpop.f32.mrb[0].mxu0
        %v10144 = vpop.f32.mrb[0].mxu0
        %10145 = vdwg.mxu0
        %10146 = vmatprep.subr.bf16.mxu0 %v6302
        %10147 = vmatpush1.bf16.xpose.msra.mxu0 %v6301
        %10148 = vmatprep.subr.bf16.mxu0 0
        %10149 = vmatpush1.bf16.xpose.msra.mxu0 0
        %10150 = vmatprep.subr.bf16.mxu0 0
        %10151 = vmatpush1.bf16.xpose.msra.mxu0 0
        %10152 = vmatprep.subr.bf16.mxu0 0
        %10153 = vmatpush1.bf16.xpose.msra.mxu0 0
        %10154 = vmatprep.subr.bf16.mxu0 0
        %10155 = vmatpush1.bf16.xpose.msra.mxu0 0
        %10156 = vmatprep.subr.bf16.mxu0 0
        %10157 = vmatpush1.bf16.xpose.msra.mxu0 0
        %10158 = vmatprep.subr.bf16.mxu0 0
        %10159 = vmatpush1.bf16.xpose.msra.mxu0 0
        %10160 = vmatprep.subr.bf16.mxu0 0
        %10161 = vmatpush1.bf16.xpose.msra.mxu0 0
        %10162 = vmatprep.subr.bf16.mxu0 0
        %10163 = vmatpush1.bf16.xpose.msra.mxu0 0
        %10164 = vmatprep.subr.bf16.mxu0 0
        %10165 = vmatpush1.bf16.xpose.msra.mxu0 0
        %10166 = vmatprep.subr.bf16.mxu0 0
        %10167 = vmatpush1.bf16.xpose.msra.mxu0 0
        %10168 = vmatprep.subr.bf16.mxu0 0
        %10169 = vmatpush1.bf16.xpose.msra.mxu0 0
        %10170 = vmatprep.subr.bf16.mxu0 0
        %10171 = vmatpush1.bf16.xpose.msra.mxu0 0
        %10172 = vmatprep.subr.bf16.mxu0 0
        %10173 = vmatpush1.bf16.xpose.msra.mxu0 0
        %10174 = vmatprep.subr.bf16.mxu0 0
        %10175 = vmatpush1.bf16.xpose.msra.mxu0 0
        %10176 = vmatprep.subr.bf16.mxu0 0
        %10177 = vmatpush1.bf16.xpose.msra.mxu0 0
        %10178 = vmatprep.mubr.bf16.mxu0 %v6105
        %10179 = vmatmul.mubr.bf16.gmra.mrb[0].mxu0 %v6104
        %v10180 = vpop.f32.mrb[0].mxu0
        %v10181 = vadd.f32 %v10141, %v10180
        %v10182 = vpop.f32.mrb[0].mxu0
        %v10183 = vpop.f32.mrb[0].mxu0
        %v10184 = vpop.f32.mrb[0].mxu0
        %10185 = vdwg.mxu0
        %10186 = vmatprep.subr.bf16.mxu0 %v6304
        %10187 = vmatpush1.bf16.xpose.msra.mxu0 %v6303
        %10188 = vmatprep.subr.bf16.mxu0 0
        %10189 = vmatpush1.bf16.xpose.msra.mxu0 0
        %10190 = vmatprep.subr.bf16.mxu0 0
        %10191 = vmatpush1.bf16.xpose.msra.mxu0 0
        %10192 = vmatprep.subr.bf16.mxu0 0
        %10193 = vmatpush1.bf16.xpose.msra.mxu0 0
        %10194 = vmatprep.subr.bf16.mxu0 0
        %10195 = vmatpush1.bf16.xpose.msra.mxu0 0
        %10196 = vmatprep.subr.bf16.mxu0 0
        %10197 = vmatpush1.bf16.xpose.msra.mxu0 0
        %10198 = vmatprep.subr.bf16.mxu0 0
        %10199 = vmatpush1.bf16.xpose.msra.mxu0 0
        %10200 = vmatprep.subr.bf16.mxu0 0
        %10201 = vmatpush1.bf16.xpose.msra.mxu0 0
        %10202 = vmatprep.subr.bf16.mxu0 0
        %10203 = vmatpush1.bf16.xpose.msra.mxu0 0
        %10204 = vmatprep.subr.bf16.mxu0 0
        %10205 = vmatpush1.bf16.xpose.msra.mxu0 0
        %10206 = vmatprep.subr.bf16.mxu0 0
        %10207 = vmatpush1.bf16.xpose.msra.mxu0 0
        %10208 = vmatprep.subr.bf16.mxu0 0
        %10209 = vmatpush1.bf16.xpose.msra.mxu0 0
        %10210 = vmatprep.subr.bf16.mxu0 0
        %10211 = vmatpush1.bf16.xpose.msra.mxu0 0
        %10212 = vmatprep.subr.bf16.mxu0 0
        %10213 = vmatpush1.bf16.xpose.msra.mxu0 0
        %10214 = vmatprep.subr.bf16.mxu0 0
        %10215 = vmatpush1.bf16.xpose.msra.mxu0 0
        %10216 = vmatprep.subr.bf16.mxu0 0
        %10217 = vmatpush1.bf16.xpose.msra.mxu0 0
        %10218 = vmatprep.mubr.bf16.mxu0 %v6107
        %10219 = vmatmul.mubr.bf16.gmra.mrb[0].mxu0 %v6106
        %v10220 = vpop.f32.mrb[0].mxu0
        %v10221 = vadd.f32 %v10181, %v10220
        %v10222 = vpop.f32.mrb[0].mxu0
        %v10223 = vpop.f32.mrb[0].mxu0
        %v10224 = vpop.f32.mrb[0].mxu0
        %10225 = vdwg.mxu0
        %10226 = vmatprep.subr.bf16.mxu0 0
        %10227 = vmatpush1.bf16.xpose.msra.mxu0 %v6305
        %10228 = vmatprep.subr.bf16.mxu0 0
        %10229 = vmatpush1.bf16.xpose.msra.mxu0 0
        %10230 = vmatprep.subr.bf16.mxu0 0
        %10231 = vmatpush1.bf16.xpose.msra.mxu0 0
        %10232 = vmatprep.subr.bf16.mxu0 0
        %10233 = vmatpush1.bf16.xpose.msra.mxu0 0
        %10234 = vmatprep.subr.bf16.mxu0 0
        %10235 = vmatpush1.bf16.xpose.msra.mxu0 0
        %10236 = vmatprep.subr.bf16.mxu0 0
        %10237 = vmatpush1.bf16.xpose.msra.mxu0 0
        %10238 = vmatprep.subr.bf16.mxu0 0
        %10239 = vmatpush1.bf16.xpose.msra.mxu0 0
        %10240 = vmatprep.subr.bf16.mxu0 0
        %10241 = vmatpush1.bf16.xpose.msra.mxu0 0
        %10242 = vmatprep.subr.bf16.mxu0 0
        %10243 = vmatpush1.bf16.xpose.msra.mxu0 0
        %10244 = vmatprep.subr.bf16.mxu0 0
        %10245 = vmatpush1.bf16.xpose.msra.mxu0 0
        %10246 = vmatprep.subr.bf16.mxu0 0
        %10247 = vmatpush1.bf16.xpose.msra.mxu0 0
        %10248 = vmatprep.subr.bf16.mxu0 0
        %10249 = vmatpush1.bf16.xpose.msra.mxu0 0
        %10250 = vmatprep.subr.bf16.mxu0 0
        %10251 = vmatpush1.bf16.xpose.msra.mxu0 0
        %10252 = vmatprep.subr.bf16.mxu0 0
        %10253 = vmatpush1.bf16.xpose.msra.mxu0 0
        %10254 = vmatprep.subr.bf16.mxu0 0
        %10255 = vmatpush1.bf16.xpose.msra.mxu0 0
        %10256 = vmatprep.subr.bf16.mxu0 0
        %10257 = vmatpush1.bf16.xpose.msra.mxu0 0
        %10258 = vmatprep.mubr.bf16.mxu0 0
        %10259 = vmatmul.mubr.bf16.gmra.mrb[0].mxu0 %v6108
        %v10260 = vpop.f32.mrb[0].mxu0
        %v10261 = vadd.f32 %v10221, %v10260
        %v10262 = vpop.f32.mrb[0].mxu0
        %v10263 = vpop.f32.mrb[0].mxu0
        %v10264 = vpop.f32.mrb[0].mxu0
        %10265 = vdwg.mxu0
        %p10266 = scmp.eq.s32.totalorder %s23, 0
        // Predicated region
        $region57: #{tpu_custom_call.1} parent=35 // pred_check
          %p10267 = pneg %p10266
        $region58: #{tpu_custom_call.1} parent=35 // pred_check_branch
          %10269 = sbr.rel (%p10267) target = $region60
        $region59: #{tpu_custom_call.1} parent=35 // pred_region
          %vm10270 = vcmask 64512
          %10271 = vst.msk [vmem:[#allocation9] sm:$0xff] %vm10270, %v10261
        $region60: #{tpu_custom_call.1} parent=35 // pred_fallthru
          _
        %p10272 = scmp.gt.s32.totalorder %s23, 0
        // Predicated region
        $region61: #{tpu_custom_call.1} parent=35 // pred_check
          %p10273 = pneg %p10272
        $region62: #{tpu_custom_call.1} parent=35 // pred_check_branch
          %10275 = sbr.rel (%p10273) target = $region64
        $region63: #{tpu_custom_call.1} parent=35 // pred_region
          %v10276 = vld [vmem:[#allocation9] sm:$0xff]
          %v10277 = vadd.f32 %v10276, %v10261
          %vm10278 = vcmask 64512
          %10279 = vst.msk [vmem:[#allocation9] sm:$0xff] %vm10278, %v10277
        $region64: #{tpu_custom_call.1} parent=35 // pred_fallthru
          _
        // Predicated region
        $region65: #{tpu_custom_call.1} parent=35 // pred_check
          %p10280 = pneg %p135
        $region66: #{tpu_custom_call.1} parent=35 // pred_check_branch
          %10282 = sbr.rel (%p10280) target = $region68
        $region67: #{tpu_custom_call.1} parent=35 // pred_region
          %s10284 = ssub.s32 128, 128
          %10285 = vsyncadd [#allocation5], %s10284
          %s10287 = sshll.u32 [#allocation9], 4
          %s10288 = int_to_ptr.vmem [resolvable:$true] %s10287
          %10290 = dma.vmem_to_hbm [thread:$0]  %s10288, 128, %s4, [#allocation5]
        $region68: #{tpu_custom_call.1} parent=35 // pred_fallthru
          _
        // Predicated region
        $region69: #{tpu_custom_call.1} parent=35 // pred_check
          %p10291 = pneg %p135
        $region70: #{tpu_custom_call.1} parent=35 // pred_check_branch
          %10293 = sbr.rel (%p10291) target = $region72
        $region71: #{tpu_custom_call.1} parent=35 // pred_region
          %10294 = dma.done [#allocation5], 128
        $region72: #{tpu_custom_call.1} parent=35 // pred_fallthru
          _
      $region36: #{tpu_custom_call.1} parent=5 // pred_fallthru
        _
      %p10295 = scmp.le.s32.totalorder 2, %s18
      // Predicated region
      $region73: #{tpu_custom_call.1} parent=5 // pred_check
        %p10296 = pneg %p10295
      $region74: #{tpu_custom_call.1} parent=5 // pred_check_branch
        %10298 = sbr.rel (%p10296) target = $region76
      $region75: #{tpu_custom_call.1} parent=5 // pred_region
        %s10299 = ssub.s32 %s18, 2
      $region76: #{tpu_custom_call.1} parent=5 // pred_fallthru
        _
    $region6: #{tpu_custom_call.1} parent=1 // loop_footer
      %s22 = sadd.s32 1, %s18
    $region7: #{tpu_custom_call.1} parent=1 // loop_footer_branch
      %17 = sbr.rel target = $region3
    $region8: #{tpu_custom_call.1} parent=1 // loop_exit
      _
    %10300 = vsyncpa [#allocation4], 1
    %s10301 = scalar_lea.sflag [#allocation4], 1
    %10302 = vsyncpa %s10301, 1
    %10303 = vsyncpa [#allocation7], 1
    %s10304 = scalar_lea.sflag [#allocation7], 1
    %10305 = vsyncpa %s10304, 1
    %10306 = vsyncpa [#allocation5], 1
    %s10307 = scalar_lea.sflag [#allocation5], 1
    %10308 = vsyncpa %s10307, 1

</llo_original>
